<compile_context>
chip_gen: v5e
topology: v5e:2x2
jax: 0.10.0
libtpu: 0.0.40
codegen_flags: <defaults>
</compile_context>

<pallas_src>
import functools

import jax
import jax.numpy as jnp
from jax import lax
from jax.experimental import pallas as pl
from jax.experimental.pallas import tpu as pltpu


def _round_up(x, m):
    return -(-x // m) * m


def _pick_t_chunk(T, B, n_in, hidden, budget_bytes=8 << 20):
    """Largest time-chunk whose per-chunk VMEM footprint fits the budget."""
    per_t = 4 * B * (4 * hidden + 2 * (n_in + hidden))  # xg_scr + dbl-buffered x/enc (f32)
    cap = max(1, budget_bytes // max(per_t, 1))
    return int(min(T, cap))


# ----------------------------------------------------------------------------
# Encoder kernel: masked LSTM over time, chunked grid (grid axis = time chunk).
# The input projection (Wp) and the LSTM input matmul (Wih) are pre-folded
# into `weff`/`beff` and applied to the whole chunk in one matmul.
# ----------------------------------------------------------------------------
def _encoder_kernel(xflat_ref, slen_ref, weff_ref, beff_ref, whh_ref,
                    enc_ref, hT_ref, cT_ref,
                    xg_scr, h_scr, c_scr, *, hidden, t_chunk, batch):
    chunk = pl.program_id(0)

    @pl.when(chunk == 0)
    def _():
        h_scr[...] = jnp.zeros_like(h_scr)
        c_scr[...] = jnp.zeros_like(c_scr)

    # Hoisted input-side matmul for the whole chunk (one MXU call per chunk):
    #   (x @ Wp + bp) @ Wih + (b_ih + b_hh)  ==  x @ (Wp @ Wih) + beff
    xg_scr[...] = (jnp.dot(xflat_ref[...], weff_ref[...],
                           preferred_element_type=jnp.float32)
                   + beff_ref[...])

    H = hidden
    B = batch
    slen = slen_ref[...]                  # (B, H) int32, lane-dense seq_lens broadcast
    t_base = chunk * t_chunk

    def step(t, carry):
        h_prev, c_prev = carry
        xg = xg_scr[pl.ds(pl.multiple_of(t * B, B), B), :]           # (B, 4H)
        gates = xg + jnp.dot(h_prev, whh_ref[...],
                             preferred_element_type=jnp.float32)
        i = jax.nn.sigmoid(gates[:, 0 * H:1 * H])
        f = jax.nn.sigmoid(gates[:, 1 * H:2 * H])
        g = jnp.tanh(gates[:, 2 * H:3 * H])
        o = jax.nn.sigmoid(gates[:, 3 * H:4 * H])
        c_new = f * c_prev + i * g
        h_new = o * jnp.tanh(c_new)

        valid = (t_base + t) < slen                                  # (B, H) bool
        enc_ref[t] = jnp.where(valid, h_new, 0.0)    # pad_packed_sequence zeros
        # packed-sequence semantics: state only advances on valid steps
        return (jnp.where(valid, h_new, h_prev),
                jnp.where(valid, c_new, c_prev))

    h_fin, c_fin = lax.fori_loop(0, t_chunk, step,
                                 (h_scr[...], c_scr[...]), unroll=True)
    h_scr[...] = h_fin
    c_scr[...] = c_fin

    # last-valid hidden / cell state, stored only once (final chunk)
    @pl.when(chunk == pl.num_programs(0) - 1)
    def _():
        hT_ref[...] = h_fin
        cT_ref[...] = c_fin


# ----------------------------------------------------------------------------
# Decoder kernel (single invocation): L-step LSTMCell recurrence with h/c as
# vreg carries, then ONE batched, lane-dense pointer-attention pass over all
# L steps against pre-projected keys (padded to Tp=128 / Mp=128 lanes).
# ----------------------------------------------------------------------------
def _decoder_kernel(kp_ref, maskneg_ref, hT_ref, cT_ref,
                    w_ref, b_ref, wq_ref, bq_ref,
                    ptr_ref, h_all_scr, *, hidden, model_dim, n_steps, batch):
    H = hidden
    B = batch

    # LSTMCell whose input is the previous hidden state -> W_ih and W_hh are
    # pre-folded into a single (H, 4H) weight (exact rewrite).
    def step(t, carry):
        h_prev, c_prev = carry
        gates = (jnp.dot(h_prev, w_ref[...], preferred_element_type=jnp.float32)
                 + b_ref[...])
        i = jax.nn.sigmoid(gates[:, 0 * H:1 * H])
        f = jax.nn.sigmoid(gates[:, 1 * H:2 * H])
        g = jnp.tanh(gates[:, 2 * H:3 * H])
        o = jax.nn.sigmoid(gates[:, 3 * H:4 * H])
        c_new = f * c_prev + i * g
        h_new = o * jnp.tanh(c_new)
        h_all_scr[pl.ds(pl.multiple_of(t * B, B), B), :] = h_new     # stack step t
        return (h_new, c_new)

    lax.fori_loop(0, n_steps, step, (hT_ref[...], cT_ref[...]), unroll=True)

    # ---- batched pointer attention over all L steps at once -----------------
    # One lane-dense query projection for every decode step ...
    qp = (jnp.dot(h_all_scr[...], wq_ref[...],
                  preferred_element_type=jnp.float32) + bq_ref[...])  # (L*B, Mp)
    q_blm = jnp.transpose(qp.reshape(n_steps, B, -1), (1, 0, 2))      # (B, L, Mp)
    # ... and one batched contraction against the decode-step-invariant keys.
    s = jnp.einsum('blm,btm->blt', q_blm, kp_ref[...],
                   preferred_element_type=jnp.float32)                # (B, L, Tp)
    scores = s * (model_dim ** -0.5) + maskneg_ref[...][:, None, :]

    m = jnp.max(scores, axis=-1, keepdims=True)
    p = jnp.exp(scores - m)
    # exact division so rows are normalized probability distributions
    ptr_ref[...] = p / jnp.sum(p, axis=-1, keepdims=True)


# ----------------------------------------------------------------------------
# pallas_call wrappers
# ----------------------------------------------------------------------------
_VMEM_LIMIT = 32 * 1024 * 1024   # fits v5e/v6e (128 MiB) and v7x (64 MiB physical)


def run_encoder(x_flat, slen_bh, weff, beff, whh, *,
                seq_pad, batch, hidden, t_chunk):
    n_in = x_flat.shape[-1]
    num_chunks = seq_pad // t_chunk
    kern = functools.partial(_encoder_kernel, hidden=hidden,
                             t_chunk=t_chunk, batch=batch)
    return pl.pallas_call(
        kern,
        out_shape=(jax.ShapeDtypeStruct((seq_pad, batch, hidden), jnp.float32),
                   jax.ShapeDtypeStruct((batch, hidden), jnp.float32),
                   jax.ShapeDtypeStruct((batch, hidden), jnp.float32)),
        grid_spec=pltpu.PrefetchScalarGridSpec(
            num_scalar_prefetch=0,
            grid=(num_chunks,),
            in_specs=[
                pl.BlockSpec((t_chunk * batch, n_in), lambda c: (c, 0)),
                pl.BlockSpec((batch, hidden), lambda c: (0, 0)),
                pl.BlockSpec(weff.shape, lambda c: (0, 0)),
                pl.BlockSpec(beff.shape, lambda c: (0, 0)),
                pl.BlockSpec(whh.shape, lambda c: (0, 0)),
            ],
            out_specs=[
                pl.BlockSpec((t_chunk, batch, hidden), lambda c: (c, 0, 0)),
                pl.BlockSpec((batch, hidden), lambda c: (0, 0)),
                pl.BlockSpec((batch, hidden), lambda c: (0, 0)),
            ],
            scratch_shapes=[pltpu.VMEM((t_chunk * batch, 4 * hidden), jnp.float32),
                            pltpu.VMEM((batch, hidden), jnp.float32),
                            pltpu.VMEM((batch, hidden), jnp.float32)],
        ),
        compiler_params=pltpu.CompilerParams(
            dimension_semantics=("arbitrary",),
            vmem_limit_bytes=_VMEM_LIMIT),
    )(x_flat, slen_bh, weff, beff, whh)


def run_decoder(kp, maskneg, hT, cT, dec_w, dec_b, wq, bq, *,
                max_output_len, hidden, model_dim):
    B, Tp, Mp = kp.shape
    kern = functools.partial(_decoder_kernel, hidden=hidden, model_dim=model_dim,
                             n_steps=max_output_len, batch=B)
    return pl.pallas_call(
        kern,
        out_shape=jax.ShapeDtypeStruct((B, max_output_len, Tp), jnp.float32),
        grid_spec=pltpu.PrefetchScalarGridSpec(
            num_scalar_prefetch=0,
            grid=(1,),
            in_specs=[
                pl.BlockSpec((B, Tp, Mp), lambda s: (0, 0, 0)),
                pl.BlockSpec((B, Tp), lambda s: (0, 0)),
                pl.BlockSpec((B, hidden), lambda s: (0, 0)),
                pl.BlockSpec((B, hidden), lambda s: (0, 0)),
                pl.BlockSpec(dec_w.shape, lambda s: (0, 0)),
                pl.BlockSpec(dec_b.shape, lambda s: (0, 0)),
                pl.BlockSpec(wq.shape, lambda s: (0, 0)),
                pl.BlockSpec(bq.shape, lambda s: (0, 0)),
            ],
            out_specs=pl.BlockSpec((B, max_output_len, Tp), lambda s: (0, 0, 0)),
            scratch_shapes=[pltpu.VMEM((max_output_len * B, hidden), jnp.float32)],
        ),
        compiler_params=pltpu.CompilerParams(
            dimension_semantics=("arbitrary",),
            vmem_limit_bytes=_VMEM_LIMIT),
    )(kp, maskneg, hT, cT, dec_w, dec_b, wq, bq)


def pointer_net_forward(sequence, seq_lens, params, *,
                        max_output_len, hidden, model_dim, t_chunk=None):
    """sequence: (B, T, n_in) float32 (batch_first, like the PyTorch module)."""
    B, T, n_in = sequence.shape
    seq_lens = jnp.asarray(seq_lens, jnp.int32)

    # ---- glue: time-major layout, chunk sizing / padding ---------------------
    if t_chunk is None:
        t_chunk = _pick_t_chunk(T, B, n_in, hidden)
    num_chunks = -(-T // t_chunk)
    T_pad = num_chunks * t_chunk
    x_tm = jnp.transpose(sequence.astype(jnp.float32), (1, 0, 2))    # (T, B, n_in)
    if T_pad != T:
        x_tm = jnp.pad(x_tm, ((0, T_pad - T), (0, 0), (0, 0)))
    x_flat = x_tm.reshape(T_pad * B, n_in)
    # lane-dense broadcast of seq_lens, used for the in-kernel validity compare
    slen_bh = jnp.broadcast_to(seq_lens[:, None], (B, hidden)).astype(jnp.int32)

    # ---- hoisted / pre-folded weights (exact algebraic rewrites) -------------
    weff = params["enc_wp"] @ params["enc_wih"]                      # (n_in, 4H)
    beff = params["enc_bp"] @ params["enc_wih"] + params["enc_b"]    # (1, 4H)
    dec_w = params["dec_wih"] + params["dec_whh"]                    # input == h_prev

    # lane padding of the attention dims (exact: padded columns are zeros)
    Mp = _round_up(model_dim, 128)
    Tp = _round_up(T, 128)
    wq_p = jnp.pad(params["att_wq"], ((0, 0), (0, Mp - model_dim)))
    bq_p = jnp.pad(params["att_bq"], ((0, 0), (0, Mp - model_dim)))
    wk_p = jnp.pad(params["att_wk"], ((0, 0), (0, Mp - model_dim)))
    bk_p = jnp.pad(params["att_bk"], ((0, 0), (0, Mp - model_dim)))

    enc_tm, hT, cT = run_encoder(x_flat, slen_bh, weff, beff, params["enc_whh"],
                                 seq_pad=T_pad, batch=B, hidden=hidden,
                                 t_chunk=t_chunk)
    enc_tm = enc_tm[:T]                                              # drop chunk pad

    # Decode-step-invariant key projection, computed exactly once (prologue),
    # padded to a full 128-lane key axis.
    enc_tp = jnp.pad(enc_tm, ((0, Tp - T), (0, 0), (0, 0)))          # (Tp, B, H)
    kp = (jnp.einsum("tbh,hm->btm", enc_tp, wk_p) + bk_p)            # (B, Tp, Mp)
    maskneg = jnp.where(jnp.arange(Tp, dtype=jnp.int32)[None, :] >= seq_lens[:, None],
                        jnp.float32(-1e9), jnp.float32(0.0))         # (B, Tp)

    ptr = run_decoder(kp, maskneg, hT, cT, dec_w, params["dec_b"],
                      wq_p, bq_p, max_output_len=max_output_len,
                      hidden=hidden, model_dim=model_dim)            # (B, L, Tp)
    return ptr[:, :, :T]                                             # (B, L, T)


# ----------------------------------------------------------------------------
# Deterministic parameter init (shapes follow the PyTorch module __init__;
# weights stored transposed, (in, out), so the kernels do x @ W directly).
# ----------------------------------------------------------------------------
def init_params(key, *, n_in, embed, hidden, model_dim):
    ks = jax.random.split(key, 12)
    k = 1.0 / (hidden ** 0.5)
    u = lambda kk, shape: jax.random.uniform(kk, shape, jnp.float32, -k, k)
    return {
        # Encoder: Linear(n_in, embed) + LSTM(embed, hidden)
        "enc_wp":  u(ks[0], (n_in, embed)),
        "enc_bp":  u(ks[1], (1, embed)),
        "enc_wih": u(ks[2], (embed, 4 * hidden)),
        "enc_whh": u(ks[3], (hidden, 4 * hidden)),
        "enc_b":   u(ks[4], (1, 4 * hidden)),          # b_ih + b_hh folded
        # Decoder: LSTMCell(hidden, hidden)
        "dec_wih": u(ks[5], (hidden, 4 * hidden)),
        "dec_whh": u(ks[6], (hidden, 4 * hidden)),
        "dec_b":   u(ks[7], (1, 4 * hidden)),
        # ScaledDotAttention: Linear(hidden, model_dim) x2
        "att_wq":  u(ks[8], (hidden, model_dim)),
        "att_bq":  u(ks[9], (1, model_dim)),
        "att_wk":  u(ks[10], (hidden, model_dim)),
        "att_bk":  u(ks[11], (1, model_dim)),
    }


# ----------------------------------------------------------------------------
# Pure-JAX reference (correctness check only; mirrors the PyTorch forward)
# ----------------------------------------------------------------------------
def reference_forward(sequence, seq_lens, max_output_len, params):
    B, T, _ = sequence.shape
    H = params["enc_whh"].shape[0]
    M = params["att_wq"].shape[1]
    seq_lens = jnp.asarray(seq_lens, jnp.int32)

    e = sequence @ params["enc_wp"] + params["enc_bp"]               # (B, T, E)
    h = jnp.zeros((B, H), jnp.float32)
    c = jnp.zeros((B, H), jnp.float32)
    enc = []
    for t in range(T):
        gates = e[:, t, :] @ params["enc_wih"] + h @ params["enc_whh"] + params["enc_b"]
        i = jax.nn.sigmoid(gates[:, :H]); f = jax.nn.sigmoid(gates[:, H:2 * H])
        g = jnp.tanh(gates[:, 2 * H:3 * H]); o = jax.nn.sigmoid(gates[:, 3 * H:4 * H])
        c_new = f * c + i * g
        h_new = o * jnp.tanh(c_new)
        valid = (t < seq_lens)[:, None]
        h = jnp.where(valid, h_new, h)
        c = jnp.where(valid, c_new, c)
        enc.append(jnp.where(valid, h_new, 0.0))
    enc = jnp.stack(enc, axis=1)                                     # (B, T, H)

    kp = enc @ params["att_wk"] + params["att_bk"]                   # (B, T, M)
    maskneg = jnp.where(jnp.arange(T)[None, :] >= seq_lens[:, None],
                        jnp.float32(-1e9), jnp.float32(0.0))
    ptrs = []
    for _ in range(max_output_len):
        gates = h @ params["dec_wih"] + h @ params["dec_whh"] + params["dec_b"]
        i = jax.nn.sigmoid(gates[:, :H]); f = jax.nn.sigmoid(gates[:, H:2 * H])
        g = jnp.tanh(gates[:, 2 * H:3 * H]); o = jax.nn.sigmoid(gates[:, 3 * H:4 * H])
        c = f * c + i * g
        h = o * jnp.tanh(c)
        qp = h @ params["att_wq"] + params["att_bq"]                 # (B, M)
        scores = jnp.einsum("bm,btm->bt", qp, kp) / jnp.sqrt(jnp.float32(M)) + maskneg
        ptrs.append(jax.nn.softmax(scores, axis=-1))
    return jnp.stack(ptrs, axis=1)                                   # (B, L, T)


if __name__ == "__main__":
    B, T, N_IN = 8, 16, 2
    EMBED = 128
    HIDDEN = 128        # lane-dense: gate slices and state tiles are 128-wide
    MODEL_DIM = 64      # fixed to 64 by the PyTorch Decoder
    MAX_OUT = 4
    SEQ_LENS = [16, 15, 14, 12, 10, 8, 5, 3]   # descending, seq_lens[0] == T

    key = jax.random.PRNGKey(0)
    kx, kparam = jax.random.split(key)
    sequence = jax.random.normal(kx, (B, T, N_IN), jnp.float32)
    params = init_params(kparam, n_in=N_IN, embed=EMBED, hidden=HIDDEN,
                         model_dim=MODEL_DIM)
    seq_lens = jnp.array(SEQ_LENS, jnp.int32)

    fwd = jax.jit(functools.partial(pointer_net_forward,
                                    max_output_len=MAX_OUT, hidden=HIDDEN,
                                    model_dim=MODEL_DIM))
    pointers = jax.block_until_ready(fwd(sequence, seq_lens, params))

    assert pointers.shape == (B, MAX_OUT, T), pointers.shape
    assert bool(jnp.all(jnp.isfinite(pointers)))
    # attention rows are probability distributions over the (unmasked) sequence
    row_sums = jnp.sum(pointers, axis=-1)
    assert bool(jnp.all(jnp.abs(row_sums - 1.0) < 1e-3))
    # masked key positions (beyond each seq_len) get ~zero probability
    for b, length in enumerate(SEQ_LENS):
        if length < T:
            assert bool(jnp.all(pointers[b, :, length:] < 1e-6))
    # match the pure-JAX reference forward
    ref = reference_forward(sequence, seq_lens, MAX_OUT, params)
    max_err = float(jnp.max(jnp.abs(pointers - ref)))
    assert max_err < 2e-2, max_err

    print("KERNEL_OK")
</pallas_src>

<mosaic_0001>
module attributes {stable_mosaic.version = 11 : i64} {
  func.func @_decoder_kernel(%arg0: i32, %arg1: memref<8x128x128xf32, #tpu.memory_space<vmem>>, %arg2: memref<8x128xf32, #tpu.memory_space<vmem>>, %arg3: memref<8x128xf32, #tpu.memory_space<vmem>>, %arg4: memref<8x128xf32, #tpu.memory_space<vmem>>, %arg5: memref<128x512xf32, #tpu.memory_space<vmem>>, %arg6: memref<1x512xf32, #tpu.memory_space<vmem>>, %arg7: memref<128x128xf32, #tpu.memory_space<vmem>>, %arg8: memref<1x128xf32, #tpu.memory_space<vmem>>, %arg9: memref<8x4x128xf32, #tpu.memory_space<vmem>>, %arg10: memref<32x128xf32, #tpu.memory_space<vmem>>) attributes {dimension_semantics = [#tpu.dimension_semantics<arbitrary>], iteration_bounds = array<i64: 1>, scalar_prefetch = 0 : i64, scratch_operands = 1 : i64, tpu.core_type = #tpu.core_type<tc>, window_params = [{pipeline_mode = #tpu.pipeline_mode<synchronous>, transform_indices = @transform_0, window_bounds = array<i64: 8, 128, 128>}, {pipeline_mode = #tpu.pipeline_mode<synchronous>, transform_indices = @transform_1, window_bounds = array<i64: 8, 128>}, {pipeline_mode = #tpu.pipeline_mode<synchronous>, transform_indices = @transform_2, window_bounds = array<i64: 8, 128>}, {pipeline_mode = #tpu.pipeline_mode<synchronous>, transform_indices = @transform_3, window_bounds = array<i64: 8, 128>}, {pipeline_mode = #tpu.pipeline_mode<synchronous>, transform_indices = @transform_4, window_bounds = array<i64: 128, 512>}, {pipeline_mode = #tpu.pipeline_mode<synchronous>, transform_indices = @transform_5, window_bounds = array<i64: 1, 512>}, {pipeline_mode = #tpu.pipeline_mode<synchronous>, transform_indices = @transform_6, window_bounds = array<i64: 128, 128>}, {pipeline_mode = #tpu.pipeline_mode<synchronous>, transform_indices = @transform_7, window_bounds = array<i64: 1, 128>}, {pipeline_mode = #tpu.pipeline_mode<synchronous>, transform_indices = @transform_8, window_bounds = array<i64: 8, 4, 128>}]} {
    %c0 = arith.constant 0 : index
    %c0_0 = arith.constant 0 : index
    %0 = vector.load %arg3[%c0, %c0_0] : memref<8x128xf32, #tpu.memory_space<vmem>>, vector<8x128xf32>
    %c0_1 = arith.constant 0 : index
    %c0_2 = arith.constant 0 : index
    %1 = vector.load %arg4[%c0_1, %c0_2] : memref<8x128xf32, #tpu.memory_space<vmem>>, vector<8x128xf32>
    %c0_i32 = arith.constant 0 : i32
    %c0_3 = arith.constant 0 : index
    %c0_4 = arith.constant 0 : index
    %2 = vector.load %arg5[%c0_3, %c0_4] : memref<128x512xf32, #tpu.memory_space<vmem>>, vector<128x512xf32>
    %cst = arith.constant dense<0.000000e+00> : vector<8x512xf32>
    %3 = tpu.matmul %0, %2, %cst {dimension_numbers = #tpu.dot_dimension_numbers<[1], [0], [0], [1], [0, 0, 1, 1], [], []>} : vector<8x128xf32>, vector<128x512xf32>, vector<8x512xf32> -> vector<8x512xf32>
    %c0_5 = arith.constant 0 : index
    %c0_6 = arith.constant 0 : index
    %4 = vector.load %arg6[%c0_5, %c0_6] : memref<1x512xf32, #tpu.memory_space<vmem>>, vector<1x512xf32>
    %5 = vector.broadcast %4 : vector<1x512xf32> to vector<8x512xf32>
    %6 = arith.addf %3, %5 : vector<8x512xf32>
    %7 = vector.extract_strided_slice %6 {offsets = [0, 0], sizes = [8, 128], strides = [1, 1]} : vector<8x512xf32> to vector<8x128xf32>
    %8 = arith.negf %7 : vector<8x128xf32>
    %9 = math.exp %8 : vector<8x128xf32>
    %cst_7 = arith.constant 1.000000e+00 : f32
    %10 = vector.broadcast %cst_7 : f32 to vector<8x128xf32>
    %11 = arith.addf %10, %9 : vector<8x128xf32>
    %12 = arith.divf %10, %11 : vector<8x128xf32>
    %13 = vector.extract_strided_slice %6 {offsets = [0, 128], sizes = [8, 128], strides = [1, 1]} : vector<8x512xf32> to vector<8x128xf32>
    %14 = arith.negf %13 : vector<8x128xf32>
    %15 = math.exp %14 : vector<8x128xf32>
    %cst_8 = arith.constant 1.000000e+00 : f32
    %16 = vector.broadcast %cst_8 : f32 to vector<8x128xf32>
    %17 = arith.addf %16, %15 : vector<8x128xf32>
    %18 = arith.divf %16, %17 : vector<8x128xf32>
    %19 = vector.extract_strided_slice %6 {offsets = [0, 256], sizes = [8, 128], strides = [1, 1]} : vector<8x512xf32> to vector<8x128xf32>
    %20 = math.tanh %19 : vector<8x128xf32>
    %21 = vector.extract_strided_slice %6 {offsets = [0, 384], sizes = [8, 128], strides = [1, 1]} : vector<8x512xf32> to vector<8x128xf32>
    %22 = arith.negf %21 : vector<8x128xf32>
    %23 = math.exp %22 : vector<8x128xf32>
    %cst_9 = arith.constant 1.000000e+00 : f32
    %24 = vector.broadcast %cst_9 : f32 to vector<8x128xf32>
    %25 = arith.addf %24, %23 : vector<8x128xf32>
    %26 = arith.divf %24, %25 : vector<8x128xf32>
    %27 = arith.mulf %18, %1 : vector<8x128xf32>
    %28 = arith.mulf %12, %20 : vector<8x128xf32>
    %29 = arith.addf %27, %28 : vector<8x128xf32>
    %30 = math.tanh %29 : vector<8x128xf32>
    %31 = arith.mulf %26, %30 : vector<8x128xf32>
    %c8_i32 = arith.constant 8 : i32
    %32 = arith.muli %c0_i32, %c8_i32 : i32
    %33 = tpu.assume_multiple %32, 8 : i32
    %34 = arith.index_cast %33 : i32 to index
    %c0_10 = arith.constant 0 : index
    %35 = vector.load %arg10[%34, %c0_10] : memref<32x128xf32, #tpu.memory_space<vmem>>, vector<8x128xf32>
    tpu.vector_store %arg10[%34, %c0_10], %31 {strides = array<i32>} : memref<32x128xf32, #tpu.memory_space<vmem>>, vector<8x128xf32>,
    %c1_i32 = arith.constant 1 : i32
    %c0_11 = arith.constant 0 : index
    %c0_12 = arith.constant 0 : index
    %36 = vector.load %arg5[%c0_11, %c0_12] : memref<128x512xf32, #tpu.memory_space<vmem>>, vector<128x512xf32>
    %cst_13 = arith.constant dense<0.000000e+00> : vector<8x512xf32>
    %37 = tpu.matmul %31, %36, %cst_13 {dimension_numbers = #tpu.dot_dimension_numbers<[1], [0], [0], [1], [0, 0, 1, 1], [], []>} : vector<8x128xf32>, vector<128x512xf32>, vector<8x512xf32> -> vector<8x512xf32>
    %c0_14 = arith.constant 0 : index
    %c0_15 = arith.constant 0 : index
    %38 = vector.load %arg6[%c0_14, %c0_15] : memref<1x512xf32, #tpu.memory_space<vmem>>, vector<1x512xf32>
    %39 = vector.broadcast %38 : vector<1x512xf32> to vector<8x512xf32>
    %40 = arith.addf %37, %39 : vector<8x512xf32>
    %41 = vector.extract_strided_slice %40 {offsets = [0, 0], sizes = [8, 128], strides = [1, 1]} : vector<8x512xf32> to vector<8x128xf32>
    %42 = arith.negf %41 : vector<8x128xf32>
    %43 = math.exp %42 : vector<8x128xf32>
    %cst_16 = arith.constant 1.000000e+00 : f32
    %44 = vector.broadcast %cst_16 : f32 to vector<8x128xf32>
    %45 = arith.addf %44, %43 : vector<8x128xf32>
    %46 = arith.divf %44, %45 : vector<8x128xf32>
    %47 = vector.extract_strided_slice %40 {offsets = [0, 128], sizes = [8, 128], strides = [1, 1]} : vector<8x512xf32> to vector<8x128xf32>
    %48 = arith.negf %47 : vector<8x128xf32>
    %49 = math.exp %48 : vector<8x128xf32>
    %cst_17 = arith.constant 1.000000e+00 : f32
    %50 = vector.broadcast %cst_17 : f32 to vector<8x128xf32>
    %51 = arith.addf %50, %49 : vector<8x128xf32>
    %52 = arith.divf %50, %51 : vector<8x128xf32>
    %53 = vector.extract_strided_slice %40 {offsets = [0, 256], sizes = [8, 128], strides = [1, 1]} : vector<8x512xf32> to vector<8x128xf32>
    %54 = math.tanh %53 : vector<8x128xf32>
    %55 = vector.extract_strided_slice %40 {offsets = [0, 384], sizes = [8, 128], strides = [1, 1]} : vector<8x512xf32> to vector<8x128xf32>
    %56 = arith.negf %55 : vector<8x128xf32>
    %57 = math.exp %56 : vector<8x128xf32>
    %cst_18 = arith.constant 1.000000e+00 : f32
    %58 = vector.broadcast %cst_18 : f32 to vector<8x128xf32>
    %59 = arith.addf %58, %57 : vector<8x128xf32>
    %60 = arith.divf %58, %59 : vector<8x128xf32>
    %61 = arith.mulf %52, %29 : vector<8x128xf32>
    %62 = arith.mulf %46, %54 : vector<8x128xf32>
    %63 = arith.addf %61, %62 : vector<8x128xf32>
    %64 = math.tanh %63 : vector<8x128xf32>
    %65 = arith.mulf %60, %64 : vector<8x128xf32>
    %c8_i32_19 = arith.constant 8 : i32
    %66 = arith.muli %c1_i32, %c8_i32_19 : i32
    %67 = tpu.assume_multiple %66, 8 : i32
    %68 = arith.index_cast %67 : i32 to index
    %c0_20 = arith.constant 0 : index
    %69 = vector.load %arg10[%68, %c0_20] : memref<32x128xf32, #tpu.memory_space<vmem>>, vector<8x128xf32>
    tpu.vector_store %arg10[%68, %c0_20], %65 {strides = array<i32>} : memref<32x128xf32, #tpu.memory_space<vmem>>, vector<8x128xf32>,
    %c2_i32 = arith.constant 2 : i32
    %c0_21 = arith.constant 0 : index
    %c0_22 = arith.constant 0 : index
    %70 = vector.load %arg5[%c0_21, %c0_22] : memref<128x512xf32, #tpu.memory_space<vmem>>, vector<128x512xf32>
    %cst_23 = arith.constant dense<0.000000e+00> : vector<8x512xf32>
    %71 = tpu.matmul %65, %70, %cst_23 {dimension_numbers = #tpu.dot_dimension_numbers<[1], [0], [0], [1], [0, 0, 1, 1], [], []>} : vector<8x128xf32>, vector<128x512xf32>, vector<8x512xf32> -> vector<8x512xf32>
    %c0_24 = arith.constant 0 : index
    %c0_25 = arith.constant 0 : index
    %72 = vector.load %arg6[%c0_24, %c0_25] : memref<1x512xf32, #tpu.memory_space<vmem>>, vector<1x512xf32>
    %73 = vector.broadcast %72 : vector<1x512xf32> to vector<8x512xf32>
    %74 = arith.addf %71, %73 : vector<8x512xf32>
    %75 = vector.extract_strided_slice %74 {offsets = [0, 0], sizes = [8, 128], strides = [1, 1]} : vector<8x512xf32> to vector<8x128xf32>
    %76 = arith.negf %75 : vector<8x128xf32>
    %77 = math.exp %76 : vector<8x128xf32>
    %cst_26 = arith.constant 1.000000e+00 : f32
    %78 = vector.broadcast %cst_26 : f32 to vector<8x128xf32>
    %79 = arith.addf %78, %77 : vector<8x128xf32>
    %80 = arith.divf %78, %79 : vector<8x128xf32>
    %81 = vector.extract_strided_slice %74 {offsets = [0, 128], sizes = [8, 128], strides = [1, 1]} : vector<8x512xf32> to vector<8x128xf32>
    %82 = arith.negf %81 : vector<8x128xf32>
    %83 = math.exp %82 : vector<8x128xf32>
    %cst_27 = arith.constant 1.000000e+00 : f32
    %84 = vector.broadcast %cst_27 : f32 to vector<8x128xf32>
    %85 = arith.addf %84, %83 : vector<8x128xf32>
    %86 = arith.divf %84, %85 : vector<8x128xf32>
    %87 = vector.extract_strided_slice %74 {offsets = [0, 256], sizes = [8, 128], strides = [1, 1]} : vector<8x512xf32> to vector<8x128xf32>
    %88 = math.tanh %87 : vector<8x128xf32>
    %89 = vector.extract_strided_slice %74 {offsets = [0, 384], sizes = [8, 128], strides = [1, 1]} : vector<8x512xf32> to vector<8x128xf32>
    %90 = arith.negf %89 : vector<8x128xf32>
    %91 = math.exp %90 : vector<8x128xf32>
    %cst_28 = arith.constant 1.000000e+00 : f32
    %92 = vector.broadcast %cst_28 : f32 to vector<8x128xf32>
    %93 = arith.addf %92, %91 : vector<8x128xf32>
    %94 = arith.divf %92, %93 : vector<8x128xf32>
    %95 = arith.mulf %86, %63 : vector<8x128xf32>
    %96 = arith.mulf %80, %88 : vector<8x128xf32>
    %97 = arith.addf %95, %96 : vector<8x128xf32>
    %98 = math.tanh %97 : vector<8x128xf32>
    %99 = arith.mulf %94, %98 : vector<8x128xf32>
    %c8_i32_29 = arith.constant 8 : i32
    %100 = arith.muli %c2_i32, %c8_i32_29 : i32
    %101 = tpu.assume_multiple %100, 8 : i32
    %102 = arith.index_cast %101 : i32 to index
    %c0_30 = arith.constant 0 : index
    %103 = vector.load %arg10[%102, %c0_30] : memref<32x128xf32, #tpu.memory_space<vmem>>, vector<8x128xf32>
    tpu.vector_store %arg10[%102, %c0_30], %99 {strides = array<i32>} : memref<32x128xf32, #tpu.memory_space<vmem>>, vector<8x128xf32>,
    %c3_i32 = arith.constant 3 : i32
    %c0_31 = arith.constant 0 : index
    %c0_32 = arith.constant 0 : index
    %104 = vector.load %arg5[%c0_31, %c0_32] : memref<128x512xf32, #tpu.memory_space<vmem>>, vector<128x512xf32>
    %cst_33 = arith.constant dense<0.000000e+00> : vector<8x512xf32>
    %105 = tpu.matmul %99, %104, %cst_33 {dimension_numbers = #tpu.dot_dimension_numbers<[1], [0], [0], [1], [0, 0, 1, 1], [], []>} : vector<8x128xf32>, vector<128x512xf32>, vector<8x512xf32> -> vector<8x512xf32>
    %c0_34 = arith.constant 0 : index
    %c0_35 = arith.constant 0 : index
    %106 = vector.load %arg6[%c0_34, %c0_35] : memref<1x512xf32, #tpu.memory_space<vmem>>, vector<1x512xf32>
    %107 = vector.broadcast %106 : vector<1x512xf32> to vector<8x512xf32>
    %108 = arith.addf %105, %107 : vector<8x512xf32>
    %109 = vector.extract_strided_slice %108 {offsets = [0, 0], sizes = [8, 128], strides = [1, 1]} : vector<8x512xf32> to vector<8x128xf32>
    %110 = arith.negf %109 : vector<8x128xf32>
    %111 = math.exp %110 : vector<8x128xf32>
    %cst_36 = arith.constant 1.000000e+00 : f32
    %112 = vector.broadcast %cst_36 : f32 to vector<8x128xf32>
    %113 = arith.addf %112, %111 : vector<8x128xf32>
    %114 = arith.divf %112, %113 : vector<8x128xf32>
    %115 = vector.extract_strided_slice %108 {offsets = [0, 128], sizes = [8, 128], strides = [1, 1]} : vector<8x512xf32> to vector<8x128xf32>
    %116 = arith.negf %115 : vector<8x128xf32>
    %117 = math.exp %116 : vector<8x128xf32>
    %cst_37 = arith.constant 1.000000e+00 : f32
    %118 = vector.broadcast %cst_37 : f32 to vector<8x128xf32>
    %119 = arith.addf %118, %117 : vector<8x128xf32>
    %120 = arith.divf %118, %119 : vector<8x128xf32>
    %121 = vector.extract_strided_slice %108 {offsets = [0, 256], sizes = [8, 128], strides = [1, 1]} : vector<8x512xf32> to vector<8x128xf32>
    %122 = math.tanh %121 : vector<8x128xf32>
    %123 = vector.extract_strided_slice %108 {offsets = [0, 384], sizes = [8, 128], strides = [1, 1]} : vector<8x512xf32> to vector<8x128xf32>
    %124 = arith.negf %123 : vector<8x128xf32>
    %125 = math.exp %124 : vector<8x128xf32>
    %cst_38 = arith.constant 1.000000e+00 : f32
    %126 = vector.broadcast %cst_38 : f32 to vector<8x128xf32>
    %127 = arith.addf %126, %125 : vector<8x128xf32>
    %128 = arith.divf %126, %127 : vector<8x128xf32>
    %129 = arith.mulf %120, %97 : vector<8x128xf32>
    %130 = arith.mulf %114, %122 : vector<8x128xf32>
    %131 = arith.addf %129, %130 : vector<8x128xf32>
    %132 = math.tanh %131 : vector<8x128xf32>
    %133 = arith.mulf %128, %132 : vector<8x128xf32>
    %c8_i32_39 = arith.constant 8 : i32
    %134 = arith.muli %c3_i32, %c8_i32_39 : i32
    %135 = tpu.assume_multiple %134, 8 : i32
    %136 = arith.index_cast %135 : i32 to index
    %c0_40 = arith.constant 0 : index
    %137 = vector.load %arg10[%136, %c0_40] : memref<32x128xf32, #tpu.memory_space<vmem>>, vector<8x128xf32>
    tpu.vector_store %arg10[%136, %c0_40], %133 {strides = array<i32>} : memref<32x128xf32, #tpu.memory_space<vmem>>, vector<8x128xf32>,
    %c4_i32 = arith.constant 4 : i32
    %c0_41 = arith.constant 0 : index
    %c0_42 = arith.constant 0 : index
    %138 = vector.load %arg10[%c0_41, %c0_42] : memref<32x128xf32, #tpu.memory_space<vmem>>, vector<32x128xf32>
    %c0_43 = arith.constant 0 : index
    %c0_44 = arith.constant 0 : index
    %139 = vector.load %arg7[%c0_43, %c0_44] : memref<128x128xf32, #tpu.memory_space<vmem>>, vector<128x128xf32>
    %cst_45 = arith.constant dense<0.000000e+00> : vector<32x128xf32>
    %140 = tpu.matmul %138, %139, %cst_45 {dimension_numbers = #tpu.dot_dimension_numbers<[1], [0], [0], [1], [0, 0, 1, 1], [], []>} : vector<32x128xf32>, vector<128x128xf32>, vector<32x128xf32> -> vector<32x128xf32>
    %c0_46 = arith.constant 0 : index
    %c0_47 = arith.constant 0 : index
    %141 = vector.load %arg8[%c0_46, %c0_47] : memref<1x128xf32, #tpu.memory_space<vmem>>, vector<1x128xf32>
    %142 = vector.broadcast %141 : vector<1x128xf32> to vector<32x128xf32>
    %143 = arith.addf %140, %142 : vector<32x128xf32>
    %144 = vector.shape_cast %143 : vector<32x128xf32> to vector<4x8x128xf32>
    %145 = tpu.transpose %144, [1, 0, 2] : vector<4x8x128xf32> -> vector<8x4x128xf32>
    %c0_48 = arith.constant 0 : index
    %c0_49 = arith.constant 0 : index
    %c0_50 = arith.constant 0 : index
    %146 = vector.load %arg1[%c0_48, %c0_49, %c0_50] : memref<8x128x128xf32, #tpu.memory_space<vmem>>, vector<8x128x128xf32>
    "tpu.trace_start"() <{level = 10 : i32, message = "blm,btm->blt"}> : () -> ()
    %cst_51 = arith.constant dense<0.000000e+00> : vector<8x4x128xf32>
    %147 = tpu.matmul %145, %146, %cst_51 {dimension_numbers = #tpu.dot_dimension_numbers<[2], [2], [1], [1], [0, 0, 0, 1, 1, 1], [0], [0]>} : vector<8x4x128xf32>, vector<8x128x128xf32>, vector<8x4x128xf32> -> vector<8x4x128xf32>
    "tpu.trace_stop"() : () -> ()
    %cst_52 = arith.constant 1.250000e-01 : f32
    %148 = vector.broadcast %cst_52 : f32 to vector<8x4x128xf32>
    %149 = arith.mulf %147, %148 : vector<8x4x128xf32>
    %c0_53 = arith.constant 0 : index
    %c0_54 = arith.constant 0 : index
    %150 = vector.load %arg2[%c0_53, %c0_54] : memref<8x128xf32, #tpu.memory_space<vmem>>, vector<8x128xf32>
    %151 = vector.shape_cast %150 : vector<8x128xf32> to vector<8x1x128xf32>
    %152 = vector.broadcast %151 : vector<8x1x128xf32> to vector<8x4x128xf32>
    %153 = arith.addf %149, %152 : vector<8x4x128xf32>
    %cst_55 = arith.constant dense<0xFF800000> : vector<8x4xf32>
    %154 = vector.multi_reduction <maximumf>, %153, %cst_55 [2] : vector<8x4x128xf32> to vector<8x4xf32>
    %155 = vector.shape_cast %154 : vector<8x4xf32> to vector<8x4x1xf32>
    %156 = vector.broadcast %155 : vector<8x4x1xf32> to vector<8x4x128xf32>
    %157 = arith.subf %153, %156 : vector<8x4x128xf32>
    %158 = math.exp %157 : vector<8x4x128xf32>
    %cst_56 = arith.constant dense<0.000000e+00> : vector<8x4xf32>
    %159 = vector.multi_reduction <add>, %158, %cst_56 [2] : vector<8x4x128xf32> to vector<8x4xf32>
    %160 = vector.shape_cast %159 : vector<8x4xf32> to vector<8x4x1xf32>
    %161 = vector.broadcast %160 : vector<8x4x1xf32> to vector<8x4x128xf32>
    %162 = arith.divf %158, %161 : vector<8x4x128xf32>
    %c0_57 = arith.constant 0 : index
    %c0_58 = arith.constant 0 : index
    %c0_59 = arith.constant 0 : index
    %163 = vector.load %arg9[%c0_57, %c0_58, %c0_59] : memref<8x4x128xf32, #tpu.memory_space<vmem>>, vector<8x4x128xf32>
    tpu.vector_store %arg9[%c0_57, %c0_58, %c0_59], %162 {strides = array<i32>} : memref<8x4x128xf32, #tpu.memory_space<vmem>>, vector<8x4x128xf32>,
    return
  }
  func.func @transform_0(%arg0: i32) -> (i32, i32, i32) {
    %c0_i32 = arith.constant 0 : i32
    %c0_i32_0 = arith.constant 0 : i32
    %c0_i32_1 = arith.constant 0 : i32
    %c0_i32_2 = arith.constant 0 : i32
    return %c0_i32, %c0_i32_0, %c0_i32_1 : i32, i32, i32
  }
  func.func @transform_1(%arg0: i32) -> (i32, i32) {
    %c0_i32 = arith.constant 0 : i32
    %c0_i32_0 = arith.constant 0 : i32
    %c0_i32_1 = arith.constant 0 : i32
    return %c0_i32, %c0_i32_0 : i32, i32
  }
  func.func @transform_2(%arg0: i32) -> (i32, i32) {
    %c0_i32 = arith.constant 0 : i32
    %c0_i32_0 = arith.constant 0 : i32
    %c0_i32_1 = arith.constant 0 : i32
    return %c0_i32, %c0_i32_0 : i32, i32
  }
  func.func @transform_3(%arg0: i32) -> (i32, i32) {
    %c0_i32 = arith.constant 0 : i32
    %c0_i32_0 = arith.constant 0 : i32
    %c0_i32_1 = arith.constant 0 : i32
    return %c0_i32, %c0_i32_0 : i32, i32
  }
  func.func @transform_4(%arg0: i32) -> (i32, i32) {
    %c0_i32 = arith.constant 0 : i32
    %c0_i32_0 = arith.constant 0 : i32
    %c0_i32_1 = arith.constant 0 : i32
    return %c0_i32, %c0_i32_0 : i32, i32
  }
  func.func @transform_5(%arg0: i32) -> (i32, i32) {
    %c0_i32 = arith.constant 0 : i32
    %c0_i32_0 = arith.constant 0 : i32
    %c0_i32_1 = arith.constant 0 : i32
    return %c0_i32, %c0_i32_0 : i32, i32
  }
  func.func @transform_6(%arg0: i32) -> (i32, i32) {
    %c0_i32 = arith.constant 0 : i32
    %c0_i32_0 = arith.constant 0 : i32
    %c0_i32_1 = arith.constant 0 : i32
    return %c0_i32, %c0_i32_0 : i32, i32
  }
  func.func @transform_7(%arg0: i32) -> (i32, i32) {
    %c0_i32 = arith.constant 0 : i32
    %c0_i32_0 = arith.constant 0 : i32
    %c0_i32_1 = arith.constant 0 : i32
    return %c0_i32, %c0_i32_0 : i32, i32
  }
  func.func @transform_8(%arg0: i32) -> (i32, i32, i32) {
    %c0_i32 = arith.constant 0 : i32
    %c0_i32_0 = arith.constant 0 : i32
    %c0_i32_1 = arith.constant 0 : i32
    %c0_i32_2 = arith.constant 0 : i32
    return %c0_i32, %c0_i32_0, %c0_i32_1 : i32, i32, i32
  }
}

module attributes {stable_mosaic.version = 11 : i64} {
  func.func @_encoder_kernel(%arg0: i32, %arg1: memref<128x2xf32, #tpu.memory_space<vmem>>, %arg2: memref<8x128xi32, #tpu.memory_space<vmem>>, %arg3: memref<2x512xf32, #tpu.memory_space<vmem>>, %arg4: memref<1x512xf32, #tpu.memory_space<vmem>>, %arg5: memref<128x512xf32, #tpu.memory_space<vmem>>, %arg6: memref<16x8x128xf32, #tpu.memory_space<vmem>>, %arg7: memref<8x128xf32, #tpu.memory_space<vmem>>, %arg8: memref<8x128xf32, #tpu.memory_space<vmem>>, %arg9: memref<128x512xf32, #tpu.memory_space<vmem>>, %arg10: memref<8x128xf32, #tpu.memory_space<vmem>>, %arg11: memref<8x128xf32, #tpu.memory_space<vmem>>) attributes {dimension_semantics = [#tpu.dimension_semantics<arbitrary>], iteration_bounds = array<i64: 1>, scalar_prefetch = 0 : i64, scratch_operands = 3 : i64, tpu.core_type = #tpu.core_type<tc>, window_params = [{transform_indices = @transform_0, window_bounds = array<i64: 128, 2>}, {pipeline_mode = #tpu.pipeline_mode<synchronous>, transform_indices = @transform_1, window_bounds = array<i64: 8, 128>}, {pipeline_mode = #tpu.pipeline_mode<synchronous>, transform_indices = @transform_2, window_bounds = array<i64: 2, 512>}, {pipeline_mode = #tpu.pipeline_mode<synchronous>, transform_indices = @transform_3, window_bounds = array<i64: 1, 512>}, {pipeline_mode = #tpu.pipeline_mode<synchronous>, transform_indices = @transform_4, window_bounds = array<i64: 128, 512>}, {transform_indices = @transform_5, window_bounds = array<i64: 16, 8, 128>}, {pipeline_mode = #tpu.pipeline_mode<synchronous>, transform_indices = @transform_6, window_bounds = array<i64: 8, 128>}, {pipeline_mode = #tpu.pipeline_mode<synchronous>, transform_indices = @transform_7, window_bounds = array<i64: 8, 128>}]} {
    %c0_i32 = arith.constant 0 : i32
    %0 = arith.cmpi eq, %arg0, %c0_i32 : i32
    %1 = arith.extui %0 : i1 to i32
    %c0_i32_0 = arith.constant 0 : i32
    %2 = arith.cmpi ne, %1, %c0_i32_0 : i32
    scf.if %2 {
      %cst_198 = arith.constant 0.000000e+00 : f32
      %707 = vector.broadcast %cst_198 : f32 to vector<8x128xf32>
      %c0_199 = arith.constant 0 : index
      %c0_200 = arith.constant 0 : index
      %708 = vector.load %arg10[%c0_199, %c0_200] : memref<8x128xf32, #tpu.memory_space<vmem>>, vector<8x128xf32>
      tpu.vector_store %arg10[%c0_199, %c0_200], %707 {strides = array<i32>} : memref<8x128xf32, #tpu.memory_space<vmem>>, vector<8x128xf32>,
      %cst_201 = arith.constant 0.000000e+00 : f32
      %709 = vector.broadcast %cst_201 : f32 to vector<8x128xf32>
      %c0_202 = arith.constant 0 : index
      %c0_203 = arith.constant 0 : index
      %710 = vector.load %arg11[%c0_202, %c0_203] : memref<8x128xf32, #tpu.memory_space<vmem>>, vector<8x128xf32>
      tpu.vector_store %arg11[%c0_202, %c0_203], %709 {strides = array<i32>} : memref<8x128xf32, #tpu.memory_space<vmem>>, vector<8x128xf32>,
    } else {
    }
    %c0 = arith.constant 0 : index
    %c0_1 = arith.constant 0 : index
    %3 = vector.load %arg1[%c0, %c0_1] : memref<128x2xf32, #tpu.memory_space<vmem>>, vector<128x2xf32>
    %c0_2 = arith.constant 0 : index
    %c0_3 = arith.constant 0 : index
    %4 = vector.load %arg3[%c0_2, %c0_3] : memref<2x512xf32, #tpu.memory_space<vmem>>, vector<2x512xf32>
    %cst = arith.constant dense<0.000000e+00> : vector<128x512xf32>
    %5 = tpu.matmul %3, %4, %cst {dimension_numbers = #tpu.dot_dimension_numbers<[1], [0], [0], [1], [0, 0, 1, 1], [], []>} : vector<128x2xf32>, vector<2x512xf32>, vector<128x512xf32> -> vector<128x512xf32>
    %c0_4 = arith.constant 0 : index
    %c0_5 = arith.constant 0 : index
    %6 = vector.load %arg4[%c0_4, %c0_5] : memref<1x512xf32, #tpu.memory_space<vmem>>, vector<1x512xf32>
    %7 = vector.broadcast %6 : vector<1x512xf32> to vector<128x512xf32>
    %8 = arith.addf %5, %7 : vector<128x512xf32>
    %c0_6 = arith.constant 0 : index
    %c0_7 = arith.constant 0 : index
    %9 = vector.load %arg9[%c0_6, %c0_7] : memref<128x512xf32, #tpu.memory_space<vmem>>, vector<128x512xf32>
    tpu.vector_store %arg9[%c0_6, %c0_7], %8 {strides = array<i32>} : memref<128x512xf32, #tpu.memory_space<vmem>>, vector<128x512xf32>,
    %c0_8 = arith.constant 0 : index
    %c0_9 = arith.constant 0 : index
    %10 = vector.load %arg2[%c0_8, %c0_9] : memref<8x128xi32, #tpu.memory_space<vmem>>, vector<8x128xi32>
    %c16_i32 = arith.constant 16 : i32
    %11 = arith.muli %arg0, %c16_i32 : i32
    %c0_10 = arith.constant 0 : index
    %c0_11 = arith.constant 0 : index
    %12 = vector.load %arg10[%c0_10, %c0_11] : memref<8x128xf32, #tpu.memory_space<vmem>>, vector<8x128xf32>
    %c0_12 = arith.constant 0 : index
    %c0_13 = arith.constant 0 : index
    %13 = vector.load %arg11[%c0_12, %c0_13] : memref<8x128xf32, #tpu.memory_space<vmem>>, vector<8x128xf32>
    %c0_i32_14 = arith.constant 0 : i32
    %c8_i32 = arith.constant 8 : i32
    %14 = arith.muli %c0_i32_14, %c8_i32 : i32
    %15 = tpu.assume_multiple %14, 8 : i32
    %16 = arith.index_cast %15 : i32 to index
    %c0_15 = arith.constant 0 : index
    %17 = vector.load %arg9[%16, %c0_15] : memref<128x512xf32, #tpu.memory_space<vmem>>, vector<8x512xf32>
    %c0_16 = arith.constant 0 : index
    %c0_17 = arith.constant 0 : index
    %18 = vector.load %arg5[%c0_16, %c0_17] : memref<128x512xf32, #tpu.memory_space<vmem>>, vector<128x512xf32>
    %cst_18 = arith.constant dense<0.000000e+00> : vector<8x512xf32>
    %19 = tpu.matmul %12, %18, %cst_18 {dimension_numbers = #tpu.dot_dimension_numbers<[1], [0], [0], [1], [0, 0, 1, 1], [], []>} : vector<8x128xf32>, vector<128x512xf32>, vector<8x512xf32> -> vector<8x512xf32>
    %20 = arith.addf %17, %19 : vector<8x512xf32>
    %21 = vector.extract_strided_slice %20 {offsets = [0, 0], sizes = [8, 128], strides = [1, 1]} : vector<8x512xf32> to vector<8x128xf32>
    %22 = arith.negf %21 : vector<8x128xf32>
    %23 = math.exp %22 : vector<8x128xf32>
    %cst_19 = arith.constant 1.000000e+00 : f32
    %24 = vector.broadcast %cst_19 : f32 to vector<8x128xf32>
    %25 = arith.addf %24, %23 : vector<8x128xf32>
    %26 = arith.divf %24, %25 : vector<8x128xf32>
    %27 = vector.extract_strided_slice %20 {offsets = [0, 128], sizes = [8, 128], strides = [1, 1]} : vector<8x512xf32> to vector<8x128xf32>
    %28 = arith.negf %27 : vector<8x128xf32>
    %29 = math.exp %28 : vector<8x128xf32>
    %cst_20 = arith.constant 1.000000e+00 : f32
    %30 = vector.broadcast %cst_20 : f32 to vector<8x128xf32>
    %31 = arith.addf %30, %29 : vector<8x128xf32>
    %32 = arith.divf %30, %31 : vector<8x128xf32>
    %33 = vector.extract_strided_slice %20 {offsets = [0, 256], sizes = [8, 128], strides = [1, 1]} : vector<8x512xf32> to vector<8x128xf32>
    %34 = math.tanh %33 : vector<8x128xf32>
    %35 = vector.extract_strided_slice %20 {offsets = [0, 384], sizes = [8, 128], strides = [1, 1]} : vector<8x512xf32> to vector<8x128xf32>
    %36 = arith.negf %35 : vector<8x128xf32>
    %37 = math.exp %36 : vector<8x128xf32>
    %cst_21 = arith.constant 1.000000e+00 : f32
    %38 = vector.broadcast %cst_21 : f32 to vector<8x128xf32>
    %39 = arith.addf %38, %37 : vector<8x128xf32>
    %40 = arith.divf %38, %39 : vector<8x128xf32>
    %41 = arith.mulf %32, %13 : vector<8x128xf32>
    %42 = arith.mulf %26, %34 : vector<8x128xf32>
    %43 = arith.addf %41, %42 : vector<8x128xf32>
    %44 = math.tanh %43 : vector<8x128xf32>
    %45 = arith.mulf %40, %44 : vector<8x128xf32>
    %46 = arith.addi %11, %c0_i32_14 : i32
    %47 = vector.broadcast %46 : i32 to vector<8x128xi32>
    %48 = arith.cmpi slt, %47, %10 : vector<8x128xi32>
    %cst_22 = arith.constant 0.000000e+00 : f32
    %49 = vector.broadcast %cst_22 : f32 to vector<8x128xf32>
    %50 = arith.select %48, %45, %49 : vector<8x128xi1>, vector<8x128xf32>
    %51 = arith.index_cast %c0_i32_14 : i32 to index
    %c0_23 = arith.constant 0 : index
    %c0_24 = arith.constant 0 : index
    %52 = vector.load %arg6[%51, %c0_23, %c0_24] : memref<16x8x128xf32, #tpu.memory_space<vmem>>, vector<1x8x128xf32>
    %53 = vector.shape_cast %52 : vector<1x8x128xf32> to vector<8x128xf32>
    %54 = vector.shape_cast %50 : vector<8x128xf32> to vector<1x8x128xf32>
    tpu.vector_store %arg6[%51, %c0_23, %c0_24], %54 {strides = array<i32>} : memref<16x8x128xf32, #tpu.memory_space<vmem>>, vector<1x8x128xf32>,
    %55 = arith.select %48, %45, %12 : vector<8x128xi1>, vector<8x128xf32>
    %56 = arith.select %48, %43, %13 : vector<8x128xi1>, vector<8x128xf32>
    %c1_i32 = arith.constant 1 : i32
    %c8_i32_25 = arith.constant 8 : i32
    %57 = arith.muli %c1_i32, %c8_i32_25 : i32
    %58 = tpu.assume_multiple %57, 8 : i32
    %59 = arith.index_cast %58 : i32 to index
    %c0_26 = arith.constant 0 : index
    %60 = vector.load %arg9[%59, %c0_26] : memref<128x512xf32, #tpu.memory_space<vmem>>, vector<8x512xf32>
    %c0_27 = arith.constant 0 : index
    %c0_28 = arith.constant 0 : index
    %61 = vector.load %arg5[%c0_27, %c0_28] : memref<128x512xf32, #tpu.memory_space<vmem>>, vector<128x512xf32>
    %cst_29 = arith.constant dense<0.000000e+00> : vector<8x512xf32>
    %62 = tpu.matmul %55, %61, %cst_29 {dimension_numbers = #tpu.dot_dimension_numbers<[1], [0], [0], [1], [0, 0, 1, 1], [], []>} : vector<8x128xf32>, vector<128x512xf32>, vector<8x512xf32> -> vector<8x512xf32>
    %63 = arith.addf %60, %62 : vector<8x512xf32>
    %64 = vector.extract_strided_slice %63 {offsets = [0, 0], sizes = [8, 128], strides = [1, 1]} : vector<8x512xf32> to vector<8x128xf32>
    %65 = arith.negf %64 : vector<8x128xf32>
    %66 = math.exp %65 : vector<8x128xf32>
    %cst_30 = arith.constant 1.000000e+00 : f32
    %67 = vector.broadcast %cst_30 : f32 to vector<8x128xf32>
    %68 = arith.addf %67, %66 : vector<8x128xf32>
    %69 = arith.divf %67, %68 : vector<8x128xf32>
    %70 = vector.extract_strided_slice %63 {offsets = [0, 128], sizes = [8, 128], strides = [1, 1]} : vector<8x512xf32> to vector<8x128xf32>
    %71 = arith.negf %70 : vector<8x128xf32>
    %72 = math.exp %71 : vector<8x128xf32>
    %cst_31 = arith.constant 1.000000e+00 : f32
    %73 = vector.broadcast %cst_31 : f32 to vector<8x128xf32>
    %74 = arith.addf %73, %72 : vector<8x128xf32>
    %75 = arith.divf %73, %74 : vector<8x128xf32>
    %76 = vector.extract_strided_slice %63 {offsets = [0, 256], sizes = [8, 128], strides = [1, 1]} : vector<8x512xf32> to vector<8x128xf32>
    %77 = math.tanh %76 : vector<8x128xf32>
    %78 = vector.extract_strided_slice %63 {offsets = [0, 384], sizes = [8, 128], strides = [1, 1]} : vector<8x512xf32> to vector<8x128xf32>
    %79 = arith.negf %78 : vector<8x128xf32>
    %80 = math.exp %79 : vector<8x128xf32>
    %cst_32 = arith.constant 1.000000e+00 : f32
    %81 = vector.broadcast %cst_32 : f32 to vector<8x128xf32>
    %82 = arith.addf %81, %80 : vector<8x128xf32>
    %83 = arith.divf %81, %82 : vector<8x128xf32>
    %84 = arith.mulf %75, %56 : vector<8x128xf32>
    %85 = arith.mulf %69, %77 : vector<8x128xf32>
    %86 = arith.addf %84, %85 : vector<8x128xf32>
    %87 = math.tanh %86 : vector<8x128xf32>
    %88 = arith.mulf %83, %87 : vector<8x128xf32>
    %89 = arith.addi %11, %c1_i32 : i32
    %90 = vector.broadcast %89 : i32 to vector<8x128xi32>
    %91 = arith.cmpi slt, %90, %10 : vector<8x128xi32>
    %cst_33 = arith.constant 0.000000e+00 : f32
    %92 = vector.broadcast %cst_33 : f32 to vector<8x128xf32>
    %93 = arith.select %91, %88, %92 : vector<8x128xi1>, vector<8x128xf32>
    %94 = arith.index_cast %c1_i32 : i32 to index
    %c0_34 = arith.constant 0 : index
    %c0_35 = arith.constant 0 : index
    %95 = vector.load %arg6[%94, %c0_34, %c0_35] : memref<16x8x128xf32, #tpu.memory_space<vmem>>, vector<1x8x128xf32>
    %96 = vector.shape_cast %95 : vector<1x8x128xf32> to vector<8x128xf32>
    %97 = vector.shape_cast %93 : vector<8x128xf32> to vector<1x8x128xf32>
    tpu.vector_store %arg6[%94, %c0_34, %c0_35], %97 {strides = array<i32>} : memref<16x8x128xf32, #tpu.memory_space<vmem>>, vector<1x8x128xf32>,
    %98 = arith.select %91, %88, %55 : vector<8x128xi1>, vector<8x128xf32>
    %99 = arith.select %91, %86, %56 : vector<8x128xi1>, vector<8x128xf32>
    %c2_i32 = arith.constant 2 : i32
    %c8_i32_36 = arith.constant 8 : i32
    %100 = arith.muli %c2_i32, %c8_i32_36 : i32
    %101 = tpu.assume_multiple %100, 8 : i32
    %102 = arith.index_cast %101 : i32 to index
    %c0_37 = arith.constant 0 : index
    %103 = vector.load %arg9[%102, %c0_37] : memref<128x512xf32, #tpu.memory_space<vmem>>, vector<8x512xf32>
    %c0_38 = arith.constant 0 : index
    %c0_39 = arith.constant 0 : index
    %104 = vector.load %arg5[%c0_38, %c0_39] : memref<128x512xf32, #tpu.memory_space<vmem>>, vector<128x512xf32>
    %cst_40 = arith.constant dense<0.000000e+00> : vector<8x512xf32>
    %105 = tpu.matmul %98, %104, %cst_40 {dimension_numbers = #tpu.dot_dimension_numbers<[1], [0], [0], [1], [0, 0, 1, 1], [], []>} : vector<8x128xf32>, vector<128x512xf32>, vector<8x512xf32> -> vector<8x512xf32>
    %106 = arith.addf %103, %105 : vector<8x512xf32>
    %107 = vector.extract_strided_slice %106 {offsets = [0, 0], sizes = [8, 128], strides = [1, 1]} : vector<8x512xf32> to vector<8x128xf32>
    %108 = arith.negf %107 : vector<8x128xf32>
    %109 = math.exp %108 : vector<8x128xf32>
    %cst_41 = arith.constant 1.000000e+00 : f32
    %110 = vector.broadcast %cst_41 : f32 to vector<8x128xf32>
    %111 = arith.addf %110, %109 : vector<8x128xf32>
    %112 = arith.divf %110, %111 : vector<8x128xf32>
    %113 = vector.extract_strided_slice %106 {offsets = [0, 128], sizes = [8, 128], strides = [1, 1]} : vector<8x512xf32> to vector<8x128xf32>
    %114 = arith.negf %113 : vector<8x128xf32>
    %115 = math.exp %114 : vector<8x128xf32>
    %cst_42 = arith.constant 1.000000e+00 : f32
    %116 = vector.broadcast %cst_42 : f32 to vector<8x128xf32>
    %117 = arith.addf %116, %115 : vector<8x128xf32>
    %118 = arith.divf %116, %117 : vector<8x128xf32>
    %119 = vector.extract_strided_slice %106 {offsets = [0, 256], sizes = [8, 128], strides = [1, 1]} : vector<8x512xf32> to vector<8x128xf32>
    %120 = math.tanh %119 : vector<8x128xf32>
    %121 = vector.extract_strided_slice %106 {offsets = [0, 384], sizes = [8, 128], strides = [1, 1]} : vector<8x512xf32> to vector<8x128xf32>
    %122 = arith.negf %121 : vector<8x128xf32>
    %123 = math.exp %122 : vector<8x128xf32>
    %cst_43 = arith.constant 1.000000e+00 : f32
    %124 = vector.broadcast %cst_43 : f32 to vector<8x128xf32>
    %125 = arith.addf %124, %123 : vector<8x128xf32>
    %126 = arith.divf %124, %125 : vector<8x128xf32>
    %127 = arith.mulf %118, %99 : vector<8x128xf32>
    %128 = arith.mulf %112, %120 : vector<8x128xf32>
    %129 = arith.addf %127, %128 : vector<8x128xf32>
    %130 = math.tanh %129 : vector<8x128xf32>
    %131 = arith.mulf %126, %130 : vector<8x128xf32>
    %132 = arith.addi %11, %c2_i32 : i32
    %133 = vector.broadcast %132 : i32 to vector<8x128xi32>
    %134 = arith.cmpi slt, %133, %10 : vector<8x128xi32>
    %cst_44 = arith.constant 0.000000e+00 : f32
    %135 = vector.broadcast %cst_44 : f32 to vector<8x128xf32>
    %136 = arith.select %134, %131, %135 : vector<8x128xi1>, vector<8x128xf32>
    %137 = arith.index_cast %c2_i32 : i32 to index
    %c0_45 = arith.constant 0 : index
    %c0_46 = arith.constant 0 : index
    %138 = vector.load %arg6[%137, %c0_45, %c0_46] : memref<16x8x128xf32, #tpu.memory_space<vmem>>, vector<1x8x128xf32>
    %139 = vector.shape_cast %138 : vector<1x8x128xf32> to vector<8x128xf32>
    %140 = vector.shape_cast %136 : vector<8x128xf32> to vector<1x8x128xf32>
    tpu.vector_store %arg6[%137, %c0_45, %c0_46], %140 {strides = array<i32>} : memref<16x8x128xf32, #tpu.memory_space<vmem>>, vector<1x8x128xf32>,
    %141 = arith.select %134, %131, %98 : vector<8x128xi1>, vector<8x128xf32>
    %142 = arith.select %134, %129, %99 : vector<8x128xi1>, vector<8x128xf32>
    %c3_i32 = arith.constant 3 : i32
    %c8_i32_47 = arith.constant 8 : i32
    %143 = arith.muli %c3_i32, %c8_i32_47 : i32
    %144 = tpu.assume_multiple %143, 8 : i32
    %145 = arith.index_cast %144 : i32 to index
    %c0_48 = arith.constant 0 : index
    %146 = vector.load %arg9[%145, %c0_48] : memref<128x512xf32, #tpu.memory_space<vmem>>, vector<8x512xf32>
    %c0_49 = arith.constant 0 : index
    %c0_50 = arith.constant 0 : index
    %147 = vector.load %arg5[%c0_49, %c0_50] : memref<128x512xf32, #tpu.memory_space<vmem>>, vector<128x512xf32>
    %cst_51 = arith.constant dense<0.000000e+00> : vector<8x512xf32>
    %148 = tpu.matmul %141, %147, %cst_51 {dimension_numbers = #tpu.dot_dimension_numbers<[1], [0], [0], [1], [0, 0, 1, 1], [], []>} : vector<8x128xf32>, vector<128x512xf32>, vector<8x512xf32> -> vector<8x512xf32>
    %149 = arith.addf %146, %148 : vector<8x512xf32>
    %150 = vector.extract_strided_slice %149 {offsets = [0, 0], sizes = [8, 128], strides = [1, 1]} : vector<8x512xf32> to vector<8x128xf32>
    %151 = arith.negf %150 : vector<8x128xf32>
    %152 = math.exp %151 : vector<8x128xf32>
    %cst_52 = arith.constant 1.000000e+00 : f32
    %153 = vector.broadcast %cst_52 : f32 to vector<8x128xf32>
    %154 = arith.addf %153, %152 : vector<8x128xf32>
    %155 = arith.divf %153, %154 : vector<8x128xf32>
    %156 = vector.extract_strided_slice %149 {offsets = [0, 128], sizes = [8, 128], strides = [1, 1]} : vector<8x512xf32> to vector<8x128xf32>
    %157 = arith.negf %156 : vector<8x128xf32>
    %158 = math.exp %157 : vector<8x128xf32>
    %cst_53 = arith.constant 1.000000e+00 : f32
    %159 = vector.broadcast %cst_53 : f32 to vector<8x128xf32>
    %160 = arith.addf %159, %158 : vector<8x128xf32>
    %161 = arith.divf %159, %160 : vector<8x128xf32>
    %162 = vector.extract_strided_slice %149 {offsets = [0, 256], sizes = [8, 128], strides = [1, 1]} : vector<8x512xf32> to vector<8x128xf32>
    %163 = math.tanh %162 : vector<8x128xf32>
    %164 = vector.extract_strided_slice %149 {offsets = [0, 384], sizes = [8, 128], strides = [1, 1]} : vector<8x512xf32> to vector<8x128xf32>
    %165 = arith.negf %164 : vector<8x128xf32>
    %166 = math.exp %165 : vector<8x128xf32>
    %cst_54 = arith.constant 1.000000e+00 : f32
    %167 = vector.broadcast %cst_54 : f32 to vector<8x128xf32>
    %168 = arith.addf %167, %166 : vector<8x128xf32>
    %169 = arith.divf %167, %168 : vector<8x128xf32>
    %170 = arith.mulf %161, %142 : vector<8x128xf32>
    %171 = arith.mulf %155, %163 : vector<8x128xf32>
    %172 = arith.addf %170, %171 : vector<8x128xf32>
    %173 = math.tanh %172 : vector<8x128xf32>
    %174 = arith.mulf %169, %173 : vector<8x128xf32>
    %175 = arith.addi %11, %c3_i32 : i32
    %176 = vector.broadcast %175 : i32 to vector<8x128xi32>
    %177 = arith.cmpi slt, %176, %10 : vector<8x128xi32>
    %cst_55 = arith.constant 0.000000e+00 : f32
    %178 = vector.broadcast %cst_55 : f32 to vector<8x128xf32>
    %179 = arith.select %177, %174, %178 : vector<8x128xi1>, vector<8x128xf32>
    %180 = arith.index_cast %c3_i32 : i32 to index
    %c0_56 = arith.constant 0 : index
    %c0_57 = arith.constant 0 : index
    %181 = vector.load %arg6[%180, %c0_56, %c0_57] : memref<16x8x128xf32, #tpu.memory_space<vmem>>, vector<1x8x128xf32>
    %182 = vector.shape_cast %181 : vector<1x8x128xf32> to vector<8x128xf32>
    %183 = vector.shape_cast %179 : vector<8x128xf32> to vector<1x8x128xf32>
    tpu.vector_store %arg6[%180, %c0_56, %c0_57], %183 {strides = array<i32>} : memref<16x8x128xf32, #tpu.memory_space<vmem>>, vector<1x8x128xf32>,
    %184 = arith.select %177, %174, %141 : vector<8x128xi1>, vector<8x128xf32>
    %185 = arith.select %177, %172, %142 : vector<8x128xi1>, vector<8x128xf32>
    %c4_i32 = arith.constant 4 : i32
    %c8_i32_58 = arith.constant 8 : i32
    %186 = arith.muli %c4_i32, %c8_i32_58 : i32
    %187 = tpu.assume_multiple %186, 8 : i32
    %188 = arith.index_cast %187 : i32 to index
    %c0_59 = arith.constant 0 : index
    %189 = vector.load %arg9[%188, %c0_59] : memref<128x512xf32, #tpu.memory_space<vmem>>, vector<8x512xf32>
    %c0_60 = arith.constant 0 : index
    %c0_61 = arith.constant 0 : index
    %190 = vector.load %arg5[%c0_60, %c0_61] : memref<128x512xf32, #tpu.memory_space<vmem>>, vector<128x512xf32>
    %cst_62 = arith.constant dense<0.000000e+00> : vector<8x512xf32>
    %191 = tpu.matmul %184, %190, %cst_62 {dimension_numbers = #tpu.dot_dimension_numbers<[1], [0], [0], [1], [0, 0, 1, 1], [], []>} : vector<8x128xf32>, vector<128x512xf32>, vector<8x512xf32> -> vector<8x512xf32>
    %192 = arith.addf %189, %191 : vector<8x512xf32>
    %193 = vector.extract_strided_slice %192 {offsets = [0, 0], sizes = [8, 128], strides = [1, 1]} : vector<8x512xf32> to vector<8x128xf32>
    %194 = arith.negf %193 : vector<8x128xf32>
    %195 = math.exp %194 : vector<8x128xf32>
    %cst_63 = arith.constant 1.000000e+00 : f32
    %196 = vector.broadcast %cst_63 : f32 to vector<8x128xf32>
    %197 = arith.addf %196, %195 : vector<8x128xf32>
    %198 = arith.divf %196, %197 : vector<8x128xf32>
    %199 = vector.extract_strided_slice %192 {offsets = [0, 128], sizes = [8, 128], strides = [1, 1]} : vector<8x512xf32> to vector<8x128xf32>
    %200 = arith.negf %199 : vector<8x128xf32>
    %201 = math.exp %200 : vector<8x128xf32>
    %cst_64 = arith.constant 1.000000e+00 : f32
    %202 = vector.broadcast %cst_64 : f32 to vector<8x128xf32>
    %203 = arith.addf %202, %201 : vector<8x128xf32>
    %204 = arith.divf %202, %203 : vector<8x128xf32>
    %205 = vector.extract_strided_slice %192 {offsets = [0, 256], sizes = [8, 128], strides = [1, 1]} : vector<8x512xf32> to vector<8x128xf32>
    %206 = math.tanh %205 : vector<8x128xf32>
    %207 = vector.extract_strided_slice %192 {offsets = [0, 384], sizes = [8, 128], strides = [1, 1]} : vector<8x512xf32> to vector<8x128xf32>
    %208 = arith.negf %207 : vector<8x128xf32>
    %209 = math.exp %208 : vector<8x128xf32>
    %cst_65 = arith.constant 1.000000e+00 : f32
    %210 = vector.broadcast %cst_65 : f32 to vector<8x128xf32>
    %211 = arith.addf %210, %209 : vector<8x128xf32>
    %212 = arith.divf %210, %211 : vector<8x128xf32>
    %213 = arith.mulf %204, %185 : vector<8x128xf32>
    %214 = arith.mulf %198, %206 : vector<8x128xf32>
    %215 = arith.addf %213, %214 : vector<8x128xf32>
    %216 = math.tanh %215 : vector<8x128xf32>
    %217 = arith.mulf %212, %216 : vector<8x128xf32>
    %218 = arith.addi %11, %c4_i32 : i32
    %219 = vector.broadcast %218 : i32 to vector<8x128xi32>
    %220 = arith.cmpi slt, %219, %10 : vector<8x128xi32>
    %cst_66 = arith.constant 0.000000e+00 : f32
    %221 = vector.broadcast %cst_66 : f32 to vector<8x128xf32>
    %222 = arith.select %220, %217, %221 : vector<8x128xi1>, vector<8x128xf32>
    %223 = arith.index_cast %c4_i32 : i32 to index
    %c0_67 = arith.constant 0 : index
    %c0_68 = arith.constant 0 : index
    %224 = vector.load %arg6[%223, %c0_67, %c0_68] : memref<16x8x128xf32, #tpu.memory_space<vmem>>, vector<1x8x128xf32>
    %225 = vector.shape_cast %224 : vector<1x8x128xf32> to vector<8x128xf32>
    %226 = vector.shape_cast %222 : vector<8x128xf32> to vector<1x8x128xf32>
    tpu.vector_store %arg6[%223, %c0_67, %c0_68], %226 {strides = array<i32>} : memref<16x8x128xf32, #tpu.memory_space<vmem>>, vector<1x8x128xf32>,
    %227 = arith.select %220, %217, %184 : vector<8x128xi1>, vector<8x128xf32>
    %228 = arith.select %220, %215, %185 : vector<8x128xi1>, vector<8x128xf32>
    %c5_i32 = arith.constant 5 : i32
    %c8_i32_69 = arith.constant 8 : i32
    %229 = arith.muli %c5_i32, %c8_i32_69 : i32
    %230 = tpu.assume_multiple %229, 8 : i32
    %231 = arith.index_cast %230 : i32 to index
    %c0_70 = arith.constant 0 : index
    %232 = vector.load %arg9[%231, %c0_70] : memref<128x512xf32, #tpu.memory_space<vmem>>, vector<8x512xf32>
    %c0_71 = arith.constant 0 : index
    %c0_72 = arith.constant 0 : index
    %233 = vector.load %arg5[%c0_71, %c0_72] : memref<128x512xf32, #tpu.memory_space<vmem>>, vector<128x512xf32>
    %cst_73 = arith.constant dense<0.000000e+00> : vector<8x512xf32>
    %234 = tpu.matmul %227, %233, %cst_73 {dimension_numbers = #tpu.dot_dimension_numbers<[1], [0], [0], [1], [0, 0, 1, 1], [], []>} : vector<8x128xf32>, vector<128x512xf32>, vector<8x512xf32> -> vector<8x512xf32>
    %235 = arith.addf %232, %234 : vector<8x512xf32>
    %236 = vector.extract_strided_slice %235 {offsets = [0, 0], sizes = [8, 128], strides = [1, 1]} : vector<8x512xf32> to vector<8x128xf32>
    %237 = arith.negf %236 : vector<8x128xf32>
    %238 = math.exp %237 : vector<8x128xf32>
    %cst_74 = arith.constant 1.000000e+00 : f32
    %239 = vector.broadcast %cst_74 : f32 to vector<8x128xf32>
    %240 = arith.addf %239, %238 : vector<8x128xf32>
    %241 = arith.divf %239, %240 : vector<8x128xf32>
    %242 = vector.extract_strided_slice %235 {offsets = [0, 128], sizes = [8, 128], strides = [1, 1]} : vector<8x512xf32> to vector<8x128xf32>
    %243 = arith.negf %242 : vector<8x128xf32>
    %244 = math.exp %243 : vector<8x128xf32>
    %cst_75 = arith.constant 1.000000e+00 : f32
    %245 = vector.broadcast %cst_75 : f32 to vector<8x128xf32>
    %246 = arith.addf %245, %244 : vector<8x128xf32>
    %247 = arith.divf %245, %246 : vector<8x128xf32>
    %248 = vector.extract_strided_slice %235 {offsets = [0, 256], sizes = [8, 128], strides = [1, 1]} : vector<8x512xf32> to vector<8x128xf32>
    %249 = math.tanh %248 : vector<8x128xf32>
    %250 = vector.extract_strided_slice %235 {offsets = [0, 384], sizes = [8, 128], strides = [1, 1]} : vector<8x512xf32> to vector<8x128xf32>
    %251 = arith.negf %250 : vector<8x128xf32>
    %252 = math.exp %251 : vector<8x128xf32>
    %cst_76 = arith.constant 1.000000e+00 : f32
    %253 = vector.broadcast %cst_76 : f32 to vector<8x128xf32>
    %254 = arith.addf %253, %252 : vector<8x128xf32>
    %255 = arith.divf %253, %254 : vector<8x128xf32>
    %256 = arith.mulf %247, %228 : vector<8x128xf32>
    %257 = arith.mulf %241, %249 : vector<8x128xf32>
    %258 = arith.addf %256, %257 : vector<8x128xf32>
    %259 = math.tanh %258 : vector<8x128xf32>
    %260 = arith.mulf %255, %259 : vector<8x128xf32>
    %261 = arith.addi %11, %c5_i32 : i32
    %262 = vector.broadcast %261 : i32 to vector<8x128xi32>
    %263 = arith.cmpi slt, %262, %10 : vector<8x128xi32>
    %cst_77 = arith.constant 0.000000e+00 : f32
    %264 = vector.broadcast %cst_77 : f32 to vector<8x128xf32>
    %265 = arith.select %263, %260, %264 : vector<8x128xi1>, vector<8x128xf32>
    %266 = arith.index_cast %c5_i32 : i32 to index
    %c0_78 = arith.constant 0 : index
    %c0_79 = arith.constant 0 : index
    %267 = vector.load %arg6[%266, %c0_78, %c0_79] : memref<16x8x128xf32, #tpu.memory_space<vmem>>, vector<1x8x128xf32>
    %268 = vector.shape_cast %267 : vector<1x8x128xf32> to vector<8x128xf32>
    %269 = vector.shape_cast %265 : vector<8x128xf32> to vector<1x8x128xf32>
    tpu.vector_store %arg6[%266, %c0_78, %c0_79], %269 {strides = array<i32>} : memref<16x8x128xf32, #tpu.memory_space<vmem>>, vector<1x8x128xf32>,
    %270 = arith.select %263, %260, %227 : vector<8x128xi1>, vector<8x128xf32>
    %271 = arith.select %263, %258, %228 : vector<8x128xi1>, vector<8x128xf32>
    %c6_i32 = arith.constant 6 : i32
    %c8_i32_80 = arith.constant 8 : i32
    %272 = arith.muli %c6_i32, %c8_i32_80 : i32
    %273 = tpu.assume_multiple %272, 8 : i32
    %274 = arith.index_cast %273 : i32 to index
    %c0_81 = arith.constant 0 : index
    %275 = vector.load %arg9[%274, %c0_81] : memref<128x512xf32, #tpu.memory_space<vmem>>, vector<8x512xf32>
    %c0_82 = arith.constant 0 : index
    %c0_83 = arith.constant 0 : index
    %276 = vector.load %arg5[%c0_82, %c0_83] : memref<128x512xf32, #tpu.memory_space<vmem>>, vector<128x512xf32>
    %cst_84 = arith.constant dense<0.000000e+00> : vector<8x512xf32>
    %277 = tpu.matmul %270, %276, %cst_84 {dimension_numbers = #tpu.dot_dimension_numbers<[1], [0], [0], [1], [0, 0, 1, 1], [], []>} : vector<8x128xf32>, vector<128x512xf32>, vector<8x512xf32> -> vector<8x512xf32>
    %278 = arith.addf %275, %277 : vector<8x512xf32>
    %279 = vector.extract_strided_slice %278 {offsets = [0, 0], sizes = [8, 128], strides = [1, 1]} : vector<8x512xf32> to vector<8x128xf32>
    %280 = arith.negf %279 : vector<8x128xf32>
    %281 = math.exp %280 : vector<8x128xf32>
    %cst_85 = arith.constant 1.000000e+00 : f32
    %282 = vector.broadcast %cst_85 : f32 to vector<8x128xf32>
    %283 = arith.addf %282, %281 : vector<8x128xf32>
    %284 = arith.divf %282, %283 : vector<8x128xf32>
    %285 = vector.extract_strided_slice %278 {offsets = [0, 128], sizes = [8, 128], strides = [1, 1]} : vector<8x512xf32> to vector<8x128xf32>
    %286 = arith.negf %285 : vector<8x128xf32>
    %287 = math.exp %286 : vector<8x128xf32>
    %cst_86 = arith.constant 1.000000e+00 : f32
    %288 = vector.broadcast %cst_86 : f32 to vector<8x128xf32>
    %289 = arith.addf %288, %287 : vector<8x128xf32>
    %290 = arith.divf %288, %289 : vector<8x128xf32>
    %291 = vector.extract_strided_slice %278 {offsets = [0, 256], sizes = [8, 128], strides = [1, 1]} : vector<8x512xf32> to vector<8x128xf32>
    %292 = math.tanh %291 : vector<8x128xf32>
    %293 = vector.extract_strided_slice %278 {offsets = [0, 384], sizes = [8, 128], strides = [1, 1]} : vector<8x512xf32> to vector<8x128xf32>
    %294 = arith.negf %293 : vector<8x128xf32>
    %295 = math.exp %294 : vector<8x128xf32>
    %cst_87 = arith.constant 1.000000e+00 : f32
    %296 = vector.broadcast %cst_87 : f32 to vector<8x128xf32>
    %297 = arith.addf %296, %295 : vector<8x128xf32>
    %298 = arith.divf %296, %297 : vector<8x128xf32>
    %299 = arith.mulf %290, %271 : vector<8x128xf32>
    %300 = arith.mulf %284, %292 : vector<8x128xf32>
    %301 = arith.addf %299, %300 : vector<8x128xf32>
    %302 = math.tanh %301 : vector<8x128xf32>
    %303 = arith.mulf %298, %302 : vector<8x128xf32>
    %304 = arith.addi %11, %c6_i32 : i32
    %305 = vector.broadcast %304 : i32 to vector<8x128xi32>
    %306 = arith.cmpi slt, %305, %10 : vector<8x128xi32>
    %cst_88 = arith.constant 0.000000e+00 : f32
    %307 = vector.broadcast %cst_88 : f32 to vector<8x128xf32>
    %308 = arith.select %306, %303, %307 : vector<8x128xi1>, vector<8x128xf32>
    %309 = arith.index_cast %c6_i32 : i32 to index
    %c0_89 = arith.constant 0 : index
    %c0_90 = arith.constant 0 : index
    %310 = vector.load %arg6[%309, %c0_89, %c0_90] : memref<16x8x128xf32, #tpu.memory_space<vmem>>, vector<1x8x128xf32>
    %311 = vector.shape_cast %310 : vector<1x8x128xf32> to vector<8x128xf32>
    %312 = vector.shape_cast %308 : vector<8x128xf32> to vector<1x8x128xf32>
    tpu.vector_store %arg6[%309, %c0_89, %c0_90], %312 {strides = array<i32>} : memref<16x8x128xf32, #tpu.memory_space<vmem>>, vector<1x8x128xf32>,
    %313 = arith.select %306, %303, %270 : vector<8x128xi1>, vector<8x128xf32>
    %314 = arith.select %306, %301, %271 : vector<8x128xi1>, vector<8x128xf32>
    %c7_i32 = arith.constant 7 : i32
    %c8_i32_91 = arith.constant 8 : i32
    %315 = arith.muli %c7_i32, %c8_i32_91 : i32
    %316 = tpu.assume_multiple %315, 8 : i32
    %317 = arith.index_cast %316 : i32 to index
    %c0_92 = arith.constant 0 : index
    %318 = vector.load %arg9[%317, %c0_92] : memref<128x512xf32, #tpu.memory_space<vmem>>, vector<8x512xf32>
    %c0_93 = arith.constant 0 : index
    %c0_94 = arith.constant 0 : index
    %319 = vector.load %arg5[%c0_93, %c0_94] : memref<128x512xf32, #tpu.memory_space<vmem>>, vector<128x512xf32>
    %cst_95 = arith.constant dense<0.000000e+00> : vector<8x512xf32>
    %320 = tpu.matmul %313, %319, %cst_95 {dimension_numbers = #tpu.dot_dimension_numbers<[1], [0], [0], [1], [0, 0, 1, 1], [], []>} : vector<8x128xf32>, vector<128x512xf32>, vector<8x512xf32> -> vector<8x512xf32>
    %321 = arith.addf %318, %320 : vector<8x512xf32>
    %322 = vector.extract_strided_slice %321 {offsets = [0, 0], sizes = [8, 128], strides = [1, 1]} : vector<8x512xf32> to vector<8x128xf32>
    %323 = arith.negf %322 : vector<8x128xf32>
    %324 = math.exp %323 : vector<8x128xf32>
    %cst_96 = arith.constant 1.000000e+00 : f32
    %325 = vector.broadcast %cst_96 : f32 to vector<8x128xf32>
    %326 = arith.addf %325, %324 : vector<8x128xf32>
    %327 = arith.divf %325, %326 : vector<8x128xf32>
    %328 = vector.extract_strided_slice %321 {offsets = [0, 128], sizes = [8, 128], strides = [1, 1]} : vector<8x512xf32> to vector<8x128xf32>
    %329 = arith.negf %328 : vector<8x128xf32>
    %330 = math.exp %329 : vector<8x128xf32>
    %cst_97 = arith.constant 1.000000e+00 : f32
    %331 = vector.broadcast %cst_97 : f32 to vector<8x128xf32>
    %332 = arith.addf %331, %330 : vector<8x128xf32>
    %333 = arith.divf %331, %332 : vector<8x128xf32>
    %334 = vector.extract_strided_slice %321 {offsets = [0, 256], sizes = [8, 128], strides = [1, 1]} : vector<8x512xf32> to vector<8x128xf32>
    %335 = math.tanh %334 : vector<8x128xf32>
    %336 = vector.extract_strided_slice %321 {offsets = [0, 384], sizes = [8, 128], strides = [1, 1]} : vector<8x512xf32> to vector<8x128xf32>
    %337 = arith.negf %336 : vector<8x128xf32>
    %338 = math.exp %337 : vector<8x128xf32>
    %cst_98 = arith.constant 1.000000e+00 : f32
    %339 = vector.broadcast %cst_98 : f32 to vector<8x128xf32>
    %340 = arith.addf %339, %338 : vector<8x128xf32>
    %341 = arith.divf %339, %340 : vector<8x128xf32>
    %342 = arith.mulf %333, %314 : vector<8x128xf32>
    %343 = arith.mulf %327, %335 : vector<8x128xf32>
    %344 = arith.addf %342, %343 : vector<8x128xf32>
    %345 = math.tanh %344 : vector<8x128xf32>
    %346 = arith.mulf %341, %345 : vector<8x128xf32>
    %347 = arith.addi %11, %c7_i32 : i32
    %348 = vector.broadcast %347 : i32 to vector<8x128xi32>
    %349 = arith.cmpi slt, %348, %10 : vector<8x128xi32>
    %cst_99 = arith.constant 0.000000e+00 : f32
    %350 = vector.broadcast %cst_99 : f32 to vector<8x128xf32>
    %351 = arith.select %349, %346, %350 : vector<8x128xi1>, vector<8x128xf32>
    %352 = arith.index_cast %c7_i32 : i32 to index
    %c0_100 = arith.constant 0 : index
    %c0_101 = arith.constant 0 : index
    %353 = vector.load %arg6[%352, %c0_100, %c0_101] : memref<16x8x128xf32, #tpu.memory_space<vmem>>, vector<1x8x128xf32>
    %354 = vector.shape_cast %353 : vector<1x8x128xf32> to vector<8x128xf32>
    %355 = vector.shape_cast %351 : vector<8x128xf32> to vector<1x8x128xf32>
    tpu.vector_store %arg6[%352, %c0_100, %c0_101], %355 {strides = array<i32>} : memref<16x8x128xf32, #tpu.memory_space<vmem>>, vector<1x8x128xf32>,
    %356 = arith.select %349, %346, %313 : vector<8x128xi1>, vector<8x128xf32>
    %357 = arith.select %349, %344, %314 : vector<8x128xi1>, vector<8x128xf32>
    %c8_i32_102 = arith.constant 8 : i32
    %c8_i32_103 = arith.constant 8 : i32
    %358 = arith.muli %c8_i32_102, %c8_i32_103 : i32
    %359 = tpu.assume_multiple %358, 8 : i32
    %360 = arith.index_cast %359 : i32 to index
    %c0_104 = arith.constant 0 : index
    %361 = vector.load %arg9[%360, %c0_104] : memref<128x512xf32, #tpu.memory_space<vmem>>, vector<8x512xf32>
    %c0_105 = arith.constant 0 : index
    %c0_106 = arith.constant 0 : index
    %362 = vector.load %arg5[%c0_105, %c0_106] : memref<128x512xf32, #tpu.memory_space<vmem>>, vector<128x512xf32>
    %cst_107 = arith.constant dense<0.000000e+00> : vector<8x512xf32>
    %363 = tpu.matmul %356, %362, %cst_107 {dimension_numbers = #tpu.dot_dimension_numbers<[1], [0], [0], [1], [0, 0, 1, 1], [], []>} : vector<8x128xf32>, vector<128x512xf32>, vector<8x512xf32> -> vector<8x512xf32>
    %364 = arith.addf %361, %363 : vector<8x512xf32>
    %365 = vector.extract_strided_slice %364 {offsets = [0, 0], sizes = [8, 128], strides = [1, 1]} : vector<8x512xf32> to vector<8x128xf32>
    %366 = arith.negf %365 : vector<8x128xf32>
    %367 = math.exp %366 : vector<8x128xf32>
    %cst_108 = arith.constant 1.000000e+00 : f32
    %368 = vector.broadcast %cst_108 : f32 to vector<8x128xf32>
    %369 = arith.addf %368, %367 : vector<8x128xf32>
    %370 = arith.divf %368, %369 : vector<8x128xf32>
    %371 = vector.extract_strided_slice %364 {offsets = [0, 128], sizes = [8, 128], strides = [1, 1]} : vector<8x512xf32> to vector<8x128xf32>
    %372 = arith.negf %371 : vector<8x128xf32>
    %373 = math.exp %372 : vector<8x128xf32>
    %cst_109 = arith.constant 1.000000e+00 : f32
    %374 = vector.broadcast %cst_109 : f32 to vector<8x128xf32>
    %375 = arith.addf %374, %373 : vector<8x128xf32>
    %376 = arith.divf %374, %375 : vector<8x128xf32>
    %377 = vector.extract_strided_slice %364 {offsets = [0, 256], sizes = [8, 128], strides = [1, 1]} : vector<8x512xf32> to vector<8x128xf32>
    %378 = math.tanh %377 : vector<8x128xf32>
    %379 = vector.extract_strided_slice %364 {offsets = [0, 384], sizes = [8, 128], strides = [1, 1]} : vector<8x512xf32> to vector<8x128xf32>
    %380 = arith.negf %379 : vector<8x128xf32>
    %381 = math.exp %380 : vector<8x128xf32>
    %cst_110 = arith.constant 1.000000e+00 : f32
    %382 = vector.broadcast %cst_110 : f32 to vector<8x128xf32>
    %383 = arith.addf %382, %381 : vector<8x128xf32>
    %384 = arith.divf %382, %383 : vector<8x128xf32>
    %385 = arith.mulf %376, %357 : vector<8x128xf32>
    %386 = arith.mulf %370, %378 : vector<8x128xf32>
    %387 = arith.addf %385, %386 : vector<8x128xf32>
    %388 = math.tanh %387 : vector<8x128xf32>
    %389 = arith.mulf %384, %388 : vector<8x128xf32>
    %390 = arith.addi %11, %c8_i32_102 : i32
    %391 = vector.broadcast %390 : i32 to vector<8x128xi32>
    %392 = arith.cmpi slt, %391, %10 : vector<8x128xi32>
    %cst_111 = arith.constant 0.000000e+00 : f32
    %393 = vector.broadcast %cst_111 : f32 to vector<8x128xf32>
    %394 = arith.select %392, %389, %393 : vector<8x128xi1>, vector<8x128xf32>
    %395 = arith.index_cast %c8_i32_102 : i32 to index
    %c0_112 = arith.constant 0 : index
    %c0_113 = arith.constant 0 : index
    %396 = vector.load %arg6[%395, %c0_112, %c0_113] : memref<16x8x128xf32, #tpu.memory_space<vmem>>, vector<1x8x128xf32>
    %397 = vector.shape_cast %396 : vector<1x8x128xf32> to vector<8x128xf32>
    %398 = vector.shape_cast %394 : vector<8x128xf32> to vector<1x8x128xf32>
    tpu.vector_store %arg6[%395, %c0_112, %c0_113], %398 {strides = array<i32>} : memref<16x8x128xf32, #tpu.memory_space<vmem>>, vector<1x8x128xf32>,
    %399 = arith.select %392, %389, %356 : vector<8x128xi1>, vector<8x128xf32>
    %400 = arith.select %392, %387, %357 : vector<8x128xi1>, vector<8x128xf32>
    %c9_i32 = arith.constant 9 : i32
    %c8_i32_114 = arith.constant 8 : i32
    %401 = arith.muli %c9_i32, %c8_i32_114 : i32
    %402 = tpu.assume_multiple %401, 8 : i32
    %403 = arith.index_cast %402 : i32 to index
    %c0_115 = arith.constant 0 : index
    %404 = vector.load %arg9[%403, %c0_115] : memref<128x512xf32, #tpu.memory_space<vmem>>, vector<8x512xf32>
    %c0_116 = arith.constant 0 : index
    %c0_117 = arith.constant 0 : index
    %405 = vector.load %arg5[%c0_116, %c0_117] : memref<128x512xf32, #tpu.memory_space<vmem>>, vector<128x512xf32>
    %cst_118 = arith.constant dense<0.000000e+00> : vector<8x512xf32>
    %406 = tpu.matmul %399, %405, %cst_118 {dimension_numbers = #tpu.dot_dimension_numbers<[1], [0], [0], [1], [0, 0, 1, 1], [], []>} : vector<8x128xf32>, vector<128x512xf32>, vector<8x512xf32> -> vector<8x512xf32>
    %407 = arith.addf %404, %406 : vector<8x512xf32>
    %408 = vector.extract_strided_slice %407 {offsets = [0, 0], sizes = [8, 128], strides = [1, 1]} : vector<8x512xf32> to vector<8x128xf32>
    %409 = arith.negf %408 : vector<8x128xf32>
    %410 = math.exp %409 : vector<8x128xf32>
    %cst_119 = arith.constant 1.000000e+00 : f32
    %411 = vector.broadcast %cst_119 : f32 to vector<8x128xf32>
    %412 = arith.addf %411, %410 : vector<8x128xf32>
    %413 = arith.divf %411, %412 : vector<8x128xf32>
    %414 = vector.extract_strided_slice %407 {offsets = [0, 128], sizes = [8, 128], strides = [1, 1]} : vector<8x512xf32> to vector<8x128xf32>
    %415 = arith.negf %414 : vector<8x128xf32>
    %416 = math.exp %415 : vector<8x128xf32>
    %cst_120 = arith.constant 1.000000e+00 : f32
    %417 = vector.broadcast %cst_120 : f32 to vector<8x128xf32>
    %418 = arith.addf %417, %416 : vector<8x128xf32>
    %419 = arith.divf %417, %418 : vector<8x128xf32>
    %420 = vector.extract_strided_slice %407 {offsets = [0, 256], sizes = [8, 128], strides = [1, 1]} : vector<8x512xf32> to vector<8x128xf32>
    %421 = math.tanh %420 : vector<8x128xf32>
    %422 = vector.extract_strided_slice %407 {offsets = [0, 384], sizes = [8, 128], strides = [1, 1]} : vector<8x512xf32> to vector<8x128xf32>
    %423 = arith.negf %422 : vector<8x128xf32>
    %424 = math.exp %423 : vector<8x128xf32>
    %cst_121 = arith.constant 1.000000e+00 : f32
    %425 = vector.broadcast %cst_121 : f32 to vector<8x128xf32>
    %426 = arith.addf %425, %424 : vector<8x128xf32>
    %427 = arith.divf %425, %426 : vector<8x128xf32>
    %428 = arith.mulf %419, %400 : vector<8x128xf32>
    %429 = arith.mulf %413, %421 : vector<8x128xf32>
    %430 = arith.addf %428, %429 : vector<8x128xf32>
    %431 = math.tanh %430 : vector<8x128xf32>
    %432 = arith.mulf %427, %431 : vector<8x128xf32>
    %433 = arith.addi %11, %c9_i32 : i32
    %434 = vector.broadcast %433 : i32 to vector<8x128xi32>
    %435 = arith.cmpi slt, %434, %10 : vector<8x128xi32>
    %cst_122 = arith.constant 0.000000e+00 : f32
    %436 = vector.broadcast %cst_122 : f32 to vector<8x128xf32>
    %437 = arith.select %435, %432, %436 : vector<8x128xi1>, vector<8x128xf32>
    %438 = arith.index_cast %c9_i32 : i32 to index
    %c0_123 = arith.constant 0 : index
    %c0_124 = arith.constant 0 : index
    %439 = vector.load %arg6[%438, %c0_123, %c0_124] : memref<16x8x128xf32, #tpu.memory_space<vmem>>, vector<1x8x128xf32>
    %440 = vector.shape_cast %439 : vector<1x8x128xf32> to vector<8x128xf32>
    %441 = vector.shape_cast %437 : vector<8x128xf32> to vector<1x8x128xf32>
    tpu.vector_store %arg6[%438, %c0_123, %c0_124], %441 {strides = array<i32>} : memref<16x8x128xf32, #tpu.memory_space<vmem>>, vector<1x8x128xf32>,
    %442 = arith.select %435, %432, %399 : vector<8x128xi1>, vector<8x128xf32>
    %443 = arith.select %435, %430, %400 : vector<8x128xi1>, vector<8x128xf32>
    %c10_i32 = arith.constant 10 : i32
    %c8_i32_125 = arith.constant 8 : i32
    %444 = arith.muli %c10_i32, %c8_i32_125 : i32
    %445 = tpu.assume_multiple %444, 8 : i32
    %446 = arith.index_cast %445 : i32 to index
    %c0_126 = arith.constant 0 : index
    %447 = vector.load %arg9[%446, %c0_126] : memref<128x512xf32, #tpu.memory_space<vmem>>, vector<8x512xf32>
    %c0_127 = arith.constant 0 : index
    %c0_128 = arith.constant 0 : index
    %448 = vector.load %arg5[%c0_127, %c0_128] : memref<128x512xf32, #tpu.memory_space<vmem>>, vector<128x512xf32>
    %cst_129 = arith.constant dense<0.000000e+00> : vector<8x512xf32>
    %449 = tpu.matmul %442, %448, %cst_129 {dimension_numbers = #tpu.dot_dimension_numbers<[1], [0], [0], [1], [0, 0, 1, 1], [], []>} : vector<8x128xf32>, vector<128x512xf32>, vector<8x512xf32> -> vector<8x512xf32>
    %450 = arith.addf %447, %449 : vector<8x512xf32>
    %451 = vector.extract_strided_slice %450 {offsets = [0, 0], sizes = [8, 128], strides = [1, 1]} : vector<8x512xf32> to vector<8x128xf32>
    %452 = arith.negf %451 : vector<8x128xf32>
    %453 = math.exp %452 : vector<8x128xf32>
    %cst_130 = arith.constant 1.000000e+00 : f32
    %454 = vector.broadcast %cst_130 : f32 to vector<8x128xf32>
    %455 = arith.addf %454, %453 : vector<8x128xf32>
    %456 = arith.divf %454, %455 : vector<8x128xf32>
    %457 = vector.extract_strided_slice %450 {offsets = [0, 128], sizes = [8, 128], strides = [1, 1]} : vector<8x512xf32> to vector<8x128xf32>
    %458 = arith.negf %457 : vector<8x128xf32>
    %459 = math.exp %458 : vector<8x128xf32>
    %cst_131 = arith.constant 1.000000e+00 : f32
    %460 = vector.broadcast %cst_131 : f32 to vector<8x128xf32>
    %461 = arith.addf %460, %459 : vector<8x128xf32>
    %462 = arith.divf %460, %461 : vector<8x128xf32>
    %463 = vector.extract_strided_slice %450 {offsets = [0, 256], sizes = [8, 128], strides = [1, 1]} : vector<8x512xf32> to vector<8x128xf32>
    %464 = math.tanh %463 : vector<8x128xf32>
    %465 = vector.extract_strided_slice %450 {offsets = [0, 384], sizes = [8, 128], strides = [1, 1]} : vector<8x512xf32> to vector<8x128xf32>
    %466 = arith.negf %465 : vector<8x128xf32>
    %467 = math.exp %466 : vector<8x128xf32>
    %cst_132 = arith.constant 1.000000e+00 : f32
    %468 = vector.broadcast %cst_132 : f32 to vector<8x128xf32>
    %469 = arith.addf %468, %467 : vector<8x128xf32>
    %470 = arith.divf %468, %469 : vector<8x128xf32>
    %471 = arith.mulf %462, %443 : vector<8x128xf32>
    %472 = arith.mulf %456, %464 : vector<8x128xf32>
    %473 = arith.addf %471, %472 : vector<8x128xf32>
    %474 = math.tanh %473 : vector<8x128xf32>
    %475 = arith.mulf %470, %474 : vector<8x128xf32>
    %476 = arith.addi %11, %c10_i32 : i32
    %477 = vector.broadcast %476 : i32 to vector<8x128xi32>
    %478 = arith.cmpi slt, %477, %10 : vector<8x128xi32>
    %cst_133 = arith.constant 0.000000e+00 : f32
    %479 = vector.broadcast %cst_133 : f32 to vector<8x128xf32>
    %480 = arith.select %478, %475, %479 : vector<8x128xi1>, vector<8x128xf32>
    %481 = arith.index_cast %c10_i32 : i32 to index
    %c0_134 = arith.constant 0 : index
    %c0_135 = arith.constant 0 : index
    %482 = vector.load %arg6[%481, %c0_134, %c0_135] : memref<16x8x128xf32, #tpu.memory_space<vmem>>, vector<1x8x128xf32>
    %483 = vector.shape_cast %482 : vector<1x8x128xf32> to vector<8x128xf32>
    %484 = vector.shape_cast %480 : vector<8x128xf32> to vector<1x8x128xf32>
    tpu.vector_store %arg6[%481, %c0_134, %c0_135], %484 {strides = array<i32>} : memref<16x8x128xf32, #tpu.memory_space<vmem>>, vector<1x8x128xf32>,
    %485 = arith.select %478, %475, %442 : vector<8x128xi1>, vector<8x128xf32>
    %486 = arith.select %478, %473, %443 : vector<8x128xi1>, vector<8x128xf32>
    %c11_i32 = arith.constant 11 : i32
    %c8_i32_136 = arith.constant 8 : i32
    %487 = arith.muli %c11_i32, %c8_i32_136 : i32
    %488 = tpu.assume_multiple %487, 8 : i32
    %489 = arith.index_cast %488 : i32 to index
    %c0_137 = arith.constant 0 : index
    %490 = vector.load %arg9[%489, %c0_137] : memref<128x512xf32, #tpu.memory_space<vmem>>, vector<8x512xf32>
    %c0_138 = arith.constant 0 : index
    %c0_139 = arith.constant 0 : index
    %491 = vector.load %arg5[%c0_138, %c0_139] : memref<128x512xf32, #tpu.memory_space<vmem>>, vector<128x512xf32>
    %cst_140 = arith.constant dense<0.000000e+00> : vector<8x512xf32>
    %492 = tpu.matmul %485, %491, %cst_140 {dimension_numbers = #tpu.dot_dimension_numbers<[1], [0], [0], [1], [0, 0, 1, 1], [], []>} : vector<8x128xf32>, vector<128x512xf32>, vector<8x512xf32> -> vector<8x512xf32>
    %493 = arith.addf %490, %492 : vector<8x512xf32>
    %494 = vector.extract_strided_slice %493 {offsets = [0, 0], sizes = [8, 128], strides = [1, 1]} : vector<8x512xf32> to vector<8x128xf32>
    %495 = arith.negf %494 : vector<8x128xf32>
    %496 = math.exp %495 : vector<8x128xf32>
    %cst_141 = arith.constant 1.000000e+00 : f32
    %497 = vector.broadcast %cst_141 : f32 to vector<8x128xf32>
    %498 = arith.addf %497, %496 : vector<8x128xf32>
    %499 = arith.divf %497, %498 : vector<8x128xf32>
    %500 = vector.extract_strided_slice %493 {offsets = [0, 128], sizes = [8, 128], strides = [1, 1]} : vector<8x512xf32> to vector<8x128xf32>
    %501 = arith.negf %500 : vector<8x128xf32>
    %502 = math.exp %501 : vector<8x128xf32>
    %cst_142 = arith.constant 1.000000e+00 : f32
    %503 = vector.broadcast %cst_142 : f32 to vector<8x128xf32>
    %504 = arith.addf %503, %502 : vector<8x128xf32>
    %505 = arith.divf %503, %504 : vector<8x128xf32>
    %506 = vector.extract_strided_slice %493 {offsets = [0, 256], sizes = [8, 128], strides = [1, 1]} : vector<8x512xf32> to vector<8x128xf32>
    %507 = math.tanh %506 : vector<8x128xf32>
    %508 = vector.extract_strided_slice %493 {offsets = [0, 384], sizes = [8, 128], strides = [1, 1]} : vector<8x512xf32> to vector<8x128xf32>
    %509 = arith.negf %508 : vector<8x128xf32>
    %510 = math.exp %509 : vector<8x128xf32>
    %cst_143 = arith.constant 1.000000e+00 : f32
    %511 = vector.broadcast %cst_143 : f32 to vector<8x128xf32>
    %512 = arith.addf %511, %510 : vector<8x128xf32>
    %513 = arith.divf %511, %512 : vector<8x128xf32>
    %514 = arith.mulf %505, %486 : vector<8x128xf32>
    %515 = arith.mulf %499, %507 : vector<8x128xf32>
    %516 = arith.addf %514, %515 : vector<8x128xf32>
    %517 = math.tanh %516 : vector<8x128xf32>
    %518 = arith.mulf %513, %517 : vector<8x128xf32>
    %519 = arith.addi %11, %c11_i32 : i32
    %520 = vector.broadcast %519 : i32 to vector<8x128xi32>
    %521 = arith.cmpi slt, %520, %10 : vector<8x128xi32>
    %cst_144 = arith.constant 0.000000e+00 : f32
    %522 = vector.broadcast %cst_144 : f32 to vector<8x128xf32>
    %523 = arith.select %521, %518, %522 : vector<8x128xi1>, vector<8x128xf32>
    %524 = arith.index_cast %c11_i32 : i32 to index
    %c0_145 = arith.constant 0 : index
    %c0_146 = arith.constant 0 : index
    %525 = vector.load %arg6[%524, %c0_145, %c0_146] : memref<16x8x128xf32, #tpu.memory_space<vmem>>, vector<1x8x128xf32>
    %526 = vector.shape_cast %525 : vector<1x8x128xf32> to vector<8x128xf32>
    %527 = vector.shape_cast %523 : vector<8x128xf32> to vector<1x8x128xf32>
    tpu.vector_store %arg6[%524, %c0_145, %c0_146], %527 {strides = array<i32>} : memref<16x8x128xf32, #tpu.memory_space<vmem>>, vector<1x8x128xf32>,
    %528 = arith.select %521, %518, %485 : vector<8x128xi1>, vector<8x128xf32>
    %529 = arith.select %521, %516, %486 : vector<8x128xi1>, vector<8x128xf32>
    %c12_i32 = arith.constant 12 : i32
    %c8_i32_147 = arith.constant 8 : i32
    %530 = arith.muli %c12_i32, %c8_i32_147 : i32
    %531 = tpu.assume_multiple %530, 8 : i32
    %532 = arith.index_cast %531 : i32 to index
    %c0_148 = arith.constant 0 : index
    %533 = vector.load %arg9[%532, %c0_148] : memref<128x512xf32, #tpu.memory_space<vmem>>, vector<8x512xf32>
    %c0_149 = arith.constant 0 : index
    %c0_150 = arith.constant 0 : index
    %534 = vector.load %arg5[%c0_149, %c0_150] : memref<128x512xf32, #tpu.memory_space<vmem>>, vector<128x512xf32>
    %cst_151 = arith.constant dense<0.000000e+00> : vector<8x512xf32>
    %535 = tpu.matmul %528, %534, %cst_151 {dimension_numbers = #tpu.dot_dimension_numbers<[1], [0], [0], [1], [0, 0, 1, 1], [], []>} : vector<8x128xf32>, vector<128x512xf32>, vector<8x512xf32> -> vector<8x512xf32>
    %536 = arith.addf %533, %535 : vector<8x512xf32>
    %537 = vector.extract_strided_slice %536 {offsets = [0, 0], sizes = [8, 128], strides = [1, 1]} : vector<8x512xf32> to vector<8x128xf32>
    %538 = arith.negf %537 : vector<8x128xf32>
    %539 = math.exp %538 : vector<8x128xf32>
    %cst_152 = arith.constant 1.000000e+00 : f32
    %540 = vector.broadcast %cst_152 : f32 to vector<8x128xf32>
    %541 = arith.addf %540, %539 : vector<8x128xf32>
    %542 = arith.divf %540, %541 : vector<8x128xf32>
    %543 = vector.extract_strided_slice %536 {offsets = [0, 128], sizes = [8, 128], strides = [1, 1]} : vector<8x512xf32> to vector<8x128xf32>
    %544 = arith.negf %543 : vector<8x128xf32>
    %545 = math.exp %544 : vector<8x128xf32>
    %cst_153 = arith.constant 1.000000e+00 : f32
    %546 = vector.broadcast %cst_153 : f32 to vector<8x128xf32>
    %547 = arith.addf %546, %545 : vector<8x128xf32>
    %548 = arith.divf %546, %547 : vector<8x128xf32>
    %549 = vector.extract_strided_slice %536 {offsets = [0, 256], sizes = [8, 128], strides = [1, 1]} : vector<8x512xf32> to vector<8x128xf32>
    %550 = math.tanh %549 : vector<8x128xf32>
    %551 = vector.extract_strided_slice %536 {offsets = [0, 384], sizes = [8, 128], strides = [1, 1]} : vector<8x512xf32> to vector<8x128xf32>
    %552 = arith.negf %551 : vector<8x128xf32>
    %553 = math.exp %552 : vector<8x128xf32>
    %cst_154 = arith.constant 1.000000e+00 : f32
    %554 = vector.broadcast %cst_154 : f32 to vector<8x128xf32>
    %555 = arith.addf %554, %553 : vector<8x128xf32>
    %556 = arith.divf %554, %555 : vector<8x128xf32>
    %557 = arith.mulf %548, %529 : vector<8x128xf32>
    %558 = arith.mulf %542, %550 : vector<8x128xf32>
    %559 = arith.addf %557, %558 : vector<8x128xf32>
    %560 = math.tanh %559 : vector<8x128xf32>
    %561 = arith.mulf %556, %560 : vector<8x128xf32>
    %562 = arith.addi %11, %c12_i32 : i32
    %563 = vector.broadcast %562 : i32 to vector<8x128xi32>
    %564 = arith.cmpi slt, %563, %10 : vector<8x128xi32>
    %cst_155 = arith.constant 0.000000e+00 : f32
    %565 = vector.broadcast %cst_155 : f32 to vector<8x128xf32>
    %566 = arith.select %564, %561, %565 : vector<8x128xi1>, vector<8x128xf32>
    %567 = arith.index_cast %c12_i32 : i32 to index
    %c0_156 = arith.constant 0 : index
    %c0_157 = arith.constant 0 : index
    %568 = vector.load %arg6[%567, %c0_156, %c0_157] : memref<16x8x128xf32, #tpu.memory_space<vmem>>, vector<1x8x128xf32>
    %569 = vector.shape_cast %568 : vector<1x8x128xf32> to vector<8x128xf32>
    %570 = vector.shape_cast %566 : vector<8x128xf32> to vector<1x8x128xf32>
    tpu.vector_store %arg6[%567, %c0_156, %c0_157], %570 {strides = array<i32>} : memref<16x8x128xf32, #tpu.memory_space<vmem>>, vector<1x8x128xf32>,
    %571 = arith.select %564, %561, %528 : vector<8x128xi1>, vector<8x128xf32>
    %572 = arith.select %564, %559, %529 : vector<8x128xi1>, vector<8x128xf32>
    %c13_i32 = arith.constant 13 : i32
    %c8_i32_158 = arith.constant 8 : i32
    %573 = arith.muli %c13_i32, %c8_i32_158 : i32
    %574 = tpu.assume_multiple %573, 8 : i32
    %575 = arith.index_cast %574 : i32 to index
    %c0_159 = arith.constant 0 : index
    %576 = vector.load %arg9[%575, %c0_159] : memref<128x512xf32, #tpu.memory_space<vmem>>, vector<8x512xf32>
    %c0_160 = arith.constant 0 : index
    %c0_161 = arith.constant 0 : index
    %577 = vector.load %arg5[%c0_160, %c0_161] : memref<128x512xf32, #tpu.memory_space<vmem>>, vector<128x512xf32>
    %cst_162 = arith.constant dense<0.000000e+00> : vector<8x512xf32>
    %578 = tpu.matmul %571, %577, %cst_162 {dimension_numbers = #tpu.dot_dimension_numbers<[1], [0], [0], [1], [0, 0, 1, 1], [], []>} : vector<8x128xf32>, vector<128x512xf32>, vector<8x512xf32> -> vector<8x512xf32>
    %579 = arith.addf %576, %578 : vector<8x512xf32>
    %580 = vector.extract_strided_slice %579 {offsets = [0, 0], sizes = [8, 128], strides = [1, 1]} : vector<8x512xf32> to vector<8x128xf32>
    %581 = arith.negf %580 : vector<8x128xf32>
    %582 = math.exp %581 : vector<8x128xf32>
    %cst_163 = arith.constant 1.000000e+00 : f32
    %583 = vector.broadcast %cst_163 : f32 to vector<8x128xf32>
    %584 = arith.addf %583, %582 : vector<8x128xf32>
    %585 = arith.divf %583, %584 : vector<8x128xf32>
    %586 = vector.extract_strided_slice %579 {offsets = [0, 128], sizes = [8, 128], strides = [1, 1]} : vector<8x512xf32> to vector<8x128xf32>
    %587 = arith.negf %586 : vector<8x128xf32>
    %588 = math.exp %587 : vector<8x128xf32>
    %cst_164 = arith.constant 1.000000e+00 : f32
    %589 = vector.broadcast %cst_164 : f32 to vector<8x128xf32>
    %590 = arith.addf %589, %588 : vector<8x128xf32>
    %591 = arith.divf %589, %590 : vector<8x128xf32>
    %592 = vector.extract_strided_slice %579 {offsets = [0, 256], sizes = [8, 128], strides = [1, 1]} : vector<8x512xf32> to vector<8x128xf32>
    %593 = math.tanh %592 : vector<8x128xf32>
    %594 = vector.extract_strided_slice %579 {offsets = [0, 384], sizes = [8, 128], strides = [1, 1]} : vector<8x512xf32> to vector<8x128xf32>
    %595 = arith.negf %594 : vector<8x128xf32>
    %596 = math.exp %595 : vector<8x128xf32>
    %cst_165 = arith.constant 1.000000e+00 : f32
    %597 = vector.broadcast %cst_165 : f32 to vector<8x128xf32>
    %598 = arith.addf %597, %596 : vector<8x128xf32>
    %599 = arith.divf %597, %598 : vector<8x128xf32>
    %600 = arith.mulf %591, %572 : vector<8x128xf32>
    %601 = arith.mulf %585, %593 : vector<8x128xf32>
    %602 = arith.addf %600, %601 : vector<8x128xf32>
    %603 = math.tanh %602 : vector<8x128xf32>
    %604 = arith.mulf %599, %603 : vector<8x128xf32>
    %605 = arith.addi %11, %c13_i32 : i32
    %606 = vector.broadcast %605 : i32 to vector<8x128xi32>
    %607 = arith.cmpi slt, %606, %10 : vector<8x128xi32>
    %cst_166 = arith.constant 0.000000e+00 : f32
    %608 = vector.broadcast %cst_166 : f32 to vector<8x128xf32>
    %609 = arith.select %607, %604, %608 : vector<8x128xi1>, vector<8x128xf32>
    %610 = arith.index_cast %c13_i32 : i32 to index
    %c0_167 = arith.constant 0 : index
    %c0_168 = arith.constant 0 : index
    %611 = vector.load %arg6[%610, %c0_167, %c0_168] : memref<16x8x128xf32, #tpu.memory_space<vmem>>, vector<1x8x128xf32>
    %612 = vector.shape_cast %611 : vector<1x8x128xf32> to vector<8x128xf32>
    %613 = vector.shape_cast %609 : vector<8x128xf32> to vector<1x8x128xf32>
    tpu.vector_store %arg6[%610, %c0_167, %c0_168], %613 {strides = array<i32>} : memref<16x8x128xf32, #tpu.memory_space<vmem>>, vector<1x8x128xf32>,
    %614 = arith.select %607, %604, %571 : vector<8x128xi1>, vector<8x128xf32>
    %615 = arith.select %607, %602, %572 : vector<8x128xi1>, vector<8x128xf32>
    %c14_i32 = arith.constant 14 : i32
    %c8_i32_169 = arith.constant 8 : i32
    %616 = arith.muli %c14_i32, %c8_i32_169 : i32
    %617 = tpu.assume_multiple %616, 8 : i32
    %618 = arith.index_cast %617 : i32 to index
    %c0_170 = arith.constant 0 : index
    %619 = vector.load %arg9[%618, %c0_170] : memref<128x512xf32, #tpu.memory_space<vmem>>, vector<8x512xf32>
    %c0_171 = arith.constant 0 : index
    %c0_172 = arith.constant 0 : index
    %620 = vector.load %arg5[%c0_171, %c0_172] : memref<128x512xf32, #tpu.memory_space<vmem>>, vector<128x512xf32>
    %cst_173 = arith.constant dense<0.000000e+00> : vector<8x512xf32>
    %621 = tpu.matmul %614, %620, %cst_173 {dimension_numbers = #tpu.dot_dimension_numbers<[1], [0], [0], [1], [0, 0, 1, 1], [], []>} : vector<8x128xf32>, vector<128x512xf32>, vector<8x512xf32> -> vector<8x512xf32>
    %622 = arith.addf %619, %621 : vector<8x512xf32>
    %623 = vector.extract_strided_slice %622 {offsets = [0, 0], sizes = [8, 128], strides = [1, 1]} : vector<8x512xf32> to vector<8x128xf32>
    %624 = arith.negf %623 : vector<8x128xf32>
    %625 = math.exp %624 : vector<8x128xf32>
    %cst_174 = arith.constant 1.000000e+00 : f32
    %626 = vector.broadcast %cst_174 : f32 to vector<8x128xf32>
    %627 = arith.addf %626, %625 : vector<8x128xf32>
    %628 = arith.divf %626, %627 : vector<8x128xf32>
    %629 = vector.extract_strided_slice %622 {offsets = [0, 128], sizes = [8, 128], strides = [1, 1]} : vector<8x512xf32> to vector<8x128xf32>
    %630 = arith.negf %629 : vector<8x128xf32>
    %631 = math.exp %630 : vector<8x128xf32>
    %cst_175 = arith.constant 1.000000e+00 : f32
    %632 = vector.broadcast %cst_175 : f32 to vector<8x128xf32>
    %633 = arith.addf %632, %631 : vector<8x128xf32>
    %634 = arith.divf %632, %633 : vector<8x128xf32>
    %635 = vector.extract_strided_slice %622 {offsets = [0, 256], sizes = [8, 128], strides = [1, 1]} : vector<8x512xf32> to vector<8x128xf32>
    %636 = math.tanh %635 : vector<8x128xf32>
    %637 = vector.extract_strided_slice %622 {offsets = [0, 384], sizes = [8, 128], strides = [1, 1]} : vector<8x512xf32> to vector<8x128xf32>
    %638 = arith.negf %637 : vector<8x128xf32>
    %639 = math.exp %638 : vector<8x128xf32>
    %cst_176 = arith.constant 1.000000e+00 : f32
    %640 = vector.broadcast %cst_176 : f32 to vector<8x128xf32>
    %641 = arith.addf %640, %639 : vector<8x128xf32>
    %642 = arith.divf %640, %641 : vector<8x128xf32>
    %643 = arith.mulf %634, %615 : vector<8x128xf32>
    %644 = arith.mulf %628, %636 : vector<8x128xf32>
    %645 = arith.addf %643, %644 : vector<8x128xf32>
    %646 = math.tanh %645 : vector<8x128xf32>
    %647 = arith.mulf %642, %646 : vector<8x128xf32>
    %648 = arith.addi %11, %c14_i32 : i32
    %649 = vector.broadcast %648 : i32 to vector<8x128xi32>
    %650 = arith.cmpi slt, %649, %10 : vector<8x128xi32>
    %cst_177 = arith.constant 0.000000e+00 : f32
    %651 = vector.broadcast %cst_177 : f32 to vector<8x128xf32>
    %652 = arith.select %650, %647, %651 : vector<8x128xi1>, vector<8x128xf32>
    %653 = arith.index_cast %c14_i32 : i32 to index
    %c0_178 = arith.constant 0 : index
    %c0_179 = arith.constant 0 : index
    %654 = vector.load %arg6[%653, %c0_178, %c0_179] : memref<16x8x128xf32, #tpu.memory_space<vmem>>, vector<1x8x128xf32>
    %655 = vector.shape_cast %654 : vector<1x8x128xf32> to vector<8x128xf32>
    %656 = vector.shape_cast %652 : vector<8x128xf32> to vector<1x8x128xf32>
    tpu.vector_store %arg6[%653, %c0_178, %c0_179], %656 {strides = array<i32>} : memref<16x8x128xf32, #tpu.memory_space<vmem>>, vector<1x8x128xf32>,
    %657 = arith.select %650, %647, %614 : vector<8x128xi1>, vector<8x128xf32>
    %658 = arith.select %650, %645, %615 : vector<8x128xi1>, vector<8x128xf32>
    %c15_i32 = arith.constant 15 : i32
    %c8_i32_180 = arith.constant 8 : i32
    %659 = arith.muli %c15_i32, %c8_i32_180 : i32
    %660 = tpu.assume_multiple %659, 8 : i32
    %661 = arith.index_cast %660 : i32 to index
    %c0_181 = arith.constant 0 : index
    %662 = vector.load %arg9[%661, %c0_181] : memref<128x512xf32, #tpu.memory_space<vmem>>, vector<8x512xf32>
    %c0_182 = arith.constant 0 : index
    %c0_183 = arith.constant 0 : index
    %663 = vector.load %arg5[%c0_182, %c0_183] : memref<128x512xf32, #tpu.memory_space<vmem>>, vector<128x512xf32>
    %cst_184 = arith.constant dense<0.000000e+00> : vector<8x512xf32>
    %664 = tpu.matmul %657, %663, %cst_184 {dimension_numbers = #tpu.dot_dimension_numbers<[1], [0], [0], [1], [0, 0, 1, 1], [], []>} : vector<8x128xf32>, vector<128x512xf32>, vector<8x512xf32> -> vector<8x512xf32>
    %665 = arith.addf %662, %664 : vector<8x512xf32>
    %666 = vector.extract_strided_slice %665 {offsets = [0, 0], sizes = [8, 128], strides = [1, 1]} : vector<8x512xf32> to vector<8x128xf32>
    %667 = arith.negf %666 : vector<8x128xf32>
    %668 = math.exp %667 : vector<8x128xf32>
    %cst_185 = arith.constant 1.000000e+00 : f32
    %669 = vector.broadcast %cst_185 : f32 to vector<8x128xf32>
    %670 = arith.addf %669, %668 : vector<8x128xf32>
    %671 = arith.divf %669, %670 : vector<8x128xf32>
    %672 = vector.extract_strided_slice %665 {offsets = [0, 128], sizes = [8, 128], strides = [1, 1]} : vector<8x512xf32> to vector<8x128xf32>
    %673 = arith.negf %672 : vector<8x128xf32>
    %674 = math.exp %673 : vector<8x128xf32>
    %cst_186 = arith.constant 1.000000e+00 : f32
    %675 = vector.broadcast %cst_186 : f32 to vector<8x128xf32>
    %676 = arith.addf %675, %674 : vector<8x128xf32>
    %677 = arith.divf %675, %676 : vector<8x128xf32>
    %678 = vector.extract_strided_slice %665 {offsets = [0, 256], sizes = [8, 128], strides = [1, 1]} : vector<8x512xf32> to vector<8x128xf32>
    %679 = math.tanh %678 : vector<8x128xf32>
    %680 = vector.extract_strided_slice %665 {offsets = [0, 384], sizes = [8, 128], strides = [1, 1]} : vector<8x512xf32> to vector<8x128xf32>
    %681 = arith.negf %680 : vector<8x128xf32>
    %682 = math.exp %681 : vector<8x128xf32>
    %cst_187 = arith.constant 1.000000e+00 : f32
    %683 = vector.broadcast %cst_187 : f32 to vector<8x128xf32>
    %684 = arith.addf %683, %682 : vector<8x128xf32>
    %685 = arith.divf %683, %684 : vector<8x128xf32>
    %686 = arith.mulf %677, %658 : vector<8x128xf32>
    %687 = arith.mulf %671, %679 : vector<8x128xf32>
    %688 = arith.addf %686, %687 : vector<8x128xf32>
    %689 = math.tanh %688 : vector<8x128xf32>
    %690 = arith.mulf %685, %689 : vector<8x128xf32>
    %691 = arith.addi %11, %c15_i32 : i32
    %692 = vector.broadcast %691 : i32 to vector<8x128xi32>
    %693 = arith.cmpi slt, %692, %10 : vector<8x128xi32>
    %cst_188 = arith.constant 0.000000e+00 : f32
    %694 = vector.broadcast %cst_188 : f32 to vector<8x128xf32>
    %695 = arith.select %693, %690, %694 : vector<8x128xi1>, vector<8x128xf32>
    %696 = arith.index_cast %c15_i32 : i32 to index
    %c0_189 = arith.constant 0 : index
    %c0_190 = arith.constant 0 : index
    %697 = vector.load %arg6[%696, %c0_189, %c0_190] : memref<16x8x128xf32, #tpu.memory_space<vmem>>, vector<1x8x128xf32>
    %698 = vector.shape_cast %697 : vector<1x8x128xf32> to vector<8x128xf32>
    %699 = vector.shape_cast %695 : vector<8x128xf32> to vector<1x8x128xf32>
    tpu.vector_store %arg6[%696, %c0_189, %c0_190], %699 {strides = array<i32>} : memref<16x8x128xf32, #tpu.memory_space<vmem>>, vector<1x8x128xf32>,
    %700 = arith.select %693, %690, %657 : vector<8x128xi1>, vector<8x128xf32>
    %701 = arith.select %693, %688, %658 : vector<8x128xi1>, vector<8x128xf32>
    %c16_i32_191 = arith.constant 16 : i32
    %c0_192 = arith.constant 0 : index
    %c0_193 = arith.constant 0 : index
    %702 = vector.load %arg10[%c0_192, %c0_193] : memref<8x128xf32, #tpu.memory_space<vmem>>, vector<8x128xf32>
    tpu.vector_store %arg10[%c0_192, %c0_193], %700 {strides = array<i32>} : memref<8x128xf32, #tpu.memory_space<vmem>>, vector<8x128xf32>,
    %c0_194 = arith.constant 0 : index
    %c0_195 = arith.constant 0 : index
    %703 = vector.load %arg11[%c0_194, %c0_195] : memref<8x128xf32, #tpu.memory_space<vmem>>, vector<8x128xf32>
    tpu.vector_store %arg11[%c0_194, %c0_195], %701 {strides = array<i32>} : memref<8x128xf32, #tpu.memory_space<vmem>>, vector<8x128xf32>,
    %c0_i32_196 = arith.constant 0 : i32
    %704 = arith.cmpi eq, %arg0, %c0_i32_196 : i32
    %705 = arith.extui %704 : i1 to i32
    %c0_i32_197 = arith.constant 0 : i32
    %706 = arith.cmpi ne, %705, %c0_i32_197 : i32
    scf.if %706 {
      %c0_198 = arith.constant 0 : index
      %c0_199 = arith.constant 0 : index
      %707 = vector.load %arg7[%c0_198, %c0_199] : memref<8x128xf32, #tpu.memory_space<vmem>>, vector<8x128xf32>
      tpu.vector_store %arg7[%c0_198, %c0_199], %700 {strides = array<i32>} : memref<8x128xf32, #tpu.memory_space<vmem>>, vector<8x128xf32>,
      %c0_200 = arith.constant 0 : index
      %c0_201 = arith.constant 0 : index
      %708 = vector.load %arg8[%c0_200, %c0_201] : memref<8x128xf32, #tpu.memory_space<vmem>>, vector<8x128xf32>
      tpu.vector_store %arg8[%c0_200, %c0_201], %701 {strides = array<i32>} : memref<8x128xf32, #tpu.memory_space<vmem>>, vector<8x128xf32>,
    } else {
    }
    return
  }
  func.func @transform_0(%arg0: i32) -> (i32, i32) {
    %c0_i32 = arith.constant 0 : i32
    %c0_i32_0 = arith.constant 0 : i32
    return %arg0, %c0_i32 : i32, i32
  }
  func.func @transform_1(%arg0: i32) -> (i32, i32) {
    %c0_i32 = arith.constant 0 : i32
    %c0_i32_0 = arith.constant 0 : i32
    %c0_i32_1 = arith.constant 0 : i32
    return %c0_i32, %c0_i32_0 : i32, i32
  }
  func.func @transform_2(%arg0: i32) -> (i32, i32) {
    %c0_i32 = arith.constant 0 : i32
    %c0_i32_0 = arith.constant 0 : i32
    %c0_i32_1 = arith.constant 0 : i32
    return %c0_i32, %c0_i32_0 : i32, i32
  }
  func.func @transform_3(%arg0: i32) -> (i32, i32) {
    %c0_i32 = arith.constant 0 : i32
    %c0_i32_0 = arith.constant 0 : i32
    %c0_i32_1 = arith.constant 0 : i32
    return %c0_i32, %c0_i32_0 : i32, i32
  }
  func.func @transform_4(%arg0: i32) -> (i32, i32) {
    %c0_i32 = arith.constant 0 : i32
    %c0_i32_0 = arith.constant 0 : i32
    %c0_i32_1 = arith.constant 0 : i32
    return %c0_i32, %c0_i32_0 : i32, i32
  }
  func.func @transform_5(%arg0: i32) -> (i32, i32, i32) {
    %c0_i32 = arith.constant 0 : i32
    %c0_i32_0 = arith.constant 0 : i32
    %c0_i32_1 = arith.constant 0 : i32
    return %arg0, %c0_i32, %c0_i32_0 : i32, i32, i32
  }
  func.func @transform_6(%arg0: i32) -> (i32, i32) {
    %c0_i32 = arith.constant 0 : i32
    %c0_i32_0 = arith.constant 0 : i32
    %c0_i32_1 = arith.constant 0 : i32
    return %c0_i32, %c0_i32_0 : i32, i32
  }
  func.func @transform_7(%arg0: i32) -> (i32, i32) {
    %c0_i32 = arith.constant 0 : i32
    %c0_i32_0 = arith.constant 0 : i32
    %c0_i32_1 = arith.constant 0 : i32
    return %c0_i32, %c0_i32_0 : i32, i32
  }
}

</mosaic_0001>

<llo_original>
// kernel: pointer_net_forward.3
$region0: #{pointer_net_forward.3}
  #allocation0 [shape = 'u32[]', space=smem, size = 0x4, offset = 0x4, fixed_abs, tag = 'smem constant byte address 0x4 - core index']
  #allocation1 [shape = 'u32[72,128]{1,0:T(1,128)}', space=vmem, size = 0x9000, scoped, tag = 'internal scratch']
  #allocation2 [shape = 'f32[32,128]{1,0:T(8,128)}', space=vmem, size = 0x4000, scoped, tag = 'scratch operand']
  %s0 = inlined_call_operand.vmem [shape: f32[8,128,128], index: 0, kind: input, shape index: {}]
  %s1 = inlined_call_operand.vmem [shape: f32[8,128], index: 1, kind: input, shape index: {}]
  %s2 = inlined_call_operand.vmem [shape: f32[8,128], index: 2, kind: input, shape index: {}]
  %s3 = inlined_call_operand.vmem [shape: f32[8,128], index: 3, kind: input, shape index: {}]
  %s4 = inlined_call_operand.vmem [shape: f32[128,512], index: 4, kind: input, shape index: {}]
  %s5 = inlined_call_operand.vmem [shape: f32[1,512], index: 5, kind: input, shape index: {}]
  %s6 = inlined_call_operand.vmem [shape: f32[128,128], index: 6, kind: input, shape index: {}]
  %s7 = inlined_call_operand.vmem [shape: f32[1,128], index: 7, kind: input, shape index: {}]
  %s8 = inlined_call_operand.hbm [shape: f32[8,4,128], index: 8, kind: output, shape index: {}]
  %s9 = sld [smem:[#allocation0]]
  $region42: #{pointer_net_forward.3} parent=0
    _
  %s11 = ssub.s32 1, %s9
  %s12 = scalar_select 0, %s11, %s9
  $region1: #{pointer_net_forward.3} parent=0
    #allocation3 [shape = 'u8[16384]{0}', space=vmem, size = 0x4000, scoped, tag = 'output window, operand 0, single buffered']
    #allocation4 [shape = 's32[1]{0}', space=sflag, size = 0x4, scoped, tag = 'scoped memory for pointer_net_forward.3']
    %13 = vsyncpa [#allocation4], 0
    // Predicated region
    $region2: #{pointer_net_forward.3} parent=1 // pred_check
      _
    $region3: #{pointer_net_forward.3} parent=1 // pred_check_branch
      %15 = sbr.rel (0) target = $region5
    $region4: #{pointer_net_forward.3} parent=1 // pred_region
      _
    $region5: #{pointer_net_forward.3} parent=1 // pred_fallthru
      _
    // Predicated region
    $region6: #{pointer_net_forward.3} parent=1 // pred_check
      _
    $region7: #{pointer_net_forward.3} parent=1 // pred_check_branch
      %17 = sbr.rel (0) target = $region9
    $region8: #{pointer_net_forward.3} parent=1 // pred_region
      _
    $region9: #{pointer_net_forward.3} parent=1 // pred_fallthru
      _
    // Predicated region
    $region10: #{pointer_net_forward.3} parent=1 // pred_check
      _
    $region11: #{pointer_net_forward.3} parent=1 // pred_check_branch
      %19 = sbr.rel (0) target = $region13
    $region12: #{pointer_net_forward.3} parent=1 // pred_region
      _
    $region13: #{pointer_net_forward.3} parent=1 // pred_fallthru
      _
    // Predicated region
    $region14: #{pointer_net_forward.3} parent=1 // pred_check
      _
    $region15: #{pointer_net_forward.3} parent=1 // pred_check_branch
      %21 = sbr.rel (0) target = $region17
    $region16: #{pointer_net_forward.3} parent=1 // pred_region
      _
    $region17: #{pointer_net_forward.3} parent=1 // pred_fallthru
      _
    // Predicated region
    $region18: #{pointer_net_forward.3} parent=1 // pred_check
      _
    $region19: #{pointer_net_forward.3} parent=1 // pred_check_branch
      %23 = sbr.rel (0) target = $region21
    $region20: #{pointer_net_forward.3} parent=1 // pred_region
      _
    $region21: #{pointer_net_forward.3} parent=1 // pred_fallthru
      _
    // Predicated region
    $region22: #{pointer_net_forward.3} parent=1 // pred_check
      _
    $region23: #{pointer_net_forward.3} parent=1 // pred_check_branch
      %25 = sbr.rel (0) target = $region25
    $region24: #{pointer_net_forward.3} parent=1 // pred_region
      _
    $region25: #{pointer_net_forward.3} parent=1 // pred_fallthru
      _
    // Predicated region
    $region26: #{pointer_net_forward.3} parent=1 // pred_check
      _
    $region27: #{pointer_net_forward.3} parent=1 // pred_check_branch
      %27 = sbr.rel (0) target = $region29
    $region28: #{pointer_net_forward.3} parent=1 // pred_region
      _
    $region29: #{pointer_net_forward.3} parent=1 // pred_fallthru
      _
    // Predicated region
    $region30: #{pointer_net_forward.3} parent=1 // pred_check
      _
    $region31: #{pointer_net_forward.3} parent=1 // pred_check_branch
      %29 = sbr.rel (0) target = $region33
    $region32: #{pointer_net_forward.3} parent=1 // pred_region
      _
    $region33: #{pointer_net_forward.3} parent=1 // pred_fallthru
      _
    %v30 = vld [vmem:[%s2] sm:$0xff]
    %v31 = vld [vmem:[%s3] sm:$0xff]
    %v32 = vld [vmem:[%s4] sm:$0xff]
    %v33 = vld [vmem:[%s4 + $0x8] sm:$0xff]
    %v34 = vld [vmem:[%s4 + $0x10] sm:$0xff]
    %v35 = vld [vmem:[%s4 + $0x18] sm:$0xff]
    %v36 = vld [vmem:[%s4 + $0x20] sm:$0xff]
    %v37 = vld [vmem:[%s4 + $0x28] sm:$0xff]
    %v38 = vld [vmem:[%s4 + $0x30] sm:$0xff]
    %v39 = vld [vmem:[%s4 + $0x38] sm:$0xff]
    %v40 = vld [vmem:[%s4 + $0x40] sm:$0xff]
    %v41 = vld [vmem:[%s4 + $0x48] sm:$0xff]
    %v42 = vld [vmem:[%s4 + $0x50] sm:$0xff]
    %v43 = vld [vmem:[%s4 + $0x58] sm:$0xff]
    %v44 = vld [vmem:[%s4 + $0x60] sm:$0xff]
    %v45 = vld [vmem:[%s4 + $0x68] sm:$0xff]
    %v46 = vld [vmem:[%s4 + $0x70] sm:$0xff]
    %v47 = vld [vmem:[%s4 + $0x78] sm:$0xff]
    %v48 = vld [vmem:[%s4 + $0x80] sm:$0xff]
    %v49 = vld [vmem:[%s4 + $0x88] sm:$0xff]
    %v50 = vld [vmem:[%s4 + $0x90] sm:$0xff]
    %v51 = vld [vmem:[%s4 + $0x98] sm:$0xff]
    %v52 = vld [vmem:[%s4 + $0xa0] sm:$0xff]
    %v53 = vld [vmem:[%s4 + $0xa8] sm:$0xff]
    %v54 = vld [vmem:[%s4 + $0xb0] sm:$0xff]
    %v55 = vld [vmem:[%s4 + $0xb8] sm:$0xff]
    %v56 = vld [vmem:[%s4 + $0xc0] sm:$0xff]
    %v57 = vld [vmem:[%s4 + $0xc8] sm:$0xff]
    %v58 = vld [vmem:[%s4 + $0xd0] sm:$0xff]
    %v59 = vld [vmem:[%s4 + $0xd8] sm:$0xff]
    %v60 = vld [vmem:[%s4 + $0xe0] sm:$0xff]
    %v61 = vld [vmem:[%s4 + $0xe8] sm:$0xff]
    %v62 = vld [vmem:[%s4 + $0xf0] sm:$0xff]
    %v63 = vld [vmem:[%s4 + $0xf8] sm:$0xff]
    %v64 = vld [vmem:[%s4 + $0x100] sm:$0xff]
    %v65 = vld [vmem:[%s4 + $0x108] sm:$0xff]
    %v66 = vld [vmem:[%s4 + $0x110] sm:$0xff]
    %v67 = vld [vmem:[%s4 + $0x118] sm:$0xff]
    %v68 = vld [vmem:[%s4 + $0x120] sm:$0xff]
    %v69 = vld [vmem:[%s4 + $0x128] sm:$0xff]
    %v70 = vld [vmem:[%s4 + $0x130] sm:$0xff]
    %v71 = vld [vmem:[%s4 + $0x138] sm:$0xff]
    %v72 = vld [vmem:[%s4 + $0x140] sm:$0xff]
    %v73 = vld [vmem:[%s4 + $0x148] sm:$0xff]
    %v74 = vld [vmem:[%s4 + $0x150] sm:$0xff]
    %v75 = vld [vmem:[%s4 + $0x158] sm:$0xff]
    %v76 = vld [vmem:[%s4 + $0x160] sm:$0xff]
    %v77 = vld [vmem:[%s4 + $0x168] sm:$0xff]
    %v78 = vld [vmem:[%s4 + $0x170] sm:$0xff]
    %v79 = vld [vmem:[%s4 + $0x178] sm:$0xff]
    %v80 = vld [vmem:[%s4 + $0x180] sm:$0xff]
    %v81 = vld [vmem:[%s4 + $0x188] sm:$0xff]
    %v82 = vld [vmem:[%s4 + $0x190] sm:$0xff]
    %v83 = vld [vmem:[%s4 + $0x198] sm:$0xff]
    %v84 = vld [vmem:[%s4 + $0x1a0] sm:$0xff]
    %v85 = vld [vmem:[%s4 + $0x1a8] sm:$0xff]
    %v86 = vld [vmem:[%s4 + $0x1b0] sm:$0xff]
    %v87 = vld [vmem:[%s4 + $0x1b8] sm:$0xff]
    %v88 = vld [vmem:[%s4 + $0x1c0] sm:$0xff]
    %v89 = vld [vmem:[%s4 + $0x1c8] sm:$0xff]
    %v90 = vld [vmem:[%s4 + $0x1d0] sm:$0xff]
    %v91 = vld [vmem:[%s4 + $0x1d8] sm:$0xff]
    %v92 = vld [vmem:[%s4 + $0x1e0] sm:$0xff]
    %v93 = vld [vmem:[%s4 + $0x1e8] sm:$0xff]
    %v94 = vld [vmem:[%s4 + $0x1f0] sm:$0xff]
    %v95 = vld [vmem:[%s4 + $0x1f8] sm:$0xff]
    %v96 = vld [vmem:[%s5] sm:$0xf]
    %v98 = vperm.slane %v96, 0
    %v99 = vperm.slane %v96, 1
    %v100 = vperm.slane %v96, 2
    %v101 = vperm.slane %v96, 3
    %106 = vmatpush.msra.mxu0 %v92
    %107 = vmatpush.msra.mxu0 %v88
    %108 = vmatpush.msra.mxu0 %v84
    %109 = vmatpush.msra.mxu0 %v80
    %110 = vmatpush.msra.mxu0 %v76
    %111 = vmatpush.msra.mxu0 %v72
    %112 = vmatpush.msra.mxu0 %v68
    %113 = vmatpush.msra.mxu0 %v64
    %114 = vmatpush.msra.mxu0 %v60
    %115 = vmatpush.msra.mxu0 %v56
    %116 = vmatpush.msra.mxu0 %v52
    %117 = vmatpush.msra.mxu0 %v48
    %118 = vmatpush.msra.mxu0 %v44
    %119 = vmatpush.msra.mxu0 %v40
    %120 = vmatpush.msra.mxu0 %v36
    %121 = vmatpush.msra.mxu0 %v32
    %122 = vmatmul.f32.gmra.mxu0 %v30
    %v123 = vpop.f32.mrf.mxu0
    %v124 = vadd.f32 %v98, %v123
    %125 = vdwg.mxu0
    %126 = vmatpush.msra.mxu0 %v93
    %127 = vmatpush.msra.mxu0 %v89
    %128 = vmatpush.msra.mxu0 %v85
    %129 = vmatpush.msra.mxu0 %v81
    %130 = vmatpush.msra.mxu0 %v77
    %131 = vmatpush.msra.mxu0 %v73
    %132 = vmatpush.msra.mxu0 %v69
    %133 = vmatpush.msra.mxu0 %v65
    %134 = vmatpush.msra.mxu0 %v61
    %135 = vmatpush.msra.mxu0 %v57
    %136 = vmatpush.msra.mxu0 %v53
    %137 = vmatpush.msra.mxu0 %v49
    %138 = vmatpush.msra.mxu0 %v45
    %139 = vmatpush.msra.mxu0 %v41
    %140 = vmatpush.msra.mxu0 %v37
    %141 = vmatpush.msra.mxu0 %v33
    %142 = vmatmul.f32.gmra.mxu0 %v30
    %v143 = vpop.f32.mrf.mxu0
    %v144 = vadd.f32 %v99, %v143
    %145 = vdwg.mxu0
    %146 = vmatpush.msra.mxu0 %v94
    %147 = vmatpush.msra.mxu0 %v90
    %148 = vmatpush.msra.mxu0 %v86
    %149 = vmatpush.msra.mxu0 %v82
    %150 = vmatpush.msra.mxu0 %v78
    %151 = vmatpush.msra.mxu0 %v74
    %152 = vmatpush.msra.mxu0 %v70
    %153 = vmatpush.msra.mxu0 %v66
    %154 = vmatpush.msra.mxu0 %v62
    %155 = vmatpush.msra.mxu0 %v58
    %156 = vmatpush.msra.mxu0 %v54
    %157 = vmatpush.msra.mxu0 %v50
    %158 = vmatpush.msra.mxu0 %v46
    %159 = vmatpush.msra.mxu0 %v42
    %160 = vmatpush.msra.mxu0 %v38
    %161 = vmatpush.msra.mxu0 %v34
    %162 = vmatmul.f32.gmra.mxu0 %v30
    %v163 = vpop.f32.mrf.mxu0
    %v164 = vadd.f32 %v100, %v163
    %165 = vdwg.mxu0
    %166 = vmatpush.msra.mxu0 %v95
    %167 = vmatpush.msra.mxu0 %v91
    %168 = vmatpush.msra.mxu0 %v87
    %169 = vmatpush.msra.mxu0 %v83
    %170 = vmatpush.msra.mxu0 %v79
    %171 = vmatpush.msra.mxu0 %v75
    %172 = vmatpush.msra.mxu0 %v71
    %173 = vmatpush.msra.mxu0 %v67
    %174 = vmatpush.msra.mxu0 %v63
    %175 = vmatpush.msra.mxu0 %v59
    %176 = vmatpush.msra.mxu0 %v55
    %177 = vmatpush.msra.mxu0 %v51
    %178 = vmatpush.msra.mxu0 %v47
    %179 = vmatpush.msra.mxu0 %v43
    %180 = vmatpush.msra.mxu0 %v39
    %181 = vmatpush.msra.mxu0 %v35
    %182 = vmatmul.f32.gmra.mxu0 %v30
    %v183 = vpop.f32.mrf.mxu0
    %v184 = vadd.f32 %v101, %v183
    %185 = vdwg.mxu0
    %v186 = vxor.u32 %v124, 2147483648
    %v187 = vmul.f32 %v186, 1.442695
    %v188 = vpow.pop %v187
    %v189 = vadd.f32 %v188, 1.0
    %v190 = vrcp.pop %v189
    %v191 = vmul.f32 %v189, %v190
    %v192 = vsub.f32 1.0, %v191
    %v193 = vmul.f32 %v190, %v192
    %v194 = vadd.f32 %v190, %v193
    %vm195 = vweird.f32 %v189
    %vm196 = vweird.f32 %v190
    %vm197 = vmor %vm195, %vm196
    %v198 = vsel %vm197, %v190, %v194
    %v199 = vand.u32 2147483647, %v189
    %vm200 = vcmp.eq.f32.partialorder %v199, 8.507059e+37
    %v201 = vand.u32 %v189, 2147483648
    %v202 = vor.u32 1.1754944e-38, %v201
    %v203 = vsel %vm200, %v202, %v198
    %v204 = vmul.f32 1.0, %v203
    %v205 = vxor.u32 %v144, 2147483648
    %v206 = vmul.f32 %v205, 1.442695
    %v207 = vpow.pop %v206
    %v208 = vadd.f32 %v207, 1.0
    %v209 = vrcp.pop %v208
    %v210 = vmul.f32 %v208, %v209
    %v211 = vsub.f32 1.0, %v210
    %v212 = vmul.f32 %v209, %v211
    %v213 = vadd.f32 %v209, %v212
    %vm214 = vweird.f32 %v208
    %vm215 = vweird.f32 %v209
    %vm216 = vmor %vm214, %vm215
    %v217 = vsel %vm216, %v209, %v213
    %v218 = vand.u32 2147483647, %v208
    %vm219 = vcmp.eq.f32.partialorder %v218, 8.507059e+37
    %v220 = vand.u32 %v208, 2147483648
    %v221 = vor.u32 1.1754944e-38, %v220
    %v222 = vsel %vm219, %v221, %v217
    %v223 = vmul.f32 1.0, %v222
    %v224 = vtanh.pop %v164
    %v225 = vxor.u32 %v184, 2147483648
    %v226 = vmul.f32 %v225, 1.442695
    %v227 = vpow.pop %v226
    %v228 = vadd.f32 %v227, 1.0
    %v229 = vrcp.pop %v228
    %v230 = vmul.f32 %v228, %v229
    %v231 = vsub.f32 1.0, %v230
    %v232 = vmul.f32 %v229, %v231
    %v233 = vadd.f32 %v229, %v232
    %vm234 = vweird.f32 %v228
    %vm235 = vweird.f32 %v229
    %vm236 = vmor %vm234, %vm235
    %v237 = vsel %vm236, %v229, %v233
    %v238 = vand.u32 2147483647, %v228
    %vm239 = vcmp.eq.f32.partialorder %v238, 8.507059e+37
    %v240 = vand.u32 %v228, 2147483648
    %v241 = vor.u32 1.1754944e-38, %v240
    %v242 = vsel %vm239, %v241, %v237
    %v243 = vmul.f32 1.0, %v242
    %v244 = vmul.f32 %v223, %v31
    %v245 = vmul.f32 %v204, %v224
    %v246 = vadd.f32 %v244, %v245
    %v247 = vtanh.pop %v246
    %v248 = vmul.f32 %v243, %v247
    %249 = vst [vmem:[#allocation2] sm:$0xff] %v248
    %v250 = vld [vmem:[%s4] sm:$0xff]
    %v251 = vld [vmem:[%s4 + $0x8] sm:$0xff]
    %v252 = vld [vmem:[%s4 + $0x10] sm:$0xff]
    %v253 = vld [vmem:[%s4 + $0x18] sm:$0xff]
    %v254 = vld [vmem:[%s4 + $0x20] sm:$0xff]
    %v255 = vld [vmem:[%s4 + $0x28] sm:$0xff]
    %v256 = vld [vmem:[%s4 + $0x30] sm:$0xff]
    %v257 = vld [vmem:[%s4 + $0x38] sm:$0xff]
    %v258 = vld [vmem:[%s4 + $0x40] sm:$0xff]
    %v259 = vld [vmem:[%s4 + $0x48] sm:$0xff]
    %v260 = vld [vmem:[%s4 + $0x50] sm:$0xff]
    %v261 = vld [vmem:[%s4 + $0x58] sm:$0xff]
    %v262 = vld [vmem:[%s4 + $0x60] sm:$0xff]
    %v263 = vld [vmem:[%s4 + $0x68] sm:$0xff]
    %v264 = vld [vmem:[%s4 + $0x70] sm:$0xff]
    %v265 = vld [vmem:[%s4 + $0x78] sm:$0xff]
    %v266 = vld [vmem:[%s4 + $0x80] sm:$0xff]
    %v267 = vld [vmem:[%s4 + $0x88] sm:$0xff]
    %v268 = vld [vmem:[%s4 + $0x90] sm:$0xff]
    %v269 = vld [vmem:[%s4 + $0x98] sm:$0xff]
    %v270 = vld [vmem:[%s4 + $0xa0] sm:$0xff]
    %v271 = vld [vmem:[%s4 + $0xa8] sm:$0xff]
    %v272 = vld [vmem:[%s4 + $0xb0] sm:$0xff]
    %v273 = vld [vmem:[%s4 + $0xb8] sm:$0xff]
    %v274 = vld [vmem:[%s4 + $0xc0] sm:$0xff]
    %v275 = vld [vmem:[%s4 + $0xc8] sm:$0xff]
    %v276 = vld [vmem:[%s4 + $0xd0] sm:$0xff]
    %v277 = vld [vmem:[%s4 + $0xd8] sm:$0xff]
    %v278 = vld [vmem:[%s4 + $0xe0] sm:$0xff]
    %v279 = vld [vmem:[%s4 + $0xe8] sm:$0xff]
    %v280 = vld [vmem:[%s4 + $0xf0] sm:$0xff]
    %v281 = vld [vmem:[%s4 + $0xf8] sm:$0xff]
    %v282 = vld [vmem:[%s4 + $0x100] sm:$0xff]
    %v283 = vld [vmem:[%s4 + $0x108] sm:$0xff]
    %v284 = vld [vmem:[%s4 + $0x110] sm:$0xff]
    %v285 = vld [vmem:[%s4 + $0x118] sm:$0xff]
    %v286 = vld [vmem:[%s4 + $0x120] sm:$0xff]
    %v287 = vld [vmem:[%s4 + $0x128] sm:$0xff]
    %v288 = vld [vmem:[%s4 + $0x130] sm:$0xff]
    %v289 = vld [vmem:[%s4 + $0x138] sm:$0xff]
    %v290 = vld [vmem:[%s4 + $0x140] sm:$0xff]
    %v291 = vld [vmem:[%s4 + $0x148] sm:$0xff]
    %v292 = vld [vmem:[%s4 + $0x150] sm:$0xff]
    %v293 = vld [vmem:[%s4 + $0x158] sm:$0xff]
    %v294 = vld [vmem:[%s4 + $0x160] sm:$0xff]
    %v295 = vld [vmem:[%s4 + $0x168] sm:$0xff]
    %v296 = vld [vmem:[%s4 + $0x170] sm:$0xff]
    %v297 = vld [vmem:[%s4 + $0x178] sm:$0xff]
    %v298 = vld [vmem:[%s4 + $0x180] sm:$0xff]
    %v299 = vld [vmem:[%s4 + $0x188] sm:$0xff]
    %v300 = vld [vmem:[%s4 + $0x190] sm:$0xff]
    %v301 = vld [vmem:[%s4 + $0x198] sm:$0xff]
    %v302 = vld [vmem:[%s4 + $0x1a0] sm:$0xff]
    %v303 = vld [vmem:[%s4 + $0x1a8] sm:$0xff]
    %v304 = vld [vmem:[%s4 + $0x1b0] sm:$0xff]
    %v305 = vld [vmem:[%s4 + $0x1b8] sm:$0xff]
    %v306 = vld [vmem:[%s4 + $0x1c0] sm:$0xff]
    %v307 = vld [vmem:[%s4 + $0x1c8] sm:$0xff]
    %v308 = vld [vmem:[%s4 + $0x1d0] sm:$0xff]
    %v309 = vld [vmem:[%s4 + $0x1d8] sm:$0xff]
    %v310 = vld [vmem:[%s4 + $0x1e0] sm:$0xff]
    %v311 = vld [vmem:[%s4 + $0x1e8] sm:$0xff]
    %v312 = vld [vmem:[%s4 + $0x1f0] sm:$0xff]
    %v313 = vld [vmem:[%s4 + $0x1f8] sm:$0xff]
    %v314 = vld [vmem:[%s5] sm:$0xf]
    %v316 = vperm.slane %v314, 0
    %v317 = vperm.slane %v314, 1
    %v318 = vperm.slane %v314, 2
    %v319 = vperm.slane %v314, 3
    %324 = vmatpush.msra.mxu0 %v310
    %325 = vmatpush.msra.mxu0 %v306
    %326 = vmatpush.msra.mxu0 %v302
    %327 = vmatpush.msra.mxu0 %v298
    %328 = vmatpush.msra.mxu0 %v294
    %329 = vmatpush.msra.mxu0 %v290
    %330 = vmatpush.msra.mxu0 %v286
    %331 = vmatpush.msra.mxu0 %v282
    %332 = vmatpush.msra.mxu0 %v278
    %333 = vmatpush.msra.mxu0 %v274
    %334 = vmatpush.msra.mxu0 %v270
    %335 = vmatpush.msra.mxu0 %v266
    %336 = vmatpush.msra.mxu0 %v262
    %337 = vmatpush.msra.mxu0 %v258
    %338 = vmatpush.msra.mxu0 %v254
    %339 = vmatpush.msra.mxu0 %v250
    %340 = vmatmul.f32.gmra.mxu0 %v248
    %v341 = vpop.f32.mrf.mxu0
    %v342 = vadd.f32 %v316, %v341
    %343 = vdwg.mxu0
    %344 = vmatpush.msra.mxu0 %v311
    %345 = vmatpush.msra.mxu0 %v307
    %346 = vmatpush.msra.mxu0 %v303
    %347 = vmatpush.msra.mxu0 %v299
    %348 = vmatpush.msra.mxu0 %v295
    %349 = vmatpush.msra.mxu0 %v291
    %350 = vmatpush.msra.mxu0 %v287
    %351 = vmatpush.msra.mxu0 %v283
    %352 = vmatpush.msra.mxu0 %v279
    %353 = vmatpush.msra.mxu0 %v275
    %354 = vmatpush.msra.mxu0 %v271
    %355 = vmatpush.msra.mxu0 %v267
    %356 = vmatpush.msra.mxu0 %v263
    %357 = vmatpush.msra.mxu0 %v259
    %358 = vmatpush.msra.mxu0 %v255
    %359 = vmatpush.msra.mxu0 %v251
    %360 = vmatmul.f32.gmra.mxu0 %v248
    %v361 = vpop.f32.mrf.mxu0
    %v362 = vadd.f32 %v317, %v361
    %363 = vdwg.mxu0
    %364 = vmatpush.msra.mxu0 %v312
    %365 = vmatpush.msra.mxu0 %v308
    %366 = vmatpush.msra.mxu0 %v304
    %367 = vmatpush.msra.mxu0 %v300
    %368 = vmatpush.msra.mxu0 %v296
    %369 = vmatpush.msra.mxu0 %v292
    %370 = vmatpush.msra.mxu0 %v288
    %371 = vmatpush.msra.mxu0 %v284
    %372 = vmatpush.msra.mxu0 %v280
    %373 = vmatpush.msra.mxu0 %v276
    %374 = vmatpush.msra.mxu0 %v272
    %375 = vmatpush.msra.mxu0 %v268
    %376 = vmatpush.msra.mxu0 %v264
    %377 = vmatpush.msra.mxu0 %v260
    %378 = vmatpush.msra.mxu0 %v256
    %379 = vmatpush.msra.mxu0 %v252
    %380 = vmatmul.f32.gmra.mxu0 %v248
    %v381 = vpop.f32.mrf.mxu0
    %v382 = vadd.f32 %v318, %v381
    %383 = vdwg.mxu0
    %384 = vmatpush.msra.mxu0 %v313
    %385 = vmatpush.msra.mxu0 %v309
    %386 = vmatpush.msra.mxu0 %v305
    %387 = vmatpush.msra.mxu0 %v301
    %388 = vmatpush.msra.mxu0 %v297
    %389 = vmatpush.msra.mxu0 %v293
    %390 = vmatpush.msra.mxu0 %v289
    %391 = vmatpush.msra.mxu0 %v285
    %392 = vmatpush.msra.mxu0 %v281
    %393 = vmatpush.msra.mxu0 %v277
    %394 = vmatpush.msra.mxu0 %v273
    %395 = vmatpush.msra.mxu0 %v269
    %396 = vmatpush.msra.mxu0 %v265
    %397 = vmatpush.msra.mxu0 %v261
    %398 = vmatpush.msra.mxu0 %v257
    %399 = vmatpush.msra.mxu0 %v253
    %400 = vmatmul.f32.gmra.mxu0 %v248
    %v401 = vpop.f32.mrf.mxu0
    %v402 = vadd.f32 %v319, %v401
    %403 = vdwg.mxu0
    %v404 = vxor.u32 %v342, 2147483648
    %v405 = vmul.f32 %v404, 1.442695
    %v406 = vpow.pop %v405
    %v407 = vadd.f32 %v406, 1.0
    %v408 = vrcp.pop %v407
    %v409 = vmul.f32 %v407, %v408
    %v410 = vsub.f32 1.0, %v409
    %v411 = vmul.f32 %v408, %v410
    %v412 = vadd.f32 %v408, %v411
    %vm413 = vweird.f32 %v407
    %vm414 = vweird.f32 %v408
    %vm415 = vmor %vm413, %vm414
    %v416 = vsel %vm415, %v408, %v412
    %v417 = vand.u32 2147483647, %v407
    %vm418 = vcmp.eq.f32.partialorder %v417, 8.507059e+37
    %v419 = vand.u32 %v407, 2147483648
    %v420 = vor.u32 1.1754944e-38, %v419
    %v421 = vsel %vm418, %v420, %v416
    %v422 = vmul.f32 1.0, %v421
    %v423 = vxor.u32 %v362, 2147483648
    %v424 = vmul.f32 %v423, 1.442695
    %v425 = vpow.pop %v424
    %v426 = vadd.f32 %v425, 1.0
    %v427 = vrcp.pop %v426
    %v428 = vmul.f32 %v426, %v427
    %v429 = vsub.f32 1.0, %v428
    %v430 = vmul.f32 %v427, %v429
    %v431 = vadd.f32 %v427, %v430
    %vm432 = vweird.f32 %v426
    %vm433 = vweird.f32 %v427
    %vm434 = vmor %vm432, %vm433
    %v435 = vsel %vm434, %v427, %v431
    %v436 = vand.u32 2147483647, %v426
    %vm437 = vcmp.eq.f32.partialorder %v436, 8.507059e+37
    %v438 = vand.u32 %v426, 2147483648
    %v439 = vor.u32 1.1754944e-38, %v438
    %v440 = vsel %vm437, %v439, %v435
    %v441 = vmul.f32 1.0, %v440
    %v442 = vtanh.pop %v382
    %v443 = vxor.u32 %v402, 2147483648
    %v444 = vmul.f32 %v443, 1.442695
    %v445 = vpow.pop %v444
    %v446 = vadd.f32 %v445, 1.0
    %v447 = vrcp.pop %v446
    %v448 = vmul.f32 %v446, %v447
    %v449 = vsub.f32 1.0, %v448
    %v450 = vmul.f32 %v447, %v449
    %v451 = vadd.f32 %v447, %v450
    %vm452 = vweird.f32 %v446
    %vm453 = vweird.f32 %v447
    %vm454 = vmor %vm452, %vm453
    %v455 = vsel %vm454, %v447, %v451
    %v456 = vand.u32 2147483647, %v446
    %vm457 = vcmp.eq.f32.partialorder %v456, 8.507059e+37
    %v458 = vand.u32 %v446, 2147483648
    %v459 = vor.u32 1.1754944e-38, %v458
    %v460 = vsel %vm457, %v459, %v455
    %v461 = vmul.f32 1.0, %v460
    %v462 = vmul.f32 %v441, %v246
    %v463 = vmul.f32 %v422, %v442
    %v464 = vadd.f32 %v462, %v463
    %v465 = vtanh.pop %v464
    %v466 = vmul.f32 %v461, %v465
    %s467 = scalar_lea.vmem [#allocation2], 8
    %468 = vst [vmem:[%s467] sm:$0xff] %v466
    %v469 = vld [vmem:[%s4] sm:$0xff]
    %v470 = vld [vmem:[%s4 + $0x8] sm:$0xff]
    %v471 = vld [vmem:[%s4 + $0x10] sm:$0xff]
    %v472 = vld [vmem:[%s4 + $0x18] sm:$0xff]
    %v473 = vld [vmem:[%s4 + $0x20] sm:$0xff]
    %v474 = vld [vmem:[%s4 + $0x28] sm:$0xff]
    %v475 = vld [vmem:[%s4 + $0x30] sm:$0xff]
    %v476 = vld [vmem:[%s4 + $0x38] sm:$0xff]
    %v477 = vld [vmem:[%s4 + $0x40] sm:$0xff]
    %v478 = vld [vmem:[%s4 + $0x48] sm:$0xff]
    %v479 = vld [vmem:[%s4 + $0x50] sm:$0xff]
    %v480 = vld [vmem:[%s4 + $0x58] sm:$0xff]
    %v481 = vld [vmem:[%s4 + $0x60] sm:$0xff]
    %v482 = vld [vmem:[%s4 + $0x68] sm:$0xff]
    %v483 = vld [vmem:[%s4 + $0x70] sm:$0xff]
    %v484 = vld [vmem:[%s4 + $0x78] sm:$0xff]
    %v485 = vld [vmem:[%s4 + $0x80] sm:$0xff]
    %v486 = vld [vmem:[%s4 + $0x88] sm:$0xff]
    %v487 = vld [vmem:[%s4 + $0x90] sm:$0xff]
    %v488 = vld [vmem:[%s4 + $0x98] sm:$0xff]
    %v489 = vld [vmem:[%s4 + $0xa0] sm:$0xff]
    %v490 = vld [vmem:[%s4 + $0xa8] sm:$0xff]
    %v491 = vld [vmem:[%s4 + $0xb0] sm:$0xff]
    %v492 = vld [vmem:[%s4 + $0xb8] sm:$0xff]
    %v493 = vld [vmem:[%s4 + $0xc0] sm:$0xff]
    %v494 = vld [vmem:[%s4 + $0xc8] sm:$0xff]
    %v495 = vld [vmem:[%s4 + $0xd0] sm:$0xff]
    %v496 = vld [vmem:[%s4 + $0xd8] sm:$0xff]
    %v497 = vld [vmem:[%s4 + $0xe0] sm:$0xff]
    %v498 = vld [vmem:[%s4 + $0xe8] sm:$0xff]
    %v499 = vld [vmem:[%s4 + $0xf0] sm:$0xff]
    %v500 = vld [vmem:[%s4 + $0xf8] sm:$0xff]
    %v501 = vld [vmem:[%s4 + $0x100] sm:$0xff]
    %v502 = vld [vmem:[%s4 + $0x108] sm:$0xff]
    %v503 = vld [vmem:[%s4 + $0x110] sm:$0xff]
    %v504 = vld [vmem:[%s4 + $0x118] sm:$0xff]
    %v505 = vld [vmem:[%s4 + $0x120] sm:$0xff]
    %v506 = vld [vmem:[%s4 + $0x128] sm:$0xff]
    %v507 = vld [vmem:[%s4 + $0x130] sm:$0xff]
    %v508 = vld [vmem:[%s4 + $0x138] sm:$0xff]
    %v509 = vld [vmem:[%s4 + $0x140] sm:$0xff]
    %v510 = vld [vmem:[%s4 + $0x148] sm:$0xff]
    %v511 = vld [vmem:[%s4 + $0x150] sm:$0xff]
    %v512 = vld [vmem:[%s4 + $0x158] sm:$0xff]
    %v513 = vld [vmem:[%s4 + $0x160] sm:$0xff]
    %v514 = vld [vmem:[%s4 + $0x168] sm:$0xff]
    %v515 = vld [vmem:[%s4 + $0x170] sm:$0xff]
    %v516 = vld [vmem:[%s4 + $0x178] sm:$0xff]
    %v517 = vld [vmem:[%s4 + $0x180] sm:$0xff]
    %v518 = vld [vmem:[%s4 + $0x188] sm:$0xff]
    %v519 = vld [vmem:[%s4 + $0x190] sm:$0xff]
    %v520 = vld [vmem:[%s4 + $0x198] sm:$0xff]
    %v521 = vld [vmem:[%s4 + $0x1a0] sm:$0xff]
    %v522 = vld [vmem:[%s4 + $0x1a8] sm:$0xff]
    %v523 = vld [vmem:[%s4 + $0x1b0] sm:$0xff]
    %v524 = vld [vmem:[%s4 + $0x1b8] sm:$0xff]
    %v525 = vld [vmem:[%s4 + $0x1c0] sm:$0xff]
    %v526 = vld [vmem:[%s4 + $0x1c8] sm:$0xff]
    %v527 = vld [vmem:[%s4 + $0x1d0] sm:$0xff]
    %v528 = vld [vmem:[%s4 + $0x1d8] sm:$0xff]
    %v529 = vld [vmem:[%s4 + $0x1e0] sm:$0xff]
    %v530 = vld [vmem:[%s4 + $0x1e8] sm:$0xff]
    %v531 = vld [vmem:[%s4 + $0x1f0] sm:$0xff]
    %v532 = vld [vmem:[%s4 + $0x1f8] sm:$0xff]
    %v533 = vld [vmem:[%s5] sm:$0xf]
    %v535 = vperm.slane %v533, 0
    %v536 = vperm.slane %v533, 1
    %v537 = vperm.slane %v533, 2
    %v538 = vperm.slane %v533, 3
    %543 = vmatpush.msra.mxu0 %v529
    %544 = vmatpush.msra.mxu0 %v525
    %545 = vmatpush.msra.mxu0 %v521
    %546 = vmatpush.msra.mxu0 %v517
    %547 = vmatpush.msra.mxu0 %v513
    %548 = vmatpush.msra.mxu0 %v509
    %549 = vmatpush.msra.mxu0 %v505
    %550 = vmatpush.msra.mxu0 %v501
    %551 = vmatpush.msra.mxu0 %v497
    %552 = vmatpush.msra.mxu0 %v493
    %553 = vmatpush.msra.mxu0 %v489
    %554 = vmatpush.msra.mxu0 %v485
    %555 = vmatpush.msra.mxu0 %v481
    %556 = vmatpush.msra.mxu0 %v477
    %557 = vmatpush.msra.mxu0 %v473
    %558 = vmatpush.msra.mxu0 %v469
    %559 = vmatmul.f32.gmra.mxu0 %v466
    %v560 = vpop.f32.mrf.mxu0
    %v561 = vadd.f32 %v535, %v560
    %562 = vdwg.mxu0
    %563 = vmatpush.msra.mxu0 %v530
    %564 = vmatpush.msra.mxu0 %v526
    %565 = vmatpush.msra.mxu0 %v522
    %566 = vmatpush.msra.mxu0 %v518
    %567 = vmatpush.msra.mxu0 %v514
    %568 = vmatpush.msra.mxu0 %v510
    %569 = vmatpush.msra.mxu0 %v506
    %570 = vmatpush.msra.mxu0 %v502
    %571 = vmatpush.msra.mxu0 %v498
    %572 = vmatpush.msra.mxu0 %v494
    %573 = vmatpush.msra.mxu0 %v490
    %574 = vmatpush.msra.mxu0 %v486
    %575 = vmatpush.msra.mxu0 %v482
    %576 = vmatpush.msra.mxu0 %v478
    %577 = vmatpush.msra.mxu0 %v474
    %578 = vmatpush.msra.mxu0 %v470
    %579 = vmatmul.f32.gmra.mxu0 %v466
    %v580 = vpop.f32.mrf.mxu0
    %v581 = vadd.f32 %v536, %v580
    %582 = vdwg.mxu0
    %583 = vmatpush.msra.mxu0 %v531
    %584 = vmatpush.msra.mxu0 %v527
    %585 = vmatpush.msra.mxu0 %v523
    %586 = vmatpush.msra.mxu0 %v519
    %587 = vmatpush.msra.mxu0 %v515
    %588 = vmatpush.msra.mxu0 %v511
    %589 = vmatpush.msra.mxu0 %v507
    %590 = vmatpush.msra.mxu0 %v503
    %591 = vmatpush.msra.mxu0 %v499
    %592 = vmatpush.msra.mxu0 %v495
    %593 = vmatpush.msra.mxu0 %v491
    %594 = vmatpush.msra.mxu0 %v487
    %595 = vmatpush.msra.mxu0 %v483
    %596 = vmatpush.msra.mxu0 %v479
    %597 = vmatpush.msra.mxu0 %v475
    %598 = vmatpush.msra.mxu0 %v471
    %599 = vmatmul.f32.gmra.mxu0 %v466
    %v600 = vpop.f32.mrf.mxu0
    %v601 = vadd.f32 %v537, %v600
    %602 = vdwg.mxu0
    %603 = vmatpush.msra.mxu0 %v532
    %604 = vmatpush.msra.mxu0 %v528
    %605 = vmatpush.msra.mxu0 %v524
    %606 = vmatpush.msra.mxu0 %v520
    %607 = vmatpush.msra.mxu0 %v516
    %608 = vmatpush.msra.mxu0 %v512
    %609 = vmatpush.msra.mxu0 %v508
    %610 = vmatpush.msra.mxu0 %v504
    %611 = vmatpush.msra.mxu0 %v500
    %612 = vmatpush.msra.mxu0 %v496
    %613 = vmatpush.msra.mxu0 %v492
    %614 = vmatpush.msra.mxu0 %v488
    %615 = vmatpush.msra.mxu0 %v484
    %616 = vmatpush.msra.mxu0 %v480
    %617 = vmatpush.msra.mxu0 %v476
    %618 = vmatpush.msra.mxu0 %v472
    %619 = vmatmul.f32.gmra.mxu0 %v466
    %v620 = vpop.f32.mrf.mxu0
    %v621 = vadd.f32 %v538, %v620
    %622 = vdwg.mxu0
    %v623 = vxor.u32 %v561, 2147483648
    %v624 = vmul.f32 %v623, 1.442695
    %v625 = vpow.pop %v624
    %v626 = vadd.f32 %v625, 1.0
    %v627 = vrcp.pop %v626
    %v628 = vmul.f32 %v626, %v627
    %v629 = vsub.f32 1.0, %v628
    %v630 = vmul.f32 %v627, %v629
    %v631 = vadd.f32 %v627, %v630
    %vm632 = vweird.f32 %v626
    %vm633 = vweird.f32 %v627
    %vm634 = vmor %vm632, %vm633
    %v635 = vsel %vm634, %v627, %v631
    %v636 = vand.u32 2147483647, %v626
    %vm637 = vcmp.eq.f32.partialorder %v636, 8.507059e+37
    %v638 = vand.u32 %v626, 2147483648
    %v639 = vor.u32 1.1754944e-38, %v638
    %v640 = vsel %vm637, %v639, %v635
    %v641 = vmul.f32 1.0, %v640
    %v642 = vxor.u32 %v581, 2147483648
    %v643 = vmul.f32 %v642, 1.442695
    %v644 = vpow.pop %v643
    %v645 = vadd.f32 %v644, 1.0
    %v646 = vrcp.pop %v645
    %v647 = vmul.f32 %v645, %v646
    %v648 = vsub.f32 1.0, %v647
    %v649 = vmul.f32 %v646, %v648
    %v650 = vadd.f32 %v646, %v649
    %vm651 = vweird.f32 %v645
    %vm652 = vweird.f32 %v646
    %vm653 = vmor %vm651, %vm652
    %v654 = vsel %vm653, %v646, %v650
    %v655 = vand.u32 2147483647, %v645
    %vm656 = vcmp.eq.f32.partialorder %v655, 8.507059e+37
    %v657 = vand.u32 %v645, 2147483648
    %v658 = vor.u32 1.1754944e-38, %v657
    %v659 = vsel %vm656, %v658, %v654
    %v660 = vmul.f32 1.0, %v659
    %v661 = vtanh.pop %v601
    %v662 = vxor.u32 %v621, 2147483648
    %v663 = vmul.f32 %v662, 1.442695
    %v664 = vpow.pop %v663
    %v665 = vadd.f32 %v664, 1.0
    %v666 = vrcp.pop %v665
    %v667 = vmul.f32 %v665, %v666
    %v668 = vsub.f32 1.0, %v667
    %v669 = vmul.f32 %v666, %v668
    %v670 = vadd.f32 %v666, %v669
    %vm671 = vweird.f32 %v665
    %vm672 = vweird.f32 %v666
    %vm673 = vmor %vm671, %vm672
    %v674 = vsel %vm673, %v666, %v670
    %v675 = vand.u32 2147483647, %v665
    %vm676 = vcmp.eq.f32.partialorder %v675, 8.507059e+37
    %v677 = vand.u32 %v665, 2147483648
    %v678 = vor.u32 1.1754944e-38, %v677
    %v679 = vsel %vm676, %v678, %v674
    %v680 = vmul.f32 1.0, %v679
    %v681 = vmul.f32 %v660, %v464
    %v682 = vmul.f32 %v641, %v661
    %v683 = vadd.f32 %v681, %v682
    %v684 = vtanh.pop %v683
    %v685 = vmul.f32 %v680, %v684
    %s686 = scalar_lea.vmem [#allocation2], 16
    %687 = vst [vmem:[%s686] sm:$0xff] %v685
    %v688 = vld [vmem:[%s4] sm:$0xff]
    %v689 = vld [vmem:[%s4 + $0x8] sm:$0xff]
    %v690 = vld [vmem:[%s4 + $0x10] sm:$0xff]
    %v691 = vld [vmem:[%s4 + $0x18] sm:$0xff]
    %v692 = vld [vmem:[%s4 + $0x20] sm:$0xff]
    %v693 = vld [vmem:[%s4 + $0x28] sm:$0xff]
    %v694 = vld [vmem:[%s4 + $0x30] sm:$0xff]
    %v695 = vld [vmem:[%s4 + $0x38] sm:$0xff]
    %v696 = vld [vmem:[%s4 + $0x40] sm:$0xff]
    %v697 = vld [vmem:[%s4 + $0x48] sm:$0xff]
    %v698 = vld [vmem:[%s4 + $0x50] sm:$0xff]
    %v699 = vld [vmem:[%s4 + $0x58] sm:$0xff]
    %v700 = vld [vmem:[%s4 + $0x60] sm:$0xff]
    %v701 = vld [vmem:[%s4 + $0x68] sm:$0xff]
    %v702 = vld [vmem:[%s4 + $0x70] sm:$0xff]
    %v703 = vld [vmem:[%s4 + $0x78] sm:$0xff]
    %v704 = vld [vmem:[%s4 + $0x80] sm:$0xff]
    %v705 = vld [vmem:[%s4 + $0x88] sm:$0xff]
    %v706 = vld [vmem:[%s4 + $0x90] sm:$0xff]
    %v707 = vld [vmem:[%s4 + $0x98] sm:$0xff]
    %v708 = vld [vmem:[%s4 + $0xa0] sm:$0xff]
    %v709 = vld [vmem:[%s4 + $0xa8] sm:$0xff]
    %v710 = vld [vmem:[%s4 + $0xb0] sm:$0xff]
    %v711 = vld [vmem:[%s4 + $0xb8] sm:$0xff]
    %v712 = vld [vmem:[%s4 + $0xc0] sm:$0xff]
    %v713 = vld [vmem:[%s4 + $0xc8] sm:$0xff]
    %v714 = vld [vmem:[%s4 + $0xd0] sm:$0xff]
    %v715 = vld [vmem:[%s4 + $0xd8] sm:$0xff]
    %v716 = vld [vmem:[%s4 + $0xe0] sm:$0xff]
    %v717 = vld [vmem:[%s4 + $0xe8] sm:$0xff]
    %v718 = vld [vmem:[%s4 + $0xf0] sm:$0xff]
    %v719 = vld [vmem:[%s4 + $0xf8] sm:$0xff]
    %v720 = vld [vmem:[%s4 + $0x100] sm:$0xff]
    %v721 = vld [vmem:[%s4 + $0x108] sm:$0xff]
    %v722 = vld [vmem:[%s4 + $0x110] sm:$0xff]
    %v723 = vld [vmem:[%s4 + $0x118] sm:$0xff]
    %v724 = vld [vmem:[%s4 + $0x120] sm:$0xff]
    %v725 = vld [vmem:[%s4 + $0x128] sm:$0xff]
    %v726 = vld [vmem:[%s4 + $0x130] sm:$0xff]
    %v727 = vld [vmem:[%s4 + $0x138] sm:$0xff]
    %v728 = vld [vmem:[%s4 + $0x140] sm:$0xff]
    %v729 = vld [vmem:[%s4 + $0x148] sm:$0xff]
    %v730 = vld [vmem:[%s4 + $0x150] sm:$0xff]
    %v731 = vld [vmem:[%s4 + $0x158] sm:$0xff]
    %v732 = vld [vmem:[%s4 + $0x160] sm:$0xff]
    %v733 = vld [vmem:[%s4 + $0x168] sm:$0xff]
    %v734 = vld [vmem:[%s4 + $0x170] sm:$0xff]
    %v735 = vld [vmem:[%s4 + $0x178] sm:$0xff]
    %v736 = vld [vmem:[%s4 + $0x180] sm:$0xff]
    %v737 = vld [vmem:[%s4 + $0x188] sm:$0xff]
    %v738 = vld [vmem:[%s4 + $0x190] sm:$0xff]
    %v739 = vld [vmem:[%s4 + $0x198] sm:$0xff]
    %v740 = vld [vmem:[%s4 + $0x1a0] sm:$0xff]
    %v741 = vld [vmem:[%s4 + $0x1a8] sm:$0xff]
    %v742 = vld [vmem:[%s4 + $0x1b0] sm:$0xff]
    %v743 = vld [vmem:[%s4 + $0x1b8] sm:$0xff]
    %v744 = vld [vmem:[%s4 + $0x1c0] sm:$0xff]
    %v745 = vld [vmem:[%s4 + $0x1c8] sm:$0xff]
    %v746 = vld [vmem:[%s4 + $0x1d0] sm:$0xff]
    %v747 = vld [vmem:[%s4 + $0x1d8] sm:$0xff]
    %v748 = vld [vmem:[%s4 + $0x1e0] sm:$0xff]
    %v749 = vld [vmem:[%s4 + $0x1e8] sm:$0xff]
    %v750 = vld [vmem:[%s4 + $0x1f0] sm:$0xff]
    %v751 = vld [vmem:[%s4 + $0x1f8] sm:$0xff]
    %v752 = vld [vmem:[%s5] sm:$0xf]
    %v754 = vperm.slane %v752, 0
    %v755 = vperm.slane %v752, 1
    %v756 = vperm.slane %v752, 2
    %v757 = vperm.slane %v752, 3
    %762 = vmatpush.msra.mxu0 %v748
    %763 = vmatpush.msra.mxu0 %v744
    %764 = vmatpush.msra.mxu0 %v740
    %765 = vmatpush.msra.mxu0 %v736
    %766 = vmatpush.msra.mxu0 %v732
    %767 = vmatpush.msra.mxu0 %v728
    %768 = vmatpush.msra.mxu0 %v724
    %769 = vmatpush.msra.mxu0 %v720
    %770 = vmatpush.msra.mxu0 %v716
    %771 = vmatpush.msra.mxu0 %v712
    %772 = vmatpush.msra.mxu0 %v708
    %773 = vmatpush.msra.mxu0 %v704
    %774 = vmatpush.msra.mxu0 %v700
    %775 = vmatpush.msra.mxu0 %v696
    %776 = vmatpush.msra.mxu0 %v692
    %777 = vmatpush.msra.mxu0 %v688
    %778 = vmatmul.f32.gmra.mxu0 %v685
    %v779 = vpop.f32.mrf.mxu0
    %v780 = vadd.f32 %v754, %v779
    %781 = vdwg.mxu0
    %782 = vmatpush.msra.mxu0 %v749
    %783 = vmatpush.msra.mxu0 %v745
    %784 = vmatpush.msra.mxu0 %v741
    %785 = vmatpush.msra.mxu0 %v737
    %786 = vmatpush.msra.mxu0 %v733
    %787 = vmatpush.msra.mxu0 %v729
    %788 = vmatpush.msra.mxu0 %v725
    %789 = vmatpush.msra.mxu0 %v721
    %790 = vmatpush.msra.mxu0 %v717
    %791 = vmatpush.msra.mxu0 %v713
    %792 = vmatpush.msra.mxu0 %v709
    %793 = vmatpush.msra.mxu0 %v705
    %794 = vmatpush.msra.mxu0 %v701
    %795 = vmatpush.msra.mxu0 %v697
    %796 = vmatpush.msra.mxu0 %v693
    %797 = vmatpush.msra.mxu0 %v689
    %798 = vmatmul.f32.gmra.mxu0 %v685
    %v799 = vpop.f32.mrf.mxu0
    %v800 = vadd.f32 %v755, %v799
    %801 = vdwg.mxu0
    %802 = vmatpush.msra.mxu0 %v750
    %803 = vmatpush.msra.mxu0 %v746
    %804 = vmatpush.msra.mxu0 %v742
    %805 = vmatpush.msra.mxu0 %v738
    %806 = vmatpush.msra.mxu0 %v734
    %807 = vmatpush.msra.mxu0 %v730
    %808 = vmatpush.msra.mxu0 %v726
    %809 = vmatpush.msra.mxu0 %v722
    %810 = vmatpush.msra.mxu0 %v718
    %811 = vmatpush.msra.mxu0 %v714
    %812 = vmatpush.msra.mxu0 %v710
    %813 = vmatpush.msra.mxu0 %v706
    %814 = vmatpush.msra.mxu0 %v702
    %815 = vmatpush.msra.mxu0 %v698
    %816 = vmatpush.msra.mxu0 %v694
    %817 = vmatpush.msra.mxu0 %v690
    %818 = vmatmul.f32.gmra.mxu0 %v685
    %v819 = vpop.f32.mrf.mxu0
    %v820 = vadd.f32 %v756, %v819
    %821 = vdwg.mxu0
    %822 = vmatpush.msra.mxu0 %v751
    %823 = vmatpush.msra.mxu0 %v747
    %824 = vmatpush.msra.mxu0 %v743
    %825 = vmatpush.msra.mxu0 %v739
    %826 = vmatpush.msra.mxu0 %v735
    %827 = vmatpush.msra.mxu0 %v731
    %828 = vmatpush.msra.mxu0 %v727
    %829 = vmatpush.msra.mxu0 %v723
    %830 = vmatpush.msra.mxu0 %v719
    %831 = vmatpush.msra.mxu0 %v715
    %832 = vmatpush.msra.mxu0 %v711
    %833 = vmatpush.msra.mxu0 %v707
    %834 = vmatpush.msra.mxu0 %v703
    %835 = vmatpush.msra.mxu0 %v699
    %836 = vmatpush.msra.mxu0 %v695
    %837 = vmatpush.msra.mxu0 %v691
    %838 = vmatmul.f32.gmra.mxu0 %v685
    %v839 = vpop.f32.mrf.mxu0
    %v840 = vadd.f32 %v757, %v839
    %841 = vdwg.mxu0
    %v842 = vxor.u32 %v780, 2147483648
    %v843 = vmul.f32 %v842, 1.442695
    %v844 = vpow.pop %v843
    %v845 = vadd.f32 %v844, 1.0
    %v846 = vrcp.pop %v845
    %v847 = vmul.f32 %v845, %v846
    %v848 = vsub.f32 1.0, %v847
    %v849 = vmul.f32 %v846, %v848
    %v850 = vadd.f32 %v846, %v849
    %vm851 = vweird.f32 %v845
    %vm852 = vweird.f32 %v846
    %vm853 = vmor %vm851, %vm852
    %v854 = vsel %vm853, %v846, %v850
    %v855 = vand.u32 2147483647, %v845
    %vm856 = vcmp.eq.f32.partialorder %v855, 8.507059e+37
    %v857 = vand.u32 %v845, 2147483648
    %v858 = vor.u32 1.1754944e-38, %v857
    %v859 = vsel %vm856, %v858, %v854
    %v860 = vmul.f32 1.0, %v859
    %v861 = vxor.u32 %v800, 2147483648
    %v862 = vmul.f32 %v861, 1.442695
    %v863 = vpow.pop %v862
    %v864 = vadd.f32 %v863, 1.0
    %v865 = vrcp.pop %v864
    %v866 = vmul.f32 %v864, %v865
    %v867 = vsub.f32 1.0, %v866
    %v868 = vmul.f32 %v865, %v867
    %v869 = vadd.f32 %v865, %v868
    %vm870 = vweird.f32 %v864
    %vm871 = vweird.f32 %v865
    %vm872 = vmor %vm870, %vm871
    %v873 = vsel %vm872, %v865, %v869
    %v874 = vand.u32 2147483647, %v864
    %vm875 = vcmp.eq.f32.partialorder %v874, 8.507059e+37
    %v876 = vand.u32 %v864, 2147483648
    %v877 = vor.u32 1.1754944e-38, %v876
    %v878 = vsel %vm875, %v877, %v873
    %v879 = vmul.f32 1.0, %v878
    %v880 = vtanh.pop %v820
    %v881 = vxor.u32 %v840, 2147483648
    %v882 = vmul.f32 %v881, 1.442695
    %v883 = vpow.pop %v882
    %v884 = vadd.f32 %v883, 1.0
    %v885 = vrcp.pop %v884
    %v886 = vmul.f32 %v884, %v885
    %v887 = vsub.f32 1.0, %v886
    %v888 = vmul.f32 %v885, %v887
    %v889 = vadd.f32 %v885, %v888
    %vm890 = vweird.f32 %v884
    %vm891 = vweird.f32 %v885
    %vm892 = vmor %vm890, %vm891
    %v893 = vsel %vm892, %v885, %v889
    %v894 = vand.u32 2147483647, %v884
    %vm895 = vcmp.eq.f32.partialorder %v894, 8.507059e+37
    %v896 = vand.u32 %v884, 2147483648
    %v897 = vor.u32 1.1754944e-38, %v896
    %v898 = vsel %vm895, %v897, %v893
    %v899 = vmul.f32 1.0, %v898
    %v900 = vmul.f32 %v879, %v683
    %v901 = vmul.f32 %v860, %v880
    %v902 = vadd.f32 %v900, %v901
    %v903 = vtanh.pop %v902
    %v904 = vmul.f32 %v899, %v903
    %s905 = scalar_lea.vmem [#allocation2], 24
    %906 = vst [vmem:[%s905] sm:$0xff] %v904
    %v907 = vld [vmem:[#allocation2] sm:$0xff]
    %v908 = vld [vmem:[#allocation2 + $0x8] sm:$0xff]
    %v909 = vld [vmem:[#allocation2 + $0x10] sm:$0xff]
    %v910 = vld [vmem:[#allocation2 + $0x18] sm:$0xff]
    %v911 = vld [vmem:[%s6] sm:$0xff]
    %v912 = vld [vmem:[%s6 + $0x8] sm:$0xff]
    %v913 = vld [vmem:[%s6 + $0x10] sm:$0xff]
    %v914 = vld [vmem:[%s6 + $0x18] sm:$0xff]
    %v915 = vld [vmem:[%s6 + $0x20] sm:$0xff]
    %v916 = vld [vmem:[%s6 + $0x28] sm:$0xff]
    %v917 = vld [vmem:[%s6 + $0x30] sm:$0xff]
    %v918 = vld [vmem:[%s6 + $0x38] sm:$0xff]
    %v919 = vld [vmem:[%s6 + $0x40] sm:$0xff]
    %v920 = vld [vmem:[%s6 + $0x48] sm:$0xff]
    %v921 = vld [vmem:[%s6 + $0x50] sm:$0xff]
    %v922 = vld [vmem:[%s6 + $0x58] sm:$0xff]
    %v923 = vld [vmem:[%s6 + $0x60] sm:$0xff]
    %v924 = vld [vmem:[%s6 + $0x68] sm:$0xff]
    %v925 = vld [vmem:[%s6 + $0x70] sm:$0xff]
    %v926 = vld [vmem:[%s6 + $0x78] sm:$0xff]
    %v927 = vld [vmem:[%s7] sm:$0x1]
    %v929 = vperm.slane %v927, 0
    %931 = vmatpush.msra.mxu0 %v926
    %932 = vmatpush.msra.mxu0 %v925
    %933 = vmatpush.msra.mxu0 %v924
    %934 = vmatpush.msra.mxu0 %v923
    %935 = vmatpush.msra.mxu0 %v922
    %936 = vmatpush.msra.mxu0 %v921
    %937 = vmatpush.msra.mxu0 %v920
    %938 = vmatpush.msra.mxu0 %v919
    %939 = vmatpush.msra.mxu0 %v918
    %940 = vmatpush.msra.mxu0 %v917
    %941 = vmatpush.msra.mxu0 %v916
    %942 = vmatpush.msra.mxu0 %v915
    %943 = vmatpush.msra.mxu0 %v914
    %944 = vmatpush.msra.mxu0 %v913
    %945 = vmatpush.msra.mxu0 %v912
    %946 = vmatpush.msra.mxu0 %v911
    %947 = vmatmul.f32.gmra.mxu0 %v907
    %v948 = vpop.f32.mrf.mxu0
    %v949 = vadd.f32 %v929, %v948
    %950 = vmatmul.f32.gmra.mxu0 %v908
    %v951 = vpop.f32.mrf.mxu0
    %v952 = vadd.f32 %v929, %v951
    %953 = vmatmul.f32.gmra.mxu0 %v909
    %v954 = vpop.f32.mrf.mxu0
    %v955 = vadd.f32 %v929, %v954
    %956 = vmatmul.f32.gmra.mxu0 %v910
    %v957 = vpop.f32.mrf.mxu0
    %v958 = vadd.f32 %v929, %v957
    %959 = vdwg.mxu0
    %v960 = vrot.slane %v955, 4
    %vm961 = vcmask 1047556
    %v962 = vsel %vm961, %v960, %v949
    %v963 = vrot.slane %v949, 4
    %v964 = vsel %vm961, %v955, %v963
    %v966 = vunpack.c.l.s4 1983009808
    %v967 = vunpack.c.0.s8 %v966
    %v968 = vperm.slane %v962, %v967
    %v970 = vunpack.c.l.s4 1983009808
    %v971 = vunpack.c.0.s8 %v970
    %v972 = vperm.slane %v964, %v971
    %v973 = vrot.slane %v958, 4
    %v974 = vsel %vm961, %v973, %v952
    %v975 = vrot.slane %v952, 4
    %v976 = vsel %vm961, %v958, %v975
    %v978 = vunpack.c.l.s4 1983009808
    %v979 = vunpack.c.0.s8 %v978
    %v980 = vperm.slane %v974, %v979
    %v982 = vunpack.c.l.s4 1983009808
    %v983 = vunpack.c.0.s8 %v982
    %v984 = vperm.slane %v976, %v983
    %v985 = vrot.slane %v980, 4
    %v986 = vsel %vm961, %v985, %v968
    %v987 = vrot.slane %v968, 4
    %v988 = vsel %vm961, %v980, %v987
    %v990 = vunpack.c.l.s4 1934713408
    %v991 = vunpack.c.0.s8 %v990
    %v992 = vperm.slane %v986, %v991
    %v994 = vunpack.c.l.s4 1934713408
    %v995 = vunpack.c.0.s8 %v994
    %v996 = vperm.slane %v988, %v995
    %v997 = vrot.slane %v984, 4
    %v998 = vsel %vm961, %v997, %v972
    %v999 = vrot.slane %v972, 4
    %v1000 = vsel %vm961, %v984, %v999
    %v1002 = vunpack.c.l.s4 1934713408
    %v1003 = vunpack.c.0.s8 %v1002
    %v1004 = vperm.slane %v998, %v1003
    %v1006 = vunpack.c.l.s4 1934713408
    %v1007 = vunpack.c.0.s8 %v1006
    %v1008 = vperm.slane %v1000, %v1007
    %v1009 = vrot.slane %v992, 4
    %v1010 = vsel %vm961, 0.0, %v1009
    %v1011 = vrot.slane %v996, 4
    %v1012 = vsel %vm961, 0.0, %v1011
    %v1013 = vrot.slane %v1004, 4
    %v1014 = vsel %vm961, 0.0, %v1013
    %v1015 = vrot.slane %v1008, 4
    %v1016 = vsel %vm961, 0.0, %v1015
    %v1017 = vld [vmem:[%s0] sm:$0xff]
    %v1018 = vld [vmem:[%s0 + $0x8] sm:$0xff]
    %v1019 = vld [vmem:[%s0 + $0x10] sm:$0xff]
    %v1020 = vld [vmem:[%s0 + $0x18] sm:$0xff]
    %v1021 = vld [vmem:[%s0 + $0x20] sm:$0xff]
    %v1022 = vld [vmem:[%s0 + $0x28] sm:$0xff]
    %v1023 = vld [vmem:[%s0 + $0x30] sm:$0xff]
    %v1024 = vld [vmem:[%s0 + $0x38] sm:$0xff]
    %v1025 = vld [vmem:[%s0 + $0x40] sm:$0xff]
    %v1026 = vld [vmem:[%s0 + $0x48] sm:$0xff]
    %v1027 = vld [vmem:[%s0 + $0x50] sm:$0xff]
    %v1028 = vld [vmem:[%s0 + $0x58] sm:$0xff]
    %v1029 = vld [vmem:[%s0 + $0x60] sm:$0xff]
    %v1030 = vld [vmem:[%s0 + $0x68] sm:$0xff]
    %v1031 = vld [vmem:[%s0 + $0x70] sm:$0xff]
    %v1032 = vld [vmem:[%s0 + $0x78] sm:$0xff]
    %v1033 = vld [vmem:[%s0 + $0x80] sm:$0xff]
    %v1034 = vld [vmem:[%s0 + $0x88] sm:$0xff]
    %v1035 = vld [vmem:[%s0 + $0x90] sm:$0xff]
    %v1036 = vld [vmem:[%s0 + $0x98] sm:$0xff]
    %v1037 = vld [vmem:[%s0 + $0xa0] sm:$0xff]
    %v1038 = vld [vmem:[%s0 + $0xa8] sm:$0xff]
    %v1039 = vld [vmem:[%s0 + $0xb0] sm:$0xff]
    %v1040 = vld [vmem:[%s0 + $0xb8] sm:$0xff]
    %v1041 = vld [vmem:[%s0 + $0xc0] sm:$0xff]
    %v1042 = vld [vmem:[%s0 + $0xc8] sm:$0xff]
    %v1043 = vld [vmem:[%s0 + $0xd0] sm:$0xff]
    %v1044 = vld [vmem:[%s0 + $0xd8] sm:$0xff]
    %v1045 = vld [vmem:[%s0 + $0xe0] sm:$0xff]
    %v1046 = vld [vmem:[%s0 + $0xe8] sm:$0xff]
    %v1047 = vld [vmem:[%s0 + $0xf0] sm:$0xff]
    %v1048 = vld [vmem:[%s0 + $0xf8] sm:$0xff]
    %v1049 = vld [vmem:[%s0 + $0x100] sm:$0xff]
    %v1050 = vld [vmem:[%s0 + $0x108] sm:$0xff]
    %v1051 = vld [vmem:[%s0 + $0x110] sm:$0xff]
    %v1052 = vld [vmem:[%s0 + $0x118] sm:$0xff]
    %v1053 = vld [vmem:[%s0 + $0x120] sm:$0xff]
    %v1054 = vld [vmem:[%s0 + $0x128] sm:$0xff]
    %v1055 = vld [vmem:[%s0 + $0x130] sm:$0xff]
    %v1056 = vld [vmem:[%s0 + $0x138] sm:$0xff]
    %v1057 = vld [vmem:[%s0 + $0x140] sm:$0xff]
    %v1058 = vld [vmem:[%s0 + $0x148] sm:$0xff]
    %v1059 = vld [vmem:[%s0 + $0x150] sm:$0xff]
    %v1060 = vld [vmem:[%s0 + $0x158] sm:$0xff]
    %v1061 = vld [vmem:[%s0 + $0x160] sm:$0xff]
    %v1062 = vld [vmem:[%s0 + $0x168] sm:$0xff]
    %v1063 = vld [vmem:[%s0 + $0x170] sm:$0xff]
    %v1064 = vld [vmem:[%s0 + $0x178] sm:$0xff]
    %v1065 = vld [vmem:[%s0 + $0x180] sm:$0xff]
    %v1066 = vld [vmem:[%s0 + $0x188] sm:$0xff]
    %v1067 = vld [vmem:[%s0 + $0x190] sm:$0xff]
    %v1068 = vld [vmem:[%s0 + $0x198] sm:$0xff]
    %v1069 = vld [vmem:[%s0 + $0x1a0] sm:$0xff]
    %v1070 = vld [vmem:[%s0 + $0x1a8] sm:$0xff]
    %v1071 = vld [vmem:[%s0 + $0x1b0] sm:$0xff]
    %v1072 = vld [vmem:[%s0 + $0x1b8] sm:$0xff]
    %v1073 = vld [vmem:[%s0 + $0x1c0] sm:$0xff]
    %v1074 = vld [vmem:[%s0 + $0x1c8] sm:$0xff]
    %v1075 = vld [vmem:[%s0 + $0x1d0] sm:$0xff]
    %v1076 = vld [vmem:[%s0 + $0x1d8] sm:$0xff]
    %v1077 = vld [vmem:[%s0 + $0x1e0] sm:$0xff]
    %v1078 = vld [vmem:[%s0 + $0x1e8] sm:$0xff]
    %v1079 = vld [vmem:[%s0 + $0x1f0] sm:$0xff]
    %v1080 = vld [vmem:[%s0 + $0x1f8] sm:$0xff]
    %v1081 = vld [vmem:[%s0 + $0x200] sm:$0xff]
    %v1082 = vld [vmem:[%s0 + $0x208] sm:$0xff]
    %v1083 = vld [vmem:[%s0 + $0x210] sm:$0xff]
    %v1084 = vld [vmem:[%s0 + $0x218] sm:$0xff]
    %v1085 = vld [vmem:[%s0 + $0x220] sm:$0xff]
    %v1086 = vld [vmem:[%s0 + $0x228] sm:$0xff]
    %v1087 = vld [vmem:[%s0 + $0x230] sm:$0xff]
    %v1088 = vld [vmem:[%s0 + $0x238] sm:$0xff]
    %v1089 = vld [vmem:[%s0 + $0x240] sm:$0xff]
    %v1090 = vld [vmem:[%s0 + $0x248] sm:$0xff]
    %v1091 = vld [vmem:[%s0 + $0x250] sm:$0xff]
    %v1092 = vld [vmem:[%s0 + $0x258] sm:$0xff]
    %v1093 = vld [vmem:[%s0 + $0x260] sm:$0xff]
    %v1094 = vld [vmem:[%s0 + $0x268] sm:$0xff]
    %v1095 = vld [vmem:[%s0 + $0x270] sm:$0xff]
    %v1096 = vld [vmem:[%s0 + $0x278] sm:$0xff]
    %v1097 = vld [vmem:[%s0 + $0x280] sm:$0xff]
    %v1098 = vld [vmem:[%s0 + $0x288] sm:$0xff]
    %v1099 = vld [vmem:[%s0 + $0x290] sm:$0xff]
    %v1100 = vld [vmem:[%s0 + $0x298] sm:$0xff]
    %v1101 = vld [vmem:[%s0 + $0x2a0] sm:$0xff]
    %v1102 = vld [vmem:[%s0 + $0x2a8] sm:$0xff]
    %v1103 = vld [vmem:[%s0 + $0x2b0] sm:$0xff]
    %v1104 = vld [vmem:[%s0 + $0x2b8] sm:$0xff]
    %v1105 = vld [vmem:[%s0 + $0x2c0] sm:$0xff]
    %v1106 = vld [vmem:[%s0 + $0x2c8] sm:$0xff]
    %v1107 = vld [vmem:[%s0 + $0x2d0] sm:$0xff]
    %v1108 = vld [vmem:[%s0 + $0x2d8] sm:$0xff]
    %v1109 = vld [vmem:[%s0 + $0x2e0] sm:$0xff]
    %v1110 = vld [vmem:[%s0 + $0x2e8] sm:$0xff]
    %v1111 = vld [vmem:[%s0 + $0x2f0] sm:$0xff]
    %v1112 = vld [vmem:[%s0 + $0x2f8] sm:$0xff]
    %v1113 = vld [vmem:[%s0 + $0x300] sm:$0xff]
    %v1114 = vld [vmem:[%s0 + $0x308] sm:$0xff]
    %v1115 = vld [vmem:[%s0 + $0x310] sm:$0xff]
    %v1116 = vld [vmem:[%s0 + $0x318] sm:$0xff]
    %v1117 = vld [vmem:[%s0 + $0x320] sm:$0xff]
    %v1118 = vld [vmem:[%s0 + $0x328] sm:$0xff]
    %v1119 = vld [vmem:[%s0 + $0x330] sm:$0xff]
    %v1120 = vld [vmem:[%s0 + $0x338] sm:$0xff]
    %v1121 = vld [vmem:[%s0 + $0x340] sm:$0xff]
    %v1122 = vld [vmem:[%s0 + $0x348] sm:$0xff]
    %v1123 = vld [vmem:[%s0 + $0x350] sm:$0xff]
    %v1124 = vld [vmem:[%s0 + $0x358] sm:$0xff]
    %v1125 = vld [vmem:[%s0 + $0x360] sm:$0xff]
    %v1126 = vld [vmem:[%s0 + $0x368] sm:$0xff]
    %v1127 = vld [vmem:[%s0 + $0x370] sm:$0xff]
    %v1128 = vld [vmem:[%s0 + $0x378] sm:$0xff]
    %v1129 = vld [vmem:[%s0 + $0x380] sm:$0xff]
    %v1130 = vld [vmem:[%s0 + $0x388] sm:$0xff]
    %v1131 = vld [vmem:[%s0 + $0x390] sm:$0xff]
    %v1132 = vld [vmem:[%s0 + $0x398] sm:$0xff]
    %v1133 = vld [vmem:[%s0 + $0x3a0] sm:$0xff]
    %v1134 = vld [vmem:[%s0 + $0x3a8] sm:$0xff]
    %v1135 = vld [vmem:[%s0 + $0x3b0] sm:$0xff]
    %v1136 = vld [vmem:[%s0 + $0x3b8] sm:$0xff]
    %v1137 = vld [vmem:[%s0 + $0x3c0] sm:$0xff]
    %v1138 = vld [vmem:[%s0 + $0x3c8] sm:$0xff]
    %v1139 = vld [vmem:[%s0 + $0x3d0] sm:$0xff]
    %v1140 = vld [vmem:[%s0 + $0x3d8] sm:$0xff]
    %v1141 = vld [vmem:[%s0 + $0x3e0] sm:$0xff]
    %v1142 = vld [vmem:[%s0 + $0x3e8] sm:$0xff]
    %v1143 = vld [vmem:[%s0 + $0x3f0] sm:$0xff]
    %v1144 = vld [vmem:[%s0 + $0x3f8] sm:$0xff]
    %1145 = vmatpush.xpose.msra.mxu0 %v1032
    %1146 = vmatpush.xpose.msra.mxu0 %v1031
    %1147 = vmatpush.xpose.msra.mxu0 %v1030
    %1148 = vmatpush.xpose.msra.mxu0 %v1029
    %1149 = vmatpush.xpose.msra.mxu0 %v1028
    %1150 = vmatpush.xpose.msra.mxu0 %v1027
    %1151 = vmatpush.xpose.msra.mxu0 %v1026
    %1152 = vmatpush.xpose.msra.mxu0 %v1025
    %1153 = vmatpush.xpose.msra.mxu0 %v1024
    %1154 = vmatpush.xpose.msra.mxu0 %v1023
    %1155 = vmatpush.xpose.msra.mxu0 %v1022
    %1156 = vmatpush.xpose.msra.mxu0 %v1021
    %1157 = vmatpush.xpose.msra.mxu0 %v1020
    %1158 = vmatpush.xpose.msra.mxu0 %v1019
    %1159 = vmatpush.xpose.msra.mxu0 %v1018
    %1160 = vmatpush.xpose.msra.mxu0 %v1017
    %1161 = vmatmul.f32.gmra.mxu0 %v992
    %v1162 = vpop.f32.mrf.mxu0
    %v1163 = vadd.f32 0.0, %v1162
    %1164 = vdwg.mxu0
    %1165 = vmatpush.xpose.msra.mxu0 %v1048
    %1166 = vmatpush.xpose.msra.mxu0 %v1047
    %1167 = vmatpush.xpose.msra.mxu0 %v1046
    %1168 = vmatpush.xpose.msra.mxu0 %v1045
    %1169 = vmatpush.xpose.msra.mxu0 %v1044
    %1170 = vmatpush.xpose.msra.mxu0 %v1043
    %1171 = vmatpush.xpose.msra.mxu0 %v1042
    %1172 = vmatpush.xpose.msra.mxu0 %v1041
    %1173 = vmatpush.xpose.msra.mxu0 %v1040
    %1174 = vmatpush.xpose.msra.mxu0 %v1039
    %1175 = vmatpush.xpose.msra.mxu0 %v1038
    %1176 = vmatpush.xpose.msra.mxu0 %v1037
    %1177 = vmatpush.xpose.msra.mxu0 %v1036
    %1178 = vmatpush.xpose.msra.mxu0 %v1035
    %1179 = vmatpush.xpose.msra.mxu0 %v1034
    %1180 = vmatpush.xpose.msra.mxu0 %v1033
    %1181 = vmatmul.f32.gmra.mxu0 %v1010
    %v1182 = vpop.f32.mrf.mxu0
    %v1183 = vadd.f32 0.0, %v1182
    %1184 = vdwg.mxu0
    %1185 = vmatpush.xpose.msra.mxu0 %v1064
    %1186 = vmatpush.xpose.msra.mxu0 %v1063
    %1187 = vmatpush.xpose.msra.mxu0 %v1062
    %1188 = vmatpush.xpose.msra.mxu0 %v1061
    %1189 = vmatpush.xpose.msra.mxu0 %v1060
    %1190 = vmatpush.xpose.msra.mxu0 %v1059
    %1191 = vmatpush.xpose.msra.mxu0 %v1058
    %1192 = vmatpush.xpose.msra.mxu0 %v1057
    %1193 = vmatpush.xpose.msra.mxu0 %v1056
    %1194 = vmatpush.xpose.msra.mxu0 %v1055
    %1195 = vmatpush.xpose.msra.mxu0 %v1054
    %1196 = vmatpush.xpose.msra.mxu0 %v1053
    %1197 = vmatpush.xpose.msra.mxu0 %v1052
    %1198 = vmatpush.xpose.msra.mxu0 %v1051
    %1199 = vmatpush.xpose.msra.mxu0 %v1050
    %1200 = vmatpush.xpose.msra.mxu0 %v1049
    %1201 = vmatmul.f32.gmra.mxu0 %v996
    %v1202 = vpop.f32.mrf.mxu0
    %v1203 = vadd.f32 0.0, %v1202
    %1204 = vdwg.mxu0
    %1205 = vmatpush.xpose.msra.mxu0 %v1080
    %1206 = vmatpush.xpose.msra.mxu0 %v1079
    %1207 = vmatpush.xpose.msra.mxu0 %v1078
    %1208 = vmatpush.xpose.msra.mxu0 %v1077
    %1209 = vmatpush.xpose.msra.mxu0 %v1076
    %1210 = vmatpush.xpose.msra.mxu0 %v1075
    %1211 = vmatpush.xpose.msra.mxu0 %v1074
    %1212 = vmatpush.xpose.msra.mxu0 %v1073
    %1213 = vmatpush.xpose.msra.mxu0 %v1072
    %1214 = vmatpush.xpose.msra.mxu0 %v1071
    %1215 = vmatpush.xpose.msra.mxu0 %v1070
    %1216 = vmatpush.xpose.msra.mxu0 %v1069
    %1217 = vmatpush.xpose.msra.mxu0 %v1068
    %1218 = vmatpush.xpose.msra.mxu0 %v1067
    %1219 = vmatpush.xpose.msra.mxu0 %v1066
    %1220 = vmatpush.xpose.msra.mxu0 %v1065
    %1221 = vmatmul.f32.gmra.mxu0 %v1012
    %v1222 = vpop.f32.mrf.mxu0
    %v1223 = vadd.f32 0.0, %v1222
    %1224 = vdwg.mxu0
    %1225 = vmatpush.xpose.msra.mxu0 %v1096
    %1226 = vmatpush.xpose.msra.mxu0 %v1095
    %1227 = vmatpush.xpose.msra.mxu0 %v1094
    %1228 = vmatpush.xpose.msra.mxu0 %v1093
    %1229 = vmatpush.xpose.msra.mxu0 %v1092
    %1230 = vmatpush.xpose.msra.mxu0 %v1091
    %1231 = vmatpush.xpose.msra.mxu0 %v1090
    %1232 = vmatpush.xpose.msra.mxu0 %v1089
    %1233 = vmatpush.xpose.msra.mxu0 %v1088
    %1234 = vmatpush.xpose.msra.mxu0 %v1087
    %1235 = vmatpush.xpose.msra.mxu0 %v1086
    %1236 = vmatpush.xpose.msra.mxu0 %v1085
    %1237 = vmatpush.xpose.msra.mxu0 %v1084
    %1238 = vmatpush.xpose.msra.mxu0 %v1083
    %1239 = vmatpush.xpose.msra.mxu0 %v1082
    %1240 = vmatpush.xpose.msra.mxu0 %v1081
    %1241 = vmatmul.f32.gmra.mxu0 %v1004
    %v1242 = vpop.f32.mrf.mxu0
    %v1243 = vadd.f32 0.0, %v1242
    %1244 = vdwg.mxu0
    %1245 = vmatpush.xpose.msra.mxu0 %v1112
    %1246 = vmatpush.xpose.msra.mxu0 %v1111
    %1247 = vmatpush.xpose.msra.mxu0 %v1110
    %1248 = vmatpush.xpose.msra.mxu0 %v1109
    %1249 = vmatpush.xpose.msra.mxu0 %v1108
    %1250 = vmatpush.xpose.msra.mxu0 %v1107
    %1251 = vmatpush.xpose.msra.mxu0 %v1106
    %1252 = vmatpush.xpose.msra.mxu0 %v1105
    %1253 = vmatpush.xpose.msra.mxu0 %v1104
    %1254 = vmatpush.xpose.msra.mxu0 %v1103
    %1255 = vmatpush.xpose.msra.mxu0 %v1102
    %1256 = vmatpush.xpose.msra.mxu0 %v1101
    %1257 = vmatpush.xpose.msra.mxu0 %v1100
    %1258 = vmatpush.xpose.msra.mxu0 %v1099
    %1259 = vmatpush.xpose.msra.mxu0 %v1098
    %1260 = vmatpush.xpose.msra.mxu0 %v1097
    %1261 = vmatmul.f32.gmra.mxu0 %v1014
    %v1262 = vpop.f32.mrf.mxu0
    %v1263 = vadd.f32 0.0, %v1262
    %1264 = vdwg.mxu0
    %1265 = vmatpush.xpose.msra.mxu0 %v1128
    %1266 = vmatpush.xpose.msra.mxu0 %v1127
    %1267 = vmatpush.xpose.msra.mxu0 %v1126
    %1268 = vmatpush.xpose.msra.mxu0 %v1125
    %1269 = vmatpush.xpose.msra.mxu0 %v1124
    %1270 = vmatpush.xpose.msra.mxu0 %v1123
    %1271 = vmatpush.xpose.msra.mxu0 %v1122
    %1272 = vmatpush.xpose.msra.mxu0 %v1121
    %1273 = vmatpush.xpose.msra.mxu0 %v1120
    %1274 = vmatpush.xpose.msra.mxu0 %v1119
    %1275 = vmatpush.xpose.msra.mxu0 %v1118
    %1276 = vmatpush.xpose.msra.mxu0 %v1117
    %1277 = vmatpush.xpose.msra.mxu0 %v1116
    %1278 = vmatpush.xpose.msra.mxu0 %v1115
    %1279 = vmatpush.xpose.msra.mxu0 %v1114
    %1280 = vmatpush.xpose.msra.mxu0 %v1113
    %1281 = vmatmul.f32.gmra.mxu0 %v1008
    %v1282 = vpop.f32.mrf.mxu0
    %v1283 = vadd.f32 0.0, %v1282
    %1284 = vdwg.mxu0
    %1285 = vmatpush.xpose.msra.mxu0 %v1144
    %1286 = vmatpush.xpose.msra.mxu0 %v1143
    %1287 = vmatpush.xpose.msra.mxu0 %v1142
    %1288 = vmatpush.xpose.msra.mxu0 %v1141
    %1289 = vmatpush.xpose.msra.mxu0 %v1140
    %1290 = vmatpush.xpose.msra.mxu0 %v1139
    %1291 = vmatpush.xpose.msra.mxu0 %v1138
    %1292 = vmatpush.xpose.msra.mxu0 %v1137
    %1293 = vmatpush.xpose.msra.mxu0 %v1136
    %1294 = vmatpush.xpose.msra.mxu0 %v1135
    %1295 = vmatpush.xpose.msra.mxu0 %v1134
    %1296 = vmatpush.xpose.msra.mxu0 %v1133
    %1297 = vmatpush.xpose.msra.mxu0 %v1132
    %1298 = vmatpush.xpose.msra.mxu0 %v1131
    %1299 = vmatpush.xpose.msra.mxu0 %v1130
    %1300 = vmatpush.xpose.msra.mxu0 %v1129
    %1301 = vmatmul.f32.gmra.mxu0 %v1016
    %v1302 = vpop.f32.mrf.mxu0
    %v1303 = vadd.f32 0.0, %v1302
    %1304 = vdwg.mxu0
    %v1305 = vmul.f32 %v1163, 0.125
    %v1306 = vmul.f32 %v1183, 0.125
    %v1307 = vmul.f32 %v1203, 0.125
    %v1308 = vmul.f32 %v1223, 0.125
    %v1309 = vmul.f32 %v1243, 0.125
    %v1310 = vmul.f32 %v1263, 0.125
    %v1311 = vmul.f32 %v1283, 0.125
    %v1312 = vmul.f32 %v1303, 0.125
    %v1313 = vld [vmem:[%s1] sm:$0xff]
    %v1315 = vrot.slane %v1313, 1
    %v1316 = vrot.slane %v1313, 2
    %v1317 = vrot.slane %v1313, 3
    %v1318 = vrot.slane %v1313, 4
    %v1319 = vrot.slane %v1313, 5
    %v1320 = vrot.slane %v1313, 6
    %v1321 = vrot.slane %v1313, 7
    %v1322 = vperm.slane %v1313, 0
    %v1323 = vperm.slane %v1315, 0
    %v1324 = vperm.slane %v1316, 0
    %v1325 = vperm.slane %v1317, 0
    %v1326 = vperm.slane %v1318, 0
    %v1327 = vperm.slane %v1319, 0
    %v1328 = vperm.slane %v1320, 0
    %v1329 = vperm.slane %v1321, 0
    %v1338 = vadd.f32 %v1305, %v1322
    %v1339 = vadd.f32 %v1306, %v1323
    %v1340 = vadd.f32 %v1307, %v1324
    %v1341 = vadd.f32 %v1308, %v1325
    %v1342 = vadd.f32 %v1309, %v1326
    %v1343 = vadd.f32 %v1310, %v1327
    %v1344 = vadd.f32 %v1311, %v1328
    %v1345 = vadd.f32 %v1312, %v1329
    %vm1346 = vcmask 1043456
    %v1347 = vsel %vm1346, %v1338, -inf
    %1348 = vmax.xlane.f32.xlu0 %v1347
    %v1349 = vpop.xlane.xlu0 %1348
    %v1350 = vsel %vm1346, %v1339, -inf
    %1351 = vmax.xlane.f32.xlu0 %v1350
    %v1352 = vpop.xlane.xlu0 %1351
    %v1353 = vsel %vm1346, %v1340, -inf
    %1354 = vmax.xlane.f32.xlu0 %v1353
    %v1355 = vpop.xlane.xlu0 %1354
    %v1356 = vsel %vm1346, %v1341, -inf
    %1357 = vmax.xlane.f32.xlu0 %v1356
    %v1358 = vpop.xlane.xlu0 %1357
    %v1359 = vsel %vm1346, %v1342, -inf
    %1360 = vmax.xlane.f32.xlu0 %v1359
    %v1361 = vpop.xlane.xlu0 %1360
    %v1362 = vsel %vm1346, %v1343, -inf
    %1363 = vmax.xlane.f32.xlu0 %v1362
    %v1364 = vpop.xlane.xlu0 %1363
    %v1365 = vsel %vm1346, %v1344, -inf
    %1366 = vmax.xlane.f32.xlu0 %v1365
    %v1367 = vpop.xlane.xlu0 %1366
    %v1368 = vsel %vm1346, %v1345, -inf
    %1369 = vmax.xlane.f32.xlu0 %v1368
    %v1370 = vpop.xlane.xlu0 %1369
    %v1371 = vsub.f32 %v1338, %v1349
    %v1372 = vsub.f32 %v1339, %v1352
    %v1373 = vsub.f32 %v1340, %v1355
    %v1374 = vsub.f32 %v1341, %v1358
    %v1375 = vsub.f32 %v1342, %v1361
    %v1376 = vsub.f32 %v1343, %v1364
    %v1377 = vsub.f32 %v1344, %v1367
    %v1378 = vsub.f32 %v1345, %v1370
    %v1379 = vmul.f32 %v1371, 1.442695
    %v1380 = vpow.pop %v1379
    %v1381 = vmul.f32 %v1372, 1.442695
    %v1382 = vpow.pop %v1381
    %v1383 = vmul.f32 %v1373, 1.442695
    %v1384 = vpow.pop %v1383
    %v1385 = vmul.f32 %v1374, 1.442695
    %v1386 = vpow.pop %v1385
    %v1387 = vmul.f32 %v1375, 1.442695
    %v1388 = vpow.pop %v1387
    %v1389 = vmul.f32 %v1376, 1.442695
    %v1390 = vpow.pop %v1389
    %v1391 = vmul.f32 %v1377, 1.442695
    %v1392 = vpow.pop %v1391
    %v1393 = vmul.f32 %v1378, 1.442695
    %v1394 = vpow.pop %v1393
    %v1395 = vsel %vm1346, %v1380, 0.0
    %1396 = vadd.xlane.f32.xlu0 %v1395
    %v1397 = vpop.xlane.xlu0 %1396
    %v1398 = vsel %vm1346, %v1382, 0.0
    %1399 = vadd.xlane.f32.xlu0 %v1398
    %v1400 = vpop.xlane.xlu0 %1399
    %v1401 = vsel %vm1346, %v1384, 0.0
    %1402 = vadd.xlane.f32.xlu0 %v1401
    %v1403 = vpop.xlane.xlu0 %1402
    %v1404 = vsel %vm1346, %v1386, 0.0
    %1405 = vadd.xlane.f32.xlu0 %v1404
    %v1406 = vpop.xlane.xlu0 %1405
    %v1407 = vsel %vm1346, %v1388, 0.0
    %1408 = vadd.xlane.f32.xlu0 %v1407
    %v1409 = vpop.xlane.xlu0 %1408
    %v1410 = vsel %vm1346, %v1390, 0.0
    %1411 = vadd.xlane.f32.xlu0 %v1410
    %v1412 = vpop.xlane.xlu0 %1411
    %v1413 = vsel %vm1346, %v1392, 0.0
    %1414 = vadd.xlane.f32.xlu0 %v1413
    %v1415 = vpop.xlane.xlu0 %1414
    %v1416 = vsel %vm1346, %v1394, 0.0
    %1417 = vadd.xlane.f32.xlu0 %v1416
    %v1418 = vpop.xlane.xlu0 %1417
    %v1419 = vrcp.pop %v1397
    %v1420 = vmul.f32 %v1397, %v1419
    %v1421 = vsub.f32 1.0, %v1420
    %v1422 = vmul.f32 %v1419, %v1421
    %v1423 = vadd.f32 %v1419, %v1422
    %vm1424 = vweird.f32 %v1397
    %vm1425 = vweird.f32 %v1419
    %vm1426 = vmor %vm1424, %vm1425
    %v1427 = vsel %vm1426, %v1419, %v1423
    %v1428 = vand.u32 2147483647, %v1397
    %vm1429 = vcmp.eq.f32.partialorder %v1428, 8.507059e+37
    %v1430 = vand.u32 %v1397, 2147483648
    %v1431 = vor.u32 1.1754944e-38, %v1430
    %v1432 = vsel %vm1429, %v1431, %v1427
    %v1433 = vmul.f32 %v1380, %v1432
    %v1434 = vrcp.pop %v1400
    %v1435 = vmul.f32 %v1400, %v1434
    %v1436 = vsub.f32 1.0, %v1435
    %v1437 = vmul.f32 %v1434, %v1436
    %v1438 = vadd.f32 %v1434, %v1437
    %vm1439 = vweird.f32 %v1400
    %vm1440 = vweird.f32 %v1434
    %vm1441 = vmor %vm1439, %vm1440
    %v1442 = vsel %vm1441, %v1434, %v1438
    %v1443 = vand.u32 2147483647, %v1400
    %vm1444 = vcmp.eq.f32.partialorder %v1443, 8.507059e+37
    %v1445 = vand.u32 %v1400, 2147483648
    %v1446 = vor.u32 1.1754944e-38, %v1445
    %v1447 = vsel %vm1444, %v1446, %v1442
    %v1448 = vmul.f32 %v1382, %v1447
    %v1449 = vrcp.pop %v1403
    %v1450 = vmul.f32 %v1403, %v1449
    %v1451 = vsub.f32 1.0, %v1450
    %v1452 = vmul.f32 %v1449, %v1451
    %v1453 = vadd.f32 %v1449, %v1452
    %vm1454 = vweird.f32 %v1403
    %vm1455 = vweird.f32 %v1449
    %vm1456 = vmor %vm1454, %vm1455
    %v1457 = vsel %vm1456, %v1449, %v1453
    %v1458 = vand.u32 2147483647, %v1403
    %vm1459 = vcmp.eq.f32.partialorder %v1458, 8.507059e+37
    %v1460 = vand.u32 %v1403, 2147483648
    %v1461 = vor.u32 1.1754944e-38, %v1460
    %v1462 = vsel %vm1459, %v1461, %v1457
    %v1463 = vmul.f32 %v1384, %v1462
    %v1464 = vrcp.pop %v1406
    %v1465 = vmul.f32 %v1406, %v1464
    %v1466 = vsub.f32 1.0, %v1465
    %v1467 = vmul.f32 %v1464, %v1466
    %v1468 = vadd.f32 %v1464, %v1467
    %vm1469 = vweird.f32 %v1406
    %vm1470 = vweird.f32 %v1464
    %vm1471 = vmor %vm1469, %vm1470
    %v1472 = vsel %vm1471, %v1464, %v1468
    %v1473 = vand.u32 2147483647, %v1406
    %vm1474 = vcmp.eq.f32.partialorder %v1473, 8.507059e+37
    %v1475 = vand.u32 %v1406, 2147483648
    %v1476 = vor.u32 1.1754944e-38, %v1475
    %v1477 = vsel %vm1474, %v1476, %v1472
    %v1478 = vmul.f32 %v1386, %v1477
    %v1479 = vrcp.pop %v1409
    %v1480 = vmul.f32 %v1409, %v1479
    %v1481 = vsub.f32 1.0, %v1480
    %v1482 = vmul.f32 %v1479, %v1481
    %v1483 = vadd.f32 %v1479, %v1482
    %vm1484 = vweird.f32 %v1409
    %vm1485 = vweird.f32 %v1479
    %vm1486 = vmor %vm1484, %vm1485
    %v1487 = vsel %vm1486, %v1479, %v1483
    %v1488 = vand.u32 2147483647, %v1409
    %vm1489 = vcmp.eq.f32.partialorder %v1488, 8.507059e+37
    %v1490 = vand.u32 %v1409, 2147483648
    %v1491 = vor.u32 1.1754944e-38, %v1490
    %v1492 = vsel %vm1489, %v1491, %v1487
    %v1493 = vmul.f32 %v1388, %v1492
    %v1494 = vrcp.pop %v1412
    %v1495 = vmul.f32 %v1412, %v1494
    %v1496 = vsub.f32 1.0, %v1495
    %v1497 = vmul.f32 %v1494, %v1496
    %v1498 = vadd.f32 %v1494, %v1497
    %vm1499 = vweird.f32 %v1412
    %vm1500 = vweird.f32 %v1494
    %vm1501 = vmor %vm1499, %vm1500
    %v1502 = vsel %vm1501, %v1494, %v1498
    %v1503 = vand.u32 2147483647, %v1412
    %vm1504 = vcmp.eq.f32.partialorder %v1503, 8.507059e+37
    %v1505 = vand.u32 %v1412, 2147483648
    %v1506 = vor.u32 1.1754944e-38, %v1505
    %v1507 = vsel %vm1504, %v1506, %v1502
    %v1508 = vmul.f32 %v1390, %v1507
    %v1509 = vrcp.pop %v1415
    %v1510 = vmul.f32 %v1415, %v1509
    %v1511 = vsub.f32 1.0, %v1510
    %v1512 = vmul.f32 %v1509, %v1511
    %v1513 = vadd.f32 %v1509, %v1512
    %vm1514 = vweird.f32 %v1415
    %vm1515 = vweird.f32 %v1509
    %vm1516 = vmor %vm1514, %vm1515
    %v1517 = vsel %vm1516, %v1509, %v1513
    %v1518 = vand.u32 2147483647, %v1415
    %vm1519 = vcmp.eq.f32.partialorder %v1518, 8.507059e+37
    %v1520 = vand.u32 %v1415, 2147483648
    %v1521 = vor.u32 1.1754944e-38, %v1520
    %v1522 = vsel %vm1519, %v1521, %v1517
    %v1523 = vmul.f32 %v1392, %v1522
    %v1524 = vrcp.pop %v1418
    %v1525 = vmul.f32 %v1418, %v1524
    %v1526 = vsub.f32 1.0, %v1525
    %v1527 = vmul.f32 %v1524, %v1526
    %v1528 = vadd.f32 %v1524, %v1527
    %vm1529 = vweird.f32 %v1418
    %vm1530 = vweird.f32 %v1524
    %vm1531 = vmor %vm1529, %vm1530
    %v1532 = vsel %vm1531, %v1524, %v1528
    %v1533 = vand.u32 2147483647, %v1418
    %vm1534 = vcmp.eq.f32.partialorder %v1533, 8.507059e+37
    %v1535 = vand.u32 %v1418, 2147483648
    %v1536 = vor.u32 1.1754944e-38, %v1535
    %v1537 = vsel %vm1534, %v1536, %v1532
    %v1538 = vmul.f32 %v1394, %v1537
    %1539 = vst [vmem:[#allocation3] sm:$0xf] %v1433
    %1540 = vst [vmem:[#allocation3 + $0x4] sm:$0xf] %v1448
    %1541 = vst [vmem:[#allocation3 + $0x8] sm:$0xf] %v1463
    %1542 = vst [vmem:[#allocation3 + $0xc] sm:$0xf] %v1478
    %1543 = vst [vmem:[#allocation3 + $0x10] sm:$0xf] %v1493
    %1544 = vst [vmem:[#allocation3 + $0x14] sm:$0xf] %v1508
    %1545 = vst [vmem:[#allocation3 + $0x18] sm:$0xf] %v1523
    %1546 = vst [vmem:[#allocation3 + $0x1c] sm:$0xf] %v1538
    // Predicated region
    $region34: #{pointer_net_forward.3} parent=1 // pred_check
      _
    $region35: #{pointer_net_forward.3} parent=1 // pred_check_branch
      %1548 = sbr.rel (0) target = $region37
    $region36: #{pointer_net_forward.3} parent=1 // pred_region
      %1550 = vsyncadd [#allocation4], 0
      %s1551 = sshll.u32 [#allocation3], 4
      %s1552 = int_to_ptr.vmem [resolvable:$true] %s1551
      %s1553 = sshll.u32 %s8, 4
      %s1554 = int_to_ptr.hbm [resolvable:$true] %s1553
      %1559 = dma.vmem_to_hbm [thread:$0]  %s1552, 512, %s1554, [#allocation4], 64, 64, 4
    $region37: #{pointer_net_forward.3} parent=1 // pred_fallthru
      _
    // Predicated region
    $region38: #{pointer_net_forward.3} parent=1 // pred_check
      _
    $region39: #{pointer_net_forward.3} parent=1 // pred_check_branch
      %1561 = sbr.rel (0) target = $region41
    $region40: #{pointer_net_forward.3} parent=1 // pred_region
      %1563 = dma.done [#allocation4], 512
    $region41: #{pointer_net_forward.3} parent=1 // pred_fallthru
      _
    %1564 = vsyncpa [#allocation4], 1

// kernel: pointer_net_forward.2
$region0: #{pointer_net_forward.2}
  #allocation0 [shape = 'u32[]', space=smem, size = 0x4, offset = 0x4, fixed_abs, tag = 'smem constant byte address 0x4 - core index']
  #allocation1 [shape = 'u32[72,128]{1,0:T(1,128)}', space=vmem, size = 0x9000, scoped, tag = 'internal scratch']
  #allocation2 [shape = 'f32[128,512]{1,0:T(8,128)}', space=vmem, size = 0x40000, scoped, tag = 'scratch operand']
  #allocation3 [shape = 'f32[8,128]{1,0:T(8,128)}', space=vmem, size = 0x1000, scoped, tag = 'scratch operand']
  #allocation4 [shape = 'f32[8,128]{1,0:T(8,128)}', space=vmem, size = 0x1000, scoped, tag = 'scratch operand']
  %s0 = inlined_call_operand.vmem [shape: f32[128,2], index: 0, kind: input, shape index: {}]
  %s1 = inlined_call_operand.vmem [shape: s32[8,128], index: 1, kind: input, shape index: {}]
  %s2 = inlined_call_operand.vmem [shape: f32[2,512], index: 2, kind: input, shape index: {}]
  %s3 = inlined_call_operand.vmem [shape: f32[1,512], index: 3, kind: input, shape index: {}]
  %s4 = inlined_call_operand.hbm [shape: f32[128,512], index: 4, kind: input, shape index: {}]
  %s5 = inlined_call_operand.vmem [shape: f32[16,8,128], index: 5, kind: output, shape index: {0}]
  %s6 = inlined_call_operand.vmem [shape: f32[8,128], index: 6, kind: output, shape index: {1}]
  %s7 = inlined_call_operand.vmem [shape: f32[8,128], index: 7, kind: output, shape index: {2}]
  %8 = xla_tuple %s5, %s6, %s7
  %s9 = sld [smem:[#allocation0]]
  $region58: #{pointer_net_forward.2} parent=0
    _
  %s11 = ssub.s32 1, %s9
  %s12 = scalar_select 0, %s11, %s9
  $region1: #{pointer_net_forward.2} parent=0
    #allocation5 [shape = 'u8[262144]{0}', space=vmem, size = 0x40000, scoped, tag = 'input window, operand 4, single buffered']
    #allocation6 [shape = 's32[1]{0}', space=sflag, size = 0x4, scoped, tag = 'scoped memory for pointer_net_forward.2']
    %13 = vsyncpa [#allocation6], 0
    // Predicated region
    $region2: #{pointer_net_forward.2} parent=1 // pred_check
      _
    $region3: #{pointer_net_forward.2} parent=1 // pred_check_branch
      %15 = sbr.rel (0) target = $region5
    $region4: #{pointer_net_forward.2} parent=1 // pred_region
      _
    $region5: #{pointer_net_forward.2} parent=1 // pred_fallthru
      _
    // Predicated region
    $region6: #{pointer_net_forward.2} parent=1 // pred_check
      _
    $region7: #{pointer_net_forward.2} parent=1 // pred_check_branch
      %17 = sbr.rel (0) target = $region9
    $region8: #{pointer_net_forward.2} parent=1 // pred_region
      _
    $region9: #{pointer_net_forward.2} parent=1 // pred_fallthru
      _
    // Predicated region
    $region10: #{pointer_net_forward.2} parent=1 // pred_check
      _
    $region11: #{pointer_net_forward.2} parent=1 // pred_check_branch
      %19 = sbr.rel (0) target = $region13
    $region12: #{pointer_net_forward.2} parent=1 // pred_region
      _
    $region13: #{pointer_net_forward.2} parent=1 // pred_fallthru
      _
    // Predicated region
    $region14: #{pointer_net_forward.2} parent=1 // pred_check
      _
    $region15: #{pointer_net_forward.2} parent=1 // pred_check_branch
      %21 = sbr.rel (0) target = $region17
    $region16: #{pointer_net_forward.2} parent=1 // pred_region
      _
    $region17: #{pointer_net_forward.2} parent=1 // pred_fallthru
      _
    // Predicated region
    $region18: #{pointer_net_forward.2} parent=1 // pred_check
      _
    $region19: #{pointer_net_forward.2} parent=1 // pred_check_branch
      %23 = sbr.rel (0) target = $region21
    $region20: #{pointer_net_forward.2} parent=1 // pred_region
      %25 = vsyncadd [#allocation6], 0
      %s26 = sshll.u32 %s4, 4
      %s27 = int_to_ptr.hbm [resolvable:$true] %s26
      %s28 = sshll.u32 [#allocation5], 4
      %s29 = int_to_ptr.vmem [resolvable:$true] %s28
      %34 = dma.hbm_to_vmem [thread:$0]  %s27, 8192, %s29, [#allocation6], 512, 512, 32
    $region21: #{pointer_net_forward.2} parent=1 // pred_fallthru
      _
    // Predicated region
    $region22: #{pointer_net_forward.2} parent=1 // pred_check
      _
    $region23: #{pointer_net_forward.2} parent=1 // pred_check_branch
      %36 = sbr.rel (0) target = $region25
    $region24: #{pointer_net_forward.2} parent=1 // pred_region
      %38 = dma.done [#allocation6], 8192
    $region25: #{pointer_net_forward.2} parent=1 // pred_fallthru
      _
    %p39 = scmp.eq.s32.totalorder 0, 0
    // Predicated region
    $region26: #{pointer_net_forward.2} parent=1 // pred_check
      %p40 = pneg %p39
    $region27: #{pointer_net_forward.2} parent=1 // pred_check_branch
      %42 = sbr.rel (%p40) target = $region29
    $region28: #{pointer_net_forward.2} parent=1 // pred_region
      %43 = vst [vmem:[#allocation3] sm:$0xff] 0.0
      %44 = vst [vmem:[#allocation4] sm:$0xff] 0.0
    $region29: #{pointer_net_forward.2} parent=1 // pred_fallthru
      _
    %v45 = vld [vmem:[%s0] sm:$0xff]
    %v46 = vld [vmem:[%s0 + $0x8] sm:$0xff]
    %v47 = vld [vmem:[%s0 + $0x10] sm:$0xff]
    %v48 = vld [vmem:[%s0 + $0x18] sm:$0xff]
    %v49 = vld [vmem:[%s0 + $0x20] sm:$0xff]
    %v50 = vld [vmem:[%s0 + $0x28] sm:$0xff]
    %v51 = vld [vmem:[%s0 + $0x30] sm:$0xff]
    %v52 = vld [vmem:[%s0 + $0x38] sm:$0xff]
    %v53 = vld [vmem:[%s0 + $0x40] sm:$0xff]
    %v54 = vld [vmem:[%s0 + $0x48] sm:$0xff]
    %v55 = vld [vmem:[%s0 + $0x50] sm:$0xff]
    %v56 = vld [vmem:[%s0 + $0x58] sm:$0xff]
    %v57 = vld [vmem:[%s0 + $0x60] sm:$0xff]
    %v58 = vld [vmem:[%s0 + $0x68] sm:$0xff]
    %v59 = vld [vmem:[%s0 + $0x70] sm:$0xff]
    %v60 = vld [vmem:[%s0 + $0x78] sm:$0xff]
    %v61 = vld [vmem:[%s2] sm:$0xff]
    %v62 = vld [vmem:[%s3] sm:$0xf]
    %v64 = vperm.slane %v62, 0
    %v65 = vperm.slane %v62, 1
    %v66 = vperm.slane %v62, 2
    %v67 = vperm.slane %v62, 3
    %73 = vst [vmem:[#allocation1] ss:$4 sm:$0xff] %v61
    %v74 = vld.sshfl [vmem:[#allocation1] sm:$0xff pattern:$0x73625140]
    %v75 = vld.sshfl [vmem:[#allocation1 + $0x8] sm:$0xff pattern:$0x73625140]
    %v76 = vld.sshfl [vmem:[#allocation1 + $0x10] sm:$0xff pattern:$0x73625140]
    %v77 = vld.sshfl [vmem:[#allocation1 + $0x18] sm:$0xff pattern:$0x73625140]
    %vm78 = vcmask 15360
    %v80 = vsel %vm78, %v45, 0
    %v83 = vsel %vm78, %v46, 0
    %v86 = vsel %vm78, %v47, 0
    %v89 = vsel %vm78, %v48, 0
    %v92 = vsel %vm78, %v49, 0
    %v95 = vsel %vm78, %v50, 0
    %v98 = vsel %vm78, %v51, 0
    %v101 = vsel %vm78, %v52, 0
    %v104 = vsel %vm78, %v53, 0
    %v107 = vsel %vm78, %v54, 0
    %v110 = vsel %vm78, %v55, 0
    %v113 = vsel %vm78, %v56, 0
    %v116 = vsel %vm78, %v57, 0
    %v119 = vsel %vm78, %v58, 0
    %v122 = vsel %vm78, %v59, 0
    %v125 = vsel %vm78, %v60, 0
    %vm127 = vcmask 1041408
    %v128 = vsel %vm127, %v74, 0
    %v130 = vsel %vm127, %v75, 0
    %v132 = vsel %vm127, %v76, 0
    %v134 = vsel %vm127, %v77, 0
    %136 = vmatpush.msra.mxu0 0.0
    %137 = vmatpush.msra.mxu0 0.0
    %138 = vmatpush.msra.mxu0 0.0
    %139 = vmatpush.msra.mxu0 0.0
    %140 = vmatpush.msra.mxu0 0.0
    %141 = vmatpush.msra.mxu0 0.0
    %142 = vmatpush.msra.mxu0 0.0
    %143 = vmatpush.msra.mxu0 0.0
    %144 = vmatpush.msra.mxu0 0.0
    %145 = vmatpush.msra.mxu0 0.0
    %146 = vmatpush.msra.mxu0 0.0
    %147 = vmatpush.msra.mxu0 0.0
    %148 = vmatpush.msra.mxu0 0.0
    %149 = vmatpush.msra.mxu0 0.0
    %150 = vmatpush.msra.mxu0 0.0
    %151 = vmatpush.msra.mxu0 %v128
    %152 = vmatmul.f32.gmra.mxu0 %v80
    %v153 = vpop.f32.mrf.mxu0
    %v154 = vadd.f32 %v64, %v153
    %155 = vmatmul.f32.gmra.mxu0 %v83
    %v156 = vpop.f32.mrf.mxu0
    %v157 = vadd.f32 %v64, %v156
    %158 = vmatmul.f32.gmra.mxu0 %v86
    %v159 = vpop.f32.mrf.mxu0
    %v160 = vadd.f32 %v64, %v159
    %161 = vmatmul.f32.gmra.mxu0 %v89
    %v162 = vpop.f32.mrf.mxu0
    %v163 = vadd.f32 %v64, %v162
    %164 = vmatmul.f32.gmra.mxu0 %v92
    %v165 = vpop.f32.mrf.mxu0
    %v166 = vadd.f32 %v64, %v165
    %167 = vmatmul.f32.gmra.mxu0 %v95
    %v168 = vpop.f32.mrf.mxu0
    %v169 = vadd.f32 %v64, %v168
    %170 = vmatmul.f32.gmra.mxu0 %v98
    %v171 = vpop.f32.mrf.mxu0
    %v172 = vadd.f32 %v64, %v171
    %173 = vmatmul.f32.gmra.mxu0 %v101
    %v174 = vpop.f32.mrf.mxu0
    %v175 = vadd.f32 %v64, %v174
    %176 = vmatmul.f32.gmra.mxu0 %v104
    %v177 = vpop.f32.mrf.mxu0
    %v178 = vadd.f32 %v64, %v177
    %179 = vmatmul.f32.gmra.mxu0 %v107
    %v180 = vpop.f32.mrf.mxu0
    %v181 = vadd.f32 %v64, %v180
    %182 = vmatmul.f32.gmra.mxu0 %v110
    %v183 = vpop.f32.mrf.mxu0
    %v184 = vadd.f32 %v64, %v183
    %185 = vmatmul.f32.gmra.mxu0 %v113
    %v186 = vpop.f32.mrf.mxu0
    %v187 = vadd.f32 %v64, %v186
    %188 = vmatmul.f32.gmra.mxu0 %v116
    %v189 = vpop.f32.mrf.mxu0
    %v190 = vadd.f32 %v64, %v189
    %191 = vmatmul.f32.gmra.mxu0 %v119
    %v192 = vpop.f32.mrf.mxu0
    %v193 = vadd.f32 %v64, %v192
    %194 = vmatmul.f32.gmra.mxu0 %v122
    %v195 = vpop.f32.mrf.mxu0
    %v196 = vadd.f32 %v64, %v195
    %197 = vmatmul.f32.gmra.mxu0 %v125
    %v198 = vpop.f32.mrf.mxu0
    %v199 = vadd.f32 %v64, %v198
    %200 = vdwg.mxu0
    %201 = vmatpush.msra.mxu0 0.0
    %202 = vmatpush.msra.mxu0 0.0
    %203 = vmatpush.msra.mxu0 0.0
    %204 = vmatpush.msra.mxu0 0.0
    %205 = vmatpush.msra.mxu0 0.0
    %206 = vmatpush.msra.mxu0 0.0
    %207 = vmatpush.msra.mxu0 0.0
    %208 = vmatpush.msra.mxu0 0.0
    %209 = vmatpush.msra.mxu0 0.0
    %210 = vmatpush.msra.mxu0 0.0
    %211 = vmatpush.msra.mxu0 0.0
    %212 = vmatpush.msra.mxu0 0.0
    %213 = vmatpush.msra.mxu0 0.0
    %214 = vmatpush.msra.mxu0 0.0
    %215 = vmatpush.msra.mxu0 0.0
    %216 = vmatpush.msra.mxu0 %v130
    %217 = vmatmul.f32.gmra.mxu0 %v80
    %v218 = vpop.f32.mrf.mxu0
    %v219 = vadd.f32 %v65, %v218
    %220 = vmatmul.f32.gmra.mxu0 %v83
    %v221 = vpop.f32.mrf.mxu0
    %v222 = vadd.f32 %v65, %v221
    %223 = vmatmul.f32.gmra.mxu0 %v86
    %v224 = vpop.f32.mrf.mxu0
    %v225 = vadd.f32 %v65, %v224
    %226 = vmatmul.f32.gmra.mxu0 %v89
    %v227 = vpop.f32.mrf.mxu0
    %v228 = vadd.f32 %v65, %v227
    %229 = vmatmul.f32.gmra.mxu0 %v92
    %v230 = vpop.f32.mrf.mxu0
    %v231 = vadd.f32 %v65, %v230
    %232 = vmatmul.f32.gmra.mxu0 %v95
    %v233 = vpop.f32.mrf.mxu0
    %v234 = vadd.f32 %v65, %v233
    %235 = vmatmul.f32.gmra.mxu0 %v98
    %v236 = vpop.f32.mrf.mxu0
    %v237 = vadd.f32 %v65, %v236
    %238 = vmatmul.f32.gmra.mxu0 %v101
    %v239 = vpop.f32.mrf.mxu0
    %v240 = vadd.f32 %v65, %v239
    %241 = vmatmul.f32.gmra.mxu0 %v104
    %v242 = vpop.f32.mrf.mxu0
    %v243 = vadd.f32 %v65, %v242
    %244 = vmatmul.f32.gmra.mxu0 %v107
    %v245 = vpop.f32.mrf.mxu0
    %v246 = vadd.f32 %v65, %v245
    %247 = vmatmul.f32.gmra.mxu0 %v110
    %v248 = vpop.f32.mrf.mxu0
    %v249 = vadd.f32 %v65, %v248
    %250 = vmatmul.f32.gmra.mxu0 %v113
    %v251 = vpop.f32.mrf.mxu0
    %v252 = vadd.f32 %v65, %v251
    %253 = vmatmul.f32.gmra.mxu0 %v116
    %v254 = vpop.f32.mrf.mxu0
    %v255 = vadd.f32 %v65, %v254
    %256 = vmatmul.f32.gmra.mxu0 %v119
    %v257 = vpop.f32.mrf.mxu0
    %v258 = vadd.f32 %v65, %v257
    %259 = vmatmul.f32.gmra.mxu0 %v122
    %v260 = vpop.f32.mrf.mxu0
    %v261 = vadd.f32 %v65, %v260
    %262 = vmatmul.f32.gmra.mxu0 %v125
    %v263 = vpop.f32.mrf.mxu0
    %v264 = vadd.f32 %v65, %v263
    %265 = vdwg.mxu0
    %266 = vmatpush.msra.mxu0 0.0
    %267 = vmatpush.msra.mxu0 0.0
    %268 = vmatpush.msra.mxu0 0.0
    %269 = vmatpush.msra.mxu0 0.0
    %270 = vmatpush.msra.mxu0 0.0
    %271 = vmatpush.msra.mxu0 0.0
    %272 = vmatpush.msra.mxu0 0.0
    %273 = vmatpush.msra.mxu0 0.0
    %274 = vmatpush.msra.mxu0 0.0
    %275 = vmatpush.msra.mxu0 0.0
    %276 = vmatpush.msra.mxu0 0.0
    %277 = vmatpush.msra.mxu0 0.0
    %278 = vmatpush.msra.mxu0 0.0
    %279 = vmatpush.msra.mxu0 0.0
    %280 = vmatpush.msra.mxu0 0.0
    %281 = vmatpush.msra.mxu0 %v132
    %282 = vmatmul.f32.gmra.mxu0 %v80
    %v283 = vpop.f32.mrf.mxu0
    %v284 = vadd.f32 %v66, %v283
    %285 = vmatmul.f32.gmra.mxu0 %v83
    %v286 = vpop.f32.mrf.mxu0
    %v287 = vadd.f32 %v66, %v286
    %288 = vmatmul.f32.gmra.mxu0 %v86
    %v289 = vpop.f32.mrf.mxu0
    %v290 = vadd.f32 %v66, %v289
    %291 = vmatmul.f32.gmra.mxu0 %v89
    %v292 = vpop.f32.mrf.mxu0
    %v293 = vadd.f32 %v66, %v292
    %294 = vmatmul.f32.gmra.mxu0 %v92
    %v295 = vpop.f32.mrf.mxu0
    %v296 = vadd.f32 %v66, %v295
    %297 = vmatmul.f32.gmra.mxu0 %v95
    %v298 = vpop.f32.mrf.mxu0
    %v299 = vadd.f32 %v66, %v298
    %300 = vmatmul.f32.gmra.mxu0 %v98
    %v301 = vpop.f32.mrf.mxu0
    %v302 = vadd.f32 %v66, %v301
    %303 = vmatmul.f32.gmra.mxu0 %v101
    %v304 = vpop.f32.mrf.mxu0
    %v305 = vadd.f32 %v66, %v304
    %306 = vmatmul.f32.gmra.mxu0 %v104
    %v307 = vpop.f32.mrf.mxu0
    %v308 = vadd.f32 %v66, %v307
    %309 = vmatmul.f32.gmra.mxu0 %v107
    %v310 = vpop.f32.mrf.mxu0
    %v311 = vadd.f32 %v66, %v310
    %312 = vmatmul.f32.gmra.mxu0 %v110
    %v313 = vpop.f32.mrf.mxu0
    %v314 = vadd.f32 %v66, %v313
    %315 = vmatmul.f32.gmra.mxu0 %v113
    %v316 = vpop.f32.mrf.mxu0
    %v317 = vadd.f32 %v66, %v316
    %318 = vmatmul.f32.gmra.mxu0 %v116
    %v319 = vpop.f32.mrf.mxu0
    %v320 = vadd.f32 %v66, %v319
    %321 = vmatmul.f32.gmra.mxu0 %v119
    %v322 = vpop.f32.mrf.mxu0
    %v323 = vadd.f32 %v66, %v322
    %324 = vmatmul.f32.gmra.mxu0 %v122
    %v325 = vpop.f32.mrf.mxu0
    %v326 = vadd.f32 %v66, %v325
    %327 = vmatmul.f32.gmra.mxu0 %v125
    %v328 = vpop.f32.mrf.mxu0
    %v329 = vadd.f32 %v66, %v328
    %330 = vdwg.mxu0
    %331 = vmatpush.msra.mxu0 0.0
    %332 = vmatpush.msra.mxu0 0.0
    %333 = vmatpush.msra.mxu0 0.0
    %334 = vmatpush.msra.mxu0 0.0
    %335 = vmatpush.msra.mxu0 0.0
    %336 = vmatpush.msra.mxu0 0.0
    %337 = vmatpush.msra.mxu0 0.0
    %338 = vmatpush.msra.mxu0 0.0
    %339 = vmatpush.msra.mxu0 0.0
    %340 = vmatpush.msra.mxu0 0.0
    %341 = vmatpush.msra.mxu0 0.0
    %342 = vmatpush.msra.mxu0 0.0
    %343 = vmatpush.msra.mxu0 0.0
    %344 = vmatpush.msra.mxu0 0.0
    %345 = vmatpush.msra.mxu0 0.0
    %346 = vmatpush.msra.mxu0 %v134
    %347 = vmatmul.f32.gmra.mxu0 %v80
    %v348 = vpop.f32.mrf.mxu0
    %v349 = vadd.f32 %v67, %v348
    %350 = vmatmul.f32.gmra.mxu0 %v83
    %v351 = vpop.f32.mrf.mxu0
    %v352 = vadd.f32 %v67, %v351
    %353 = vmatmul.f32.gmra.mxu0 %v86
    %v354 = vpop.f32.mrf.mxu0
    %v355 = vadd.f32 %v67, %v354
    %356 = vmatmul.f32.gmra.mxu0 %v89
    %v357 = vpop.f32.mrf.mxu0
    %v358 = vadd.f32 %v67, %v357
    %359 = vmatmul.f32.gmra.mxu0 %v92
    %v360 = vpop.f32.mrf.mxu0
    %v361 = vadd.f32 %v67, %v360
    %362 = vmatmul.f32.gmra.mxu0 %v95
    %v363 = vpop.f32.mrf.mxu0
    %v364 = vadd.f32 %v67, %v363
    %365 = vmatmul.f32.gmra.mxu0 %v98
    %v366 = vpop.f32.mrf.mxu0
    %v367 = vadd.f32 %v67, %v366
    %368 = vmatmul.f32.gmra.mxu0 %v101
    %v369 = vpop.f32.mrf.mxu0
    %v370 = vadd.f32 %v67, %v369
    %371 = vmatmul.f32.gmra.mxu0 %v104
    %v372 = vpop.f32.mrf.mxu0
    %v373 = vadd.f32 %v67, %v372
    %374 = vmatmul.f32.gmra.mxu0 %v107
    %v375 = vpop.f32.mrf.mxu0
    %v376 = vadd.f32 %v67, %v375
    %377 = vmatmul.f32.gmra.mxu0 %v110
    %v378 = vpop.f32.mrf.mxu0
    %v379 = vadd.f32 %v67, %v378
    %380 = vmatmul.f32.gmra.mxu0 %v113
    %v381 = vpop.f32.mrf.mxu0
    %v382 = vadd.f32 %v67, %v381
    %383 = vmatmul.f32.gmra.mxu0 %v116
    %v384 = vpop.f32.mrf.mxu0
    %v385 = vadd.f32 %v67, %v384
    %386 = vmatmul.f32.gmra.mxu0 %v119
    %v387 = vpop.f32.mrf.mxu0
    %v388 = vadd.f32 %v67, %v387
    %389 = vmatmul.f32.gmra.mxu0 %v122
    %v390 = vpop.f32.mrf.mxu0
    %v391 = vadd.f32 %v67, %v390
    %392 = vmatmul.f32.gmra.mxu0 %v125
    %v393 = vpop.f32.mrf.mxu0
    %v394 = vadd.f32 %v67, %v393
    %395 = vdwg.mxu0
    %396 = vst [vmem:[#allocation2] sm:$0xff] %v154
    %397 = vst [vmem:[#allocation2 + $0x8] sm:$0xff] %v219
    %398 = vst [vmem:[#allocation2 + $0x10] sm:$0xff] %v284
    %399 = vst [vmem:[#allocation2 + $0x18] sm:$0xff] %v349
    %400 = vst [vmem:[#allocation2 + $0x20] sm:$0xff] %v157
    %401 = vst [vmem:[#allocation2 + $0x28] sm:$0xff] %v222
    %402 = vst [vmem:[#allocation2 + $0x30] sm:$0xff] %v287
    %403 = vst [vmem:[#allocation2 + $0x38] sm:$0xff] %v352
    %404 = vst [vmem:[#allocation2 + $0x40] sm:$0xff] %v160
    %405 = vst [vmem:[#allocation2 + $0x48] sm:$0xff] %v225
    %406 = vst [vmem:[#allocation2 + $0x50] sm:$0xff] %v290
    %407 = vst [vmem:[#allocation2 + $0x58] sm:$0xff] %v355
    %408 = vst [vmem:[#allocation2 + $0x60] sm:$0xff] %v163
    %409 = vst [vmem:[#allocation2 + $0x68] sm:$0xff] %v228
    %410 = vst [vmem:[#allocation2 + $0x70] sm:$0xff] %v293
    %411 = vst [vmem:[#allocation2 + $0x78] sm:$0xff] %v358
    %412 = vst [vmem:[#allocation2 + $0x80] sm:$0xff] %v166
    %413 = vst [vmem:[#allocation2 + $0x88] sm:$0xff] %v231
    %414 = vst [vmem:[#allocation2 + $0x90] sm:$0xff] %v296
    %415 = vst [vmem:[#allocation2 + $0x98] sm:$0xff] %v361
    %416 = vst [vmem:[#allocation2 + $0xa0] sm:$0xff] %v169
    %417 = vst [vmem:[#allocation2 + $0xa8] sm:$0xff] %v234
    %418 = vst [vmem:[#allocation2 + $0xb0] sm:$0xff] %v299
    %419 = vst [vmem:[#allocation2 + $0xb8] sm:$0xff] %v364
    %420 = vst [vmem:[#allocation2 + $0xc0] sm:$0xff] %v172
    %421 = vst [vmem:[#allocation2 + $0xc8] sm:$0xff] %v237
    %422 = vst [vmem:[#allocation2 + $0xd0] sm:$0xff] %v302
    %423 = vst [vmem:[#allocation2 + $0xd8] sm:$0xff] %v367
    %424 = vst [vmem:[#allocation2 + $0xe0] sm:$0xff] %v175
    %425 = vst [vmem:[#allocation2 + $0xe8] sm:$0xff] %v240
    %426 = vst [vmem:[#allocation2 + $0xf0] sm:$0xff] %v305
    %427 = vst [vmem:[#allocation2 + $0xf8] sm:$0xff] %v370
    %428 = vst [vmem:[#allocation2 + $0x100] sm:$0xff] %v178
    %429 = vst [vmem:[#allocation2 + $0x108] sm:$0xff] %v243
    %430 = vst [vmem:[#allocation2 + $0x110] sm:$0xff] %v308
    %431 = vst [vmem:[#allocation2 + $0x118] sm:$0xff] %v373
    %432 = vst [vmem:[#allocation2 + $0x120] sm:$0xff] %v181
    %433 = vst [vmem:[#allocation2 + $0x128] sm:$0xff] %v246
    %434 = vst [vmem:[#allocation2 + $0x130] sm:$0xff] %v311
    %435 = vst [vmem:[#allocation2 + $0x138] sm:$0xff] %v376
    %436 = vst [vmem:[#allocation2 + $0x140] sm:$0xff] %v184
    %437 = vst [vmem:[#allocation2 + $0x148] sm:$0xff] %v249
    %438 = vst [vmem:[#allocation2 + $0x150] sm:$0xff] %v314
    %439 = vst [vmem:[#allocation2 + $0x158] sm:$0xff] %v379
    %440 = vst [vmem:[#allocation2 + $0x160] sm:$0xff] %v187
    %441 = vst [vmem:[#allocation2 + $0x168] sm:$0xff] %v252
    %442 = vst [vmem:[#allocation2 + $0x170] sm:$0xff] %v317
    %443 = vst [vmem:[#allocation2 + $0x178] sm:$0xff] %v382
    %444 = vst [vmem:[#allocation2 + $0x180] sm:$0xff] %v190
    %445 = vst [vmem:[#allocation2 + $0x188] sm:$0xff] %v255
    %446 = vst [vmem:[#allocation2 + $0x190] sm:$0xff] %v320
    %447 = vst [vmem:[#allocation2 + $0x198] sm:$0xff] %v385
    %448 = vst [vmem:[#allocation2 + $0x1a0] sm:$0xff] %v193
    %449 = vst [vmem:[#allocation2 + $0x1a8] sm:$0xff] %v258
    %450 = vst [vmem:[#allocation2 + $0x1b0] sm:$0xff] %v323
    %451 = vst [vmem:[#allocation2 + $0x1b8] sm:$0xff] %v388
    %452 = vst [vmem:[#allocation2 + $0x1c0] sm:$0xff] %v196
    %453 = vst [vmem:[#allocation2 + $0x1c8] sm:$0xff] %v261
    %454 = vst [vmem:[#allocation2 + $0x1d0] sm:$0xff] %v326
    %455 = vst [vmem:[#allocation2 + $0x1d8] sm:$0xff] %v391
    %456 = vst [vmem:[#allocation2 + $0x1e0] sm:$0xff] %v199
    %457 = vst [vmem:[#allocation2 + $0x1e8] sm:$0xff] %v264
    %458 = vst [vmem:[#allocation2 + $0x1f0] sm:$0xff] %v329
    %459 = vst [vmem:[#allocation2 + $0x1f8] sm:$0xff] %v394
    %v460 = vld [vmem:[%s1] sm:$0xff]
    %s461 = smul.u32 0, 16
    %v462 = vld [vmem:[#allocation3] sm:$0xff]
    %v463 = vld [vmem:[#allocation4] sm:$0xff]
    %s464 = smul.u32 0, 4
    %s465 = smul.addr %s464, 8
    %s466 = scalar_lea.vmem [#allocation2], %s465
    %v467 = vld [vmem:[%s466] sm:$0xff]
    %v468 = vld [vmem:[%s466 + $0x8] sm:$0xff]
    %v469 = vld [vmem:[%s466 + $0x10] sm:$0xff]
    %v470 = vld [vmem:[%s466 + $0x18] sm:$0xff]
    %v471 = vld [vmem:[#allocation5] sm:$0xff]
    %v472 = vld [vmem:[#allocation5 + $0x8] sm:$0xff]
    %v473 = vld [vmem:[#allocation5 + $0x10] sm:$0xff]
    %v474 = vld [vmem:[#allocation5 + $0x18] sm:$0xff]
    %v475 = vld [vmem:[#allocation5 + $0x20] sm:$0xff]
    %v476 = vld [vmem:[#allocation5 + $0x28] sm:$0xff]
    %v477 = vld [vmem:[#allocation5 + $0x30] sm:$0xff]
    %v478 = vld [vmem:[#allocation5 + $0x38] sm:$0xff]
    %v479 = vld [vmem:[#allocation5 + $0x40] sm:$0xff]
    %v480 = vld [vmem:[#allocation5 + $0x48] sm:$0xff]
    %v481 = vld [vmem:[#allocation5 + $0x50] sm:$0xff]
    %v482 = vld [vmem:[#allocation5 + $0x58] sm:$0xff]
    %v483 = vld [vmem:[#allocation5 + $0x60] sm:$0xff]
    %v484 = vld [vmem:[#allocation5 + $0x68] sm:$0xff]
    %v485 = vld [vmem:[#allocation5 + $0x70] sm:$0xff]
    %v486 = vld [vmem:[#allocation5 + $0x78] sm:$0xff]
    %v487 = vld [vmem:[#allocation5 + $0x80] sm:$0xff]
    %v488 = vld [vmem:[#allocation5 + $0x88] sm:$0xff]
    %v489 = vld [vmem:[#allocation5 + $0x90] sm:$0xff]
    %v490 = vld [vmem:[#allocation5 + $0x98] sm:$0xff]
    %v491 = vld [vmem:[#allocation5 + $0xa0] sm:$0xff]
    %v492 = vld [vmem:[#allocation5 + $0xa8] sm:$0xff]
    %v493 = vld [vmem:[#allocation5 + $0xb0] sm:$0xff]
    %v494 = vld [vmem:[#allocation5 + $0xb8] sm:$0xff]
    %v495 = vld [vmem:[#allocation5 + $0xc0] sm:$0xff]
    %v496 = vld [vmem:[#allocation5 + $0xc8] sm:$0xff]
    %v497 = vld [vmem:[#allocation5 + $0xd0] sm:$0xff]
    %v498 = vld [vmem:[#allocation5 + $0xd8] sm:$0xff]
    %v499 = vld [vmem:[#allocation5 + $0xe0] sm:$0xff]
    %v500 = vld [vmem:[#allocation5 + $0xe8] sm:$0xff]
    %v501 = vld [vmem:[#allocation5 + $0xf0] sm:$0xff]
    %v502 = vld [vmem:[#allocation5 + $0xf8] sm:$0xff]
    %v503 = vld [vmem:[#allocation5 + $0x100] sm:$0xff]
    %v504 = vld [vmem:[#allocation5 + $0x108] sm:$0xff]
    %v505 = vld [vmem:[#allocation5 + $0x110] sm:$0xff]
    %v506 = vld [vmem:[#allocation5 + $0x118] sm:$0xff]
    %v507 = vld [vmem:[#allocation5 + $0x120] sm:$0xff]
    %v508 = vld [vmem:[#allocation5 + $0x128] sm:$0xff]
    %v509 = vld [vmem:[#allocation5 + $0x130] sm:$0xff]
    %v510 = vld [vmem:[#allocation5 + $0x138] sm:$0xff]
    %v511 = vld [vmem:[#allocation5 + $0x140] sm:$0xff]
    %v512 = vld [vmem:[#allocation5 + $0x148] sm:$0xff]
    %v513 = vld [vmem:[#allocation5 + $0x150] sm:$0xff]
    %v514 = vld [vmem:[#allocation5 + $0x158] sm:$0xff]
    %v515 = vld [vmem:[#allocation5 + $0x160] sm:$0xff]
    %v516 = vld [vmem:[#allocation5 + $0x168] sm:$0xff]
    %v517 = vld [vmem:[#allocation5 + $0x170] sm:$0xff]
    %v518 = vld [vmem:[#allocation5 + $0x178] sm:$0xff]
    %v519 = vld [vmem:[#allocation5 + $0x180] sm:$0xff]
    %v520 = vld [vmem:[#allocation5 + $0x188] sm:$0xff]
    %v521 = vld [vmem:[#allocation5 + $0x190] sm:$0xff]
    %v522 = vld [vmem:[#allocation5 + $0x198] sm:$0xff]
    %v523 = vld [vmem:[#allocation5 + $0x1a0] sm:$0xff]
    %v524 = vld [vmem:[#allocation5 + $0x1a8] sm:$0xff]
    %v525 = vld [vmem:[#allocation5 + $0x1b0] sm:$0xff]
    %v526 = vld [vmem:[#allocation5 + $0x1b8] sm:$0xff]
    %v527 = vld [vmem:[#allocation5 + $0x1c0] sm:$0xff]
    %v528 = vld [vmem:[#allocation5 + $0x1c8] sm:$0xff]
    %v529 = vld [vmem:[#allocation5 + $0x1d0] sm:$0xff]
    %v530 = vld [vmem:[#allocation5 + $0x1d8] sm:$0xff]
    %v531 = vld [vmem:[#allocation5 + $0x1e0] sm:$0xff]
    %v532 = vld [vmem:[#allocation5 + $0x1e8] sm:$0xff]
    %v533 = vld [vmem:[#allocation5 + $0x1f0] sm:$0xff]
    %v534 = vld [vmem:[#allocation5 + $0x1f8] sm:$0xff]
    %535 = vmatpush.msra.mxu0 %v531
    %536 = vmatpush.msra.mxu0 %v527
    %537 = vmatpush.msra.mxu0 %v523
    %538 = vmatpush.msra.mxu0 %v519
    %539 = vmatpush.msra.mxu0 %v515
    %540 = vmatpush.msra.mxu0 %v511
    %541 = vmatpush.msra.mxu0 %v507
    %542 = vmatpush.msra.mxu0 %v503
    %543 = vmatpush.msra.mxu0 %v499
    %544 = vmatpush.msra.mxu0 %v495
    %545 = vmatpush.msra.mxu0 %v491
    %546 = vmatpush.msra.mxu0 %v487
    %547 = vmatpush.msra.mxu0 %v483
    %548 = vmatpush.msra.mxu0 %v479
    %549 = vmatpush.msra.mxu0 %v475
    %550 = vmatpush.msra.mxu0 %v471
    %551 = vmatmul.f32.gmra.mxu0 %v462
    %v552 = vpop.f32.mrf.mxu0
    %v553 = vadd.f32 0.0, %v552
    %554 = vdwg.mxu0
    %555 = vmatpush.msra.mxu0 %v532
    %556 = vmatpush.msra.mxu0 %v528
    %557 = vmatpush.msra.mxu0 %v524
    %558 = vmatpush.msra.mxu0 %v520
    %559 = vmatpush.msra.mxu0 %v516
    %560 = vmatpush.msra.mxu0 %v512
    %561 = vmatpush.msra.mxu0 %v508
    %562 = vmatpush.msra.mxu0 %v504
    %563 = vmatpush.msra.mxu0 %v500
    %564 = vmatpush.msra.mxu0 %v496
    %565 = vmatpush.msra.mxu0 %v492
    %566 = vmatpush.msra.mxu0 %v488
    %567 = vmatpush.msra.mxu0 %v484
    %568 = vmatpush.msra.mxu0 %v480
    %569 = vmatpush.msra.mxu0 %v476
    %570 = vmatpush.msra.mxu0 %v472
    %571 = vmatmul.f32.gmra.mxu0 %v462
    %v572 = vpop.f32.mrf.mxu0
    %v573 = vadd.f32 0.0, %v572
    %574 = vdwg.mxu0
    %575 = vmatpush.msra.mxu0 %v533
    %576 = vmatpush.msra.mxu0 %v529
    %577 = vmatpush.msra.mxu0 %v525
    %578 = vmatpush.msra.mxu0 %v521
    %579 = vmatpush.msra.mxu0 %v517
    %580 = vmatpush.msra.mxu0 %v513
    %581 = vmatpush.msra.mxu0 %v509
    %582 = vmatpush.msra.mxu0 %v505
    %583 = vmatpush.msra.mxu0 %v501
    %584 = vmatpush.msra.mxu0 %v497
    %585 = vmatpush.msra.mxu0 %v493
    %586 = vmatpush.msra.mxu0 %v489
    %587 = vmatpush.msra.mxu0 %v485
    %588 = vmatpush.msra.mxu0 %v481
    %589 = vmatpush.msra.mxu0 %v477
    %590 = vmatpush.msra.mxu0 %v473
    %591 = vmatmul.f32.gmra.mxu0 %v462
    %v592 = vpop.f32.mrf.mxu0
    %v593 = vadd.f32 0.0, %v592
    %594 = vdwg.mxu0
    %595 = vmatpush.msra.mxu0 %v534
    %596 = vmatpush.msra.mxu0 %v530
    %597 = vmatpush.msra.mxu0 %v526
    %598 = vmatpush.msra.mxu0 %v522
    %599 = vmatpush.msra.mxu0 %v518
    %600 = vmatpush.msra.mxu0 %v514
    %601 = vmatpush.msra.mxu0 %v510
    %602 = vmatpush.msra.mxu0 %v506
    %603 = vmatpush.msra.mxu0 %v502
    %604 = vmatpush.msra.mxu0 %v498
    %605 = vmatpush.msra.mxu0 %v494
    %606 = vmatpush.msra.mxu0 %v490
    %607 = vmatpush.msra.mxu0 %v486
    %608 = vmatpush.msra.mxu0 %v482
    %609 = vmatpush.msra.mxu0 %v478
    %610 = vmatpush.msra.mxu0 %v474
    %611 = vmatmul.f32.gmra.mxu0 %v462
    %v612 = vpop.f32.mrf.mxu0
    %v613 = vadd.f32 0.0, %v612
    %614 = vdwg.mxu0
    %v615 = vadd.f32 %v467, %v553
    %v616 = vadd.f32 %v468, %v573
    %v617 = vadd.f32 %v469, %v593
    %v618 = vadd.f32 %v470, %v613
    %v619 = vxor.u32 %v615, 2147483648
    %v620 = vmul.f32 %v619, 1.442695
    %v621 = vpow.pop %v620
    %v622 = vadd.f32 %v621, 1.0
    %v623 = vrcp.pop %v622
    %v624 = vmul.f32 %v622, %v623
    %v625 = vsub.f32 1.0, %v624
    %v626 = vmul.f32 %v623, %v625
    %v627 = vadd.f32 %v623, %v626
    %vm628 = vweird.f32 %v622
    %vm629 = vweird.f32 %v623
    %vm630 = vmor %vm628, %vm629
    %v631 = vsel %vm630, %v623, %v627
    %v632 = vand.u32 2147483647, %v622
    %vm633 = vcmp.eq.f32.partialorder %v632, 8.507059e+37
    %v634 = vand.u32 %v622, 2147483648
    %v635 = vor.u32 1.1754944e-38, %v634
    %v636 = vsel %vm633, %v635, %v631
    %v637 = vmul.f32 1.0, %v636
    %v638 = vxor.u32 %v616, 2147483648
    %v639 = vmul.f32 %v638, 1.442695
    %v640 = vpow.pop %v639
    %v641 = vadd.f32 %v640, 1.0
    %v642 = vrcp.pop %v641
    %v643 = vmul.f32 %v641, %v642
    %v644 = vsub.f32 1.0, %v643
    %v645 = vmul.f32 %v642, %v644
    %v646 = vadd.f32 %v642, %v645
    %vm647 = vweird.f32 %v641
    %vm648 = vweird.f32 %v642
    %vm649 = vmor %vm647, %vm648
    %v650 = vsel %vm649, %v642, %v646
    %v651 = vand.u32 2147483647, %v641
    %vm652 = vcmp.eq.f32.partialorder %v651, 8.507059e+37
    %v653 = vand.u32 %v641, 2147483648
    %v654 = vor.u32 1.1754944e-38, %v653
    %v655 = vsel %vm652, %v654, %v650
    %v656 = vmul.f32 1.0, %v655
    %v657 = vtanh.pop %v617
    %v658 = vxor.u32 %v618, 2147483648
    %v659 = vmul.f32 %v658, 1.442695
    %v660 = vpow.pop %v659
    %v661 = vadd.f32 %v660, 1.0
    %v662 = vrcp.pop %v661
    %v663 = vmul.f32 %v661, %v662
    %v664 = vsub.f32 1.0, %v663
    %v665 = vmul.f32 %v662, %v664
    %v666 = vadd.f32 %v662, %v665
    %vm667 = vweird.f32 %v661
    %vm668 = vweird.f32 %v662
    %vm669 = vmor %vm667, %vm668
    %v670 = vsel %vm669, %v662, %v666
    %v671 = vand.u32 2147483647, %v661
    %vm672 = vcmp.eq.f32.partialorder %v671, 8.507059e+37
    %v673 = vand.u32 %v661, 2147483648
    %v674 = vor.u32 1.1754944e-38, %v673
    %v675 = vsel %vm672, %v674, %v670
    %v676 = vmul.f32 1.0, %v675
    %v677 = vmul.f32 %v656, %v463
    %v678 = vmul.f32 %v637, %v657
    %v679 = vadd.f32 %v677, %v678
    %v680 = vtanh.pop %v679
    %v681 = vmul.f32 %v676, %v680
    %v682 = vstv %s461
    %vm683 = vcmp.lt.s32.totalorder %v682, %v460
    %v684 = vsel %vm683, %v681, 0.0
    %685 = vst [vmem:[%s5] sm:$0xff] %v684
    %v686 = vsel %vm683, %v681, %v462
    %v687 = vsel %vm683, %v679, %v463
    %s688 = smul.u32 1, 4
    %s689 = smul.addr %s688, 8
    %s690 = scalar_lea.vmem [#allocation2], %s689
    %v691 = vld [vmem:[%s690] sm:$0xff]
    %v692 = vld [vmem:[%s690 + $0x8] sm:$0xff]
    %v693 = vld [vmem:[%s690 + $0x10] sm:$0xff]
    %v694 = vld [vmem:[%s690 + $0x18] sm:$0xff]
    %v695 = vld [vmem:[#allocation5] sm:$0xff]
    %v696 = vld [vmem:[#allocation5 + $0x8] sm:$0xff]
    %v697 = vld [vmem:[#allocation5 + $0x10] sm:$0xff]
    %v698 = vld [vmem:[#allocation5 + $0x18] sm:$0xff]
    %v699 = vld [vmem:[#allocation5 + $0x20] sm:$0xff]
    %v700 = vld [vmem:[#allocation5 + $0x28] sm:$0xff]
    %v701 = vld [vmem:[#allocation5 + $0x30] sm:$0xff]
    %v702 = vld [vmem:[#allocation5 + $0x38] sm:$0xff]
    %v703 = vld [vmem:[#allocation5 + $0x40] sm:$0xff]
    %v704 = vld [vmem:[#allocation5 + $0x48] sm:$0xff]
    %v705 = vld [vmem:[#allocation5 + $0x50] sm:$0xff]
    %v706 = vld [vmem:[#allocation5 + $0x58] sm:$0xff]
    %v707 = vld [vmem:[#allocation5 + $0x60] sm:$0xff]
    %v708 = vld [vmem:[#allocation5 + $0x68] sm:$0xff]
    %v709 = vld [vmem:[#allocation5 + $0x70] sm:$0xff]
    %v710 = vld [vmem:[#allocation5 + $0x78] sm:$0xff]
    %v711 = vld [vmem:[#allocation5 + $0x80] sm:$0xff]
    %v712 = vld [vmem:[#allocation5 + $0x88] sm:$0xff]
    %v713 = vld [vmem:[#allocation5 + $0x90] sm:$0xff]
    %v714 = vld [vmem:[#allocation5 + $0x98] sm:$0xff]
    %v715 = vld [vmem:[#allocation5 + $0xa0] sm:$0xff]
    %v716 = vld [vmem:[#allocation5 + $0xa8] sm:$0xff]
    %v717 = vld [vmem:[#allocation5 + $0xb0] sm:$0xff]
    %v718 = vld [vmem:[#allocation5 + $0xb8] sm:$0xff]
    %v719 = vld [vmem:[#allocation5 + $0xc0] sm:$0xff]
    %v720 = vld [vmem:[#allocation5 + $0xc8] sm:$0xff]
    %v721 = vld [vmem:[#allocation5 + $0xd0] sm:$0xff]
    %v722 = vld [vmem:[#allocation5 + $0xd8] sm:$0xff]
    %v723 = vld [vmem:[#allocation5 + $0xe0] sm:$0xff]
    %v724 = vld [vmem:[#allocation5 + $0xe8] sm:$0xff]
    %v725 = vld [vmem:[#allocation5 + $0xf0] sm:$0xff]
    %v726 = vld [vmem:[#allocation5 + $0xf8] sm:$0xff]
    %v727 = vld [vmem:[#allocation5 + $0x100] sm:$0xff]
    %v728 = vld [vmem:[#allocation5 + $0x108] sm:$0xff]
    %v729 = vld [vmem:[#allocation5 + $0x110] sm:$0xff]
    %v730 = vld [vmem:[#allocation5 + $0x118] sm:$0xff]
    %v731 = vld [vmem:[#allocation5 + $0x120] sm:$0xff]
    %v732 = vld [vmem:[#allocation5 + $0x128] sm:$0xff]
    %v733 = vld [vmem:[#allocation5 + $0x130] sm:$0xff]
    %v734 = vld [vmem:[#allocation5 + $0x138] sm:$0xff]
    %v735 = vld [vmem:[#allocation5 + $0x140] sm:$0xff]
    %v736 = vld [vmem:[#allocation5 + $0x148] sm:$0xff]
    %v737 = vld [vmem:[#allocation5 + $0x150] sm:$0xff]
    %v738 = vld [vmem:[#allocation5 + $0x158] sm:$0xff]
    %v739 = vld [vmem:[#allocation5 + $0x160] sm:$0xff]
    %v740 = vld [vmem:[#allocation5 + $0x168] sm:$0xff]
    %v741 = vld [vmem:[#allocation5 + $0x170] sm:$0xff]
    %v742 = vld [vmem:[#allocation5 + $0x178] sm:$0xff]
    %v743 = vld [vmem:[#allocation5 + $0x180] sm:$0xff]
    %v744 = vld [vmem:[#allocation5 + $0x188] sm:$0xff]
    %v745 = vld [vmem:[#allocation5 + $0x190] sm:$0xff]
    %v746 = vld [vmem:[#allocation5 + $0x198] sm:$0xff]
    %v747 = vld [vmem:[#allocation5 + $0x1a0] sm:$0xff]
    %v748 = vld [vmem:[#allocation5 + $0x1a8] sm:$0xff]
    %v749 = vld [vmem:[#allocation5 + $0x1b0] sm:$0xff]
    %v750 = vld [vmem:[#allocation5 + $0x1b8] sm:$0xff]
    %v751 = vld [vmem:[#allocation5 + $0x1c0] sm:$0xff]
    %v752 = vld [vmem:[#allocation5 + $0x1c8] sm:$0xff]
    %v753 = vld [vmem:[#allocation5 + $0x1d0] sm:$0xff]
    %v754 = vld [vmem:[#allocation5 + $0x1d8] sm:$0xff]
    %v755 = vld [vmem:[#allocation5 + $0x1e0] sm:$0xff]
    %v756 = vld [vmem:[#allocation5 + $0x1e8] sm:$0xff]
    %v757 = vld [vmem:[#allocation5 + $0x1f0] sm:$0xff]
    %v758 = vld [vmem:[#allocation5 + $0x1f8] sm:$0xff]
    %759 = vmatpush.msra.mxu0 %v755
    %760 = vmatpush.msra.mxu0 %v751
    %761 = vmatpush.msra.mxu0 %v747
    %762 = vmatpush.msra.mxu0 %v743
    %763 = vmatpush.msra.mxu0 %v739
    %764 = vmatpush.msra.mxu0 %v735
    %765 = vmatpush.msra.mxu0 %v731
    %766 = vmatpush.msra.mxu0 %v727
    %767 = vmatpush.msra.mxu0 %v723
    %768 = vmatpush.msra.mxu0 %v719
    %769 = vmatpush.msra.mxu0 %v715
    %770 = vmatpush.msra.mxu0 %v711
    %771 = vmatpush.msra.mxu0 %v707
    %772 = vmatpush.msra.mxu0 %v703
    %773 = vmatpush.msra.mxu0 %v699
    %774 = vmatpush.msra.mxu0 %v695
    %775 = vmatmul.f32.gmra.mxu0 %v686
    %v776 = vpop.f32.mrf.mxu0
    %v777 = vadd.f32 0.0, %v776
    %778 = vdwg.mxu0
    %779 = vmatpush.msra.mxu0 %v756
    %780 = vmatpush.msra.mxu0 %v752
    %781 = vmatpush.msra.mxu0 %v748
    %782 = vmatpush.msra.mxu0 %v744
    %783 = vmatpush.msra.mxu0 %v740
    %784 = vmatpush.msra.mxu0 %v736
    %785 = vmatpush.msra.mxu0 %v732
    %786 = vmatpush.msra.mxu0 %v728
    %787 = vmatpush.msra.mxu0 %v724
    %788 = vmatpush.msra.mxu0 %v720
    %789 = vmatpush.msra.mxu0 %v716
    %790 = vmatpush.msra.mxu0 %v712
    %791 = vmatpush.msra.mxu0 %v708
    %792 = vmatpush.msra.mxu0 %v704
    %793 = vmatpush.msra.mxu0 %v700
    %794 = vmatpush.msra.mxu0 %v696
    %795 = vmatmul.f32.gmra.mxu0 %v686
    %v796 = vpop.f32.mrf.mxu0
    %v797 = vadd.f32 0.0, %v796
    %798 = vdwg.mxu0
    %799 = vmatpush.msra.mxu0 %v757
    %800 = vmatpush.msra.mxu0 %v753
    %801 = vmatpush.msra.mxu0 %v749
    %802 = vmatpush.msra.mxu0 %v745
    %803 = vmatpush.msra.mxu0 %v741
    %804 = vmatpush.msra.mxu0 %v737
    %805 = vmatpush.msra.mxu0 %v733
    %806 = vmatpush.msra.mxu0 %v729
    %807 = vmatpush.msra.mxu0 %v725
    %808 = vmatpush.msra.mxu0 %v721
    %809 = vmatpush.msra.mxu0 %v717
    %810 = vmatpush.msra.mxu0 %v713
    %811 = vmatpush.msra.mxu0 %v709
    %812 = vmatpush.msra.mxu0 %v705
    %813 = vmatpush.msra.mxu0 %v701
    %814 = vmatpush.msra.mxu0 %v697
    %815 = vmatmul.f32.gmra.mxu0 %v686
    %v816 = vpop.f32.mrf.mxu0
    %v817 = vadd.f32 0.0, %v816
    %818 = vdwg.mxu0
    %819 = vmatpush.msra.mxu0 %v758
    %820 = vmatpush.msra.mxu0 %v754
    %821 = vmatpush.msra.mxu0 %v750
    %822 = vmatpush.msra.mxu0 %v746
    %823 = vmatpush.msra.mxu0 %v742
    %824 = vmatpush.msra.mxu0 %v738
    %825 = vmatpush.msra.mxu0 %v734
    %826 = vmatpush.msra.mxu0 %v730
    %827 = vmatpush.msra.mxu0 %v726
    %828 = vmatpush.msra.mxu0 %v722
    %829 = vmatpush.msra.mxu0 %v718
    %830 = vmatpush.msra.mxu0 %v714
    %831 = vmatpush.msra.mxu0 %v710
    %832 = vmatpush.msra.mxu0 %v706
    %833 = vmatpush.msra.mxu0 %v702
    %834 = vmatpush.msra.mxu0 %v698
    %835 = vmatmul.f32.gmra.mxu0 %v686
    %v836 = vpop.f32.mrf.mxu0
    %v837 = vadd.f32 0.0, %v836
    %838 = vdwg.mxu0
    %v839 = vadd.f32 %v691, %v777
    %v840 = vadd.f32 %v692, %v797
    %v841 = vadd.f32 %v693, %v817
    %v842 = vadd.f32 %v694, %v837
    %v843 = vxor.u32 %v839, 2147483648
    %v844 = vmul.f32 %v843, 1.442695
    %v845 = vpow.pop %v844
    %v846 = vadd.f32 %v845, 1.0
    %v847 = vrcp.pop %v846
    %v848 = vmul.f32 %v846, %v847
    %v849 = vsub.f32 1.0, %v848
    %v850 = vmul.f32 %v847, %v849
    %v851 = vadd.f32 %v847, %v850
    %vm852 = vweird.f32 %v846
    %vm853 = vweird.f32 %v847
    %vm854 = vmor %vm852, %vm853
    %v855 = vsel %vm854, %v847, %v851
    %v856 = vand.u32 2147483647, %v846
    %vm857 = vcmp.eq.f32.partialorder %v856, 8.507059e+37
    %v858 = vand.u32 %v846, 2147483648
    %v859 = vor.u32 1.1754944e-38, %v858
    %v860 = vsel %vm857, %v859, %v855
    %v861 = vmul.f32 1.0, %v860
    %v862 = vxor.u32 %v840, 2147483648
    %v863 = vmul.f32 %v862, 1.442695
    %v864 = vpow.pop %v863
    %v865 = vadd.f32 %v864, 1.0
    %v866 = vrcp.pop %v865
    %v867 = vmul.f32 %v865, %v866
    %v868 = vsub.f32 1.0, %v867
    %v869 = vmul.f32 %v866, %v868
    %v870 = vadd.f32 %v866, %v869
    %vm871 = vweird.f32 %v865
    %vm872 = vweird.f32 %v866
    %vm873 = vmor %vm871, %vm872
    %v874 = vsel %vm873, %v866, %v870
    %v875 = vand.u32 2147483647, %v865
    %vm876 = vcmp.eq.f32.partialorder %v875, 8.507059e+37
    %v877 = vand.u32 %v865, 2147483648
    %v878 = vor.u32 1.1754944e-38, %v877
    %v879 = vsel %vm876, %v878, %v874
    %v880 = vmul.f32 1.0, %v879
    %v881 = vtanh.pop %v841
    %v882 = vxor.u32 %v842, 2147483648
    %v883 = vmul.f32 %v882, 1.442695
    %v884 = vpow.pop %v883
    %v885 = vadd.f32 %v884, 1.0
    %v886 = vrcp.pop %v885
    %v887 = vmul.f32 %v885, %v886
    %v888 = vsub.f32 1.0, %v887
    %v889 = vmul.f32 %v886, %v888
    %v890 = vadd.f32 %v886, %v889
    %vm891 = vweird.f32 %v885
    %vm892 = vweird.f32 %v886
    %vm893 = vmor %vm891, %vm892
    %v894 = vsel %vm893, %v886, %v890
    %v895 = vand.u32 2147483647, %v885
    %vm896 = vcmp.eq.f32.partialorder %v895, 8.507059e+37
    %v897 = vand.u32 %v885, 2147483648
    %v898 = vor.u32 1.1754944e-38, %v897
    %v899 = vsel %vm896, %v898, %v894
    %v900 = vmul.f32 1.0, %v899
    %v901 = vmul.f32 %v880, %v687
    %v902 = vmul.f32 %v861, %v881
    %v903 = vadd.f32 %v901, %v902
    %v904 = vtanh.pop %v903
    %v905 = vmul.f32 %v900, %v904
    %s906 = sadd.s32 %s461, 1
    %v907 = vstv %s906
    %vm908 = vcmp.lt.s32.totalorder %v907, %v460
    %v909 = vsel %vm908, %v905, 0.0
    %s910 = scalar_lea.vmem %s5, 8
    %911 = vst [vmem:[%s910] sm:$0xff] %v909
    %v912 = vsel %vm908, %v905, %v686
    %v913 = vsel %vm908, %v903, %v687
    %s914 = smul.u32 2, 4
    %s915 = smul.addr %s914, 8
    %s916 = scalar_lea.vmem [#allocation2], %s915
    %v917 = vld [vmem:[%s916] sm:$0xff]
    %v918 = vld [vmem:[%s916 + $0x8] sm:$0xff]
    %v919 = vld [vmem:[%s916 + $0x10] sm:$0xff]
    %v920 = vld [vmem:[%s916 + $0x18] sm:$0xff]
    %v921 = vld [vmem:[#allocation5] sm:$0xff]
    %v922 = vld [vmem:[#allocation5 + $0x8] sm:$0xff]
    %v923 = vld [vmem:[#allocation5 + $0x10] sm:$0xff]
    %v924 = vld [vmem:[#allocation5 + $0x18] sm:$0xff]
    %v925 = vld [vmem:[#allocation5 + $0x20] sm:$0xff]
    %v926 = vld [vmem:[#allocation5 + $0x28] sm:$0xff]
    %v927 = vld [vmem:[#allocation5 + $0x30] sm:$0xff]
    %v928 = vld [vmem:[#allocation5 + $0x38] sm:$0xff]
    %v929 = vld [vmem:[#allocation5 + $0x40] sm:$0xff]
    %v930 = vld [vmem:[#allocation5 + $0x48] sm:$0xff]
    %v931 = vld [vmem:[#allocation5 + $0x50] sm:$0xff]
    %v932 = vld [vmem:[#allocation5 + $0x58] sm:$0xff]
    %v933 = vld [vmem:[#allocation5 + $0x60] sm:$0xff]
    %v934 = vld [vmem:[#allocation5 + $0x68] sm:$0xff]
    %v935 = vld [vmem:[#allocation5 + $0x70] sm:$0xff]
    %v936 = vld [vmem:[#allocation5 + $0x78] sm:$0xff]
    %v937 = vld [vmem:[#allocation5 + $0x80] sm:$0xff]
    %v938 = vld [vmem:[#allocation5 + $0x88] sm:$0xff]
    %v939 = vld [vmem:[#allocation5 + $0x90] sm:$0xff]
    %v940 = vld [vmem:[#allocation5 + $0x98] sm:$0xff]
    %v941 = vld [vmem:[#allocation5 + $0xa0] sm:$0xff]
    %v942 = vld [vmem:[#allocation5 + $0xa8] sm:$0xff]
    %v943 = vld [vmem:[#allocation5 + $0xb0] sm:$0xff]
    %v944 = vld [vmem:[#allocation5 + $0xb8] sm:$0xff]
    %v945 = vld [vmem:[#allocation5 + $0xc0] sm:$0xff]
    %v946 = vld [vmem:[#allocation5 + $0xc8] sm:$0xff]
    %v947 = vld [vmem:[#allocation5 + $0xd0] sm:$0xff]
    %v948 = vld [vmem:[#allocation5 + $0xd8] sm:$0xff]
    %v949 = vld [vmem:[#allocation5 + $0xe0] sm:$0xff]
    %v950 = vld [vmem:[#allocation5 + $0xe8] sm:$0xff]
    %v951 = vld [vmem:[#allocation5 + $0xf0] sm:$0xff]
    %v952 = vld [vmem:[#allocation5 + $0xf8] sm:$0xff]
    %v953 = vld [vmem:[#allocation5 + $0x100] sm:$0xff]
    %v954 = vld [vmem:[#allocation5 + $0x108] sm:$0xff]
    %v955 = vld [vmem:[#allocation5 + $0x110] sm:$0xff]
    %v956 = vld [vmem:[#allocation5 + $0x118] sm:$0xff]
    %v957 = vld [vmem:[#allocation5 + $0x120] sm:$0xff]
    %v958 = vld [vmem:[#allocation5 + $0x128] sm:$0xff]
    %v959 = vld [vmem:[#allocation5 + $0x130] sm:$0xff]
    %v960 = vld [vmem:[#allocation5 + $0x138] sm:$0xff]
    %v961 = vld [vmem:[#allocation5 + $0x140] sm:$0xff]
    %v962 = vld [vmem:[#allocation5 + $0x148] sm:$0xff]
    %v963 = vld [vmem:[#allocation5 + $0x150] sm:$0xff]
    %v964 = vld [vmem:[#allocation5 + $0x158] sm:$0xff]
    %v965 = vld [vmem:[#allocation5 + $0x160] sm:$0xff]
    %v966 = vld [vmem:[#allocation5 + $0x168] sm:$0xff]
    %v967 = vld [vmem:[#allocation5 + $0x170] sm:$0xff]
    %v968 = vld [vmem:[#allocation5 + $0x178] sm:$0xff]
    %v969 = vld [vmem:[#allocation5 + $0x180] sm:$0xff]
    %v970 = vld [vmem:[#allocation5 + $0x188] sm:$0xff]
    %v971 = vld [vmem:[#allocation5 + $0x190] sm:$0xff]
    %v972 = vld [vmem:[#allocation5 + $0x198] sm:$0xff]
    %v973 = vld [vmem:[#allocation5 + $0x1a0] sm:$0xff]
    %v974 = vld [vmem:[#allocation5 + $0x1a8] sm:$0xff]
    %v975 = vld [vmem:[#allocation5 + $0x1b0] sm:$0xff]
    %v976 = vld [vmem:[#allocation5 + $0x1b8] sm:$0xff]
    %v977 = vld [vmem:[#allocation5 + $0x1c0] sm:$0xff]
    %v978 = vld [vmem:[#allocation5 + $0x1c8] sm:$0xff]
    %v979 = vld [vmem:[#allocation5 + $0x1d0] sm:$0xff]
    %v980 = vld [vmem:[#allocation5 + $0x1d8] sm:$0xff]
    %v981 = vld [vmem:[#allocation5 + $0x1e0] sm:$0xff]
    %v982 = vld [vmem:[#allocation5 + $0x1e8] sm:$0xff]
    %v983 = vld [vmem:[#allocation5 + $0x1f0] sm:$0xff]
    %v984 = vld [vmem:[#allocation5 + $0x1f8] sm:$0xff]
    %985 = vmatpush.msra.mxu0 %v981
    %986 = vmatpush.msra.mxu0 %v977
    %987 = vmatpush.msra.mxu0 %v973
    %988 = vmatpush.msra.mxu0 %v969
    %989 = vmatpush.msra.mxu0 %v965
    %990 = vmatpush.msra.mxu0 %v961
    %991 = vmatpush.msra.mxu0 %v957
    %992 = vmatpush.msra.mxu0 %v953
    %993 = vmatpush.msra.mxu0 %v949
    %994 = vmatpush.msra.mxu0 %v945
    %995 = vmatpush.msra.mxu0 %v941
    %996 = vmatpush.msra.mxu0 %v937
    %997 = vmatpush.msra.mxu0 %v933
    %998 = vmatpush.msra.mxu0 %v929
    %999 = vmatpush.msra.mxu0 %v925
    %1000 = vmatpush.msra.mxu0 %v921
    %1001 = vmatmul.f32.gmra.mxu0 %v912
    %v1002 = vpop.f32.mrf.mxu0
    %v1003 = vadd.f32 0.0, %v1002
    %1004 = vdwg.mxu0
    %1005 = vmatpush.msra.mxu0 %v982
    %1006 = vmatpush.msra.mxu0 %v978
    %1007 = vmatpush.msra.mxu0 %v974
    %1008 = vmatpush.msra.mxu0 %v970
    %1009 = vmatpush.msra.mxu0 %v966
    %1010 = vmatpush.msra.mxu0 %v962
    %1011 = vmatpush.msra.mxu0 %v958
    %1012 = vmatpush.msra.mxu0 %v954
    %1013 = vmatpush.msra.mxu0 %v950
    %1014 = vmatpush.msra.mxu0 %v946
    %1015 = vmatpush.msra.mxu0 %v942
    %1016 = vmatpush.msra.mxu0 %v938
    %1017 = vmatpush.msra.mxu0 %v934
    %1018 = vmatpush.msra.mxu0 %v930
    %1019 = vmatpush.msra.mxu0 %v926
    %1020 = vmatpush.msra.mxu0 %v922
    %1021 = vmatmul.f32.gmra.mxu0 %v912
    %v1022 = vpop.f32.mrf.mxu0
    %v1023 = vadd.f32 0.0, %v1022
    %1024 = vdwg.mxu0
    %1025 = vmatpush.msra.mxu0 %v983
    %1026 = vmatpush.msra.mxu0 %v979
    %1027 = vmatpush.msra.mxu0 %v975
    %1028 = vmatpush.msra.mxu0 %v971
    %1029 = vmatpush.msra.mxu0 %v967
    %1030 = vmatpush.msra.mxu0 %v963
    %1031 = vmatpush.msra.mxu0 %v959
    %1032 = vmatpush.msra.mxu0 %v955
    %1033 = vmatpush.msra.mxu0 %v951
    %1034 = vmatpush.msra.mxu0 %v947
    %1035 = vmatpush.msra.mxu0 %v943
    %1036 = vmatpush.msra.mxu0 %v939
    %1037 = vmatpush.msra.mxu0 %v935
    %1038 = vmatpush.msra.mxu0 %v931
    %1039 = vmatpush.msra.mxu0 %v927
    %1040 = vmatpush.msra.mxu0 %v923
    %1041 = vmatmul.f32.gmra.mxu0 %v912
    %v1042 = vpop.f32.mrf.mxu0
    %v1043 = vadd.f32 0.0, %v1042
    %1044 = vdwg.mxu0
    %1045 = vmatpush.msra.mxu0 %v984
    %1046 = vmatpush.msra.mxu0 %v980
    %1047 = vmatpush.msra.mxu0 %v976
    %1048 = vmatpush.msra.mxu0 %v972
    %1049 = vmatpush.msra.mxu0 %v968
    %1050 = vmatpush.msra.mxu0 %v964
    %1051 = vmatpush.msra.mxu0 %v960
    %1052 = vmatpush.msra.mxu0 %v956
    %1053 = vmatpush.msra.mxu0 %v952
    %1054 = vmatpush.msra.mxu0 %v948
    %1055 = vmatpush.msra.mxu0 %v944
    %1056 = vmatpush.msra.mxu0 %v940
    %1057 = vmatpush.msra.mxu0 %v936
    %1058 = vmatpush.msra.mxu0 %v932
    %1059 = vmatpush.msra.mxu0 %v928
    %1060 = vmatpush.msra.mxu0 %v924
    %1061 = vmatmul.f32.gmra.mxu0 %v912
    %v1062 = vpop.f32.mrf.mxu0
    %v1063 = vadd.f32 0.0, %v1062
    %1064 = vdwg.mxu0
    %v1065 = vadd.f32 %v917, %v1003
    %v1066 = vadd.f32 %v918, %v1023
    %v1067 = vadd.f32 %v919, %v1043
    %v1068 = vadd.f32 %v920, %v1063
    %v1069 = vxor.u32 %v1065, 2147483648
    %v1070 = vmul.f32 %v1069, 1.442695
    %v1071 = vpow.pop %v1070
    %v1072 = vadd.f32 %v1071, 1.0
    %v1073 = vrcp.pop %v1072
    %v1074 = vmul.f32 %v1072, %v1073
    %v1075 = vsub.f32 1.0, %v1074
    %v1076 = vmul.f32 %v1073, %v1075
    %v1077 = vadd.f32 %v1073, %v1076
    %vm1078 = vweird.f32 %v1072
    %vm1079 = vweird.f32 %v1073
    %vm1080 = vmor %vm1078, %vm1079
    %v1081 = vsel %vm1080, %v1073, %v1077
    %v1082 = vand.u32 2147483647, %v1072
    %vm1083 = vcmp.eq.f32.partialorder %v1082, 8.507059e+37
    %v1084 = vand.u32 %v1072, 2147483648
    %v1085 = vor.u32 1.1754944e-38, %v1084
    %v1086 = vsel %vm1083, %v1085, %v1081
    %v1087 = vmul.f32 1.0, %v1086
    %v1088 = vxor.u32 %v1066, 2147483648
    %v1089 = vmul.f32 %v1088, 1.442695
    %v1090 = vpow.pop %v1089
    %v1091 = vadd.f32 %v1090, 1.0
    %v1092 = vrcp.pop %v1091
    %v1093 = vmul.f32 %v1091, %v1092
    %v1094 = vsub.f32 1.0, %v1093
    %v1095 = vmul.f32 %v1092, %v1094
    %v1096 = vadd.f32 %v1092, %v1095
    %vm1097 = vweird.f32 %v1091
    %vm1098 = vweird.f32 %v1092
    %vm1099 = vmor %vm1097, %vm1098
    %v1100 = vsel %vm1099, %v1092, %v1096
    %v1101 = vand.u32 2147483647, %v1091
    %vm1102 = vcmp.eq.f32.partialorder %v1101, 8.507059e+37
    %v1103 = vand.u32 %v1091, 2147483648
    %v1104 = vor.u32 1.1754944e-38, %v1103
    %v1105 = vsel %vm1102, %v1104, %v1100
    %v1106 = vmul.f32 1.0, %v1105
    %v1107 = vtanh.pop %v1067
    %v1108 = vxor.u32 %v1068, 2147483648
    %v1109 = vmul.f32 %v1108, 1.442695
    %v1110 = vpow.pop %v1109
    %v1111 = vadd.f32 %v1110, 1.0
    %v1112 = vrcp.pop %v1111
    %v1113 = vmul.f32 %v1111, %v1112
    %v1114 = vsub.f32 1.0, %v1113
    %v1115 = vmul.f32 %v1112, %v1114
    %v1116 = vadd.f32 %v1112, %v1115
    %vm1117 = vweird.f32 %v1111
    %vm1118 = vweird.f32 %v1112
    %vm1119 = vmor %vm1117, %vm1118
    %v1120 = vsel %vm1119, %v1112, %v1116
    %v1121 = vand.u32 2147483647, %v1111
    %vm1122 = vcmp.eq.f32.partialorder %v1121, 8.507059e+37
    %v1123 = vand.u32 %v1111, 2147483648
    %v1124 = vor.u32 1.1754944e-38, %v1123
    %v1125 = vsel %vm1122, %v1124, %v1120
    %v1126 = vmul.f32 1.0, %v1125
    %v1127 = vmul.f32 %v1106, %v913
    %v1128 = vmul.f32 %v1087, %v1107
    %v1129 = vadd.f32 %v1127, %v1128
    %v1130 = vtanh.pop %v1129
    %v1131 = vmul.f32 %v1126, %v1130
    %s1132 = sadd.s32 %s461, 2
    %v1133 = vstv %s1132
    %vm1134 = vcmp.lt.s32.totalorder %v1133, %v460
    %v1135 = vsel %vm1134, %v1131, 0.0
    %s1136 = scalar_lea.vmem %s5, 16
    %1137 = vst [vmem:[%s1136] sm:$0xff] %v1135
    %v1138 = vsel %vm1134, %v1131, %v912
    %v1139 = vsel %vm1134, %v1129, %v913
    %s1140 = smul.u32 3, 4
    %s1141 = smul.addr %s1140, 8
    %s1142 = scalar_lea.vmem [#allocation2], %s1141
    %v1143 = vld [vmem:[%s1142] sm:$0xff]
    %v1144 = vld [vmem:[%s1142 + $0x8] sm:$0xff]
    %v1145 = vld [vmem:[%s1142 + $0x10] sm:$0xff]
    %v1146 = vld [vmem:[%s1142 + $0x18] sm:$0xff]
    %v1147 = vld [vmem:[#allocation5] sm:$0xff]
    %v1148 = vld [vmem:[#allocation5 + $0x8] sm:$0xff]
    %v1149 = vld [vmem:[#allocation5 + $0x10] sm:$0xff]
    %v1150 = vld [vmem:[#allocation5 + $0x18] sm:$0xff]
    %v1151 = vld [vmem:[#allocation5 + $0x20] sm:$0xff]
    %v1152 = vld [vmem:[#allocation5 + $0x28] sm:$0xff]
    %v1153 = vld [vmem:[#allocation5 + $0x30] sm:$0xff]
    %v1154 = vld [vmem:[#allocation5 + $0x38] sm:$0xff]
    %v1155 = vld [vmem:[#allocation5 + $0x40] sm:$0xff]
    %v1156 = vld [vmem:[#allocation5 + $0x48] sm:$0xff]
    %v1157 = vld [vmem:[#allocation5 + $0x50] sm:$0xff]
    %v1158 = vld [vmem:[#allocation5 + $0x58] sm:$0xff]
    %v1159 = vld [vmem:[#allocation5 + $0x60] sm:$0xff]
    %v1160 = vld [vmem:[#allocation5 + $0x68] sm:$0xff]
    %v1161 = vld [vmem:[#allocation5 + $0x70] sm:$0xff]
    %v1162 = vld [vmem:[#allocation5 + $0x78] sm:$0xff]
    %v1163 = vld [vmem:[#allocation5 + $0x80] sm:$0xff]
    %v1164 = vld [vmem:[#allocation5 + $0x88] sm:$0xff]
    %v1165 = vld [vmem:[#allocation5 + $0x90] sm:$0xff]
    %v1166 = vld [vmem:[#allocation5 + $0x98] sm:$0xff]
    %v1167 = vld [vmem:[#allocation5 + $0xa0] sm:$0xff]
    %v1168 = vld [vmem:[#allocation5 + $0xa8] sm:$0xff]
    %v1169 = vld [vmem:[#allocation5 + $0xb0] sm:$0xff]
    %v1170 = vld [vmem:[#allocation5 + $0xb8] sm:$0xff]
    %v1171 = vld [vmem:[#allocation5 + $0xc0] sm:$0xff]
    %v1172 = vld [vmem:[#allocation5 + $0xc8] sm:$0xff]
    %v1173 = vld [vmem:[#allocation5 + $0xd0] sm:$0xff]
    %v1174 = vld [vmem:[#allocation5 + $0xd8] sm:$0xff]
    %v1175 = vld [vmem:[#allocation5 + $0xe0] sm:$0xff]
    %v1176 = vld [vmem:[#allocation5 + $0xe8] sm:$0xff]
    %v1177 = vld [vmem:[#allocation5 + $0xf0] sm:$0xff]
    %v1178 = vld [vmem:[#allocation5 + $0xf8] sm:$0xff]
    %v1179 = vld [vmem:[#allocation5 + $0x100] sm:$0xff]
    %v1180 = vld [vmem:[#allocation5 + $0x108] sm:$0xff]
    %v1181 = vld [vmem:[#allocation5 + $0x110] sm:$0xff]
    %v1182 = vld [vmem:[#allocation5 + $0x118] sm:$0xff]
    %v1183 = vld [vmem:[#allocation5 + $0x120] sm:$0xff]
    %v1184 = vld [vmem:[#allocation5 + $0x128] sm:$0xff]
    %v1185 = vld [vmem:[#allocation5 + $0x130] sm:$0xff]
    %v1186 = vld [vmem:[#allocation5 + $0x138] sm:$0xff]
    %v1187 = vld [vmem:[#allocation5 + $0x140] sm:$0xff]
    %v1188 = vld [vmem:[#allocation5 + $0x148] sm:$0xff]
    %v1189 = vld [vmem:[#allocation5 + $0x150] sm:$0xff]
    %v1190 = vld [vmem:[#allocation5 + $0x158] sm:$0xff]
    %v1191 = vld [vmem:[#allocation5 + $0x160] sm:$0xff]
    %v1192 = vld [vmem:[#allocation5 + $0x168] sm:$0xff]
    %v1193 = vld [vmem:[#allocation5 + $0x170] sm:$0xff]
    %v1194 = vld [vmem:[#allocation5 + $0x178] sm:$0xff]
    %v1195 = vld [vmem:[#allocation5 + $0x180] sm:$0xff]
    %v1196 = vld [vmem:[#allocation5 + $0x188] sm:$0xff]
    %v1197 = vld [vmem:[#allocation5 + $0x190] sm:$0xff]
    %v1198 = vld [vmem:[#allocation5 + $0x198] sm:$0xff]
    %v1199 = vld [vmem:[#allocation5 + $0x1a0] sm:$0xff]
    %v1200 = vld [vmem:[#allocation5 + $0x1a8] sm:$0xff]
    %v1201 = vld [vmem:[#allocation5 + $0x1b0] sm:$0xff]
    %v1202 = vld [vmem:[#allocation5 + $0x1b8] sm:$0xff]
    %v1203 = vld [vmem:[#allocation5 + $0x1c0] sm:$0xff]
    %v1204 = vld [vmem:[#allocation5 + $0x1c8] sm:$0xff]
    %v1205 = vld [vmem:[#allocation5 + $0x1d0] sm:$0xff]
    %v1206 = vld [vmem:[#allocation5 + $0x1d8] sm:$0xff]
    %v1207 = vld [vmem:[#allocation5 + $0x1e0] sm:$0xff]
    %v1208 = vld [vmem:[#allocation5 + $0x1e8] sm:$0xff]
    %v1209 = vld [vmem:[#allocation5 + $0x1f0] sm:$0xff]
    %v1210 = vld [vmem:[#allocation5 + $0x1f8] sm:$0xff]
    %1211 = vmatpush.msra.mxu0 %v1207
    %1212 = vmatpush.msra.mxu0 %v1203
    %1213 = vmatpush.msra.mxu0 %v1199
    %1214 = vmatpush.msra.mxu0 %v1195
    %1215 = vmatpush.msra.mxu0 %v1191
    %1216 = vmatpush.msra.mxu0 %v1187
    %1217 = vmatpush.msra.mxu0 %v1183
    %1218 = vmatpush.msra.mxu0 %v1179
    %1219 = vmatpush.msra.mxu0 %v1175
    %1220 = vmatpush.msra.mxu0 %v1171
    %1221 = vmatpush.msra.mxu0 %v1167
    %1222 = vmatpush.msra.mxu0 %v1163
    %1223 = vmatpush.msra.mxu0 %v1159
    %1224 = vmatpush.msra.mxu0 %v1155
    %1225 = vmatpush.msra.mxu0 %v1151
    %1226 = vmatpush.msra.mxu0 %v1147
    %1227 = vmatmul.f32.gmra.mxu0 %v1138
    %v1228 = vpop.f32.mrf.mxu0
    %v1229 = vadd.f32 0.0, %v1228
    %1230 = vdwg.mxu0
    %1231 = vmatpush.msra.mxu0 %v1208
    %1232 = vmatpush.msra.mxu0 %v1204
    %1233 = vmatpush.msra.mxu0 %v1200
    %1234 = vmatpush.msra.mxu0 %v1196
    %1235 = vmatpush.msra.mxu0 %v1192
    %1236 = vmatpush.msra.mxu0 %v1188
    %1237 = vmatpush.msra.mxu0 %v1184
    %1238 = vmatpush.msra.mxu0 %v1180
    %1239 = vmatpush.msra.mxu0 %v1176
    %1240 = vmatpush.msra.mxu0 %v1172
    %1241 = vmatpush.msra.mxu0 %v1168
    %1242 = vmatpush.msra.mxu0 %v1164
    %1243 = vmatpush.msra.mxu0 %v1160
    %1244 = vmatpush.msra.mxu0 %v1156
    %1245 = vmatpush.msra.mxu0 %v1152
    %1246 = vmatpush.msra.mxu0 %v1148
    %1247 = vmatmul.f32.gmra.mxu0 %v1138
    %v1248 = vpop.f32.mrf.mxu0
    %v1249 = vadd.f32 0.0, %v1248
    %1250 = vdwg.mxu0
    %1251 = vmatpush.msra.mxu0 %v1209
    %1252 = vmatpush.msra.mxu0 %v1205
    %1253 = vmatpush.msra.mxu0 %v1201
    %1254 = vmatpush.msra.mxu0 %v1197
    %1255 = vmatpush.msra.mxu0 %v1193
    %1256 = vmatpush.msra.mxu0 %v1189
    %1257 = vmatpush.msra.mxu0 %v1185
    %1258 = vmatpush.msra.mxu0 %v1181
    %1259 = vmatpush.msra.mxu0 %v1177
    %1260 = vmatpush.msra.mxu0 %v1173
    %1261 = vmatpush.msra.mxu0 %v1169
    %1262 = vmatpush.msra.mxu0 %v1165
    %1263 = vmatpush.msra.mxu0 %v1161
    %1264 = vmatpush.msra.mxu0 %v1157
    %1265 = vmatpush.msra.mxu0 %v1153
    %1266 = vmatpush.msra.mxu0 %v1149
    %1267 = vmatmul.f32.gmra.mxu0 %v1138
    %v1268 = vpop.f32.mrf.mxu0
    %v1269 = vadd.f32 0.0, %v1268
    %1270 = vdwg.mxu0
    %1271 = vmatpush.msra.mxu0 %v1210
    %1272 = vmatpush.msra.mxu0 %v1206
    %1273 = vmatpush.msra.mxu0 %v1202
    %1274 = vmatpush.msra.mxu0 %v1198
    %1275 = vmatpush.msra.mxu0 %v1194
    %1276 = vmatpush.msra.mxu0 %v1190
    %1277 = vmatpush.msra.mxu0 %v1186
    %1278 = vmatpush.msra.mxu0 %v1182
    %1279 = vmatpush.msra.mxu0 %v1178
    %1280 = vmatpush.msra.mxu0 %v1174
    %1281 = vmatpush.msra.mxu0 %v1170
    %1282 = vmatpush.msra.mxu0 %v1166
    %1283 = vmatpush.msra.mxu0 %v1162
    %1284 = vmatpush.msra.mxu0 %v1158
    %1285 = vmatpush.msra.mxu0 %v1154
    %1286 = vmatpush.msra.mxu0 %v1150
    %1287 = vmatmul.f32.gmra.mxu0 %v1138
    %v1288 = vpop.f32.mrf.mxu0
    %v1289 = vadd.f32 0.0, %v1288
    %1290 = vdwg.mxu0
    %v1291 = vadd.f32 %v1143, %v1229
    %v1292 = vadd.f32 %v1144, %v1249
    %v1293 = vadd.f32 %v1145, %v1269
    %v1294 = vadd.f32 %v1146, %v1289
    %v1295 = vxor.u32 %v1291, 2147483648
    %v1296 = vmul.f32 %v1295, 1.442695
    %v1297 = vpow.pop %v1296
    %v1298 = vadd.f32 %v1297, 1.0
    %v1299 = vrcp.pop %v1298
    %v1300 = vmul.f32 %v1298, %v1299
    %v1301 = vsub.f32 1.0, %v1300
    %v1302 = vmul.f32 %v1299, %v1301
    %v1303 = vadd.f32 %v1299, %v1302
    %vm1304 = vweird.f32 %v1298
    %vm1305 = vweird.f32 %v1299
    %vm1306 = vmor %vm1304, %vm1305
    %v1307 = vsel %vm1306, %v1299, %v1303
    %v1308 = vand.u32 2147483647, %v1298
    %vm1309 = vcmp.eq.f32.partialorder %v1308, 8.507059e+37
    %v1310 = vand.u32 %v1298, 2147483648
    %v1311 = vor.u32 1.1754944e-38, %v1310
    %v1312 = vsel %vm1309, %v1311, %v1307
    %v1313 = vmul.f32 1.0, %v1312
    %v1314 = vxor.u32 %v1292, 2147483648
    %v1315 = vmul.f32 %v1314, 1.442695
    %v1316 = vpow.pop %v1315
    %v1317 = vadd.f32 %v1316, 1.0
    %v1318 = vrcp.pop %v1317
    %v1319 = vmul.f32 %v1317, %v1318
    %v1320 = vsub.f32 1.0, %v1319
    %v1321 = vmul.f32 %v1318, %v1320
    %v1322 = vadd.f32 %v1318, %v1321
    %vm1323 = vweird.f32 %v1317
    %vm1324 = vweird.f32 %v1318
    %vm1325 = vmor %vm1323, %vm1324
    %v1326 = vsel %vm1325, %v1318, %v1322
    %v1327 = vand.u32 2147483647, %v1317
    %vm1328 = vcmp.eq.f32.partialorder %v1327, 8.507059e+37
    %v1329 = vand.u32 %v1317, 2147483648
    %v1330 = vor.u32 1.1754944e-38, %v1329
    %v1331 = vsel %vm1328, %v1330, %v1326
    %v1332 = vmul.f32 1.0, %v1331
    %v1333 = vtanh.pop %v1293
    %v1334 = vxor.u32 %v1294, 2147483648
    %v1335 = vmul.f32 %v1334, 1.442695
    %v1336 = vpow.pop %v1335
    %v1337 = vadd.f32 %v1336, 1.0
    %v1338 = vrcp.pop %v1337
    %v1339 = vmul.f32 %v1337, %v1338
    %v1340 = vsub.f32 1.0, %v1339
    %v1341 = vmul.f32 %v1338, %v1340
    %v1342 = vadd.f32 %v1338, %v1341
    %vm1343 = vweird.f32 %v1337
    %vm1344 = vweird.f32 %v1338
    %vm1345 = vmor %vm1343, %vm1344
    %v1346 = vsel %vm1345, %v1338, %v1342
    %v1347 = vand.u32 2147483647, %v1337
    %vm1348 = vcmp.eq.f32.partialorder %v1347, 8.507059e+37
    %v1349 = vand.u32 %v1337, 2147483648
    %v1350 = vor.u32 1.1754944e-38, %v1349
    %v1351 = vsel %vm1348, %v1350, %v1346
    %v1352 = vmul.f32 1.0, %v1351
    %v1353 = vmul.f32 %v1332, %v1139
    %v1354 = vmul.f32 %v1313, %v1333
    %v1355 = vadd.f32 %v1353, %v1354
    %v1356 = vtanh.pop %v1355
    %v1357 = vmul.f32 %v1352, %v1356
    %s1358 = sadd.s32 %s461, 3
    %v1359 = vstv %s1358
    %vm1360 = vcmp.lt.s32.totalorder %v1359, %v460
    %v1361 = vsel %vm1360, %v1357, 0.0
    %s1362 = scalar_lea.vmem %s5, 24
    %1363 = vst [vmem:[%s1362] sm:$0xff] %v1361
    %v1364 = vsel %vm1360, %v1357, %v1138
    %v1365 = vsel %vm1360, %v1355, %v1139
    %s1366 = smul.u32 4, 4
    %s1367 = smul.addr %s1366, 8
    %s1368 = scalar_lea.vmem [#allocation2], %s1367
    %v1369 = vld [vmem:[%s1368] sm:$0xff]
    %v1370 = vld [vmem:[%s1368 + $0x8] sm:$0xff]
    %v1371 = vld [vmem:[%s1368 + $0x10] sm:$0xff]
    %v1372 = vld [vmem:[%s1368 + $0x18] sm:$0xff]
    %v1373 = vld [vmem:[#allocation5] sm:$0xff]
    %v1374 = vld [vmem:[#allocation5 + $0x8] sm:$0xff]
    %v1375 = vld [vmem:[#allocation5 + $0x10] sm:$0xff]
    %v1376 = vld [vmem:[#allocation5 + $0x18] sm:$0xff]
    %v1377 = vld [vmem:[#allocation5 + $0x20] sm:$0xff]
    %v1378 = vld [vmem:[#allocation5 + $0x28] sm:$0xff]
    %v1379 = vld [vmem:[#allocation5 + $0x30] sm:$0xff]
    %v1380 = vld [vmem:[#allocation5 + $0x38] sm:$0xff]
    %v1381 = vld [vmem:[#allocation5 + $0x40] sm:$0xff]
    %v1382 = vld [vmem:[#allocation5 + $0x48] sm:$0xff]
    %v1383 = vld [vmem:[#allocation5 + $0x50] sm:$0xff]
    %v1384 = vld [vmem:[#allocation5 + $0x58] sm:$0xff]
    %v1385 = vld [vmem:[#allocation5 + $0x60] sm:$0xff]
    %v1386 = vld [vmem:[#allocation5 + $0x68] sm:$0xff]
    %v1387 = vld [vmem:[#allocation5 + $0x70] sm:$0xff]
    %v1388 = vld [vmem:[#allocation5 + $0x78] sm:$0xff]
    %v1389 = vld [vmem:[#allocation5 + $0x80] sm:$0xff]
    %v1390 = vld [vmem:[#allocation5 + $0x88] sm:$0xff]
    %v1391 = vld [vmem:[#allocation5 + $0x90] sm:$0xff]
    %v1392 = vld [vmem:[#allocation5 + $0x98] sm:$0xff]
    %v1393 = vld [vmem:[#allocation5 + $0xa0] sm:$0xff]
    %v1394 = vld [vmem:[#allocation5 + $0xa8] sm:$0xff]
    %v1395 = vld [vmem:[#allocation5 + $0xb0] sm:$0xff]
    %v1396 = vld [vmem:[#allocation5 + $0xb8] sm:$0xff]
    %v1397 = vld [vmem:[#allocation5 + $0xc0] sm:$0xff]
    %v1398 = vld [vmem:[#allocation5 + $0xc8] sm:$0xff]
    %v1399 = vld [vmem:[#allocation5 + $0xd0] sm:$0xff]
    %v1400 = vld [vmem:[#allocation5 + $0xd8] sm:$0xff]
    %v1401 = vld [vmem:[#allocation5 + $0xe0] sm:$0xff]
    %v1402 = vld [vmem:[#allocation5 + $0xe8] sm:$0xff]
    %v1403 = vld [vmem:[#allocation5 + $0xf0] sm:$0xff]
    %v1404 = vld [vmem:[#allocation5 + $0xf8] sm:$0xff]
    %v1405 = vld [vmem:[#allocation5 + $0x100] sm:$0xff]
    %v1406 = vld [vmem:[#allocation5 + $0x108] sm:$0xff]
    %v1407 = vld [vmem:[#allocation5 + $0x110] sm:$0xff]
    %v1408 = vld [vmem:[#allocation5 + $0x118] sm:$0xff]
    %v1409 = vld [vmem:[#allocation5 + $0x120] sm:$0xff]
    %v1410 = vld [vmem:[#allocation5 + $0x128] sm:$0xff]
    %v1411 = vld [vmem:[#allocation5 + $0x130] sm:$0xff]
    %v1412 = vld [vmem:[#allocation5 + $0x138] sm:$0xff]
    %v1413 = vld [vmem:[#allocation5 + $0x140] sm:$0xff]
    %v1414 = vld [vmem:[#allocation5 + $0x148] sm:$0xff]
    %v1415 = vld [vmem:[#allocation5 + $0x150] sm:$0xff]
    %v1416 = vld [vmem:[#allocation5 + $0x158] sm:$0xff]
    %v1417 = vld [vmem:[#allocation5 + $0x160] sm:$0xff]
    %v1418 = vld [vmem:[#allocation5 + $0x168] sm:$0xff]
    %v1419 = vld [vmem:[#allocation5 + $0x170] sm:$0xff]
    %v1420 = vld [vmem:[#allocation5 + $0x178] sm:$0xff]
    %v1421 = vld [vmem:[#allocation5 + $0x180] sm:$0xff]
    %v1422 = vld [vmem:[#allocation5 + $0x188] sm:$0xff]
    %v1423 = vld [vmem:[#allocation5 + $0x190] sm:$0xff]
    %v1424 = vld [vmem:[#allocation5 + $0x198] sm:$0xff]
    %v1425 = vld [vmem:[#allocation5 + $0x1a0] sm:$0xff]
    %v1426 = vld [vmem:[#allocation5 + $0x1a8] sm:$0xff]
    %v1427 = vld [vmem:[#allocation5 + $0x1b0] sm:$0xff]
    %v1428 = vld [vmem:[#allocation5 + $0x1b8] sm:$0xff]
    %v1429 = vld [vmem:[#allocation5 + $0x1c0] sm:$0xff]
    %v1430 = vld [vmem:[#allocation5 + $0x1c8] sm:$0xff]
    %v1431 = vld [vmem:[#allocation5 + $0x1d0] sm:$0xff]
    %v1432 = vld [vmem:[#allocation5 + $0x1d8] sm:$0xff]
    %v1433 = vld [vmem:[#allocation5 + $0x1e0] sm:$0xff]
    %v1434 = vld [vmem:[#allocation5 + $0x1e8] sm:$0xff]
    %v1435 = vld [vmem:[#allocation5 + $0x1f0] sm:$0xff]
    %v1436 = vld [vmem:[#allocation5 + $0x1f8] sm:$0xff]
    %1437 = vmatpush.msra.mxu0 %v1433
    %1438 = vmatpush.msra.mxu0 %v1429
    %1439 = vmatpush.msra.mxu0 %v1425
    %1440 = vmatpush.msra.mxu0 %v1421
    %1441 = vmatpush.msra.mxu0 %v1417
    %1442 = vmatpush.msra.mxu0 %v1413
    %1443 = vmatpush.msra.mxu0 %v1409
    %1444 = vmatpush.msra.mxu0 %v1405
    %1445 = vmatpush.msra.mxu0 %v1401
    %1446 = vmatpush.msra.mxu0 %v1397
    %1447 = vmatpush.msra.mxu0 %v1393
    %1448 = vmatpush.msra.mxu0 %v1389
    %1449 = vmatpush.msra.mxu0 %v1385
    %1450 = vmatpush.msra.mxu0 %v1381
    %1451 = vmatpush.msra.mxu0 %v1377
    %1452 = vmatpush.msra.mxu0 %v1373
    %1453 = vmatmul.f32.gmra.mxu0 %v1364
    %v1454 = vpop.f32.mrf.mxu0
    %v1455 = vadd.f32 0.0, %v1454
    %1456 = vdwg.mxu0
    %1457 = vmatpush.msra.mxu0 %v1434
    %1458 = vmatpush.msra.mxu0 %v1430
    %1459 = vmatpush.msra.mxu0 %v1426
    %1460 = vmatpush.msra.mxu0 %v1422
    %1461 = vmatpush.msra.mxu0 %v1418
    %1462 = vmatpush.msra.mxu0 %v1414
    %1463 = vmatpush.msra.mxu0 %v1410
    %1464 = vmatpush.msra.mxu0 %v1406
    %1465 = vmatpush.msra.mxu0 %v1402
    %1466 = vmatpush.msra.mxu0 %v1398
    %1467 = vmatpush.msra.mxu0 %v1394
    %1468 = vmatpush.msra.mxu0 %v1390
    %1469 = vmatpush.msra.mxu0 %v1386
    %1470 = vmatpush.msra.mxu0 %v1382
    %1471 = vmatpush.msra.mxu0 %v1378
    %1472 = vmatpush.msra.mxu0 %v1374
    %1473 = vmatmul.f32.gmra.mxu0 %v1364
    %v1474 = vpop.f32.mrf.mxu0
    %v1475 = vadd.f32 0.0, %v1474
    %1476 = vdwg.mxu0
    %1477 = vmatpush.msra.mxu0 %v1435
    %1478 = vmatpush.msra.mxu0 %v1431
    %1479 = vmatpush.msra.mxu0 %v1427
    %1480 = vmatpush.msra.mxu0 %v1423
    %1481 = vmatpush.msra.mxu0 %v1419
    %1482 = vmatpush.msra.mxu0 %v1415
    %1483 = vmatpush.msra.mxu0 %v1411
    %1484 = vmatpush.msra.mxu0 %v1407
    %1485 = vmatpush.msra.mxu0 %v1403
    %1486 = vmatpush.msra.mxu0 %v1399
    %1487 = vmatpush.msra.mxu0 %v1395
    %1488 = vmatpush.msra.mxu0 %v1391
    %1489 = vmatpush.msra.mxu0 %v1387
    %1490 = vmatpush.msra.mxu0 %v1383
    %1491 = vmatpush.msra.mxu0 %v1379
    %1492 = vmatpush.msra.mxu0 %v1375
    %1493 = vmatmul.f32.gmra.mxu0 %v1364
    %v1494 = vpop.f32.mrf.mxu0
    %v1495 = vadd.f32 0.0, %v1494
    %1496 = vdwg.mxu0
    %1497 = vmatpush.msra.mxu0 %v1436
    %1498 = vmatpush.msra.mxu0 %v1432
    %1499 = vmatpush.msra.mxu0 %v1428
    %1500 = vmatpush.msra.mxu0 %v1424
    %1501 = vmatpush.msra.mxu0 %v1420
    %1502 = vmatpush.msra.mxu0 %v1416
    %1503 = vmatpush.msra.mxu0 %v1412
    %1504 = vmatpush.msra.mxu0 %v1408
    %1505 = vmatpush.msra.mxu0 %v1404
    %1506 = vmatpush.msra.mxu0 %v1400
    %1507 = vmatpush.msra.mxu0 %v1396
    %1508 = vmatpush.msra.mxu0 %v1392
    %1509 = vmatpush.msra.mxu0 %v1388
    %1510 = vmatpush.msra.mxu0 %v1384
    %1511 = vmatpush.msra.mxu0 %v1380
    %1512 = vmatpush.msra.mxu0 %v1376
    %1513 = vmatmul.f32.gmra.mxu0 %v1364
    %v1514 = vpop.f32.mrf.mxu0
    %v1515 = vadd.f32 0.0, %v1514
    %1516 = vdwg.mxu0
    %v1517 = vadd.f32 %v1369, %v1455
    %v1518 = vadd.f32 %v1370, %v1475
    %v1519 = vadd.f32 %v1371, %v1495
    %v1520 = vadd.f32 %v1372, %v1515
    %v1521 = vxor.u32 %v1517, 2147483648
    %v1522 = vmul.f32 %v1521, 1.442695
    %v1523 = vpow.pop %v1522
    %v1524 = vadd.f32 %v1523, 1.0
    %v1525 = vrcp.pop %v1524
    %v1526 = vmul.f32 %v1524, %v1525
    %v1527 = vsub.f32 1.0, %v1526
    %v1528 = vmul.f32 %v1525, %v1527
    %v1529 = vadd.f32 %v1525, %v1528
    %vm1530 = vweird.f32 %v1524
    %vm1531 = vweird.f32 %v1525
    %vm1532 = vmor %vm1530, %vm1531
    %v1533 = vsel %vm1532, %v1525, %v1529
    %v1534 = vand.u32 2147483647, %v1524
    %vm1535 = vcmp.eq.f32.partialorder %v1534, 8.507059e+37
    %v1536 = vand.u32 %v1524, 2147483648
    %v1537 = vor.u32 1.1754944e-38, %v1536
    %v1538 = vsel %vm1535, %v1537, %v1533
    %v1539 = vmul.f32 1.0, %v1538
    %v1540 = vxor.u32 %v1518, 2147483648
    %v1541 = vmul.f32 %v1540, 1.442695
    %v1542 = vpow.pop %v1541
    %v1543 = vadd.f32 %v1542, 1.0
    %v1544 = vrcp.pop %v1543
    %v1545 = vmul.f32 %v1543, %v1544
    %v1546 = vsub.f32 1.0, %v1545
    %v1547 = vmul.f32 %v1544, %v1546
    %v1548 = vadd.f32 %v1544, %v1547
    %vm1549 = vweird.f32 %v1543
    %vm1550 = vweird.f32 %v1544
    %vm1551 = vmor %vm1549, %vm1550
    %v1552 = vsel %vm1551, %v1544, %v1548
    %v1553 = vand.u32 2147483647, %v1543
    %vm1554 = vcmp.eq.f32.partialorder %v1553, 8.507059e+37
    %v1555 = vand.u32 %v1543, 2147483648
    %v1556 = vor.u32 1.1754944e-38, %v1555
    %v1557 = vsel %vm1554, %v1556, %v1552
    %v1558 = vmul.f32 1.0, %v1557
    %v1559 = vtanh.pop %v1519
    %v1560 = vxor.u32 %v1520, 2147483648
    %v1561 = vmul.f32 %v1560, 1.442695
    %v1562 = vpow.pop %v1561
    %v1563 = vadd.f32 %v1562, 1.0
    %v1564 = vrcp.pop %v1563
    %v1565 = vmul.f32 %v1563, %v1564
    %v1566 = vsub.f32 1.0, %v1565
    %v1567 = vmul.f32 %v1564, %v1566
    %v1568 = vadd.f32 %v1564, %v1567
    %vm1569 = vweird.f32 %v1563
    %vm1570 = vweird.f32 %v1564
    %vm1571 = vmor %vm1569, %vm1570
    %v1572 = vsel %vm1571, %v1564, %v1568
    %v1573 = vand.u32 2147483647, %v1563
    %vm1574 = vcmp.eq.f32.partialorder %v1573, 8.507059e+37
    %v1575 = vand.u32 %v1563, 2147483648
    %v1576 = vor.u32 1.1754944e-38, %v1575
    %v1577 = vsel %vm1574, %v1576, %v1572
    %v1578 = vmul.f32 1.0, %v1577
    %v1579 = vmul.f32 %v1558, %v1365
    %v1580 = vmul.f32 %v1539, %v1559
    %v1581 = vadd.f32 %v1579, %v1580
    %v1582 = vtanh.pop %v1581
    %v1583 = vmul.f32 %v1578, %v1582
    %s1584 = sadd.s32 %s461, 4
    %v1585 = vstv %s1584
    %vm1586 = vcmp.lt.s32.totalorder %v1585, %v460
    %v1587 = vsel %vm1586, %v1583, 0.0
    %s1588 = scalar_lea.vmem %s5, 32
    %1589 = vst [vmem:[%s1588] sm:$0xff] %v1587
    %v1590 = vsel %vm1586, %v1583, %v1364
    %v1591 = vsel %vm1586, %v1581, %v1365
    %s1592 = smul.u32 5, 4
    %s1593 = smul.addr %s1592, 8
    %s1594 = scalar_lea.vmem [#allocation2], %s1593
    %v1595 = vld [vmem:[%s1594] sm:$0xff]
    %v1596 = vld [vmem:[%s1594 + $0x8] sm:$0xff]
    %v1597 = vld [vmem:[%s1594 + $0x10] sm:$0xff]
    %v1598 = vld [vmem:[%s1594 + $0x18] sm:$0xff]
    %v1599 = vld [vmem:[#allocation5] sm:$0xff]
    %v1600 = vld [vmem:[#allocation5 + $0x8] sm:$0xff]
    %v1601 = vld [vmem:[#allocation5 + $0x10] sm:$0xff]
    %v1602 = vld [vmem:[#allocation5 + $0x18] sm:$0xff]
    %v1603 = vld [vmem:[#allocation5 + $0x20] sm:$0xff]
    %v1604 = vld [vmem:[#allocation5 + $0x28] sm:$0xff]
    %v1605 = vld [vmem:[#allocation5 + $0x30] sm:$0xff]
    %v1606 = vld [vmem:[#allocation5 + $0x38] sm:$0xff]
    %v1607 = vld [vmem:[#allocation5 + $0x40] sm:$0xff]
    %v1608 = vld [vmem:[#allocation5 + $0x48] sm:$0xff]
    %v1609 = vld [vmem:[#allocation5 + $0x50] sm:$0xff]
    %v1610 = vld [vmem:[#allocation5 + $0x58] sm:$0xff]
    %v1611 = vld [vmem:[#allocation5 + $0x60] sm:$0xff]
    %v1612 = vld [vmem:[#allocation5 + $0x68] sm:$0xff]
    %v1613 = vld [vmem:[#allocation5 + $0x70] sm:$0xff]
    %v1614 = vld [vmem:[#allocation5 + $0x78] sm:$0xff]
    %v1615 = vld [vmem:[#allocation5 + $0x80] sm:$0xff]
    %v1616 = vld [vmem:[#allocation5 + $0x88] sm:$0xff]
    %v1617 = vld [vmem:[#allocation5 + $0x90] sm:$0xff]
    %v1618 = vld [vmem:[#allocation5 + $0x98] sm:$0xff]
    %v1619 = vld [vmem:[#allocation5 + $0xa0] sm:$0xff]
    %v1620 = vld [vmem:[#allocation5 + $0xa8] sm:$0xff]
    %v1621 = vld [vmem:[#allocation5 + $0xb0] sm:$0xff]
    %v1622 = vld [vmem:[#allocation5 + $0xb8] sm:$0xff]
    %v1623 = vld [vmem:[#allocation5 + $0xc0] sm:$0xff]
    %v1624 = vld [vmem:[#allocation5 + $0xc8] sm:$0xff]
    %v1625 = vld [vmem:[#allocation5 + $0xd0] sm:$0xff]
    %v1626 = vld [vmem:[#allocation5 + $0xd8] sm:$0xff]
    %v1627 = vld [vmem:[#allocation5 + $0xe0] sm:$0xff]
    %v1628 = vld [vmem:[#allocation5 + $0xe8] sm:$0xff]
    %v1629 = vld [vmem:[#allocation5 + $0xf0] sm:$0xff]
    %v1630 = vld [vmem:[#allocation5 + $0xf8] sm:$0xff]
    %v1631 = vld [vmem:[#allocation5 + $0x100] sm:$0xff]
    %v1632 = vld [vmem:[#allocation5 + $0x108] sm:$0xff]
    %v1633 = vld [vmem:[#allocation5 + $0x110] sm:$0xff]
    %v1634 = vld [vmem:[#allocation5 + $0x118] sm:$0xff]
    %v1635 = vld [vmem:[#allocation5 + $0x120] sm:$0xff]
    %v1636 = vld [vmem:[#allocation5 + $0x128] sm:$0xff]
    %v1637 = vld [vmem:[#allocation5 + $0x130] sm:$0xff]
    %v1638 = vld [vmem:[#allocation5 + $0x138] sm:$0xff]
    %v1639 = vld [vmem:[#allocation5 + $0x140] sm:$0xff]
    %v1640 = vld [vmem:[#allocation5 + $0x148] sm:$0xff]
    %v1641 = vld [vmem:[#allocation5 + $0x150] sm:$0xff]
    %v1642 = vld [vmem:[#allocation5 + $0x158] sm:$0xff]
    %v1643 = vld [vmem:[#allocation5 + $0x160] sm:$0xff]
    %v1644 = vld [vmem:[#allocation5 + $0x168] sm:$0xff]
    %v1645 = vld [vmem:[#allocation5 + $0x170] sm:$0xff]
    %v1646 = vld [vmem:[#allocation5 + $0x178] sm:$0xff]
    %v1647 = vld [vmem:[#allocation5 + $0x180] sm:$0xff]
    %v1648 = vld [vmem:[#allocation5 + $0x188] sm:$0xff]
    %v1649 = vld [vmem:[#allocation5 + $0x190] sm:$0xff]
    %v1650 = vld [vmem:[#allocation5 + $0x198] sm:$0xff]
    %v1651 = vld [vmem:[#allocation5 + $0x1a0] sm:$0xff]
    %v1652 = vld [vmem:[#allocation5 + $0x1a8] sm:$0xff]
    %v1653 = vld [vmem:[#allocation5 + $0x1b0] sm:$0xff]
    %v1654 = vld [vmem:[#allocation5 + $0x1b8] sm:$0xff]
    %v1655 = vld [vmem:[#allocation5 + $0x1c0] sm:$0xff]
    %v1656 = vld [vmem:[#allocation5 + $0x1c8] sm:$0xff]
    %v1657 = vld [vmem:[#allocation5 + $0x1d0] sm:$0xff]
    %v1658 = vld [vmem:[#allocation5 + $0x1d8] sm:$0xff]
    %v1659 = vld [vmem:[#allocation5 + $0x1e0] sm:$0xff]
    %v1660 = vld [vmem:[#allocation5 + $0x1e8] sm:$0xff]
    %v1661 = vld [vmem:[#allocation5 + $0x1f0] sm:$0xff]
    %v1662 = vld [vmem:[#allocation5 + $0x1f8] sm:$0xff]
    %1663 = vmatpush.msra.mxu0 %v1659
    %1664 = vmatpush.msra.mxu0 %v1655
    %1665 = vmatpush.msra.mxu0 %v1651
    %1666 = vmatpush.msra.mxu0 %v1647
    %1667 = vmatpush.msra.mxu0 %v1643
    %1668 = vmatpush.msra.mxu0 %v1639
    %1669 = vmatpush.msra.mxu0 %v1635
    %1670 = vmatpush.msra.mxu0 %v1631
    %1671 = vmatpush.msra.mxu0 %v1627
    %1672 = vmatpush.msra.mxu0 %v1623
    %1673 = vmatpush.msra.mxu0 %v1619
    %1674 = vmatpush.msra.mxu0 %v1615
    %1675 = vmatpush.msra.mxu0 %v1611
    %1676 = vmatpush.msra.mxu0 %v1607
    %1677 = vmatpush.msra.mxu0 %v1603
    %1678 = vmatpush.msra.mxu0 %v1599
    %1679 = vmatmul.f32.gmra.mxu0 %v1590
    %v1680 = vpop.f32.mrf.mxu0
    %v1681 = vadd.f32 0.0, %v1680
    %1682 = vdwg.mxu0
    %1683 = vmatpush.msra.mxu0 %v1660
    %1684 = vmatpush.msra.mxu0 %v1656
    %1685 = vmatpush.msra.mxu0 %v1652
    %1686 = vmatpush.msra.mxu0 %v1648
    %1687 = vmatpush.msra.mxu0 %v1644
    %1688 = vmatpush.msra.mxu0 %v1640
    %1689 = vmatpush.msra.mxu0 %v1636
    %1690 = vmatpush.msra.mxu0 %v1632
    %1691 = vmatpush.msra.mxu0 %v1628
    %1692 = vmatpush.msra.mxu0 %v1624
    %1693 = vmatpush.msra.mxu0 %v1620
    %1694 = vmatpush.msra.mxu0 %v1616
    %1695 = vmatpush.msra.mxu0 %v1612
    %1696 = vmatpush.msra.mxu0 %v1608
    %1697 = vmatpush.msra.mxu0 %v1604
    %1698 = vmatpush.msra.mxu0 %v1600
    %1699 = vmatmul.f32.gmra.mxu0 %v1590
    %v1700 = vpop.f32.mrf.mxu0
    %v1701 = vadd.f32 0.0, %v1700
    %1702 = vdwg.mxu0
    %1703 = vmatpush.msra.mxu0 %v1661
    %1704 = vmatpush.msra.mxu0 %v1657
    %1705 = vmatpush.msra.mxu0 %v1653
    %1706 = vmatpush.msra.mxu0 %v1649
    %1707 = vmatpush.msra.mxu0 %v1645
    %1708 = vmatpush.msra.mxu0 %v1641
    %1709 = vmatpush.msra.mxu0 %v1637
    %1710 = vmatpush.msra.mxu0 %v1633
    %1711 = vmatpush.msra.mxu0 %v1629
    %1712 = vmatpush.msra.mxu0 %v1625
    %1713 = vmatpush.msra.mxu0 %v1621
    %1714 = vmatpush.msra.mxu0 %v1617
    %1715 = vmatpush.msra.mxu0 %v1613
    %1716 = vmatpush.msra.mxu0 %v1609
    %1717 = vmatpush.msra.mxu0 %v1605
    %1718 = vmatpush.msra.mxu0 %v1601
    %1719 = vmatmul.f32.gmra.mxu0 %v1590
    %v1720 = vpop.f32.mrf.mxu0
    %v1721 = vadd.f32 0.0, %v1720
    %1722 = vdwg.mxu0
    %1723 = vmatpush.msra.mxu0 %v1662
    %1724 = vmatpush.msra.mxu0 %v1658
    %1725 = vmatpush.msra.mxu0 %v1654
    %1726 = vmatpush.msra.mxu0 %v1650
    %1727 = vmatpush.msra.mxu0 %v1646
    %1728 = vmatpush.msra.mxu0 %v1642
    %1729 = vmatpush.msra.mxu0 %v1638
    %1730 = vmatpush.msra.mxu0 %v1634
    %1731 = vmatpush.msra.mxu0 %v1630
    %1732 = vmatpush.msra.mxu0 %v1626
    %1733 = vmatpush.msra.mxu0 %v1622
    %1734 = vmatpush.msra.mxu0 %v1618
    %1735 = vmatpush.msra.mxu0 %v1614
    %1736 = vmatpush.msra.mxu0 %v1610
    %1737 = vmatpush.msra.mxu0 %v1606
    %1738 = vmatpush.msra.mxu0 %v1602
    %1739 = vmatmul.f32.gmra.mxu0 %v1590
    %v1740 = vpop.f32.mrf.mxu0
    %v1741 = vadd.f32 0.0, %v1740
    %1742 = vdwg.mxu0
    %v1743 = vadd.f32 %v1595, %v1681
    %v1744 = vadd.f32 %v1596, %v1701
    %v1745 = vadd.f32 %v1597, %v1721
    %v1746 = vadd.f32 %v1598, %v1741
    %v1747 = vxor.u32 %v1743, 2147483648
    %v1748 = vmul.f32 %v1747, 1.442695
    %v1749 = vpow.pop %v1748
    %v1750 = vadd.f32 %v1749, 1.0
    %v1751 = vrcp.pop %v1750
    %v1752 = vmul.f32 %v1750, %v1751
    %v1753 = vsub.f32 1.0, %v1752
    %v1754 = vmul.f32 %v1751, %v1753
    %v1755 = vadd.f32 %v1751, %v1754
    %vm1756 = vweird.f32 %v1750
    %vm1757 = vweird.f32 %v1751
    %vm1758 = vmor %vm1756, %vm1757
    %v1759 = vsel %vm1758, %v1751, %v1755
    %v1760 = vand.u32 2147483647, %v1750
    %vm1761 = vcmp.eq.f32.partialorder %v1760, 8.507059e+37
    %v1762 = vand.u32 %v1750, 2147483648
    %v1763 = vor.u32 1.1754944e-38, %v1762
    %v1764 = vsel %vm1761, %v1763, %v1759
    %v1765 = vmul.f32 1.0, %v1764
    %v1766 = vxor.u32 %v1744, 2147483648
    %v1767 = vmul.f32 %v1766, 1.442695
    %v1768 = vpow.pop %v1767
    %v1769 = vadd.f32 %v1768, 1.0
    %v1770 = vrcp.pop %v1769
    %v1771 = vmul.f32 %v1769, %v1770
    %v1772 = vsub.f32 1.0, %v1771
    %v1773 = vmul.f32 %v1770, %v1772
    %v1774 = vadd.f32 %v1770, %v1773
    %vm1775 = vweird.f32 %v1769
    %vm1776 = vweird.f32 %v1770
    %vm1777 = vmor %vm1775, %vm1776
    %v1778 = vsel %vm1777, %v1770, %v1774
    %v1779 = vand.u32 2147483647, %v1769
    %vm1780 = vcmp.eq.f32.partialorder %v1779, 8.507059e+37
    %v1781 = vand.u32 %v1769, 2147483648
    %v1782 = vor.u32 1.1754944e-38, %v1781
    %v1783 = vsel %vm1780, %v1782, %v1778
    %v1784 = vmul.f32 1.0, %v1783
    %v1785 = vtanh.pop %v1745
    %v1786 = vxor.u32 %v1746, 2147483648
    %v1787 = vmul.f32 %v1786, 1.442695
    %v1788 = vpow.pop %v1787
    %v1789 = vadd.f32 %v1788, 1.0
    %v1790 = vrcp.pop %v1789
    %v1791 = vmul.f32 %v1789, %v1790
    %v1792 = vsub.f32 1.0, %v1791
    %v1793 = vmul.f32 %v1790, %v1792
    %v1794 = vadd.f32 %v1790, %v1793
    %vm1795 = vweird.f32 %v1789
    %vm1796 = vweird.f32 %v1790
    %vm1797 = vmor %vm1795, %vm1796
    %v1798 = vsel %vm1797, %v1790, %v1794
    %v1799 = vand.u32 2147483647, %v1789
    %vm1800 = vcmp.eq.f32.partialorder %v1799, 8.507059e+37
    %v1801 = vand.u32 %v1789, 2147483648
    %v1802 = vor.u32 1.1754944e-38, %v1801
    %v1803 = vsel %vm1800, %v1802, %v1798
    %v1804 = vmul.f32 1.0, %v1803
    %v1805 = vmul.f32 %v1784, %v1591
    %v1806 = vmul.f32 %v1765, %v1785
    %v1807 = vadd.f32 %v1805, %v1806
    %v1808 = vtanh.pop %v1807
    %v1809 = vmul.f32 %v1804, %v1808
    %s1810 = sadd.s32 %s461, 5
    %v1811 = vstv %s1810
    %vm1812 = vcmp.lt.s32.totalorder %v1811, %v460
    %v1813 = vsel %vm1812, %v1809, 0.0
    %s1814 = scalar_lea.vmem %s5, 40
    %1815 = vst [vmem:[%s1814] sm:$0xff] %v1813
    %v1816 = vsel %vm1812, %v1809, %v1590
    %v1817 = vsel %vm1812, %v1807, %v1591
    %s1818 = smul.u32 6, 4
    %s1819 = smul.addr %s1818, 8
    %s1820 = scalar_lea.vmem [#allocation2], %s1819
    %v1821 = vld [vmem:[%s1820] sm:$0xff]
    %v1822 = vld [vmem:[%s1820 + $0x8] sm:$0xff]
    %v1823 = vld [vmem:[%s1820 + $0x10] sm:$0xff]
    %v1824 = vld [vmem:[%s1820 + $0x18] sm:$0xff]
    %v1825 = vld [vmem:[#allocation5] sm:$0xff]
    %v1826 = vld [vmem:[#allocation5 + $0x8] sm:$0xff]
    %v1827 = vld [vmem:[#allocation5 + $0x10] sm:$0xff]
    %v1828 = vld [vmem:[#allocation5 + $0x18] sm:$0xff]
    %v1829 = vld [vmem:[#allocation5 + $0x20] sm:$0xff]
    %v1830 = vld [vmem:[#allocation5 + $0x28] sm:$0xff]
    %v1831 = vld [vmem:[#allocation5 + $0x30] sm:$0xff]
    %v1832 = vld [vmem:[#allocation5 + $0x38] sm:$0xff]
    %v1833 = vld [vmem:[#allocation5 + $0x40] sm:$0xff]
    %v1834 = vld [vmem:[#allocation5 + $0x48] sm:$0xff]
    %v1835 = vld [vmem:[#allocation5 + $0x50] sm:$0xff]
    %v1836 = vld [vmem:[#allocation5 + $0x58] sm:$0xff]
    %v1837 = vld [vmem:[#allocation5 + $0x60] sm:$0xff]
    %v1838 = vld [vmem:[#allocation5 + $0x68] sm:$0xff]
    %v1839 = vld [vmem:[#allocation5 + $0x70] sm:$0xff]
    %v1840 = vld [vmem:[#allocation5 + $0x78] sm:$0xff]
    %v1841 = vld [vmem:[#allocation5 + $0x80] sm:$0xff]
    %v1842 = vld [vmem:[#allocation5 + $0x88] sm:$0xff]
    %v1843 = vld [vmem:[#allocation5 + $0x90] sm:$0xff]
    %v1844 = vld [vmem:[#allocation5 + $0x98] sm:$0xff]
    %v1845 = vld [vmem:[#allocation5 + $0xa0] sm:$0xff]
    %v1846 = vld [vmem:[#allocation5 + $0xa8] sm:$0xff]
    %v1847 = vld [vmem:[#allocation5 + $0xb0] sm:$0xff]
    %v1848 = vld [vmem:[#allocation5 + $0xb8] sm:$0xff]
    %v1849 = vld [vmem:[#allocation5 + $0xc0] sm:$0xff]
    %v1850 = vld [vmem:[#allocation5 + $0xc8] sm:$0xff]
    %v1851 = vld [vmem:[#allocation5 + $0xd0] sm:$0xff]
    %v1852 = vld [vmem:[#allocation5 + $0xd8] sm:$0xff]
    %v1853 = vld [vmem:[#allocation5 + $0xe0] sm:$0xff]
    %v1854 = vld [vmem:[#allocation5 + $0xe8] sm:$0xff]
    %v1855 = vld [vmem:[#allocation5 + $0xf0] sm:$0xff]
    %v1856 = vld [vmem:[#allocation5 + $0xf8] sm:$0xff]
    %v1857 = vld [vmem:[#allocation5 + $0x100] sm:$0xff]
    %v1858 = vld [vmem:[#allocation5 + $0x108] sm:$0xff]
    %v1859 = vld [vmem:[#allocation5 + $0x110] sm:$0xff]
    %v1860 = vld [vmem:[#allocation5 + $0x118] sm:$0xff]
    %v1861 = vld [vmem:[#allocation5 + $0x120] sm:$0xff]
    %v1862 = vld [vmem:[#allocation5 + $0x128] sm:$0xff]
    %v1863 = vld [vmem:[#allocation5 + $0x130] sm:$0xff]
    %v1864 = vld [vmem:[#allocation5 + $0x138] sm:$0xff]
    %v1865 = vld [vmem:[#allocation5 + $0x140] sm:$0xff]
    %v1866 = vld [vmem:[#allocation5 + $0x148] sm:$0xff]
    %v1867 = vld [vmem:[#allocation5 + $0x150] sm:$0xff]
    %v1868 = vld [vmem:[#allocation5 + $0x158] sm:$0xff]
    %v1869 = vld [vmem:[#allocation5 + $0x160] sm:$0xff]
    %v1870 = vld [vmem:[#allocation5 + $0x168] sm:$0xff]
    %v1871 = vld [vmem:[#allocation5 + $0x170] sm:$0xff]
    %v1872 = vld [vmem:[#allocation5 + $0x178] sm:$0xff]
    %v1873 = vld [vmem:[#allocation5 + $0x180] sm:$0xff]
    %v1874 = vld [vmem:[#allocation5 + $0x188] sm:$0xff]
    %v1875 = vld [vmem:[#allocation5 + $0x190] sm:$0xff]
    %v1876 = vld [vmem:[#allocation5 + $0x198] sm:$0xff]
    %v1877 = vld [vmem:[#allocation5 + $0x1a0] sm:$0xff]
    %v1878 = vld [vmem:[#allocation5 + $0x1a8] sm:$0xff]
    %v1879 = vld [vmem:[#allocation5 + $0x1b0] sm:$0xff]
    %v1880 = vld [vmem:[#allocation5 + $0x1b8] sm:$0xff]
    %v1881 = vld [vmem:[#allocation5 + $0x1c0] sm:$0xff]
    %v1882 = vld [vmem:[#allocation5 + $0x1c8] sm:$0xff]
    %v1883 = vld [vmem:[#allocation5 + $0x1d0] sm:$0xff]
    %v1884 = vld [vmem:[#allocation5 + $0x1d8] sm:$0xff]
    %v1885 = vld [vmem:[#allocation5 + $0x1e0] sm:$0xff]
    %v1886 = vld [vmem:[#allocation5 + $0x1e8] sm:$0xff]
    %v1887 = vld [vmem:[#allocation5 + $0x1f0] sm:$0xff]
    %v1888 = vld [vmem:[#allocation5 + $0x1f8] sm:$0xff]
    %1889 = vmatpush.msra.mxu0 %v1885
    %1890 = vmatpush.msra.mxu0 %v1881
    %1891 = vmatpush.msra.mxu0 %v1877
    %1892 = vmatpush.msra.mxu0 %v1873
    %1893 = vmatpush.msra.mxu0 %v1869
    %1894 = vmatpush.msra.mxu0 %v1865
    %1895 = vmatpush.msra.mxu0 %v1861
    %1896 = vmatpush.msra.mxu0 %v1857
    %1897 = vmatpush.msra.mxu0 %v1853
    %1898 = vmatpush.msra.mxu0 %v1849
    %1899 = vmatpush.msra.mxu0 %v1845
    %1900 = vmatpush.msra.mxu0 %v1841
    %1901 = vmatpush.msra.mxu0 %v1837
    %1902 = vmatpush.msra.mxu0 %v1833
    %1903 = vmatpush.msra.mxu0 %v1829
    %1904 = vmatpush.msra.mxu0 %v1825
    %1905 = vmatmul.f32.gmra.mxu0 %v1816
    %v1906 = vpop.f32.mrf.mxu0
    %v1907 = vadd.f32 0.0, %v1906
    %1908 = vdwg.mxu0
    %1909 = vmatpush.msra.mxu0 %v1886
    %1910 = vmatpush.msra.mxu0 %v1882
    %1911 = vmatpush.msra.mxu0 %v1878
    %1912 = vmatpush.msra.mxu0 %v1874
    %1913 = vmatpush.msra.mxu0 %v1870
    %1914 = vmatpush.msra.mxu0 %v1866
    %1915 = vmatpush.msra.mxu0 %v1862
    %1916 = vmatpush.msra.mxu0 %v1858
    %1917 = vmatpush.msra.mxu0 %v1854
    %1918 = vmatpush.msra.mxu0 %v1850
    %1919 = vmatpush.msra.mxu0 %v1846
    %1920 = vmatpush.msra.mxu0 %v1842
    %1921 = vmatpush.msra.mxu0 %v1838
    %1922 = vmatpush.msra.mxu0 %v1834
    %1923 = vmatpush.msra.mxu0 %v1830
    %1924 = vmatpush.msra.mxu0 %v1826
    %1925 = vmatmul.f32.gmra.mxu0 %v1816
    %v1926 = vpop.f32.mrf.mxu0
    %v1927 = vadd.f32 0.0, %v1926
    %1928 = vdwg.mxu0
    %1929 = vmatpush.msra.mxu0 %v1887
    %1930 = vmatpush.msra.mxu0 %v1883
    %1931 = vmatpush.msra.mxu0 %v1879
    %1932 = vmatpush.msra.mxu0 %v1875
    %1933 = vmatpush.msra.mxu0 %v1871
    %1934 = vmatpush.msra.mxu0 %v1867
    %1935 = vmatpush.msra.mxu0 %v1863
    %1936 = vmatpush.msra.mxu0 %v1859
    %1937 = vmatpush.msra.mxu0 %v1855
    %1938 = vmatpush.msra.mxu0 %v1851
    %1939 = vmatpush.msra.mxu0 %v1847
    %1940 = vmatpush.msra.mxu0 %v1843
    %1941 = vmatpush.msra.mxu0 %v1839
    %1942 = vmatpush.msra.mxu0 %v1835
    %1943 = vmatpush.msra.mxu0 %v1831
    %1944 = vmatpush.msra.mxu0 %v1827
    %1945 = vmatmul.f32.gmra.mxu0 %v1816
    %v1946 = vpop.f32.mrf.mxu0
    %v1947 = vadd.f32 0.0, %v1946
    %1948 = vdwg.mxu0
    %1949 = vmatpush.msra.mxu0 %v1888
    %1950 = vmatpush.msra.mxu0 %v1884
    %1951 = vmatpush.msra.mxu0 %v1880
    %1952 = vmatpush.msra.mxu0 %v1876
    %1953 = vmatpush.msra.mxu0 %v1872
    %1954 = vmatpush.msra.mxu0 %v1868
    %1955 = vmatpush.msra.mxu0 %v1864
    %1956 = vmatpush.msra.mxu0 %v1860
    %1957 = vmatpush.msra.mxu0 %v1856
    %1958 = vmatpush.msra.mxu0 %v1852
    %1959 = vmatpush.msra.mxu0 %v1848
    %1960 = vmatpush.msra.mxu0 %v1844
    %1961 = vmatpush.msra.mxu0 %v1840
    %1962 = vmatpush.msra.mxu0 %v1836
    %1963 = vmatpush.msra.mxu0 %v1832
    %1964 = vmatpush.msra.mxu0 %v1828
    %1965 = vmatmul.f32.gmra.mxu0 %v1816
    %v1966 = vpop.f32.mrf.mxu0
    %v1967 = vadd.f32 0.0, %v1966
    %1968 = vdwg.mxu0
    %v1969 = vadd.f32 %v1821, %v1907
    %v1970 = vadd.f32 %v1822, %v1927
    %v1971 = vadd.f32 %v1823, %v1947
    %v1972 = vadd.f32 %v1824, %v1967
    %v1973 = vxor.u32 %v1969, 2147483648
    %v1974 = vmul.f32 %v1973, 1.442695
    %v1975 = vpow.pop %v1974
    %v1976 = vadd.f32 %v1975, 1.0
    %v1977 = vrcp.pop %v1976
    %v1978 = vmul.f32 %v1976, %v1977
    %v1979 = vsub.f32 1.0, %v1978
    %v1980 = vmul.f32 %v1977, %v1979
    %v1981 = vadd.f32 %v1977, %v1980
    %vm1982 = vweird.f32 %v1976
    %vm1983 = vweird.f32 %v1977
    %vm1984 = vmor %vm1982, %vm1983
    %v1985 = vsel %vm1984, %v1977, %v1981
    %v1986 = vand.u32 2147483647, %v1976
    %vm1987 = vcmp.eq.f32.partialorder %v1986, 8.507059e+37
    %v1988 = vand.u32 %v1976, 2147483648
    %v1989 = vor.u32 1.1754944e-38, %v1988
    %v1990 = vsel %vm1987, %v1989, %v1985
    %v1991 = vmul.f32 1.0, %v1990
    %v1992 = vxor.u32 %v1970, 2147483648
    %v1993 = vmul.f32 %v1992, 1.442695
    %v1994 = vpow.pop %v1993
    %v1995 = vadd.f32 %v1994, 1.0
    %v1996 = vrcp.pop %v1995
    %v1997 = vmul.f32 %v1995, %v1996
    %v1998 = vsub.f32 1.0, %v1997
    %v1999 = vmul.f32 %v1996, %v1998
    %v2000 = vadd.f32 %v1996, %v1999
    %vm2001 = vweird.f32 %v1995
    %vm2002 = vweird.f32 %v1996
    %vm2003 = vmor %vm2001, %vm2002
    %v2004 = vsel %vm2003, %v1996, %v2000
    %v2005 = vand.u32 2147483647, %v1995
    %vm2006 = vcmp.eq.f32.partialorder %v2005, 8.507059e+37
    %v2007 = vand.u32 %v1995, 2147483648
    %v2008 = vor.u32 1.1754944e-38, %v2007
    %v2009 = vsel %vm2006, %v2008, %v2004
    %v2010 = vmul.f32 1.0, %v2009
    %v2011 = vtanh.pop %v1971
    %v2012 = vxor.u32 %v1972, 2147483648
    %v2013 = vmul.f32 %v2012, 1.442695
    %v2014 = vpow.pop %v2013
    %v2015 = vadd.f32 %v2014, 1.0
    %v2016 = vrcp.pop %v2015
    %v2017 = vmul.f32 %v2015, %v2016
    %v2018 = vsub.f32 1.0, %v2017
    %v2019 = vmul.f32 %v2016, %v2018
    %v2020 = vadd.f32 %v2016, %v2019
    %vm2021 = vweird.f32 %v2015
    %vm2022 = vweird.f32 %v2016
    %vm2023 = vmor %vm2021, %vm2022
    %v2024 = vsel %vm2023, %v2016, %v2020
    %v2025 = vand.u32 2147483647, %v2015
    %vm2026 = vcmp.eq.f32.partialorder %v2025, 8.507059e+37
    %v2027 = vand.u32 %v2015, 2147483648
    %v2028 = vor.u32 1.1754944e-38, %v2027
    %v2029 = vsel %vm2026, %v2028, %v2024
    %v2030 = vmul.f32 1.0, %v2029
    %v2031 = vmul.f32 %v2010, %v1817
    %v2032 = vmul.f32 %v1991, %v2011
    %v2033 = vadd.f32 %v2031, %v2032
    %v2034 = vtanh.pop %v2033
    %v2035 = vmul.f32 %v2030, %v2034
    %s2036 = sadd.s32 %s461, 6
    %v2037 = vstv %s2036
    %vm2038 = vcmp.lt.s32.totalorder %v2037, %v460
    %v2039 = vsel %vm2038, %v2035, 0.0
    %s2040 = scalar_lea.vmem %s5, 48
    %2041 = vst [vmem:[%s2040] sm:$0xff] %v2039
    %v2042 = vsel %vm2038, %v2035, %v1816
    %v2043 = vsel %vm2038, %v2033, %v1817
    %s2044 = smul.u32 7, 4
    %s2045 = smul.addr %s2044, 8
    %s2046 = scalar_lea.vmem [#allocation2], %s2045
    %v2047 = vld [vmem:[%s2046] sm:$0xff]
    %v2048 = vld [vmem:[%s2046 + $0x8] sm:$0xff]
    %v2049 = vld [vmem:[%s2046 + $0x10] sm:$0xff]
    %v2050 = vld [vmem:[%s2046 + $0x18] sm:$0xff]
    %v2051 = vld [vmem:[#allocation5] sm:$0xff]
    %v2052 = vld [vmem:[#allocation5 + $0x8] sm:$0xff]
    %v2053 = vld [vmem:[#allocation5 + $0x10] sm:$0xff]
    %v2054 = vld [vmem:[#allocation5 + $0x18] sm:$0xff]
    %v2055 = vld [vmem:[#allocation5 + $0x20] sm:$0xff]
    %v2056 = vld [vmem:[#allocation5 + $0x28] sm:$0xff]
    %v2057 = vld [vmem:[#allocation5 + $0x30] sm:$0xff]
    %v2058 = vld [vmem:[#allocation5 + $0x38] sm:$0xff]
    %v2059 = vld [vmem:[#allocation5 + $0x40] sm:$0xff]
    %v2060 = vld [vmem:[#allocation5 + $0x48] sm:$0xff]
    %v2061 = vld [vmem:[#allocation5 + $0x50] sm:$0xff]
    %v2062 = vld [vmem:[#allocation5 + $0x58] sm:$0xff]
    %v2063 = vld [vmem:[#allocation5 + $0x60] sm:$0xff]
    %v2064 = vld [vmem:[#allocation5 + $0x68] sm:$0xff]
    %v2065 = vld [vmem:[#allocation5 + $0x70] sm:$0xff]
    %v2066 = vld [vmem:[#allocation5 + $0x78] sm:$0xff]
    %v2067 = vld [vmem:[#allocation5 + $0x80] sm:$0xff]
    %v2068 = vld [vmem:[#allocation5 + $0x88] sm:$0xff]
    %v2069 = vld [vmem:[#allocation5 + $0x90] sm:$0xff]
    %v2070 = vld [vmem:[#allocation5 + $0x98] sm:$0xff]
    %v2071 = vld [vmem:[#allocation5 + $0xa0] sm:$0xff]
    %v2072 = vld [vmem:[#allocation5 + $0xa8] sm:$0xff]
    %v2073 = vld [vmem:[#allocation5 + $0xb0] sm:$0xff]
    %v2074 = vld [vmem:[#allocation5 + $0xb8] sm:$0xff]
    %v2075 = vld [vmem:[#allocation5 + $0xc0] sm:$0xff]
    %v2076 = vld [vmem:[#allocation5 + $0xc8] sm:$0xff]
    %v2077 = vld [vmem:[#allocation5 + $0xd0] sm:$0xff]
    %v2078 = vld [vmem:[#allocation5 + $0xd8] sm:$0xff]
    %v2079 = vld [vmem:[#allocation5 + $0xe0] sm:$0xff]
    %v2080 = vld [vmem:[#allocation5 + $0xe8] sm:$0xff]
    %v2081 = vld [vmem:[#allocation5 + $0xf0] sm:$0xff]
    %v2082 = vld [vmem:[#allocation5 + $0xf8] sm:$0xff]
    %v2083 = vld [vmem:[#allocation5 + $0x100] sm:$0xff]
    %v2084 = vld [vmem:[#allocation5 + $0x108] sm:$0xff]
    %v2085 = vld [vmem:[#allocation5 + $0x110] sm:$0xff]
    %v2086 = vld [vmem:[#allocation5 + $0x118] sm:$0xff]
    %v2087 = vld [vmem:[#allocation5 + $0x120] sm:$0xff]
    %v2088 = vld [vmem:[#allocation5 + $0x128] sm:$0xff]
    %v2089 = vld [vmem:[#allocation5 + $0x130] sm:$0xff]
    %v2090 = vld [vmem:[#allocation5 + $0x138] sm:$0xff]
    %v2091 = vld [vmem:[#allocation5 + $0x140] sm:$0xff]
    %v2092 = vld [vmem:[#allocation5 + $0x148] sm:$0xff]
    %v2093 = vld [vmem:[#allocation5 + $0x150] sm:$0xff]
    %v2094 = vld [vmem:[#allocation5 + $0x158] sm:$0xff]
    %v2095 = vld [vmem:[#allocation5 + $0x160] sm:$0xff]
    %v2096 = vld [vmem:[#allocation5 + $0x168] sm:$0xff]
    %v2097 = vld [vmem:[#allocation5 + $0x170] sm:$0xff]
    %v2098 = vld [vmem:[#allocation5 + $0x178] sm:$0xff]
    %v2099 = vld [vmem:[#allocation5 + $0x180] sm:$0xff]
    %v2100 = vld [vmem:[#allocation5 + $0x188] sm:$0xff]
    %v2101 = vld [vmem:[#allocation5 + $0x190] sm:$0xff]
    %v2102 = vld [vmem:[#allocation5 + $0x198] sm:$0xff]
    %v2103 = vld [vmem:[#allocation5 + $0x1a0] sm:$0xff]
    %v2104 = vld [vmem:[#allocation5 + $0x1a8] sm:$0xff]
    %v2105 = vld [vmem:[#allocation5 + $0x1b0] sm:$0xff]
    %v2106 = vld [vmem:[#allocation5 + $0x1b8] sm:$0xff]
    %v2107 = vld [vmem:[#allocation5 + $0x1c0] sm:$0xff]
    %v2108 = vld [vmem:[#allocation5 + $0x1c8] sm:$0xff]
    %v2109 = vld [vmem:[#allocation5 + $0x1d0] sm:$0xff]
    %v2110 = vld [vmem:[#allocation5 + $0x1d8] sm:$0xff]
    %v2111 = vld [vmem:[#allocation5 + $0x1e0] sm:$0xff]
    %v2112 = vld [vmem:[#allocation5 + $0x1e8] sm:$0xff]
    %v2113 = vld [vmem:[#allocation5 + $0x1f0] sm:$0xff]
    %v2114 = vld [vmem:[#allocation5 + $0x1f8] sm:$0xff]
    %2115 = vmatpush.msra.mxu0 %v2111
    %2116 = vmatpush.msra.mxu0 %v2107
    %2117 = vmatpush.msra.mxu0 %v2103
    %2118 = vmatpush.msra.mxu0 %v2099
    %2119 = vmatpush.msra.mxu0 %v2095
    %2120 = vmatpush.msra.mxu0 %v2091
    %2121 = vmatpush.msra.mxu0 %v2087
    %2122 = vmatpush.msra.mxu0 %v2083
    %2123 = vmatpush.msra.mxu0 %v2079
    %2124 = vmatpush.msra.mxu0 %v2075
    %2125 = vmatpush.msra.mxu0 %v2071
    %2126 = vmatpush.msra.mxu0 %v2067
    %2127 = vmatpush.msra.mxu0 %v2063
    %2128 = vmatpush.msra.mxu0 %v2059
    %2129 = vmatpush.msra.mxu0 %v2055
    %2130 = vmatpush.msra.mxu0 %v2051
    %2131 = vmatmul.f32.gmra.mxu0 %v2042
    %v2132 = vpop.f32.mrf.mxu0
    %v2133 = vadd.f32 0.0, %v2132
    %2134 = vdwg.mxu0
    %2135 = vmatpush.msra.mxu0 %v2112
    %2136 = vmatpush.msra.mxu0 %v2108
    %2137 = vmatpush.msra.mxu0 %v2104
    %2138 = vmatpush.msra.mxu0 %v2100
    %2139 = vmatpush.msra.mxu0 %v2096
    %2140 = vmatpush.msra.mxu0 %v2092
    %2141 = vmatpush.msra.mxu0 %v2088
    %2142 = vmatpush.msra.mxu0 %v2084
    %2143 = vmatpush.msra.mxu0 %v2080
    %2144 = vmatpush.msra.mxu0 %v2076
    %2145 = vmatpush.msra.mxu0 %v2072
    %2146 = vmatpush.msra.mxu0 %v2068
    %2147 = vmatpush.msra.mxu0 %v2064
    %2148 = vmatpush.msra.mxu0 %v2060
    %2149 = vmatpush.msra.mxu0 %v2056
    %2150 = vmatpush.msra.mxu0 %v2052
    %2151 = vmatmul.f32.gmra.mxu0 %v2042
    %v2152 = vpop.f32.mrf.mxu0
    %v2153 = vadd.f32 0.0, %v2152
    %2154 = vdwg.mxu0
    %2155 = vmatpush.msra.mxu0 %v2113
    %2156 = vmatpush.msra.mxu0 %v2109
    %2157 = vmatpush.msra.mxu0 %v2105
    %2158 = vmatpush.msra.mxu0 %v2101
    %2159 = vmatpush.msra.mxu0 %v2097
    %2160 = vmatpush.msra.mxu0 %v2093
    %2161 = vmatpush.msra.mxu0 %v2089
    %2162 = vmatpush.msra.mxu0 %v2085
    %2163 = vmatpush.msra.mxu0 %v2081
    %2164 = vmatpush.msra.mxu0 %v2077
    %2165 = vmatpush.msra.mxu0 %v2073
    %2166 = vmatpush.msra.mxu0 %v2069
    %2167 = vmatpush.msra.mxu0 %v2065
    %2168 = vmatpush.msra.mxu0 %v2061
    %2169 = vmatpush.msra.mxu0 %v2057
    %2170 = vmatpush.msra.mxu0 %v2053
    %2171 = vmatmul.f32.gmra.mxu0 %v2042
    %v2172 = vpop.f32.mrf.mxu0
    %v2173 = vadd.f32 0.0, %v2172
    %2174 = vdwg.mxu0
    %2175 = vmatpush.msra.mxu0 %v2114
    %2176 = vmatpush.msra.mxu0 %v2110
    %2177 = vmatpush.msra.mxu0 %v2106
    %2178 = vmatpush.msra.mxu0 %v2102
    %2179 = vmatpush.msra.mxu0 %v2098
    %2180 = vmatpush.msra.mxu0 %v2094
    %2181 = vmatpush.msra.mxu0 %v2090
    %2182 = vmatpush.msra.mxu0 %v2086
    %2183 = vmatpush.msra.mxu0 %v2082
    %2184 = vmatpush.msra.mxu0 %v2078
    %2185 = vmatpush.msra.mxu0 %v2074
    %2186 = vmatpush.msra.mxu0 %v2070
    %2187 = vmatpush.msra.mxu0 %v2066
    %2188 = vmatpush.msra.mxu0 %v2062
    %2189 = vmatpush.msra.mxu0 %v2058
    %2190 = vmatpush.msra.mxu0 %v2054
    %2191 = vmatmul.f32.gmra.mxu0 %v2042
    %v2192 = vpop.f32.mrf.mxu0
    %v2193 = vadd.f32 0.0, %v2192
    %2194 = vdwg.mxu0
    %v2195 = vadd.f32 %v2047, %v2133
    %v2196 = vadd.f32 %v2048, %v2153
    %v2197 = vadd.f32 %v2049, %v2173
    %v2198 = vadd.f32 %v2050, %v2193
    %v2199 = vxor.u32 %v2195, 2147483648
    %v2200 = vmul.f32 %v2199, 1.442695
    %v2201 = vpow.pop %v2200
    %v2202 = vadd.f32 %v2201, 1.0
    %v2203 = vrcp.pop %v2202
    %v2204 = vmul.f32 %v2202, %v2203
    %v2205 = vsub.f32 1.0, %v2204
    %v2206 = vmul.f32 %v2203, %v2205
    %v2207 = vadd.f32 %v2203, %v2206
    %vm2208 = vweird.f32 %v2202
    %vm2209 = vweird.f32 %v2203
    %vm2210 = vmor %vm2208, %vm2209
    %v2211 = vsel %vm2210, %v2203, %v2207
    %v2212 = vand.u32 2147483647, %v2202
    %vm2213 = vcmp.eq.f32.partialorder %v2212, 8.507059e+37
    %v2214 = vand.u32 %v2202, 2147483648
    %v2215 = vor.u32 1.1754944e-38, %v2214
    %v2216 = vsel %vm2213, %v2215, %v2211
    %v2217 = vmul.f32 1.0, %v2216
    %v2218 = vxor.u32 %v2196, 2147483648
    %v2219 = vmul.f32 %v2218, 1.442695
    %v2220 = vpow.pop %v2219
    %v2221 = vadd.f32 %v2220, 1.0
    %v2222 = vrcp.pop %v2221
    %v2223 = vmul.f32 %v2221, %v2222
    %v2224 = vsub.f32 1.0, %v2223
    %v2225 = vmul.f32 %v2222, %v2224
    %v2226 = vadd.f32 %v2222, %v2225
    %vm2227 = vweird.f32 %v2221
    %vm2228 = vweird.f32 %v2222
    %vm2229 = vmor %vm2227, %vm2228
    %v2230 = vsel %vm2229, %v2222, %v2226
    %v2231 = vand.u32 2147483647, %v2221
    %vm2232 = vcmp.eq.f32.partialorder %v2231, 8.507059e+37
    %v2233 = vand.u32 %v2221, 2147483648
    %v2234 = vor.u32 1.1754944e-38, %v2233
    %v2235 = vsel %vm2232, %v2234, %v2230
    %v2236 = vmul.f32 1.0, %v2235
    %v2237 = vtanh.pop %v2197
    %v2238 = vxor.u32 %v2198, 2147483648
    %v2239 = vmul.f32 %v2238, 1.442695
    %v2240 = vpow.pop %v2239
    %v2241 = vadd.f32 %v2240, 1.0
    %v2242 = vrcp.pop %v2241
    %v2243 = vmul.f32 %v2241, %v2242
    %v2244 = vsub.f32 1.0, %v2243
    %v2245 = vmul.f32 %v2242, %v2244
    %v2246 = vadd.f32 %v2242, %v2245
    %vm2247 = vweird.f32 %v2241
    %vm2248 = vweird.f32 %v2242
    %vm2249 = vmor %vm2247, %vm2248
    %v2250 = vsel %vm2249, %v2242, %v2246
    %v2251 = vand.u32 2147483647, %v2241
    %vm2252 = vcmp.eq.f32.partialorder %v2251, 8.507059e+37
    %v2253 = vand.u32 %v2241, 2147483648
    %v2254 = vor.u32 1.1754944e-38, %v2253
    %v2255 = vsel %vm2252, %v2254, %v2250
    %v2256 = vmul.f32 1.0, %v2255
    %v2257 = vmul.f32 %v2236, %v2043
    %v2258 = vmul.f32 %v2217, %v2237
    %v2259 = vadd.f32 %v2257, %v2258
    %v2260 = vtanh.pop %v2259
    %v2261 = vmul.f32 %v2256, %v2260
    %s2262 = sadd.s32 %s461, 7
    %v2263 = vstv %s2262
    %vm2264 = vcmp.lt.s32.totalorder %v2263, %v460
    %v2265 = vsel %vm2264, %v2261, 0.0
    %s2266 = scalar_lea.vmem %s5, 56
    %2267 = vst [vmem:[%s2266] sm:$0xff] %v2265
    %v2268 = vsel %vm2264, %v2261, %v2042
    %v2269 = vsel %vm2264, %v2259, %v2043
    %s2270 = smul.u32 8, 4
    %s2271 = smul.addr %s2270, 8
    %s2272 = scalar_lea.vmem [#allocation2], %s2271
    %v2273 = vld [vmem:[%s2272] sm:$0xff]
    %v2274 = vld [vmem:[%s2272 + $0x8] sm:$0xff]
    %v2275 = vld [vmem:[%s2272 + $0x10] sm:$0xff]
    %v2276 = vld [vmem:[%s2272 + $0x18] sm:$0xff]
    %v2277 = vld [vmem:[#allocation5] sm:$0xff]
    %v2278 = vld [vmem:[#allocation5 + $0x8] sm:$0xff]
    %v2279 = vld [vmem:[#allocation5 + $0x10] sm:$0xff]
    %v2280 = vld [vmem:[#allocation5 + $0x18] sm:$0xff]
    %v2281 = vld [vmem:[#allocation5 + $0x20] sm:$0xff]
    %v2282 = vld [vmem:[#allocation5 + $0x28] sm:$0xff]
    %v2283 = vld [vmem:[#allocation5 + $0x30] sm:$0xff]
    %v2284 = vld [vmem:[#allocation5 + $0x38] sm:$0xff]
    %v2285 = vld [vmem:[#allocation5 + $0x40] sm:$0xff]
    %v2286 = vld [vmem:[#allocation5 + $0x48] sm:$0xff]
    %v2287 = vld [vmem:[#allocation5 + $0x50] sm:$0xff]
    %v2288 = vld [vmem:[#allocation5 + $0x58] sm:$0xff]
    %v2289 = vld [vmem:[#allocation5 + $0x60] sm:$0xff]
    %v2290 = vld [vmem:[#allocation5 + $0x68] sm:$0xff]
    %v2291 = vld [vmem:[#allocation5 + $0x70] sm:$0xff]
    %v2292 = vld [vmem:[#allocation5 + $0x78] sm:$0xff]
    %v2293 = vld [vmem:[#allocation5 + $0x80] sm:$0xff]
    %v2294 = vld [vmem:[#allocation5 + $0x88] sm:$0xff]
    %v2295 = vld [vmem:[#allocation5 + $0x90] sm:$0xff]
    %v2296 = vld [vmem:[#allocation5 + $0x98] sm:$0xff]
    %v2297 = vld [vmem:[#allocation5 + $0xa0] sm:$0xff]
    %v2298 = vld [vmem:[#allocation5 + $0xa8] sm:$0xff]
    %v2299 = vld [vmem:[#allocation5 + $0xb0] sm:$0xff]
    %v2300 = vld [vmem:[#allocation5 + $0xb8] sm:$0xff]
    %v2301 = vld [vmem:[#allocation5 + $0xc0] sm:$0xff]
    %v2302 = vld [vmem:[#allocation5 + $0xc8] sm:$0xff]
    %v2303 = vld [vmem:[#allocation5 + $0xd0] sm:$0xff]
    %v2304 = vld [vmem:[#allocation5 + $0xd8] sm:$0xff]
    %v2305 = vld [vmem:[#allocation5 + $0xe0] sm:$0xff]
    %v2306 = vld [vmem:[#allocation5 + $0xe8] sm:$0xff]
    %v2307 = vld [vmem:[#allocation5 + $0xf0] sm:$0xff]
    %v2308 = vld [vmem:[#allocation5 + $0xf8] sm:$0xff]
    %v2309 = vld [vmem:[#allocation5 + $0x100] sm:$0xff]
    %v2310 = vld [vmem:[#allocation5 + $0x108] sm:$0xff]
    %v2311 = vld [vmem:[#allocation5 + $0x110] sm:$0xff]
    %v2312 = vld [vmem:[#allocation5 + $0x118] sm:$0xff]
    %v2313 = vld [vmem:[#allocation5 + $0x120] sm:$0xff]
    %v2314 = vld [vmem:[#allocation5 + $0x128] sm:$0xff]
    %v2315 = vld [vmem:[#allocation5 + $0x130] sm:$0xff]
    %v2316 = vld [vmem:[#allocation5 + $0x138] sm:$0xff]
    %v2317 = vld [vmem:[#allocation5 + $0x140] sm:$0xff]
    %v2318 = vld [vmem:[#allocation5 + $0x148] sm:$0xff]
    %v2319 = vld [vmem:[#allocation5 + $0x150] sm:$0xff]
    %v2320 = vld [vmem:[#allocation5 + $0x158] sm:$0xff]
    %v2321 = vld [vmem:[#allocation5 + $0x160] sm:$0xff]
    %v2322 = vld [vmem:[#allocation5 + $0x168] sm:$0xff]
    %v2323 = vld [vmem:[#allocation5 + $0x170] sm:$0xff]
    %v2324 = vld [vmem:[#allocation5 + $0x178] sm:$0xff]
    %v2325 = vld [vmem:[#allocation5 + $0x180] sm:$0xff]
    %v2326 = vld [vmem:[#allocation5 + $0x188] sm:$0xff]
    %v2327 = vld [vmem:[#allocation5 + $0x190] sm:$0xff]
    %v2328 = vld [vmem:[#allocation5 + $0x198] sm:$0xff]
    %v2329 = vld [vmem:[#allocation5 + $0x1a0] sm:$0xff]
    %v2330 = vld [vmem:[#allocation5 + $0x1a8] sm:$0xff]
    %v2331 = vld [vmem:[#allocation5 + $0x1b0] sm:$0xff]
    %v2332 = vld [vmem:[#allocation5 + $0x1b8] sm:$0xff]
    %v2333 = vld [vmem:[#allocation5 + $0x1c0] sm:$0xff]
    %v2334 = vld [vmem:[#allocation5 + $0x1c8] sm:$0xff]
    %v2335 = vld [vmem:[#allocation5 + $0x1d0] sm:$0xff]
    %v2336 = vld [vmem:[#allocation5 + $0x1d8] sm:$0xff]
    %v2337 = vld [vmem:[#allocation5 + $0x1e0] sm:$0xff]
    %v2338 = vld [vmem:[#allocation5 + $0x1e8] sm:$0xff]
    %v2339 = vld [vmem:[#allocation5 + $0x1f0] sm:$0xff]
    %v2340 = vld [vmem:[#allocation5 + $0x1f8] sm:$0xff]
    %2341 = vmatpush.msra.mxu0 %v2337
    %2342 = vmatpush.msra.mxu0 %v2333
    %2343 = vmatpush.msra.mxu0 %v2329
    %2344 = vmatpush.msra.mxu0 %v2325
    %2345 = vmatpush.msra.mxu0 %v2321
    %2346 = vmatpush.msra.mxu0 %v2317
    %2347 = vmatpush.msra.mxu0 %v2313
    %2348 = vmatpush.msra.mxu0 %v2309
    %2349 = vmatpush.msra.mxu0 %v2305
    %2350 = vmatpush.msra.mxu0 %v2301
    %2351 = vmatpush.msra.mxu0 %v2297
    %2352 = vmatpush.msra.mxu0 %v2293
    %2353 = vmatpush.msra.mxu0 %v2289
    %2354 = vmatpush.msra.mxu0 %v2285
    %2355 = vmatpush.msra.mxu0 %v2281
    %2356 = vmatpush.msra.mxu0 %v2277
    %2357 = vmatmul.f32.gmra.mxu0 %v2268
    %v2358 = vpop.f32.mrf.mxu0
    %v2359 = vadd.f32 0.0, %v2358
    %2360 = vdwg.mxu0
    %2361 = vmatpush.msra.mxu0 %v2338
    %2362 = vmatpush.msra.mxu0 %v2334
    %2363 = vmatpush.msra.mxu0 %v2330
    %2364 = vmatpush.msra.mxu0 %v2326
    %2365 = vmatpush.msra.mxu0 %v2322
    %2366 = vmatpush.msra.mxu0 %v2318
    %2367 = vmatpush.msra.mxu0 %v2314
    %2368 = vmatpush.msra.mxu0 %v2310
    %2369 = vmatpush.msra.mxu0 %v2306
    %2370 = vmatpush.msra.mxu0 %v2302
    %2371 = vmatpush.msra.mxu0 %v2298
    %2372 = vmatpush.msra.mxu0 %v2294
    %2373 = vmatpush.msra.mxu0 %v2290
    %2374 = vmatpush.msra.mxu0 %v2286
    %2375 = vmatpush.msra.mxu0 %v2282
    %2376 = vmatpush.msra.mxu0 %v2278
    %2377 = vmatmul.f32.gmra.mxu0 %v2268
    %v2378 = vpop.f32.mrf.mxu0
    %v2379 = vadd.f32 0.0, %v2378
    %2380 = vdwg.mxu0
    %2381 = vmatpush.msra.mxu0 %v2339
    %2382 = vmatpush.msra.mxu0 %v2335
    %2383 = vmatpush.msra.mxu0 %v2331
    %2384 = vmatpush.msra.mxu0 %v2327
    %2385 = vmatpush.msra.mxu0 %v2323
    %2386 = vmatpush.msra.mxu0 %v2319
    %2387 = vmatpush.msra.mxu0 %v2315
    %2388 = vmatpush.msra.mxu0 %v2311
    %2389 = vmatpush.msra.mxu0 %v2307
    %2390 = vmatpush.msra.mxu0 %v2303
    %2391 = vmatpush.msra.mxu0 %v2299
    %2392 = vmatpush.msra.mxu0 %v2295
    %2393 = vmatpush.msra.mxu0 %v2291
    %2394 = vmatpush.msra.mxu0 %v2287
    %2395 = vmatpush.msra.mxu0 %v2283
    %2396 = vmatpush.msra.mxu0 %v2279
    %2397 = vmatmul.f32.gmra.mxu0 %v2268
    %v2398 = vpop.f32.mrf.mxu0
    %v2399 = vadd.f32 0.0, %v2398
    %2400 = vdwg.mxu0
    %2401 = vmatpush.msra.mxu0 %v2340
    %2402 = vmatpush.msra.mxu0 %v2336
    %2403 = vmatpush.msra.mxu0 %v2332
    %2404 = vmatpush.msra.mxu0 %v2328
    %2405 = vmatpush.msra.mxu0 %v2324
    %2406 = vmatpush.msra.mxu0 %v2320
    %2407 = vmatpush.msra.mxu0 %v2316
    %2408 = vmatpush.msra.mxu0 %v2312
    %2409 = vmatpush.msra.mxu0 %v2308
    %2410 = vmatpush.msra.mxu0 %v2304
    %2411 = vmatpush.msra.mxu0 %v2300
    %2412 = vmatpush.msra.mxu0 %v2296
    %2413 = vmatpush.msra.mxu0 %v2292
    %2414 = vmatpush.msra.mxu0 %v2288
    %2415 = vmatpush.msra.mxu0 %v2284
    %2416 = vmatpush.msra.mxu0 %v2280
    %2417 = vmatmul.f32.gmra.mxu0 %v2268
    %v2418 = vpop.f32.mrf.mxu0
    %v2419 = vadd.f32 0.0, %v2418
    %2420 = vdwg.mxu0
    %v2421 = vadd.f32 %v2273, %v2359
    %v2422 = vadd.f32 %v2274, %v2379
    %v2423 = vadd.f32 %v2275, %v2399
    %v2424 = vadd.f32 %v2276, %v2419
    %v2425 = vxor.u32 %v2421, 2147483648
    %v2426 = vmul.f32 %v2425, 1.442695
    %v2427 = vpow.pop %v2426
    %v2428 = vadd.f32 %v2427, 1.0
    %v2429 = vrcp.pop %v2428
    %v2430 = vmul.f32 %v2428, %v2429
    %v2431 = vsub.f32 1.0, %v2430
    %v2432 = vmul.f32 %v2429, %v2431
    %v2433 = vadd.f32 %v2429, %v2432
    %vm2434 = vweird.f32 %v2428
    %vm2435 = vweird.f32 %v2429
    %vm2436 = vmor %vm2434, %vm2435
    %v2437 = vsel %vm2436, %v2429, %v2433
    %v2438 = vand.u32 2147483647, %v2428
    %vm2439 = vcmp.eq.f32.partialorder %v2438, 8.507059e+37
    %v2440 = vand.u32 %v2428, 2147483648
    %v2441 = vor.u32 1.1754944e-38, %v2440
    %v2442 = vsel %vm2439, %v2441, %v2437
    %v2443 = vmul.f32 1.0, %v2442
    %v2444 = vxor.u32 %v2422, 2147483648
    %v2445 = vmul.f32 %v2444, 1.442695
    %v2446 = vpow.pop %v2445
    %v2447 = vadd.f32 %v2446, 1.0
    %v2448 = vrcp.pop %v2447
    %v2449 = vmul.f32 %v2447, %v2448
    %v2450 = vsub.f32 1.0, %v2449
    %v2451 = vmul.f32 %v2448, %v2450
    %v2452 = vadd.f32 %v2448, %v2451
    %vm2453 = vweird.f32 %v2447
    %vm2454 = vweird.f32 %v2448
    %vm2455 = vmor %vm2453, %vm2454
    %v2456 = vsel %vm2455, %v2448, %v2452
    %v2457 = vand.u32 2147483647, %v2447
    %vm2458 = vcmp.eq.f32.partialorder %v2457, 8.507059e+37
    %v2459 = vand.u32 %v2447, 2147483648
    %v2460 = vor.u32 1.1754944e-38, %v2459
    %v2461 = vsel %vm2458, %v2460, %v2456
    %v2462 = vmul.f32 1.0, %v2461
    %v2463 = vtanh.pop %v2423
    %v2464 = vxor.u32 %v2424, 2147483648
    %v2465 = vmul.f32 %v2464, 1.442695
    %v2466 = vpow.pop %v2465
    %v2467 = vadd.f32 %v2466, 1.0
    %v2468 = vrcp.pop %v2467
    %v2469 = vmul.f32 %v2467, %v2468
    %v2470 = vsub.f32 1.0, %v2469
    %v2471 = vmul.f32 %v2468, %v2470
    %v2472 = vadd.f32 %v2468, %v2471
    %vm2473 = vweird.f32 %v2467
    %vm2474 = vweird.f32 %v2468
    %vm2475 = vmor %vm2473, %vm2474
    %v2476 = vsel %vm2475, %v2468, %v2472
    %v2477 = vand.u32 2147483647, %v2467
    %vm2478 = vcmp.eq.f32.partialorder %v2477, 8.507059e+37
    %v2479 = vand.u32 %v2467, 2147483648
    %v2480 = vor.u32 1.1754944e-38, %v2479
    %v2481 = vsel %vm2478, %v2480, %v2476
    %v2482 = vmul.f32 1.0, %v2481
    %v2483 = vmul.f32 %v2462, %v2269
    %v2484 = vmul.f32 %v2443, %v2463
    %v2485 = vadd.f32 %v2483, %v2484
    %v2486 = vtanh.pop %v2485
    %v2487 = vmul.f32 %v2482, %v2486
    %s2488 = sadd.s32 %s461, 8
    %v2489 = vstv %s2488
    %vm2490 = vcmp.lt.s32.totalorder %v2489, %v460
    %v2491 = vsel %vm2490, %v2487, 0.0
    %s2492 = scalar_lea.vmem %s5, 64
    %2493 = vst [vmem:[%s2492] sm:$0xff] %v2491
    %v2494 = vsel %vm2490, %v2487, %v2268
    %v2495 = vsel %vm2490, %v2485, %v2269
    %s2496 = smul.u32 9, 4
    %s2497 = smul.addr %s2496, 8
    %s2498 = scalar_lea.vmem [#allocation2], %s2497
    %v2499 = vld [vmem:[%s2498] sm:$0xff]
    %v2500 = vld [vmem:[%s2498 + $0x8] sm:$0xff]
    %v2501 = vld [vmem:[%s2498 + $0x10] sm:$0xff]
    %v2502 = vld [vmem:[%s2498 + $0x18] sm:$0xff]
    %v2503 = vld [vmem:[#allocation5] sm:$0xff]
    %v2504 = vld [vmem:[#allocation5 + $0x8] sm:$0xff]
    %v2505 = vld [vmem:[#allocation5 + $0x10] sm:$0xff]
    %v2506 = vld [vmem:[#allocation5 + $0x18] sm:$0xff]
    %v2507 = vld [vmem:[#allocation5 + $0x20] sm:$0xff]
    %v2508 = vld [vmem:[#allocation5 + $0x28] sm:$0xff]
    %v2509 = vld [vmem:[#allocation5 + $0x30] sm:$0xff]
    %v2510 = vld [vmem:[#allocation5 + $0x38] sm:$0xff]
    %v2511 = vld [vmem:[#allocation5 + $0x40] sm:$0xff]
    %v2512 = vld [vmem:[#allocation5 + $0x48] sm:$0xff]
    %v2513 = vld [vmem:[#allocation5 + $0x50] sm:$0xff]
    %v2514 = vld [vmem:[#allocation5 + $0x58] sm:$0xff]
    %v2515 = vld [vmem:[#allocation5 + $0x60] sm:$0xff]
    %v2516 = vld [vmem:[#allocation5 + $0x68] sm:$0xff]
    %v2517 = vld [vmem:[#allocation5 + $0x70] sm:$0xff]
    %v2518 = vld [vmem:[#allocation5 + $0x78] sm:$0xff]
    %v2519 = vld [vmem:[#allocation5 + $0x80] sm:$0xff]
    %v2520 = vld [vmem:[#allocation5 + $0x88] sm:$0xff]
    %v2521 = vld [vmem:[#allocation5 + $0x90] sm:$0xff]
    %v2522 = vld [vmem:[#allocation5 + $0x98] sm:$0xff]
    %v2523 = vld [vmem:[#allocation5 + $0xa0] sm:$0xff]
    %v2524 = vld [vmem:[#allocation5 + $0xa8] sm:$0xff]
    %v2525 = vld [vmem:[#allocation5 + $0xb0] sm:$0xff]
    %v2526 = vld [vmem:[#allocation5 + $0xb8] sm:$0xff]
    %v2527 = vld [vmem:[#allocation5 + $0xc0] sm:$0xff]
    %v2528 = vld [vmem:[#allocation5 + $0xc8] sm:$0xff]
    %v2529 = vld [vmem:[#allocation5 + $0xd0] sm:$0xff]
    %v2530 = vld [vmem:[#allocation5 + $0xd8] sm:$0xff]
    %v2531 = vld [vmem:[#allocation5 + $0xe0] sm:$0xff]
    %v2532 = vld [vmem:[#allocation5 + $0xe8] sm:$0xff]
    %v2533 = vld [vmem:[#allocation5 + $0xf0] sm:$0xff]
    %v2534 = vld [vmem:[#allocation5 + $0xf8] sm:$0xff]
    %v2535 = vld [vmem:[#allocation5 + $0x100] sm:$0xff]
    %v2536 = vld [vmem:[#allocation5 + $0x108] sm:$0xff]
    %v2537 = vld [vmem:[#allocation5 + $0x110] sm:$0xff]
    %v2538 = vld [vmem:[#allocation5 + $0x118] sm:$0xff]
    %v2539 = vld [vmem:[#allocation5 + $0x120] sm:$0xff]
    %v2540 = vld [vmem:[#allocation5 + $0x128] sm:$0xff]
    %v2541 = vld [vmem:[#allocation5 + $0x130] sm:$0xff]
    %v2542 = vld [vmem:[#allocation5 + $0x138] sm:$0xff]
    %v2543 = vld [vmem:[#allocation5 + $0x140] sm:$0xff]
    %v2544 = vld [vmem:[#allocation5 + $0x148] sm:$0xff]
    %v2545 = vld [vmem:[#allocation5 + $0x150] sm:$0xff]
    %v2546 = vld [vmem:[#allocation5 + $0x158] sm:$0xff]
    %v2547 = vld [vmem:[#allocation5 + $0x160] sm:$0xff]
    %v2548 = vld [vmem:[#allocation5 + $0x168] sm:$0xff]
    %v2549 = vld [vmem:[#allocation5 + $0x170] sm:$0xff]
    %v2550 = vld [vmem:[#allocation5 + $0x178] sm:$0xff]
    %v2551 = vld [vmem:[#allocation5 + $0x180] sm:$0xff]
    %v2552 = vld [vmem:[#allocation5 + $0x188] sm:$0xff]
    %v2553 = vld [vmem:[#allocation5 + $0x190] sm:$0xff]
    %v2554 = vld [vmem:[#allocation5 + $0x198] sm:$0xff]
    %v2555 = vld [vmem:[#allocation5 + $0x1a0] sm:$0xff]
    %v2556 = vld [vmem:[#allocation5 + $0x1a8] sm:$0xff]
    %v2557 = vld [vmem:[#allocation5 + $0x1b0] sm:$0xff]
    %v2558 = vld [vmem:[#allocation5 + $0x1b8] sm:$0xff]
    %v2559 = vld [vmem:[#allocation5 + $0x1c0] sm:$0xff]
    %v2560 = vld [vmem:[#allocation5 + $0x1c8] sm:$0xff]
    %v2561 = vld [vmem:[#allocation5 + $0x1d0] sm:$0xff]
    %v2562 = vld [vmem:[#allocation5 + $0x1d8] sm:$0xff]
    %v2563 = vld [vmem:[#allocation5 + $0x1e0] sm:$0xff]
    %v2564 = vld [vmem:[#allocation5 + $0x1e8] sm:$0xff]
    %v2565 = vld [vmem:[#allocation5 + $0x1f0] sm:$0xff]
    %v2566 = vld [vmem:[#allocation5 + $0x1f8] sm:$0xff]
    %2567 = vmatpush.msra.mxu0 %v2563
    %2568 = vmatpush.msra.mxu0 %v2559
    %2569 = vmatpush.msra.mxu0 %v2555
    %2570 = vmatpush.msra.mxu0 %v2551
    %2571 = vmatpush.msra.mxu0 %v2547
    %2572 = vmatpush.msra.mxu0 %v2543
    %2573 = vmatpush.msra.mxu0 %v2539
    %2574 = vmatpush.msra.mxu0 %v2535
    %2575 = vmatpush.msra.mxu0 %v2531
    %2576 = vmatpush.msra.mxu0 %v2527
    %2577 = vmatpush.msra.mxu0 %v2523
    %2578 = vmatpush.msra.mxu0 %v2519
    %2579 = vmatpush.msra.mxu0 %v2515
    %2580 = vmatpush.msra.mxu0 %v2511
    %2581 = vmatpush.msra.mxu0 %v2507
    %2582 = vmatpush.msra.mxu0 %v2503
    %2583 = vmatmul.f32.gmra.mxu0 %v2494
    %v2584 = vpop.f32.mrf.mxu0
    %v2585 = vadd.f32 0.0, %v2584
    %2586 = vdwg.mxu0
    %2587 = vmatpush.msra.mxu0 %v2564
    %2588 = vmatpush.msra.mxu0 %v2560
    %2589 = vmatpush.msra.mxu0 %v2556
    %2590 = vmatpush.msra.mxu0 %v2552
    %2591 = vmatpush.msra.mxu0 %v2548
    %2592 = vmatpush.msra.mxu0 %v2544
    %2593 = vmatpush.msra.mxu0 %v2540
    %2594 = vmatpush.msra.mxu0 %v2536
    %2595 = vmatpush.msra.mxu0 %v2532
    %2596 = vmatpush.msra.mxu0 %v2528
    %2597 = vmatpush.msra.mxu0 %v2524
    %2598 = vmatpush.msra.mxu0 %v2520
    %2599 = vmatpush.msra.mxu0 %v2516
    %2600 = vmatpush.msra.mxu0 %v2512
    %2601 = vmatpush.msra.mxu0 %v2508
    %2602 = vmatpush.msra.mxu0 %v2504
    %2603 = vmatmul.f32.gmra.mxu0 %v2494
    %v2604 = vpop.f32.mrf.mxu0
    %v2605 = vadd.f32 0.0, %v2604
    %2606 = vdwg.mxu0
    %2607 = vmatpush.msra.mxu0 %v2565
    %2608 = vmatpush.msra.mxu0 %v2561
    %2609 = vmatpush.msra.mxu0 %v2557
    %2610 = vmatpush.msra.mxu0 %v2553
    %2611 = vmatpush.msra.mxu0 %v2549
    %2612 = vmatpush.msra.mxu0 %v2545
    %2613 = vmatpush.msra.mxu0 %v2541
    %2614 = vmatpush.msra.mxu0 %v2537
    %2615 = vmatpush.msra.mxu0 %v2533
    %2616 = vmatpush.msra.mxu0 %v2529
    %2617 = vmatpush.msra.mxu0 %v2525
    %2618 = vmatpush.msra.mxu0 %v2521
    %2619 = vmatpush.msra.mxu0 %v2517
    %2620 = vmatpush.msra.mxu0 %v2513
    %2621 = vmatpush.msra.mxu0 %v2509
    %2622 = vmatpush.msra.mxu0 %v2505
    %2623 = vmatmul.f32.gmra.mxu0 %v2494
    %v2624 = vpop.f32.mrf.mxu0
    %v2625 = vadd.f32 0.0, %v2624
    %2626 = vdwg.mxu0
    %2627 = vmatpush.msra.mxu0 %v2566
    %2628 = vmatpush.msra.mxu0 %v2562
    %2629 = vmatpush.msra.mxu0 %v2558
    %2630 = vmatpush.msra.mxu0 %v2554
    %2631 = vmatpush.msra.mxu0 %v2550
    %2632 = vmatpush.msra.mxu0 %v2546
    %2633 = vmatpush.msra.mxu0 %v2542
    %2634 = vmatpush.msra.mxu0 %v2538
    %2635 = vmatpush.msra.mxu0 %v2534
    %2636 = vmatpush.msra.mxu0 %v2530
    %2637 = vmatpush.msra.mxu0 %v2526
    %2638 = vmatpush.msra.mxu0 %v2522
    %2639 = vmatpush.msra.mxu0 %v2518
    %2640 = vmatpush.msra.mxu0 %v2514
    %2641 = vmatpush.msra.mxu0 %v2510
    %2642 = vmatpush.msra.mxu0 %v2506
    %2643 = vmatmul.f32.gmra.mxu0 %v2494
    %v2644 = vpop.f32.mrf.mxu0
    %v2645 = vadd.f32 0.0, %v2644
    %2646 = vdwg.mxu0
    %v2647 = vadd.f32 %v2499, %v2585
    %v2648 = vadd.f32 %v2500, %v2605
    %v2649 = vadd.f32 %v2501, %v2625
    %v2650 = vadd.f32 %v2502, %v2645
    %v2651 = vxor.u32 %v2647, 2147483648
    %v2652 = vmul.f32 %v2651, 1.442695
    %v2653 = vpow.pop %v2652
    %v2654 = vadd.f32 %v2653, 1.0
    %v2655 = vrcp.pop %v2654
    %v2656 = vmul.f32 %v2654, %v2655
    %v2657 = vsub.f32 1.0, %v2656
    %v2658 = vmul.f32 %v2655, %v2657
    %v2659 = vadd.f32 %v2655, %v2658
    %vm2660 = vweird.f32 %v2654
    %vm2661 = vweird.f32 %v2655
    %vm2662 = vmor %vm2660, %vm2661
    %v2663 = vsel %vm2662, %v2655, %v2659
    %v2664 = vand.u32 2147483647, %v2654
    %vm2665 = vcmp.eq.f32.partialorder %v2664, 8.507059e+37
    %v2666 = vand.u32 %v2654, 2147483648
    %v2667 = vor.u32 1.1754944e-38, %v2666
    %v2668 = vsel %vm2665, %v2667, %v2663
    %v2669 = vmul.f32 1.0, %v2668
    %v2670 = vxor.u32 %v2648, 2147483648
    %v2671 = vmul.f32 %v2670, 1.442695
    %v2672 = vpow.pop %v2671
    %v2673 = vadd.f32 %v2672, 1.0
    %v2674 = vrcp.pop %v2673
    %v2675 = vmul.f32 %v2673, %v2674
    %v2676 = vsub.f32 1.0, %v2675
    %v2677 = vmul.f32 %v2674, %v2676
    %v2678 = vadd.f32 %v2674, %v2677
    %vm2679 = vweird.f32 %v2673
    %vm2680 = vweird.f32 %v2674
    %vm2681 = vmor %vm2679, %vm2680
    %v2682 = vsel %vm2681, %v2674, %v2678
    %v2683 = vand.u32 2147483647, %v2673
    %vm2684 = vcmp.eq.f32.partialorder %v2683, 8.507059e+37
    %v2685 = vand.u32 %v2673, 2147483648
    %v2686 = vor.u32 1.1754944e-38, %v2685
    %v2687 = vsel %vm2684, %v2686, %v2682
    %v2688 = vmul.f32 1.0, %v2687
    %v2689 = vtanh.pop %v2649
    %v2690 = vxor.u32 %v2650, 2147483648
    %v2691 = vmul.f32 %v2690, 1.442695
    %v2692 = vpow.pop %v2691
    %v2693 = vadd.f32 %v2692, 1.0
    %v2694 = vrcp.pop %v2693
    %v2695 = vmul.f32 %v2693, %v2694
    %v2696 = vsub.f32 1.0, %v2695
    %v2697 = vmul.f32 %v2694, %v2696
    %v2698 = vadd.f32 %v2694, %v2697
    %vm2699 = vweird.f32 %v2693
    %vm2700 = vweird.f32 %v2694
    %vm2701 = vmor %vm2699, %vm2700
    %v2702 = vsel %vm2701, %v2694, %v2698
    %v2703 = vand.u32 2147483647, %v2693
    %vm2704 = vcmp.eq.f32.partialorder %v2703, 8.507059e+37
    %v2705 = vand.u32 %v2693, 2147483648
    %v2706 = vor.u32 1.1754944e-38, %v2705
    %v2707 = vsel %vm2704, %v2706, %v2702
    %v2708 = vmul.f32 1.0, %v2707
    %v2709 = vmul.f32 %v2688, %v2495
    %v2710 = vmul.f32 %v2669, %v2689
    %v2711 = vadd.f32 %v2709, %v2710
    %v2712 = vtanh.pop %v2711
    %v2713 = vmul.f32 %v2708, %v2712
    %s2714 = sadd.s32 %s461, 9
    %v2715 = vstv %s2714
    %vm2716 = vcmp.lt.s32.totalorder %v2715, %v460
    %v2717 = vsel %vm2716, %v2713, 0.0
    %s2718 = scalar_lea.vmem %s5, 72
    %2719 = vst [vmem:[%s2718] sm:$0xff] %v2717
    %v2720 = vsel %vm2716, %v2713, %v2494
    %v2721 = vsel %vm2716, %v2711, %v2495
    %s2722 = smul.u32 10, 4
    %s2723 = smul.addr %s2722, 8
    %s2724 = scalar_lea.vmem [#allocation2], %s2723
    %v2725 = vld [vmem:[%s2724] sm:$0xff]
    %v2726 = vld [vmem:[%s2724 + $0x8] sm:$0xff]
    %v2727 = vld [vmem:[%s2724 + $0x10] sm:$0xff]
    %v2728 = vld [vmem:[%s2724 + $0x18] sm:$0xff]
    %v2729 = vld [vmem:[#allocation5] sm:$0xff]
    %v2730 = vld [vmem:[#allocation5 + $0x8] sm:$0xff]
    %v2731 = vld [vmem:[#allocation5 + $0x10] sm:$0xff]
    %v2732 = vld [vmem:[#allocation5 + $0x18] sm:$0xff]
    %v2733 = vld [vmem:[#allocation5 + $0x20] sm:$0xff]
    %v2734 = vld [vmem:[#allocation5 + $0x28] sm:$0xff]
    %v2735 = vld [vmem:[#allocation5 + $0x30] sm:$0xff]
    %v2736 = vld [vmem:[#allocation5 + $0x38] sm:$0xff]
    %v2737 = vld [vmem:[#allocation5 + $0x40] sm:$0xff]
    %v2738 = vld [vmem:[#allocation5 + $0x48] sm:$0xff]
    %v2739 = vld [vmem:[#allocation5 + $0x50] sm:$0xff]
    %v2740 = vld [vmem:[#allocation5 + $0x58] sm:$0xff]
    %v2741 = vld [vmem:[#allocation5 + $0x60] sm:$0xff]
    %v2742 = vld [vmem:[#allocation5 + $0x68] sm:$0xff]
    %v2743 = vld [vmem:[#allocation5 + $0x70] sm:$0xff]
    %v2744 = vld [vmem:[#allocation5 + $0x78] sm:$0xff]
    %v2745 = vld [vmem:[#allocation5 + $0x80] sm:$0xff]
    %v2746 = vld [vmem:[#allocation5 + $0x88] sm:$0xff]
    %v2747 = vld [vmem:[#allocation5 + $0x90] sm:$0xff]
    %v2748 = vld [vmem:[#allocation5 + $0x98] sm:$0xff]
    %v2749 = vld [vmem:[#allocation5 + $0xa0] sm:$0xff]
    %v2750 = vld [vmem:[#allocation5 + $0xa8] sm:$0xff]
    %v2751 = vld [vmem:[#allocation5 + $0xb0] sm:$0xff]
    %v2752 = vld [vmem:[#allocation5 + $0xb8] sm:$0xff]
    %v2753 = vld [vmem:[#allocation5 + $0xc0] sm:$0xff]
    %v2754 = vld [vmem:[#allocation5 + $0xc8] sm:$0xff]
    %v2755 = vld [vmem:[#allocation5 + $0xd0] sm:$0xff]
    %v2756 = vld [vmem:[#allocation5 + $0xd8] sm:$0xff]
    %v2757 = vld [vmem:[#allocation5 + $0xe0] sm:$0xff]
    %v2758 = vld [vmem:[#allocation5 + $0xe8] sm:$0xff]
    %v2759 = vld [vmem:[#allocation5 + $0xf0] sm:$0xff]
    %v2760 = vld [vmem:[#allocation5 + $0xf8] sm:$0xff]
    %v2761 = vld [vmem:[#allocation5 + $0x100] sm:$0xff]
    %v2762 = vld [vmem:[#allocation5 + $0x108] sm:$0xff]
    %v2763 = vld [vmem:[#allocation5 + $0x110] sm:$0xff]
    %v2764 = vld [vmem:[#allocation5 + $0x118] sm:$0xff]
    %v2765 = vld [vmem:[#allocation5 + $0x120] sm:$0xff]
    %v2766 = vld [vmem:[#allocation5 + $0x128] sm:$0xff]
    %v2767 = vld [vmem:[#allocation5 + $0x130] sm:$0xff]
    %v2768 = vld [vmem:[#allocation5 + $0x138] sm:$0xff]
    %v2769 = vld [vmem:[#allocation5 + $0x140] sm:$0xff]
    %v2770 = vld [vmem:[#allocation5 + $0x148] sm:$0xff]
    %v2771 = vld [vmem:[#allocation5 + $0x150] sm:$0xff]
    %v2772 = vld [vmem:[#allocation5 + $0x158] sm:$0xff]
    %v2773 = vld [vmem:[#allocation5 + $0x160] sm:$0xff]
    %v2774 = vld [vmem:[#allocation5 + $0x168] sm:$0xff]
    %v2775 = vld [vmem:[#allocation5 + $0x170] sm:$0xff]
    %v2776 = vld [vmem:[#allocation5 + $0x178] sm:$0xff]
    %v2777 = vld [vmem:[#allocation5 + $0x180] sm:$0xff]
    %v2778 = vld [vmem:[#allocation5 + $0x188] sm:$0xff]
    %v2779 = vld [vmem:[#allocation5 + $0x190] sm:$0xff]
    %v2780 = vld [vmem:[#allocation5 + $0x198] sm:$0xff]
    %v2781 = vld [vmem:[#allocation5 + $0x1a0] sm:$0xff]
    %v2782 = vld [vmem:[#allocation5 + $0x1a8] sm:$0xff]
    %v2783 = vld [vmem:[#allocation5 + $0x1b0] sm:$0xff]
    %v2784 = vld [vmem:[#allocation5 + $0x1b8] sm:$0xff]
    %v2785 = vld [vmem:[#allocation5 + $0x1c0] sm:$0xff]
    %v2786 = vld [vmem:[#allocation5 + $0x1c8] sm:$0xff]
    %v2787 = vld [vmem:[#allocation5 + $0x1d0] sm:$0xff]
    %v2788 = vld [vmem:[#allocation5 + $0x1d8] sm:$0xff]
    %v2789 = vld [vmem:[#allocation5 + $0x1e0] sm:$0xff]
    %v2790 = vld [vmem:[#allocation5 + $0x1e8] sm:$0xff]
    %v2791 = vld [vmem:[#allocation5 + $0x1f0] sm:$0xff]
    %v2792 = vld [vmem:[#allocation5 + $0x1f8] sm:$0xff]
    %2793 = vmatpush.msra.mxu0 %v2789
    %2794 = vmatpush.msra.mxu0 %v2785
    %2795 = vmatpush.msra.mxu0 %v2781
    %2796 = vmatpush.msra.mxu0 %v2777
    %2797 = vmatpush.msra.mxu0 %v2773
    %2798 = vmatpush.msra.mxu0 %v2769
    %2799 = vmatpush.msra.mxu0 %v2765
    %2800 = vmatpush.msra.mxu0 %v2761
    %2801 = vmatpush.msra.mxu0 %v2757
    %2802 = vmatpush.msra.mxu0 %v2753
    %2803 = vmatpush.msra.mxu0 %v2749
    %2804 = vmatpush.msra.mxu0 %v2745
    %2805 = vmatpush.msra.mxu0 %v2741
    %2806 = vmatpush.msra.mxu0 %v2737
    %2807 = vmatpush.msra.mxu0 %v2733
    %2808 = vmatpush.msra.mxu0 %v2729
    %2809 = vmatmul.f32.gmra.mxu0 %v2720
    %v2810 = vpop.f32.mrf.mxu0
    %v2811 = vadd.f32 0.0, %v2810
    %2812 = vdwg.mxu0
    %2813 = vmatpush.msra.mxu0 %v2790
    %2814 = vmatpush.msra.mxu0 %v2786
    %2815 = vmatpush.msra.mxu0 %v2782
    %2816 = vmatpush.msra.mxu0 %v2778
    %2817 = vmatpush.msra.mxu0 %v2774
    %2818 = vmatpush.msra.mxu0 %v2770
    %2819 = vmatpush.msra.mxu0 %v2766
    %2820 = vmatpush.msra.mxu0 %v2762
    %2821 = vmatpush.msra.mxu0 %v2758
    %2822 = vmatpush.msra.mxu0 %v2754
    %2823 = vmatpush.msra.mxu0 %v2750
    %2824 = vmatpush.msra.mxu0 %v2746
    %2825 = vmatpush.msra.mxu0 %v2742
    %2826 = vmatpush.msra.mxu0 %v2738
    %2827 = vmatpush.msra.mxu0 %v2734
    %2828 = vmatpush.msra.mxu0 %v2730
    %2829 = vmatmul.f32.gmra.mxu0 %v2720
    %v2830 = vpop.f32.mrf.mxu0
    %v2831 = vadd.f32 0.0, %v2830
    %2832 = vdwg.mxu0
    %2833 = vmatpush.msra.mxu0 %v2791
    %2834 = vmatpush.msra.mxu0 %v2787
    %2835 = vmatpush.msra.mxu0 %v2783
    %2836 = vmatpush.msra.mxu0 %v2779
    %2837 = vmatpush.msra.mxu0 %v2775
    %2838 = vmatpush.msra.mxu0 %v2771
    %2839 = vmatpush.msra.mxu0 %v2767
    %2840 = vmatpush.msra.mxu0 %v2763
    %2841 = vmatpush.msra.mxu0 %v2759
    %2842 = vmatpush.msra.mxu0 %v2755
    %2843 = vmatpush.msra.mxu0 %v2751
    %2844 = vmatpush.msra.mxu0 %v2747
    %2845 = vmatpush.msra.mxu0 %v2743
    %2846 = vmatpush.msra.mxu0 %v2739
    %2847 = vmatpush.msra.mxu0 %v2735
    %2848 = vmatpush.msra.mxu0 %v2731
    %2849 = vmatmul.f32.gmra.mxu0 %v2720
    %v2850 = vpop.f32.mrf.mxu0
    %v2851 = vadd.f32 0.0, %v2850
    %2852 = vdwg.mxu0
    %2853 = vmatpush.msra.mxu0 %v2792
    %2854 = vmatpush.msra.mxu0 %v2788
    %2855 = vmatpush.msra.mxu0 %v2784
    %2856 = vmatpush.msra.mxu0 %v2780
    %2857 = vmatpush.msra.mxu0 %v2776
    %2858 = vmatpush.msra.mxu0 %v2772
    %2859 = vmatpush.msra.mxu0 %v2768
    %2860 = vmatpush.msra.mxu0 %v2764
    %2861 = vmatpush.msra.mxu0 %v2760
    %2862 = vmatpush.msra.mxu0 %v2756
    %2863 = vmatpush.msra.mxu0 %v2752
    %2864 = vmatpush.msra.mxu0 %v2748
    %2865 = vmatpush.msra.mxu0 %v2744
    %2866 = vmatpush.msra.mxu0 %v2740
    %2867 = vmatpush.msra.mxu0 %v2736
    %2868 = vmatpush.msra.mxu0 %v2732
    %2869 = vmatmul.f32.gmra.mxu0 %v2720
    %v2870 = vpop.f32.mrf.mxu0
    %v2871 = vadd.f32 0.0, %v2870
    %2872 = vdwg.mxu0
    %v2873 = vadd.f32 %v2725, %v2811
    %v2874 = vadd.f32 %v2726, %v2831
    %v2875 = vadd.f32 %v2727, %v2851
    %v2876 = vadd.f32 %v2728, %v2871
    %v2877 = vxor.u32 %v2873, 2147483648
    %v2878 = vmul.f32 %v2877, 1.442695
    %v2879 = vpow.pop %v2878
    %v2880 = vadd.f32 %v2879, 1.0
    %v2881 = vrcp.pop %v2880
    %v2882 = vmul.f32 %v2880, %v2881
    %v2883 = vsub.f32 1.0, %v2882
    %v2884 = vmul.f32 %v2881, %v2883
    %v2885 = vadd.f32 %v2881, %v2884
    %vm2886 = vweird.f32 %v2880
    %vm2887 = vweird.f32 %v2881
    %vm2888 = vmor %vm2886, %vm2887
    %v2889 = vsel %vm2888, %v2881, %v2885
    %v2890 = vand.u32 2147483647, %v2880
    %vm2891 = vcmp.eq.f32.partialorder %v2890, 8.507059e+37
    %v2892 = vand.u32 %v2880, 2147483648
    %v2893 = vor.u32 1.1754944e-38, %v2892
    %v2894 = vsel %vm2891, %v2893, %v2889
    %v2895 = vmul.f32 1.0, %v2894
    %v2896 = vxor.u32 %v2874, 2147483648
    %v2897 = vmul.f32 %v2896, 1.442695
    %v2898 = vpow.pop %v2897
    %v2899 = vadd.f32 %v2898, 1.0
    %v2900 = vrcp.pop %v2899
    %v2901 = vmul.f32 %v2899, %v2900
    %v2902 = vsub.f32 1.0, %v2901
    %v2903 = vmul.f32 %v2900, %v2902
    %v2904 = vadd.f32 %v2900, %v2903
    %vm2905 = vweird.f32 %v2899
    %vm2906 = vweird.f32 %v2900
    %vm2907 = vmor %vm2905, %vm2906
    %v2908 = vsel %vm2907, %v2900, %v2904
    %v2909 = vand.u32 2147483647, %v2899
    %vm2910 = vcmp.eq.f32.partialorder %v2909, 8.507059e+37
    %v2911 = vand.u32 %v2899, 2147483648
    %v2912 = vor.u32 1.1754944e-38, %v2911
    %v2913 = vsel %vm2910, %v2912, %v2908
    %v2914 = vmul.f32 1.0, %v2913
    %v2915 = vtanh.pop %v2875
    %v2916 = vxor.u32 %v2876, 2147483648
    %v2917 = vmul.f32 %v2916, 1.442695
    %v2918 = vpow.pop %v2917
    %v2919 = vadd.f32 %v2918, 1.0
    %v2920 = vrcp.pop %v2919
    %v2921 = vmul.f32 %v2919, %v2920
    %v2922 = vsub.f32 1.0, %v2921
    %v2923 = vmul.f32 %v2920, %v2922
    %v2924 = vadd.f32 %v2920, %v2923
    %vm2925 = vweird.f32 %v2919
    %vm2926 = vweird.f32 %v2920
    %vm2927 = vmor %vm2925, %vm2926
    %v2928 = vsel %vm2927, %v2920, %v2924
    %v2929 = vand.u32 2147483647, %v2919
    %vm2930 = vcmp.eq.f32.partialorder %v2929, 8.507059e+37
    %v2931 = vand.u32 %v2919, 2147483648
    %v2932 = vor.u32 1.1754944e-38, %v2931
    %v2933 = vsel %vm2930, %v2932, %v2928
    %v2934 = vmul.f32 1.0, %v2933
    %v2935 = vmul.f32 %v2914, %v2721
    %v2936 = vmul.f32 %v2895, %v2915
    %v2937 = vadd.f32 %v2935, %v2936
    %v2938 = vtanh.pop %v2937
    %v2939 = vmul.f32 %v2934, %v2938
    %s2940 = sadd.s32 %s461, 10
    %v2941 = vstv %s2940
    %vm2942 = vcmp.lt.s32.totalorder %v2941, %v460
    %v2943 = vsel %vm2942, %v2939, 0.0
    %s2944 = scalar_lea.vmem %s5, 80
    %2945 = vst [vmem:[%s2944] sm:$0xff] %v2943
    %v2946 = vsel %vm2942, %v2939, %v2720
    %v2947 = vsel %vm2942, %v2937, %v2721
    %s2948 = smul.u32 11, 4
    %s2949 = smul.addr %s2948, 8
    %s2950 = scalar_lea.vmem [#allocation2], %s2949
    %v2951 = vld [vmem:[%s2950] sm:$0xff]
    %v2952 = vld [vmem:[%s2950 + $0x8] sm:$0xff]
    %v2953 = vld [vmem:[%s2950 + $0x10] sm:$0xff]
    %v2954 = vld [vmem:[%s2950 + $0x18] sm:$0xff]
    %v2955 = vld [vmem:[#allocation5] sm:$0xff]
    %v2956 = vld [vmem:[#allocation5 + $0x8] sm:$0xff]
    %v2957 = vld [vmem:[#allocation5 + $0x10] sm:$0xff]
    %v2958 = vld [vmem:[#allocation5 + $0x18] sm:$0xff]
    %v2959 = vld [vmem:[#allocation5 + $0x20] sm:$0xff]
    %v2960 = vld [vmem:[#allocation5 + $0x28] sm:$0xff]
    %v2961 = vld [vmem:[#allocation5 + $0x30] sm:$0xff]
    %v2962 = vld [vmem:[#allocation5 + $0x38] sm:$0xff]
    %v2963 = vld [vmem:[#allocation5 + $0x40] sm:$0xff]
    %v2964 = vld [vmem:[#allocation5 + $0x48] sm:$0xff]
    %v2965 = vld [vmem:[#allocation5 + $0x50] sm:$0xff]
    %v2966 = vld [vmem:[#allocation5 + $0x58] sm:$0xff]
    %v2967 = vld [vmem:[#allocation5 + $0x60] sm:$0xff]
    %v2968 = vld [vmem:[#allocation5 + $0x68] sm:$0xff]
    %v2969 = vld [vmem:[#allocation5 + $0x70] sm:$0xff]
    %v2970 = vld [vmem:[#allocation5 + $0x78] sm:$0xff]
    %v2971 = vld [vmem:[#allocation5 + $0x80] sm:$0xff]
    %v2972 = vld [vmem:[#allocation5 + $0x88] sm:$0xff]
    %v2973 = vld [vmem:[#allocation5 + $0x90] sm:$0xff]
    %v2974 = vld [vmem:[#allocation5 + $0x98] sm:$0xff]
    %v2975 = vld [vmem:[#allocation5 + $0xa0] sm:$0xff]
    %v2976 = vld [vmem:[#allocation5 + $0xa8] sm:$0xff]
    %v2977 = vld [vmem:[#allocation5 + $0xb0] sm:$0xff]
    %v2978 = vld [vmem:[#allocation5 + $0xb8] sm:$0xff]
    %v2979 = vld [vmem:[#allocation5 + $0xc0] sm:$0xff]
    %v2980 = vld [vmem:[#allocation5 + $0xc8] sm:$0xff]
    %v2981 = vld [vmem:[#allocation5 + $0xd0] sm:$0xff]
    %v2982 = vld [vmem:[#allocation5 + $0xd8] sm:$0xff]
    %v2983 = vld [vmem:[#allocation5 + $0xe0] sm:$0xff]
    %v2984 = vld [vmem:[#allocation5 + $0xe8] sm:$0xff]
    %v2985 = vld [vmem:[#allocation5 + $0xf0] sm:$0xff]
    %v2986 = vld [vmem:[#allocation5 + $0xf8] sm:$0xff]
    %v2987 = vld [vmem:[#allocation5 + $0x100] sm:$0xff]
    %v2988 = vld [vmem:[#allocation5 + $0x108] sm:$0xff]
    %v2989 = vld [vmem:[#allocation5 + $0x110] sm:$0xff]
    %v2990 = vld [vmem:[#allocation5 + $0x118] sm:$0xff]
    %v2991 = vld [vmem:[#allocation5 + $0x120] sm:$0xff]
    %v2992 = vld [vmem:[#allocation5 + $0x128] sm:$0xff]
    %v2993 = vld [vmem:[#allocation5 + $0x130] sm:$0xff]
    %v2994 = vld [vmem:[#allocation5 + $0x138] sm:$0xff]
    %v2995 = vld [vmem:[#allocation5 + $0x140] sm:$0xff]
    %v2996 = vld [vmem:[#allocation5 + $0x148] sm:$0xff]
    %v2997 = vld [vmem:[#allocation5 + $0x150] sm:$0xff]
    %v2998 = vld [vmem:[#allocation5 + $0x158] sm:$0xff]
    %v2999 = vld [vmem:[#allocation5 + $0x160] sm:$0xff]
    %v3000 = vld [vmem:[#allocation5 + $0x168] sm:$0xff]
    %v3001 = vld [vmem:[#allocation5 + $0x170] sm:$0xff]
    %v3002 = vld [vmem:[#allocation5 + $0x178] sm:$0xff]
    %v3003 = vld [vmem:[#allocation5 + $0x180] sm:$0xff]
    %v3004 = vld [vmem:[#allocation5 + $0x188] sm:$0xff]
    %v3005 = vld [vmem:[#allocation5 + $0x190] sm:$0xff]
    %v3006 = vld [vmem:[#allocation5 + $0x198] sm:$0xff]
    %v3007 = vld [vmem:[#allocation5 + $0x1a0] sm:$0xff]
    %v3008 = vld [vmem:[#allocation5 + $0x1a8] sm:$0xff]
    %v3009 = vld [vmem:[#allocation5 + $0x1b0] sm:$0xff]
    %v3010 = vld [vmem:[#allocation5 + $0x1b8] sm:$0xff]
    %v3011 = vld [vmem:[#allocation5 + $0x1c0] sm:$0xff]
    %v3012 = vld [vmem:[#allocation5 + $0x1c8] sm:$0xff]
    %v3013 = vld [vmem:[#allocation5 + $0x1d0] sm:$0xff]
    %v3014 = vld [vmem:[#allocation5 + $0x1d8] sm:$0xff]
    %v3015 = vld [vmem:[#allocation5 + $0x1e0] sm:$0xff]
    %v3016 = vld [vmem:[#allocation5 + $0x1e8] sm:$0xff]
    %v3017 = vld [vmem:[#allocation5 + $0x1f0] sm:$0xff]
    %v3018 = vld [vmem:[#allocation5 + $0x1f8] sm:$0xff]
    %3019 = vmatpush.msra.mxu0 %v3015
    %3020 = vmatpush.msra.mxu0 %v3011
    %3021 = vmatpush.msra.mxu0 %v3007
    %3022 = vmatpush.msra.mxu0 %v3003
    %3023 = vmatpush.msra.mxu0 %v2999
    %3024 = vmatpush.msra.mxu0 %v2995
    %3025 = vmatpush.msra.mxu0 %v2991
    %3026 = vmatpush.msra.mxu0 %v2987
    %3027 = vmatpush.msra.mxu0 %v2983
    %3028 = vmatpush.msra.mxu0 %v2979
    %3029 = vmatpush.msra.mxu0 %v2975
    %3030 = vmatpush.msra.mxu0 %v2971
    %3031 = vmatpush.msra.mxu0 %v2967
    %3032 = vmatpush.msra.mxu0 %v2963
    %3033 = vmatpush.msra.mxu0 %v2959
    %3034 = vmatpush.msra.mxu0 %v2955
    %3035 = vmatmul.f32.gmra.mxu0 %v2946
    %v3036 = vpop.f32.mrf.mxu0
    %v3037 = vadd.f32 0.0, %v3036
    %3038 = vdwg.mxu0
    %3039 = vmatpush.msra.mxu0 %v3016
    %3040 = vmatpush.msra.mxu0 %v3012
    %3041 = vmatpush.msra.mxu0 %v3008
    %3042 = vmatpush.msra.mxu0 %v3004
    %3043 = vmatpush.msra.mxu0 %v3000
    %3044 = vmatpush.msra.mxu0 %v2996
    %3045 = vmatpush.msra.mxu0 %v2992
    %3046 = vmatpush.msra.mxu0 %v2988
    %3047 = vmatpush.msra.mxu0 %v2984
    %3048 = vmatpush.msra.mxu0 %v2980
    %3049 = vmatpush.msra.mxu0 %v2976
    %3050 = vmatpush.msra.mxu0 %v2972
    %3051 = vmatpush.msra.mxu0 %v2968
    %3052 = vmatpush.msra.mxu0 %v2964
    %3053 = vmatpush.msra.mxu0 %v2960
    %3054 = vmatpush.msra.mxu0 %v2956
    %3055 = vmatmul.f32.gmra.mxu0 %v2946
    %v3056 = vpop.f32.mrf.mxu0
    %v3057 = vadd.f32 0.0, %v3056
    %3058 = vdwg.mxu0
    %3059 = vmatpush.msra.mxu0 %v3017
    %3060 = vmatpush.msra.mxu0 %v3013
    %3061 = vmatpush.msra.mxu0 %v3009
    %3062 = vmatpush.msra.mxu0 %v3005
    %3063 = vmatpush.msra.mxu0 %v3001
    %3064 = vmatpush.msra.mxu0 %v2997
    %3065 = vmatpush.msra.mxu0 %v2993
    %3066 = vmatpush.msra.mxu0 %v2989
    %3067 = vmatpush.msra.mxu0 %v2985
    %3068 = vmatpush.msra.mxu0 %v2981
    %3069 = vmatpush.msra.mxu0 %v2977
    %3070 = vmatpush.msra.mxu0 %v2973
    %3071 = vmatpush.msra.mxu0 %v2969
    %3072 = vmatpush.msra.mxu0 %v2965
    %3073 = vmatpush.msra.mxu0 %v2961
    %3074 = vmatpush.msra.mxu0 %v2957
    %3075 = vmatmul.f32.gmra.mxu0 %v2946
    %v3076 = vpop.f32.mrf.mxu0
    %v3077 = vadd.f32 0.0, %v3076
    %3078 = vdwg.mxu0
    %3079 = vmatpush.msra.mxu0 %v3018
    %3080 = vmatpush.msra.mxu0 %v3014
    %3081 = vmatpush.msra.mxu0 %v3010
    %3082 = vmatpush.msra.mxu0 %v3006
    %3083 = vmatpush.msra.mxu0 %v3002
    %3084 = vmatpush.msra.mxu0 %v2998
    %3085 = vmatpush.msra.mxu0 %v2994
    %3086 = vmatpush.msra.mxu0 %v2990
    %3087 = vmatpush.msra.mxu0 %v2986
    %3088 = vmatpush.msra.mxu0 %v2982
    %3089 = vmatpush.msra.mxu0 %v2978
    %3090 = vmatpush.msra.mxu0 %v2974
    %3091 = vmatpush.msra.mxu0 %v2970
    %3092 = vmatpush.msra.mxu0 %v2966
    %3093 = vmatpush.msra.mxu0 %v2962
    %3094 = vmatpush.msra.mxu0 %v2958
    %3095 = vmatmul.f32.gmra.mxu0 %v2946
    %v3096 = vpop.f32.mrf.mxu0
    %v3097 = vadd.f32 0.0, %v3096
    %3098 = vdwg.mxu0
    %v3099 = vadd.f32 %v2951, %v3037
    %v3100 = vadd.f32 %v2952, %v3057
    %v3101 = vadd.f32 %v2953, %v3077
    %v3102 = vadd.f32 %v2954, %v3097
    %v3103 = vxor.u32 %v3099, 2147483648
    %v3104 = vmul.f32 %v3103, 1.442695
    %v3105 = vpow.pop %v3104
    %v3106 = vadd.f32 %v3105, 1.0
    %v3107 = vrcp.pop %v3106
    %v3108 = vmul.f32 %v3106, %v3107
    %v3109 = vsub.f32 1.0, %v3108
    %v3110 = vmul.f32 %v3107, %v3109
    %v3111 = vadd.f32 %v3107, %v3110
    %vm3112 = vweird.f32 %v3106
    %vm3113 = vweird.f32 %v3107
    %vm3114 = vmor %vm3112, %vm3113
    %v3115 = vsel %vm3114, %v3107, %v3111
    %v3116 = vand.u32 2147483647, %v3106
    %vm3117 = vcmp.eq.f32.partialorder %v3116, 8.507059e+37
    %v3118 = vand.u32 %v3106, 2147483648
    %v3119 = vor.u32 1.1754944e-38, %v3118
    %v3120 = vsel %vm3117, %v3119, %v3115
    %v3121 = vmul.f32 1.0, %v3120
    %v3122 = vxor.u32 %v3100, 2147483648
    %v3123 = vmul.f32 %v3122, 1.442695
    %v3124 = vpow.pop %v3123
    %v3125 = vadd.f32 %v3124, 1.0
    %v3126 = vrcp.pop %v3125
    %v3127 = vmul.f32 %v3125, %v3126
    %v3128 = vsub.f32 1.0, %v3127
    %v3129 = vmul.f32 %v3126, %v3128
    %v3130 = vadd.f32 %v3126, %v3129
    %vm3131 = vweird.f32 %v3125
    %vm3132 = vweird.f32 %v3126
    %vm3133 = vmor %vm3131, %vm3132
    %v3134 = vsel %vm3133, %v3126, %v3130
    %v3135 = vand.u32 2147483647, %v3125
    %vm3136 = vcmp.eq.f32.partialorder %v3135, 8.507059e+37
    %v3137 = vand.u32 %v3125, 2147483648
    %v3138 = vor.u32 1.1754944e-38, %v3137
    %v3139 = vsel %vm3136, %v3138, %v3134
    %v3140 = vmul.f32 1.0, %v3139
    %v3141 = vtanh.pop %v3101
    %v3142 = vxor.u32 %v3102, 2147483648
    %v3143 = vmul.f32 %v3142, 1.442695
    %v3144 = vpow.pop %v3143
    %v3145 = vadd.f32 %v3144, 1.0
    %v3146 = vrcp.pop %v3145
    %v3147 = vmul.f32 %v3145, %v3146
    %v3148 = vsub.f32 1.0, %v3147
    %v3149 = vmul.f32 %v3146, %v3148
    %v3150 = vadd.f32 %v3146, %v3149
    %vm3151 = vweird.f32 %v3145
    %vm3152 = vweird.f32 %v3146
    %vm3153 = vmor %vm3151, %vm3152
    %v3154 = vsel %vm3153, %v3146, %v3150
    %v3155 = vand.u32 2147483647, %v3145
    %vm3156 = vcmp.eq.f32.partialorder %v3155, 8.507059e+37
    %v3157 = vand.u32 %v3145, 2147483648
    %v3158 = vor.u32 1.1754944e-38, %v3157
    %v3159 = vsel %vm3156, %v3158, %v3154
    %v3160 = vmul.f32 1.0, %v3159
    %v3161 = vmul.f32 %v3140, %v2947
    %v3162 = vmul.f32 %v3121, %v3141
    %v3163 = vadd.f32 %v3161, %v3162
    %v3164 = vtanh.pop %v3163
    %v3165 = vmul.f32 %v3160, %v3164
    %s3166 = sadd.s32 %s461, 11
    %v3167 = vstv %s3166
    %vm3168 = vcmp.lt.s32.totalorder %v3167, %v460
    %v3169 = vsel %vm3168, %v3165, 0.0
    %s3170 = scalar_lea.vmem %s5, 88
    %3171 = vst [vmem:[%s3170] sm:$0xff] %v3169
    %v3172 = vsel %vm3168, %v3165, %v2946
    %v3173 = vsel %vm3168, %v3163, %v2947
    %s3174 = smul.u32 12, 4
    %s3175 = smul.addr %s3174, 8
    %s3176 = scalar_lea.vmem [#allocation2], %s3175
    %v3177 = vld [vmem:[%s3176] sm:$0xff]
    %v3178 = vld [vmem:[%s3176 + $0x8] sm:$0xff]
    %v3179 = vld [vmem:[%s3176 + $0x10] sm:$0xff]
    %v3180 = vld [vmem:[%s3176 + $0x18] sm:$0xff]
    %v3181 = vld [vmem:[#allocation5] sm:$0xff]
    %v3182 = vld [vmem:[#allocation5 + $0x8] sm:$0xff]
    %v3183 = vld [vmem:[#allocation5 + $0x10] sm:$0xff]
    %v3184 = vld [vmem:[#allocation5 + $0x18] sm:$0xff]
    %v3185 = vld [vmem:[#allocation5 + $0x20] sm:$0xff]
    %v3186 = vld [vmem:[#allocation5 + $0x28] sm:$0xff]
    %v3187 = vld [vmem:[#allocation5 + $0x30] sm:$0xff]
    %v3188 = vld [vmem:[#allocation5 + $0x38] sm:$0xff]
    %v3189 = vld [vmem:[#allocation5 + $0x40] sm:$0xff]
    %v3190 = vld [vmem:[#allocation5 + $0x48] sm:$0xff]
    %v3191 = vld [vmem:[#allocation5 + $0x50] sm:$0xff]
    %v3192 = vld [vmem:[#allocation5 + $0x58] sm:$0xff]
    %v3193 = vld [vmem:[#allocation5 + $0x60] sm:$0xff]
    %v3194 = vld [vmem:[#allocation5 + $0x68] sm:$0xff]
    %v3195 = vld [vmem:[#allocation5 + $0x70] sm:$0xff]
    %v3196 = vld [vmem:[#allocation5 + $0x78] sm:$0xff]
    %v3197 = vld [vmem:[#allocation5 + $0x80] sm:$0xff]
    %v3198 = vld [vmem:[#allocation5 + $0x88] sm:$0xff]
    %v3199 = vld [vmem:[#allocation5 + $0x90] sm:$0xff]
    %v3200 = vld [vmem:[#allocation5 + $0x98] sm:$0xff]
    %v3201 = vld [vmem:[#allocation5 + $0xa0] sm:$0xff]
    %v3202 = vld [vmem:[#allocation5 + $0xa8] sm:$0xff]
    %v3203 = vld [vmem:[#allocation5 + $0xb0] sm:$0xff]
    %v3204 = vld [vmem:[#allocation5 + $0xb8] sm:$0xff]
    %v3205 = vld [vmem:[#allocation5 + $0xc0] sm:$0xff]
    %v3206 = vld [vmem:[#allocation5 + $0xc8] sm:$0xff]
    %v3207 = vld [vmem:[#allocation5 + $0xd0] sm:$0xff]
    %v3208 = vld [vmem:[#allocation5 + $0xd8] sm:$0xff]
    %v3209 = vld [vmem:[#allocation5 + $0xe0] sm:$0xff]
    %v3210 = vld [vmem:[#allocation5 + $0xe8] sm:$0xff]
    %v3211 = vld [vmem:[#allocation5 + $0xf0] sm:$0xff]
    %v3212 = vld [vmem:[#allocation5 + $0xf8] sm:$0xff]
    %v3213 = vld [vmem:[#allocation5 + $0x100] sm:$0xff]
    %v3214 = vld [vmem:[#allocation5 + $0x108] sm:$0xff]
    %v3215 = vld [vmem:[#allocation5 + $0x110] sm:$0xff]
    %v3216 = vld [vmem:[#allocation5 + $0x118] sm:$0xff]
    %v3217 = vld [vmem:[#allocation5 + $0x120] sm:$0xff]
    %v3218 = vld [vmem:[#allocation5 + $0x128] sm:$0xff]
    %v3219 = vld [vmem:[#allocation5 + $0x130] sm:$0xff]
    %v3220 = vld [vmem:[#allocation5 + $0x138] sm:$0xff]
    %v3221 = vld [vmem:[#allocation5 + $0x140] sm:$0xff]
    %v3222 = vld [vmem:[#allocation5 + $0x148] sm:$0xff]
    %v3223 = vld [vmem:[#allocation5 + $0x150] sm:$0xff]
    %v3224 = vld [vmem:[#allocation5 + $0x158] sm:$0xff]
    %v3225 = vld [vmem:[#allocation5 + $0x160] sm:$0xff]
    %v3226 = vld [vmem:[#allocation5 + $0x168] sm:$0xff]
    %v3227 = vld [vmem:[#allocation5 + $0x170] sm:$0xff]
    %v3228 = vld [vmem:[#allocation5 + $0x178] sm:$0xff]
    %v3229 = vld [vmem:[#allocation5 + $0x180] sm:$0xff]
    %v3230 = vld [vmem:[#allocation5 + $0x188] sm:$0xff]
    %v3231 = vld [vmem:[#allocation5 + $0x190] sm:$0xff]
    %v3232 = vld [vmem:[#allocation5 + $0x198] sm:$0xff]
    %v3233 = vld [vmem:[#allocation5 + $0x1a0] sm:$0xff]
    %v3234 = vld [vmem:[#allocation5 + $0x1a8] sm:$0xff]
    %v3235 = vld [vmem:[#allocation5 + $0x1b0] sm:$0xff]
    %v3236 = vld [vmem:[#allocation5 + $0x1b8] sm:$0xff]
    %v3237 = vld [vmem:[#allocation5 + $0x1c0] sm:$0xff]
    %v3238 = vld [vmem:[#allocation5 + $0x1c8] sm:$0xff]
    %v3239 = vld [vmem:[#allocation5 + $0x1d0] sm:$0xff]
    %v3240 = vld [vmem:[#allocation5 + $0x1d8] sm:$0xff]
    %v3241 = vld [vmem:[#allocation5 + $0x1e0] sm:$0xff]
    %v3242 = vld [vmem:[#allocation5 + $0x1e8] sm:$0xff]
    %v3243 = vld [vmem:[#allocation5 + $0x1f0] sm:$0xff]
    %v3244 = vld [vmem:[#allocation5 + $0x1f8] sm:$0xff]
    %3245 = vmatpush.msra.mxu0 %v3241
    %3246 = vmatpush.msra.mxu0 %v3237
    %3247 = vmatpush.msra.mxu0 %v3233
    %3248 = vmatpush.msra.mxu0 %v3229
    %3249 = vmatpush.msra.mxu0 %v3225
    %3250 = vmatpush.msra.mxu0 %v3221
    %3251 = vmatpush.msra.mxu0 %v3217
    %3252 = vmatpush.msra.mxu0 %v3213
    %3253 = vmatpush.msra.mxu0 %v3209
    %3254 = vmatpush.msra.mxu0 %v3205
    %3255 = vmatpush.msra.mxu0 %v3201
    %3256 = vmatpush.msra.mxu0 %v3197
    %3257 = vmatpush.msra.mxu0 %v3193
    %3258 = vmatpush.msra.mxu0 %v3189
    %3259 = vmatpush.msra.mxu0 %v3185
    %3260 = vmatpush.msra.mxu0 %v3181
    %3261 = vmatmul.f32.gmra.mxu0 %v3172
    %v3262 = vpop.f32.mrf.mxu0
    %v3263 = vadd.f32 0.0, %v3262
    %3264 = vdwg.mxu0
    %3265 = vmatpush.msra.mxu0 %v3242
    %3266 = vmatpush.msra.mxu0 %v3238
    %3267 = vmatpush.msra.mxu0 %v3234
    %3268 = vmatpush.msra.mxu0 %v3230
    %3269 = vmatpush.msra.mxu0 %v3226
    %3270 = vmatpush.msra.mxu0 %v3222
    %3271 = vmatpush.msra.mxu0 %v3218
    %3272 = vmatpush.msra.mxu0 %v3214
    %3273 = vmatpush.msra.mxu0 %v3210
    %3274 = vmatpush.msra.mxu0 %v3206
    %3275 = vmatpush.msra.mxu0 %v3202
    %3276 = vmatpush.msra.mxu0 %v3198
    %3277 = vmatpush.msra.mxu0 %v3194
    %3278 = vmatpush.msra.mxu0 %v3190
    %3279 = vmatpush.msra.mxu0 %v3186
    %3280 = vmatpush.msra.mxu0 %v3182
    %3281 = vmatmul.f32.gmra.mxu0 %v3172
    %v3282 = vpop.f32.mrf.mxu0
    %v3283 = vadd.f32 0.0, %v3282
    %3284 = vdwg.mxu0
    %3285 = vmatpush.msra.mxu0 %v3243
    %3286 = vmatpush.msra.mxu0 %v3239
    %3287 = vmatpush.msra.mxu0 %v3235
    %3288 = vmatpush.msra.mxu0 %v3231
    %3289 = vmatpush.msra.mxu0 %v3227
    %3290 = vmatpush.msra.mxu0 %v3223
    %3291 = vmatpush.msra.mxu0 %v3219
    %3292 = vmatpush.msra.mxu0 %v3215
    %3293 = vmatpush.msra.mxu0 %v3211
    %3294 = vmatpush.msra.mxu0 %v3207
    %3295 = vmatpush.msra.mxu0 %v3203
    %3296 = vmatpush.msra.mxu0 %v3199
    %3297 = vmatpush.msra.mxu0 %v3195
    %3298 = vmatpush.msra.mxu0 %v3191
    %3299 = vmatpush.msra.mxu0 %v3187
    %3300 = vmatpush.msra.mxu0 %v3183
    %3301 = vmatmul.f32.gmra.mxu0 %v3172
    %v3302 = vpop.f32.mrf.mxu0
    %v3303 = vadd.f32 0.0, %v3302
    %3304 = vdwg.mxu0
    %3305 = vmatpush.msra.mxu0 %v3244
    %3306 = vmatpush.msra.mxu0 %v3240
    %3307 = vmatpush.msra.mxu0 %v3236
    %3308 = vmatpush.msra.mxu0 %v3232
    %3309 = vmatpush.msra.mxu0 %v3228
    %3310 = vmatpush.msra.mxu0 %v3224
    %3311 = vmatpush.msra.mxu0 %v3220
    %3312 = vmatpush.msra.mxu0 %v3216
    %3313 = vmatpush.msra.mxu0 %v3212
    %3314 = vmatpush.msra.mxu0 %v3208
    %3315 = vmatpush.msra.mxu0 %v3204
    %3316 = vmatpush.msra.mxu0 %v3200
    %3317 = vmatpush.msra.mxu0 %v3196
    %3318 = vmatpush.msra.mxu0 %v3192
    %3319 = vmatpush.msra.mxu0 %v3188
    %3320 = vmatpush.msra.mxu0 %v3184
    %3321 = vmatmul.f32.gmra.mxu0 %v3172
    %v3322 = vpop.f32.mrf.mxu0
    %v3323 = vadd.f32 0.0, %v3322
    %3324 = vdwg.mxu0
    %v3325 = vadd.f32 %v3177, %v3263
    %v3326 = vadd.f32 %v3178, %v3283
    %v3327 = vadd.f32 %v3179, %v3303
    %v3328 = vadd.f32 %v3180, %v3323
    %v3329 = vxor.u32 %v3325, 2147483648
    %v3330 = vmul.f32 %v3329, 1.442695
    %v3331 = vpow.pop %v3330
    %v3332 = vadd.f32 %v3331, 1.0
    %v3333 = vrcp.pop %v3332
    %v3334 = vmul.f32 %v3332, %v3333
    %v3335 = vsub.f32 1.0, %v3334
    %v3336 = vmul.f32 %v3333, %v3335
    %v3337 = vadd.f32 %v3333, %v3336
    %vm3338 = vweird.f32 %v3332
    %vm3339 = vweird.f32 %v3333
    %vm3340 = vmor %vm3338, %vm3339
    %v3341 = vsel %vm3340, %v3333, %v3337
    %v3342 = vand.u32 2147483647, %v3332
    %vm3343 = vcmp.eq.f32.partialorder %v3342, 8.507059e+37
    %v3344 = vand.u32 %v3332, 2147483648
    %v3345 = vor.u32 1.1754944e-38, %v3344
    %v3346 = vsel %vm3343, %v3345, %v3341
    %v3347 = vmul.f32 1.0, %v3346
    %v3348 = vxor.u32 %v3326, 2147483648
    %v3349 = vmul.f32 %v3348, 1.442695
    %v3350 = vpow.pop %v3349
    %v3351 = vadd.f32 %v3350, 1.0
    %v3352 = vrcp.pop %v3351
    %v3353 = vmul.f32 %v3351, %v3352
    %v3354 = vsub.f32 1.0, %v3353
    %v3355 = vmul.f32 %v3352, %v3354
    %v3356 = vadd.f32 %v3352, %v3355
    %vm3357 = vweird.f32 %v3351
    %vm3358 = vweird.f32 %v3352
    %vm3359 = vmor %vm3357, %vm3358
    %v3360 = vsel %vm3359, %v3352, %v3356
    %v3361 = vand.u32 2147483647, %v3351
    %vm3362 = vcmp.eq.f32.partialorder %v3361, 8.507059e+37
    %v3363 = vand.u32 %v3351, 2147483648
    %v3364 = vor.u32 1.1754944e-38, %v3363
    %v3365 = vsel %vm3362, %v3364, %v3360
    %v3366 = vmul.f32 1.0, %v3365
    %v3367 = vtanh.pop %v3327
    %v3368 = vxor.u32 %v3328, 2147483648
    %v3369 = vmul.f32 %v3368, 1.442695
    %v3370 = vpow.pop %v3369
    %v3371 = vadd.f32 %v3370, 1.0
    %v3372 = vrcp.pop %v3371
    %v3373 = vmul.f32 %v3371, %v3372
    %v3374 = vsub.f32 1.0, %v3373
    %v3375 = vmul.f32 %v3372, %v3374
    %v3376 = vadd.f32 %v3372, %v3375
    %vm3377 = vweird.f32 %v3371
    %vm3378 = vweird.f32 %v3372
    %vm3379 = vmor %vm3377, %vm3378
    %v3380 = vsel %vm3379, %v3372, %v3376
    %v3381 = vand.u32 2147483647, %v3371
    %vm3382 = vcmp.eq.f32.partialorder %v3381, 8.507059e+37
    %v3383 = vand.u32 %v3371, 2147483648
    %v3384 = vor.u32 1.1754944e-38, %v3383
    %v3385 = vsel %vm3382, %v3384, %v3380
    %v3386 = vmul.f32 1.0, %v3385
    %v3387 = vmul.f32 %v3366, %v3173
    %v3388 = vmul.f32 %v3347, %v3367
    %v3389 = vadd.f32 %v3387, %v3388
    %v3390 = vtanh.pop %v3389
    %v3391 = vmul.f32 %v3386, %v3390
    %s3392 = sadd.s32 %s461, 12
    %v3393 = vstv %s3392
    %vm3394 = vcmp.lt.s32.totalorder %v3393, %v460
    %v3395 = vsel %vm3394, %v3391, 0.0
    %s3396 = scalar_lea.vmem %s5, 96
    %3397 = vst [vmem:[%s3396] sm:$0xff] %v3395
    %v3398 = vsel %vm3394, %v3391, %v3172
    %v3399 = vsel %vm3394, %v3389, %v3173
    %s3400 = smul.u32 13, 4
    %s3401 = smul.addr %s3400, 8
    %s3402 = scalar_lea.vmem [#allocation2], %s3401
    %v3403 = vld [vmem:[%s3402] sm:$0xff]
    %v3404 = vld [vmem:[%s3402 + $0x8] sm:$0xff]
    %v3405 = vld [vmem:[%s3402 + $0x10] sm:$0xff]
    %v3406 = vld [vmem:[%s3402 + $0x18] sm:$0xff]
    %v3407 = vld [vmem:[#allocation5] sm:$0xff]
    %v3408 = vld [vmem:[#allocation5 + $0x8] sm:$0xff]
    %v3409 = vld [vmem:[#allocation5 + $0x10] sm:$0xff]
    %v3410 = vld [vmem:[#allocation5 + $0x18] sm:$0xff]
    %v3411 = vld [vmem:[#allocation5 + $0x20] sm:$0xff]
    %v3412 = vld [vmem:[#allocation5 + $0x28] sm:$0xff]
    %v3413 = vld [vmem:[#allocation5 + $0x30] sm:$0xff]
    %v3414 = vld [vmem:[#allocation5 + $0x38] sm:$0xff]
    %v3415 = vld [vmem:[#allocation5 + $0x40] sm:$0xff]
    %v3416 = vld [vmem:[#allocation5 + $0x48] sm:$0xff]
    %v3417 = vld [vmem:[#allocation5 + $0x50] sm:$0xff]
    %v3418 = vld [vmem:[#allocation5 + $0x58] sm:$0xff]
    %v3419 = vld [vmem:[#allocation5 + $0x60] sm:$0xff]
    %v3420 = vld [vmem:[#allocation5 + $0x68] sm:$0xff]
    %v3421 = vld [vmem:[#allocation5 + $0x70] sm:$0xff]
    %v3422 = vld [vmem:[#allocation5 + $0x78] sm:$0xff]
    %v3423 = vld [vmem:[#allocation5 + $0x80] sm:$0xff]
    %v3424 = vld [vmem:[#allocation5 + $0x88] sm:$0xff]
    %v3425 = vld [vmem:[#allocation5 + $0x90] sm:$0xff]
    %v3426 = vld [vmem:[#allocation5 + $0x98] sm:$0xff]
    %v3427 = vld [vmem:[#allocation5 + $0xa0] sm:$0xff]
    %v3428 = vld [vmem:[#allocation5 + $0xa8] sm:$0xff]
    %v3429 = vld [vmem:[#allocation5 + $0xb0] sm:$0xff]
    %v3430 = vld [vmem:[#allocation5 + $0xb8] sm:$0xff]
    %v3431 = vld [vmem:[#allocation5 + $0xc0] sm:$0xff]
    %v3432 = vld [vmem:[#allocation5 + $0xc8] sm:$0xff]
    %v3433 = vld [vmem:[#allocation5 + $0xd0] sm:$0xff]
    %v3434 = vld [vmem:[#allocation5 + $0xd8] sm:$0xff]
    %v3435 = vld [vmem:[#allocation5 + $0xe0] sm:$0xff]
    %v3436 = vld [vmem:[#allocation5 + $0xe8] sm:$0xff]
    %v3437 = vld [vmem:[#allocation5 + $0xf0] sm:$0xff]
    %v3438 = vld [vmem:[#allocation5 + $0xf8] sm:$0xff]
    %v3439 = vld [vmem:[#allocation5 + $0x100] sm:$0xff]
    %v3440 = vld [vmem:[#allocation5 + $0x108] sm:$0xff]
    %v3441 = vld [vmem:[#allocation5 + $0x110] sm:$0xff]
    %v3442 = vld [vmem:[#allocation5 + $0x118] sm:$0xff]
    %v3443 = vld [vmem:[#allocation5 + $0x120] sm:$0xff]
    %v3444 = vld [vmem:[#allocation5 + $0x128] sm:$0xff]
    %v3445 = vld [vmem:[#allocation5 + $0x130] sm:$0xff]
    %v3446 = vld [vmem:[#allocation5 + $0x138] sm:$0xff]
    %v3447 = vld [vmem:[#allocation5 + $0x140] sm:$0xff]
    %v3448 = vld [vmem:[#allocation5 + $0x148] sm:$0xff]
    %v3449 = vld [vmem:[#allocation5 + $0x150] sm:$0xff]
    %v3450 = vld [vmem:[#allocation5 + $0x158] sm:$0xff]
    %v3451 = vld [vmem:[#allocation5 + $0x160] sm:$0xff]
    %v3452 = vld [vmem:[#allocation5 + $0x168] sm:$0xff]
    %v3453 = vld [vmem:[#allocation5 + $0x170] sm:$0xff]
    %v3454 = vld [vmem:[#allocation5 + $0x178] sm:$0xff]
    %v3455 = vld [vmem:[#allocation5 + $0x180] sm:$0xff]
    %v3456 = vld [vmem:[#allocation5 + $0x188] sm:$0xff]
    %v3457 = vld [vmem:[#allocation5 + $0x190] sm:$0xff]
    %v3458 = vld [vmem:[#allocation5 + $0x198] sm:$0xff]
    %v3459 = vld [vmem:[#allocation5 + $0x1a0] sm:$0xff]
    %v3460 = vld [vmem:[#allocation5 + $0x1a8] sm:$0xff]
    %v3461 = vld [vmem:[#allocation5 + $0x1b0] sm:$0xff]
    %v3462 = vld [vmem:[#allocation5 + $0x1b8] sm:$0xff]
    %v3463 = vld [vmem:[#allocation5 + $0x1c0] sm:$0xff]
    %v3464 = vld [vmem:[#allocation5 + $0x1c8] sm:$0xff]
    %v3465 = vld [vmem:[#allocation5 + $0x1d0] sm:$0xff]
    %v3466 = vld [vmem:[#allocation5 + $0x1d8] sm:$0xff]
    %v3467 = vld [vmem:[#allocation5 + $0x1e0] sm:$0xff]
    %v3468 = vld [vmem:[#allocation5 + $0x1e8] sm:$0xff]
    %v3469 = vld [vmem:[#allocation5 + $0x1f0] sm:$0xff]
    %v3470 = vld [vmem:[#allocation5 + $0x1f8] sm:$0xff]
    %3471 = vmatpush.msra.mxu0 %v3467
    %3472 = vmatpush.msra.mxu0 %v3463
    %3473 = vmatpush.msra.mxu0 %v3459
    %3474 = vmatpush.msra.mxu0 %v3455
    %3475 = vmatpush.msra.mxu0 %v3451
    %3476 = vmatpush.msra.mxu0 %v3447
    %3477 = vmatpush.msra.mxu0 %v3443
    %3478 = vmatpush.msra.mxu0 %v3439
    %3479 = vmatpush.msra.mxu0 %v3435
    %3480 = vmatpush.msra.mxu0 %v3431
    %3481 = vmatpush.msra.mxu0 %v3427
    %3482 = vmatpush.msra.mxu0 %v3423
    %3483 = vmatpush.msra.mxu0 %v3419
    %3484 = vmatpush.msra.mxu0 %v3415
    %3485 = vmatpush.msra.mxu0 %v3411
    %3486 = vmatpush.msra.mxu0 %v3407
    %3487 = vmatmul.f32.gmra.mxu0 %v3398
    %v3488 = vpop.f32.mrf.mxu0
    %v3489 = vadd.f32 0.0, %v3488
    %3490 = vdwg.mxu0
    %3491 = vmatpush.msra.mxu0 %v3468
    %3492 = vmatpush.msra.mxu0 %v3464
    %3493 = vmatpush.msra.mxu0 %v3460
    %3494 = vmatpush.msra.mxu0 %v3456
    %3495 = vmatpush.msra.mxu0 %v3452
    %3496 = vmatpush.msra.mxu0 %v3448
    %3497 = vmatpush.msra.mxu0 %v3444
    %3498 = vmatpush.msra.mxu0 %v3440
    %3499 = vmatpush.msra.mxu0 %v3436
    %3500 = vmatpush.msra.mxu0 %v3432
    %3501 = vmatpush.msra.mxu0 %v3428
    %3502 = vmatpush.msra.mxu0 %v3424
    %3503 = vmatpush.msra.mxu0 %v3420
    %3504 = vmatpush.msra.mxu0 %v3416
    %3505 = vmatpush.msra.mxu0 %v3412
    %3506 = vmatpush.msra.mxu0 %v3408
    %3507 = vmatmul.f32.gmra.mxu0 %v3398
    %v3508 = vpop.f32.mrf.mxu0
    %v3509 = vadd.f32 0.0, %v3508
    %3510 = vdwg.mxu0
    %3511 = vmatpush.msra.mxu0 %v3469
    %3512 = vmatpush.msra.mxu0 %v3465
    %3513 = vmatpush.msra.mxu0 %v3461
    %3514 = vmatpush.msra.mxu0 %v3457
    %3515 = vmatpush.msra.mxu0 %v3453
    %3516 = vmatpush.msra.mxu0 %v3449
    %3517 = vmatpush.msra.mxu0 %v3445
    %3518 = vmatpush.msra.mxu0 %v3441
    %3519 = vmatpush.msra.mxu0 %v3437
    %3520 = vmatpush.msra.mxu0 %v3433
    %3521 = vmatpush.msra.mxu0 %v3429
    %3522 = vmatpush.msra.mxu0 %v3425
    %3523 = vmatpush.msra.mxu0 %v3421
    %3524 = vmatpush.msra.mxu0 %v3417
    %3525 = vmatpush.msra.mxu0 %v3413
    %3526 = vmatpush.msra.mxu0 %v3409
    %3527 = vmatmul.f32.gmra.mxu0 %v3398
    %v3528 = vpop.f32.mrf.mxu0
    %v3529 = vadd.f32 0.0, %v3528
    %3530 = vdwg.mxu0
    %3531 = vmatpush.msra.mxu0 %v3470
    %3532 = vmatpush.msra.mxu0 %v3466
    %3533 = vmatpush.msra.mxu0 %v3462
    %3534 = vmatpush.msra.mxu0 %v3458
    %3535 = vmatpush.msra.mxu0 %v3454
    %3536 = vmatpush.msra.mxu0 %v3450
    %3537 = vmatpush.msra.mxu0 %v3446
    %3538 = vmatpush.msra.mxu0 %v3442
    %3539 = vmatpush.msra.mxu0 %v3438
    %3540 = vmatpush.msra.mxu0 %v3434
    %3541 = vmatpush.msra.mxu0 %v3430
    %3542 = vmatpush.msra.mxu0 %v3426
    %3543 = vmatpush.msra.mxu0 %v3422
    %3544 = vmatpush.msra.mxu0 %v3418
    %3545 = vmatpush.msra.mxu0 %v3414
    %3546 = vmatpush.msra.mxu0 %v3410
    %3547 = vmatmul.f32.gmra.mxu0 %v3398
    %v3548 = vpop.f32.mrf.mxu0
    %v3549 = vadd.f32 0.0, %v3548
    %3550 = vdwg.mxu0
    %v3551 = vadd.f32 %v3403, %v3489
    %v3552 = vadd.f32 %v3404, %v3509
    %v3553 = vadd.f32 %v3405, %v3529
    %v3554 = vadd.f32 %v3406, %v3549
    %v3555 = vxor.u32 %v3551, 2147483648
    %v3556 = vmul.f32 %v3555, 1.442695
    %v3557 = vpow.pop %v3556
    %v3558 = vadd.f32 %v3557, 1.0
    %v3559 = vrcp.pop %v3558
    %v3560 = vmul.f32 %v3558, %v3559
    %v3561 = vsub.f32 1.0, %v3560
    %v3562 = vmul.f32 %v3559, %v3561
    %v3563 = vadd.f32 %v3559, %v3562
    %vm3564 = vweird.f32 %v3558
    %vm3565 = vweird.f32 %v3559
    %vm3566 = vmor %vm3564, %vm3565
    %v3567 = vsel %vm3566, %v3559, %v3563
    %v3568 = vand.u32 2147483647, %v3558
    %vm3569 = vcmp.eq.f32.partialorder %v3568, 8.507059e+37
    %v3570 = vand.u32 %v3558, 2147483648
    %v3571 = vor.u32 1.1754944e-38, %v3570
    %v3572 = vsel %vm3569, %v3571, %v3567
    %v3573 = vmul.f32 1.0, %v3572
    %v3574 = vxor.u32 %v3552, 2147483648
    %v3575 = vmul.f32 %v3574, 1.442695
    %v3576 = vpow.pop %v3575
    %v3577 = vadd.f32 %v3576, 1.0
    %v3578 = vrcp.pop %v3577
    %v3579 = vmul.f32 %v3577, %v3578
    %v3580 = vsub.f32 1.0, %v3579
    %v3581 = vmul.f32 %v3578, %v3580
    %v3582 = vadd.f32 %v3578, %v3581
    %vm3583 = vweird.f32 %v3577
    %vm3584 = vweird.f32 %v3578
    %vm3585 = vmor %vm3583, %vm3584
    %v3586 = vsel %vm3585, %v3578, %v3582
    %v3587 = vand.u32 2147483647, %v3577
    %vm3588 = vcmp.eq.f32.partialorder %v3587, 8.507059e+37
    %v3589 = vand.u32 %v3577, 2147483648
    %v3590 = vor.u32 1.1754944e-38, %v3589
    %v3591 = vsel %vm3588, %v3590, %v3586
    %v3592 = vmul.f32 1.0, %v3591
    %v3593 = vtanh.pop %v3553
    %v3594 = vxor.u32 %v3554, 2147483648
    %v3595 = vmul.f32 %v3594, 1.442695
    %v3596 = vpow.pop %v3595
    %v3597 = vadd.f32 %v3596, 1.0
    %v3598 = vrcp.pop %v3597
    %v3599 = vmul.f32 %v3597, %v3598
    %v3600 = vsub.f32 1.0, %v3599
    %v3601 = vmul.f32 %v3598, %v3600
    %v3602 = vadd.f32 %v3598, %v3601
    %vm3603 = vweird.f32 %v3597
    %vm3604 = vweird.f32 %v3598
    %vm3605 = vmor %vm3603, %vm3604
    %v3606 = vsel %vm3605, %v3598, %v3602
    %v3607 = vand.u32 2147483647, %v3597
    %vm3608 = vcmp.eq.f32.partialorder %v3607, 8.507059e+37
    %v3609 = vand.u32 %v3597, 2147483648
    %v3610 = vor.u32 1.1754944e-38, %v3609
    %v3611 = vsel %vm3608, %v3610, %v3606
    %v3612 = vmul.f32 1.0, %v3611
    %v3613 = vmul.f32 %v3592, %v3399
    %v3614 = vmul.f32 %v3573, %v3593
    %v3615 = vadd.f32 %v3613, %v3614
    %v3616 = vtanh.pop %v3615
    %v3617 = vmul.f32 %v3612, %v3616
    %s3618 = sadd.s32 %s461, 13
    %v3619 = vstv %s3618
    %vm3620 = vcmp.lt.s32.totalorder %v3619, %v460
    %v3621 = vsel %vm3620, %v3617, 0.0
    %s3622 = scalar_lea.vmem %s5, 104
    %3623 = vst [vmem:[%s3622] sm:$0xff] %v3621
    %v3624 = vsel %vm3620, %v3617, %v3398
    %v3625 = vsel %vm3620, %v3615, %v3399
    %s3626 = smul.u32 14, 4
    %s3627 = smul.addr %s3626, 8
    %s3628 = scalar_lea.vmem [#allocation2], %s3627
    %v3629 = vld [vmem:[%s3628] sm:$0xff]
    %v3630 = vld [vmem:[%s3628 + $0x8] sm:$0xff]
    %v3631 = vld [vmem:[%s3628 + $0x10] sm:$0xff]
    %v3632 = vld [vmem:[%s3628 + $0x18] sm:$0xff]
    %v3633 = vld [vmem:[#allocation5] sm:$0xff]
    %v3634 = vld [vmem:[#allocation5 + $0x8] sm:$0xff]
    %v3635 = vld [vmem:[#allocation5 + $0x10] sm:$0xff]
    %v3636 = vld [vmem:[#allocation5 + $0x18] sm:$0xff]
    %v3637 = vld [vmem:[#allocation5 + $0x20] sm:$0xff]
    %v3638 = vld [vmem:[#allocation5 + $0x28] sm:$0xff]
    %v3639 = vld [vmem:[#allocation5 + $0x30] sm:$0xff]
    %v3640 = vld [vmem:[#allocation5 + $0x38] sm:$0xff]
    %v3641 = vld [vmem:[#allocation5 + $0x40] sm:$0xff]
    %v3642 = vld [vmem:[#allocation5 + $0x48] sm:$0xff]
    %v3643 = vld [vmem:[#allocation5 + $0x50] sm:$0xff]
    %v3644 = vld [vmem:[#allocation5 + $0x58] sm:$0xff]
    %v3645 = vld [vmem:[#allocation5 + $0x60] sm:$0xff]
    %v3646 = vld [vmem:[#allocation5 + $0x68] sm:$0xff]
    %v3647 = vld [vmem:[#allocation5 + $0x70] sm:$0xff]
    %v3648 = vld [vmem:[#allocation5 + $0x78] sm:$0xff]
    %v3649 = vld [vmem:[#allocation5 + $0x80] sm:$0xff]
    %v3650 = vld [vmem:[#allocation5 + $0x88] sm:$0xff]
    %v3651 = vld [vmem:[#allocation5 + $0x90] sm:$0xff]
    %v3652 = vld [vmem:[#allocation5 + $0x98] sm:$0xff]
    %v3653 = vld [vmem:[#allocation5 + $0xa0] sm:$0xff]
    %v3654 = vld [vmem:[#allocation5 + $0xa8] sm:$0xff]
    %v3655 = vld [vmem:[#allocation5 + $0xb0] sm:$0xff]
    %v3656 = vld [vmem:[#allocation5 + $0xb8] sm:$0xff]
    %v3657 = vld [vmem:[#allocation5 + $0xc0] sm:$0xff]
    %v3658 = vld [vmem:[#allocation5 + $0xc8] sm:$0xff]
    %v3659 = vld [vmem:[#allocation5 + $0xd0] sm:$0xff]
    %v3660 = vld [vmem:[#allocation5 + $0xd8] sm:$0xff]
    %v3661 = vld [vmem:[#allocation5 + $0xe0] sm:$0xff]
    %v3662 = vld [vmem:[#allocation5 + $0xe8] sm:$0xff]
    %v3663 = vld [vmem:[#allocation5 + $0xf0] sm:$0xff]
    %v3664 = vld [vmem:[#allocation5 + $0xf8] sm:$0xff]
    %v3665 = vld [vmem:[#allocation5 + $0x100] sm:$0xff]
    %v3666 = vld [vmem:[#allocation5 + $0x108] sm:$0xff]
    %v3667 = vld [vmem:[#allocation5 + $0x110] sm:$0xff]
    %v3668 = vld [vmem:[#allocation5 + $0x118] sm:$0xff]
    %v3669 = vld [vmem:[#allocation5 + $0x120] sm:$0xff]
    %v3670 = vld [vmem:[#allocation5 + $0x128] sm:$0xff]
    %v3671 = vld [vmem:[#allocation5 + $0x130] sm:$0xff]
    %v3672 = vld [vmem:[#allocation5 + $0x138] sm:$0xff]
    %v3673 = vld [vmem:[#allocation5 + $0x140] sm:$0xff]
    %v3674 = vld [vmem:[#allocation5 + $0x148] sm:$0xff]
    %v3675 = vld [vmem:[#allocation5 + $0x150] sm:$0xff]
    %v3676 = vld [vmem:[#allocation5 + $0x158] sm:$0xff]
    %v3677 = vld [vmem:[#allocation5 + $0x160] sm:$0xff]
    %v3678 = vld [vmem:[#allocation5 + $0x168] sm:$0xff]
    %v3679 = vld [vmem:[#allocation5 + $0x170] sm:$0xff]
    %v3680 = vld [vmem:[#allocation5 + $0x178] sm:$0xff]
    %v3681 = vld [vmem:[#allocation5 + $0x180] sm:$0xff]
    %v3682 = vld [vmem:[#allocation5 + $0x188] sm:$0xff]
    %v3683 = vld [vmem:[#allocation5 + $0x190] sm:$0xff]
    %v3684 = vld [vmem:[#allocation5 + $0x198] sm:$0xff]
    %v3685 = vld [vmem:[#allocation5 + $0x1a0] sm:$0xff]
    %v3686 = vld [vmem:[#allocation5 + $0x1a8] sm:$0xff]
    %v3687 = vld [vmem:[#allocation5 + $0x1b0] sm:$0xff]
    %v3688 = vld [vmem:[#allocation5 + $0x1b8] sm:$0xff]
    %v3689 = vld [vmem:[#allocation5 + $0x1c0] sm:$0xff]
    %v3690 = vld [vmem:[#allocation5 + $0x1c8] sm:$0xff]
    %v3691 = vld [vmem:[#allocation5 + $0x1d0] sm:$0xff]
    %v3692 = vld [vmem:[#allocation5 + $0x1d8] sm:$0xff]
    %v3693 = vld [vmem:[#allocation5 + $0x1e0] sm:$0xff]
    %v3694 = vld [vmem:[#allocation5 + $0x1e8] sm:$0xff]
    %v3695 = vld [vmem:[#allocation5 + $0x1f0] sm:$0xff]
    %v3696 = vld [vmem:[#allocation5 + $0x1f8] sm:$0xff]
    %3697 = vmatpush.msra.mxu0 %v3693
    %3698 = vmatpush.msra.mxu0 %v3689
    %3699 = vmatpush.msra.mxu0 %v3685
    %3700 = vmatpush.msra.mxu0 %v3681
    %3701 = vmatpush.msra.mxu0 %v3677
    %3702 = vmatpush.msra.mxu0 %v3673
    %3703 = vmatpush.msra.mxu0 %v3669
    %3704 = vmatpush.msra.mxu0 %v3665
    %3705 = vmatpush.msra.mxu0 %v3661
    %3706 = vmatpush.msra.mxu0 %v3657
    %3707 = vmatpush.msra.mxu0 %v3653
    %3708 = vmatpush.msra.mxu0 %v3649
    %3709 = vmatpush.msra.mxu0 %v3645
    %3710 = vmatpush.msra.mxu0 %v3641
    %3711 = vmatpush.msra.mxu0 %v3637
    %3712 = vmatpush.msra.mxu0 %v3633
    %3713 = vmatmul.f32.gmra.mxu0 %v3624
    %v3714 = vpop.f32.mrf.mxu0
    %v3715 = vadd.f32 0.0, %v3714
    %3716 = vdwg.mxu0
    %3717 = vmatpush.msra.mxu0 %v3694
    %3718 = vmatpush.msra.mxu0 %v3690
    %3719 = vmatpush.msra.mxu0 %v3686
    %3720 = vmatpush.msra.mxu0 %v3682
    %3721 = vmatpush.msra.mxu0 %v3678
    %3722 = vmatpush.msra.mxu0 %v3674
    %3723 = vmatpush.msra.mxu0 %v3670
    %3724 = vmatpush.msra.mxu0 %v3666
    %3725 = vmatpush.msra.mxu0 %v3662
    %3726 = vmatpush.msra.mxu0 %v3658
    %3727 = vmatpush.msra.mxu0 %v3654
    %3728 = vmatpush.msra.mxu0 %v3650
    %3729 = vmatpush.msra.mxu0 %v3646
    %3730 = vmatpush.msra.mxu0 %v3642
    %3731 = vmatpush.msra.mxu0 %v3638
    %3732 = vmatpush.msra.mxu0 %v3634
    %3733 = vmatmul.f32.gmra.mxu0 %v3624
    %v3734 = vpop.f32.mrf.mxu0
    %v3735 = vadd.f32 0.0, %v3734
    %3736 = vdwg.mxu0
    %3737 = vmatpush.msra.mxu0 %v3695
    %3738 = vmatpush.msra.mxu0 %v3691
    %3739 = vmatpush.msra.mxu0 %v3687
    %3740 = vmatpush.msra.mxu0 %v3683
    %3741 = vmatpush.msra.mxu0 %v3679
    %3742 = vmatpush.msra.mxu0 %v3675
    %3743 = vmatpush.msra.mxu0 %v3671
    %3744 = vmatpush.msra.mxu0 %v3667
    %3745 = vmatpush.msra.mxu0 %v3663
    %3746 = vmatpush.msra.mxu0 %v3659
    %3747 = vmatpush.msra.mxu0 %v3655
    %3748 = vmatpush.msra.mxu0 %v3651
    %3749 = vmatpush.msra.mxu0 %v3647
    %3750 = vmatpush.msra.mxu0 %v3643
    %3751 = vmatpush.msra.mxu0 %v3639
    %3752 = vmatpush.msra.mxu0 %v3635
    %3753 = vmatmul.f32.gmra.mxu0 %v3624
    %v3754 = vpop.f32.mrf.mxu0
    %v3755 = vadd.f32 0.0, %v3754
    %3756 = vdwg.mxu0
    %3757 = vmatpush.msra.mxu0 %v3696
    %3758 = vmatpush.msra.mxu0 %v3692
    %3759 = vmatpush.msra.mxu0 %v3688
    %3760 = vmatpush.msra.mxu0 %v3684
    %3761 = vmatpush.msra.mxu0 %v3680
    %3762 = vmatpush.msra.mxu0 %v3676
    %3763 = vmatpush.msra.mxu0 %v3672
    %3764 = vmatpush.msra.mxu0 %v3668
    %3765 = vmatpush.msra.mxu0 %v3664
    %3766 = vmatpush.msra.mxu0 %v3660
    %3767 = vmatpush.msra.mxu0 %v3656
    %3768 = vmatpush.msra.mxu0 %v3652
    %3769 = vmatpush.msra.mxu0 %v3648
    %3770 = vmatpush.msra.mxu0 %v3644
    %3771 = vmatpush.msra.mxu0 %v3640
    %3772 = vmatpush.msra.mxu0 %v3636
    %3773 = vmatmul.f32.gmra.mxu0 %v3624
    %v3774 = vpop.f32.mrf.mxu0
    %v3775 = vadd.f32 0.0, %v3774
    %3776 = vdwg.mxu0
    %v3777 = vadd.f32 %v3629, %v3715
    %v3778 = vadd.f32 %v3630, %v3735
    %v3779 = vadd.f32 %v3631, %v3755
    %v3780 = vadd.f32 %v3632, %v3775
    %v3781 = vxor.u32 %v3777, 2147483648
    %v3782 = vmul.f32 %v3781, 1.442695
    %v3783 = vpow.pop %v3782
    %v3784 = vadd.f32 %v3783, 1.0
    %v3785 = vrcp.pop %v3784
    %v3786 = vmul.f32 %v3784, %v3785
    %v3787 = vsub.f32 1.0, %v3786
    %v3788 = vmul.f32 %v3785, %v3787
    %v3789 = vadd.f32 %v3785, %v3788
    %vm3790 = vweird.f32 %v3784
    %vm3791 = vweird.f32 %v3785
    %vm3792 = vmor %vm3790, %vm3791
    %v3793 = vsel %vm3792, %v3785, %v3789
    %v3794 = vand.u32 2147483647, %v3784
    %vm3795 = vcmp.eq.f32.partialorder %v3794, 8.507059e+37
    %v3796 = vand.u32 %v3784, 2147483648
    %v3797 = vor.u32 1.1754944e-38, %v3796
    %v3798 = vsel %vm3795, %v3797, %v3793
    %v3799 = vmul.f32 1.0, %v3798
    %v3800 = vxor.u32 %v3778, 2147483648
    %v3801 = vmul.f32 %v3800, 1.442695
    %v3802 = vpow.pop %v3801
    %v3803 = vadd.f32 %v3802, 1.0
    %v3804 = vrcp.pop %v3803
    %v3805 = vmul.f32 %v3803, %v3804
    %v3806 = vsub.f32 1.0, %v3805
    %v3807 = vmul.f32 %v3804, %v3806
    %v3808 = vadd.f32 %v3804, %v3807
    %vm3809 = vweird.f32 %v3803
    %vm3810 = vweird.f32 %v3804
    %vm3811 = vmor %vm3809, %vm3810
    %v3812 = vsel %vm3811, %v3804, %v3808
    %v3813 = vand.u32 2147483647, %v3803
    %vm3814 = vcmp.eq.f32.partialorder %v3813, 8.507059e+37
    %v3815 = vand.u32 %v3803, 2147483648
    %v3816 = vor.u32 1.1754944e-38, %v3815
    %v3817 = vsel %vm3814, %v3816, %v3812
    %v3818 = vmul.f32 1.0, %v3817
    %v3819 = vtanh.pop %v3779
    %v3820 = vxor.u32 %v3780, 2147483648
    %v3821 = vmul.f32 %v3820, 1.442695
    %v3822 = vpow.pop %v3821
    %v3823 = vadd.f32 %v3822, 1.0
    %v3824 = vrcp.pop %v3823
    %v3825 = vmul.f32 %v3823, %v3824
    %v3826 = vsub.f32 1.0, %v3825
    %v3827 = vmul.f32 %v3824, %v3826
    %v3828 = vadd.f32 %v3824, %v3827
    %vm3829 = vweird.f32 %v3823
    %vm3830 = vweird.f32 %v3824
    %vm3831 = vmor %vm3829, %vm3830
    %v3832 = vsel %vm3831, %v3824, %v3828
    %v3833 = vand.u32 2147483647, %v3823
    %vm3834 = vcmp.eq.f32.partialorder %v3833, 8.507059e+37
    %v3835 = vand.u32 %v3823, 2147483648
    %v3836 = vor.u32 1.1754944e-38, %v3835
    %v3837 = vsel %vm3834, %v3836, %v3832
    %v3838 = vmul.f32 1.0, %v3837
    %v3839 = vmul.f32 %v3818, %v3625
    %v3840 = vmul.f32 %v3799, %v3819
    %v3841 = vadd.f32 %v3839, %v3840
    %v3842 = vtanh.pop %v3841
    %v3843 = vmul.f32 %v3838, %v3842
    %s3844 = sadd.s32 %s461, 14
    %v3845 = vstv %s3844
    %vm3846 = vcmp.lt.s32.totalorder %v3845, %v460
    %v3847 = vsel %vm3846, %v3843, 0.0
    %s3848 = scalar_lea.vmem %s5, 112
    %3849 = vst [vmem:[%s3848] sm:$0xff] %v3847
    %v3850 = vsel %vm3846, %v3843, %v3624
    %v3851 = vsel %vm3846, %v3841, %v3625
    %s3852 = smul.u32 15, 4
    %s3853 = smul.addr %s3852, 8
    %s3854 = scalar_lea.vmem [#allocation2], %s3853
    %v3855 = vld [vmem:[%s3854] sm:$0xff]
    %v3856 = vld [vmem:[%s3854 + $0x8] sm:$0xff]
    %v3857 = vld [vmem:[%s3854 + $0x10] sm:$0xff]
    %v3858 = vld [vmem:[%s3854 + $0x18] sm:$0xff]
    %v3859 = vld [vmem:[#allocation5] sm:$0xff]
    %v3860 = vld [vmem:[#allocation5 + $0x8] sm:$0xff]
    %v3861 = vld [vmem:[#allocation5 + $0x10] sm:$0xff]
    %v3862 = vld [vmem:[#allocation5 + $0x18] sm:$0xff]
    %v3863 = vld [vmem:[#allocation5 + $0x20] sm:$0xff]
    %v3864 = vld [vmem:[#allocation5 + $0x28] sm:$0xff]
    %v3865 = vld [vmem:[#allocation5 + $0x30] sm:$0xff]
    %v3866 = vld [vmem:[#allocation5 + $0x38] sm:$0xff]
    %v3867 = vld [vmem:[#allocation5 + $0x40] sm:$0xff]
    %v3868 = vld [vmem:[#allocation5 + $0x48] sm:$0xff]
    %v3869 = vld [vmem:[#allocation5 + $0x50] sm:$0xff]
    %v3870 = vld [vmem:[#allocation5 + $0x58] sm:$0xff]
    %v3871 = vld [vmem:[#allocation5 + $0x60] sm:$0xff]
    %v3872 = vld [vmem:[#allocation5 + $0x68] sm:$0xff]
    %v3873 = vld [vmem:[#allocation5 + $0x70] sm:$0xff]
    %v3874 = vld [vmem:[#allocation5 + $0x78] sm:$0xff]
    %v3875 = vld [vmem:[#allocation5 + $0x80] sm:$0xff]
    %v3876 = vld [vmem:[#allocation5 + $0x88] sm:$0xff]
    %v3877 = vld [vmem:[#allocation5 + $0x90] sm:$0xff]
    %v3878 = vld [vmem:[#allocation5 + $0x98] sm:$0xff]
    %v3879 = vld [vmem:[#allocation5 + $0xa0] sm:$0xff]
    %v3880 = vld [vmem:[#allocation5 + $0xa8] sm:$0xff]
    %v3881 = vld [vmem:[#allocation5 + $0xb0] sm:$0xff]
    %v3882 = vld [vmem:[#allocation5 + $0xb8] sm:$0xff]
    %v3883 = vld [vmem:[#allocation5 + $0xc0] sm:$0xff]
    %v3884 = vld [vmem:[#allocation5 + $0xc8] sm:$0xff]
    %v3885 = vld [vmem:[#allocation5 + $0xd0] sm:$0xff]
    %v3886 = vld [vmem:[#allocation5 + $0xd8] sm:$0xff]
    %v3887 = vld [vmem:[#allocation5 + $0xe0] sm:$0xff]
    %v3888 = vld [vmem:[#allocation5 + $0xe8] sm:$0xff]
    %v3889 = vld [vmem:[#allocation5 + $0xf0] sm:$0xff]
    %v3890 = vld [vmem:[#allocation5 + $0xf8] sm:$0xff]
    %v3891 = vld [vmem:[#allocation5 + $0x100] sm:$0xff]
    %v3892 = vld [vmem:[#allocation5 + $0x108] sm:$0xff]
    %v3893 = vld [vmem:[#allocation5 + $0x110] sm:$0xff]
    %v3894 = vld [vmem:[#allocation5 + $0x118] sm:$0xff]
    %v3895 = vld [vmem:[#allocation5 + $0x120] sm:$0xff]
    %v3896 = vld [vmem:[#allocation5 + $0x128] sm:$0xff]
    %v3897 = vld [vmem:[#allocation5 + $0x130] sm:$0xff]
    %v3898 = vld [vmem:[#allocation5 + $0x138] sm:$0xff]
    %v3899 = vld [vmem:[#allocation5 + $0x140] sm:$0xff]
    %v3900 = vld [vmem:[#allocation5 + $0x148] sm:$0xff]
    %v3901 = vld [vmem:[#allocation5 + $0x150] sm:$0xff]
    %v3902 = vld [vmem:[#allocation5 + $0x158] sm:$0xff]
    %v3903 = vld [vmem:[#allocation5 + $0x160] sm:$0xff]
    %v3904 = vld [vmem:[#allocation5 + $0x168] sm:$0xff]
    %v3905 = vld [vmem:[#allocation5 + $0x170] sm:$0xff]
    %v3906 = vld [vmem:[#allocation5 + $0x178] sm:$0xff]
    %v3907 = vld [vmem:[#allocation5 + $0x180] sm:$0xff]
    %v3908 = vld [vmem:[#allocation5 + $0x188] sm:$0xff]
    %v3909 = vld [vmem:[#allocation5 + $0x190] sm:$0xff]
    %v3910 = vld [vmem:[#allocation5 + $0x198] sm:$0xff]
    %v3911 = vld [vmem:[#allocation5 + $0x1a0] sm:$0xff]
    %v3912 = vld [vmem:[#allocation5 + $0x1a8] sm:$0xff]
    %v3913 = vld [vmem:[#allocation5 + $0x1b0] sm:$0xff]
    %v3914 = vld [vmem:[#allocation5 + $0x1b8] sm:$0xff]
    %v3915 = vld [vmem:[#allocation5 + $0x1c0] sm:$0xff]
    %v3916 = vld [vmem:[#allocation5 + $0x1c8] sm:$0xff]
    %v3917 = vld [vmem:[#allocation5 + $0x1d0] sm:$0xff]
    %v3918 = vld [vmem:[#allocation5 + $0x1d8] sm:$0xff]
    %v3919 = vld [vmem:[#allocation5 + $0x1e0] sm:$0xff]
    %v3920 = vld [vmem:[#allocation5 + $0x1e8] sm:$0xff]
    %v3921 = vld [vmem:[#allocation5 + $0x1f0] sm:$0xff]
    %v3922 = vld [vmem:[#allocation5 + $0x1f8] sm:$0xff]
    %3923 = vmatpush.msra.mxu0 %v3919
    %3924 = vmatpush.msra.mxu0 %v3915
    %3925 = vmatpush.msra.mxu0 %v3911
    %3926 = vmatpush.msra.mxu0 %v3907
    %3927 = vmatpush.msra.mxu0 %v3903
    %3928 = vmatpush.msra.mxu0 %v3899
    %3929 = vmatpush.msra.mxu0 %v3895
    %3930 = vmatpush.msra.mxu0 %v3891
    %3931 = vmatpush.msra.mxu0 %v3887
    %3932 = vmatpush.msra.mxu0 %v3883
    %3933 = vmatpush.msra.mxu0 %v3879
    %3934 = vmatpush.msra.mxu0 %v3875
    %3935 = vmatpush.msra.mxu0 %v3871
    %3936 = vmatpush.msra.mxu0 %v3867
    %3937 = vmatpush.msra.mxu0 %v3863
    %3938 = vmatpush.msra.mxu0 %v3859
    %3939 = vmatmul.f32.gmra.mxu0 %v3850
    %v3940 = vpop.f32.mrf.mxu0
    %v3941 = vadd.f32 0.0, %v3940
    %3942 = vdwg.mxu0
    %3943 = vmatpush.msra.mxu0 %v3920
    %3944 = vmatpush.msra.mxu0 %v3916
    %3945 = vmatpush.msra.mxu0 %v3912
    %3946 = vmatpush.msra.mxu0 %v3908
    %3947 = vmatpush.msra.mxu0 %v3904
    %3948 = vmatpush.msra.mxu0 %v3900
    %3949 = vmatpush.msra.mxu0 %v3896
    %3950 = vmatpush.msra.mxu0 %v3892
    %3951 = vmatpush.msra.mxu0 %v3888
    %3952 = vmatpush.msra.mxu0 %v3884
    %3953 = vmatpush.msra.mxu0 %v3880
    %3954 = vmatpush.msra.mxu0 %v3876
    %3955 = vmatpush.msra.mxu0 %v3872
    %3956 = vmatpush.msra.mxu0 %v3868
    %3957 = vmatpush.msra.mxu0 %v3864
    %3958 = vmatpush.msra.mxu0 %v3860
    %3959 = vmatmul.f32.gmra.mxu0 %v3850
    %v3960 = vpop.f32.mrf.mxu0
    %v3961 = vadd.f32 0.0, %v3960
    %3962 = vdwg.mxu0
    %3963 = vmatpush.msra.mxu0 %v3921
    %3964 = vmatpush.msra.mxu0 %v3917
    %3965 = vmatpush.msra.mxu0 %v3913
    %3966 = vmatpush.msra.mxu0 %v3909
    %3967 = vmatpush.msra.mxu0 %v3905
    %3968 = vmatpush.msra.mxu0 %v3901
    %3969 = vmatpush.msra.mxu0 %v3897
    %3970 = vmatpush.msra.mxu0 %v3893
    %3971 = vmatpush.msra.mxu0 %v3889
    %3972 = vmatpush.msra.mxu0 %v3885
    %3973 = vmatpush.msra.mxu0 %v3881
    %3974 = vmatpush.msra.mxu0 %v3877
    %3975 = vmatpush.msra.mxu0 %v3873
    %3976 = vmatpush.msra.mxu0 %v3869
    %3977 = vmatpush.msra.mxu0 %v3865
    %3978 = vmatpush.msra.mxu0 %v3861
    %3979 = vmatmul.f32.gmra.mxu0 %v3850
    %v3980 = vpop.f32.mrf.mxu0
    %v3981 = vadd.f32 0.0, %v3980
    %3982 = vdwg.mxu0
    %3983 = vmatpush.msra.mxu0 %v3922
    %3984 = vmatpush.msra.mxu0 %v3918
    %3985 = vmatpush.msra.mxu0 %v3914
    %3986 = vmatpush.msra.mxu0 %v3910
    %3987 = vmatpush.msra.mxu0 %v3906
    %3988 = vmatpush.msra.mxu0 %v3902
    %3989 = vmatpush.msra.mxu0 %v3898
    %3990 = vmatpush.msra.mxu0 %v3894
    %3991 = vmatpush.msra.mxu0 %v3890
    %3992 = vmatpush.msra.mxu0 %v3886
    %3993 = vmatpush.msra.mxu0 %v3882
    %3994 = vmatpush.msra.mxu0 %v3878
    %3995 = vmatpush.msra.mxu0 %v3874
    %3996 = vmatpush.msra.mxu0 %v3870
    %3997 = vmatpush.msra.mxu0 %v3866
    %3998 = vmatpush.msra.mxu0 %v3862
    %3999 = vmatmul.f32.gmra.mxu0 %v3850
    %v4000 = vpop.f32.mrf.mxu0
    %v4001 = vadd.f32 0.0, %v4000
    %4002 = vdwg.mxu0
    %v4003 = vadd.f32 %v3855, %v3941
    %v4004 = vadd.f32 %v3856, %v3961
    %v4005 = vadd.f32 %v3857, %v3981
    %v4006 = vadd.f32 %v3858, %v4001
    %v4007 = vxor.u32 %v4003, 2147483648
    %v4008 = vmul.f32 %v4007, 1.442695
    %v4009 = vpow.pop %v4008
    %v4010 = vadd.f32 %v4009, 1.0
    %v4011 = vrcp.pop %v4010
    %v4012 = vmul.f32 %v4010, %v4011
    %v4013 = vsub.f32 1.0, %v4012
    %v4014 = vmul.f32 %v4011, %v4013
    %v4015 = vadd.f32 %v4011, %v4014
    %vm4016 = vweird.f32 %v4010
    %vm4017 = vweird.f32 %v4011
    %vm4018 = vmor %vm4016, %vm4017
    %v4019 = vsel %vm4018, %v4011, %v4015
    %v4020 = vand.u32 2147483647, %v4010
    %vm4021 = vcmp.eq.f32.partialorder %v4020, 8.507059e+37
    %v4022 = vand.u32 %v4010, 2147483648
    %v4023 = vor.u32 1.1754944e-38, %v4022
    %v4024 = vsel %vm4021, %v4023, %v4019
    %v4025 = vmul.f32 1.0, %v4024
    %v4026 = vxor.u32 %v4004, 2147483648
    %v4027 = vmul.f32 %v4026, 1.442695
    %v4028 = vpow.pop %v4027
    %v4029 = vadd.f32 %v4028, 1.0
    %v4030 = vrcp.pop %v4029
    %v4031 = vmul.f32 %v4029, %v4030
    %v4032 = vsub.f32 1.0, %v4031
    %v4033 = vmul.f32 %v4030, %v4032
    %v4034 = vadd.f32 %v4030, %v4033
    %vm4035 = vweird.f32 %v4029
    %vm4036 = vweird.f32 %v4030
    %vm4037 = vmor %vm4035, %vm4036
    %v4038 = vsel %vm4037, %v4030, %v4034
    %v4039 = vand.u32 2147483647, %v4029
    %vm4040 = vcmp.eq.f32.partialorder %v4039, 8.507059e+37
    %v4041 = vand.u32 %v4029, 2147483648
    %v4042 = vor.u32 1.1754944e-38, %v4041
    %v4043 = vsel %vm4040, %v4042, %v4038
    %v4044 = vmul.f32 1.0, %v4043
    %v4045 = vtanh.pop %v4005
    %v4046 = vxor.u32 %v4006, 2147483648
    %v4047 = vmul.f32 %v4046, 1.442695
    %v4048 = vpow.pop %v4047
    %v4049 = vadd.f32 %v4048, 1.0
    %v4050 = vrcp.pop %v4049
    %v4051 = vmul.f32 %v4049, %v4050
    %v4052 = vsub.f32 1.0, %v4051
    %v4053 = vmul.f32 %v4050, %v4052
    %v4054 = vadd.f32 %v4050, %v4053
    %vm4055 = vweird.f32 %v4049
    %vm4056 = vweird.f32 %v4050
    %vm4057 = vmor %vm4055, %vm4056
    %v4058 = vsel %vm4057, %v4050, %v4054
    %v4059 = vand.u32 2147483647, %v4049
    %vm4060 = vcmp.eq.f32.partialorder %v4059, 8.507059e+37
    %v4061 = vand.u32 %v4049, 2147483648
    %v4062 = vor.u32 1.1754944e-38, %v4061
    %v4063 = vsel %vm4060, %v4062, %v4058
    %v4064 = vmul.f32 1.0, %v4063
    %v4065 = vmul.f32 %v4044, %v3851
    %v4066 = vmul.f32 %v4025, %v4045
    %v4067 = vadd.f32 %v4065, %v4066
    %v4068 = vtanh.pop %v4067
    %v4069 = vmul.f32 %v4064, %v4068
    %s4070 = sadd.s32 %s461, 15
    %v4071 = vstv %s4070
    %vm4072 = vcmp.lt.s32.totalorder %v4071, %v460
    %v4073 = vsel %vm4072, %v4069, 0.0
    %s4074 = scalar_lea.vmem %s5, 120
    %4075 = vst [vmem:[%s4074] sm:$0xff] %v4073
    %v4076 = vsel %vm4072, %v4069, %v3850
    %v4077 = vsel %vm4072, %v4067, %v3851
    %4078 = vst [vmem:[#allocation3] sm:$0xff] %v4076
    %4079 = vst [vmem:[#allocation4] sm:$0xff] %v4077
    // Predicated region
    $region30: #{pointer_net_forward.2} parent=1 // pred_check
      %p4080 = pneg %p39
    $region31: #{pointer_net_forward.2} parent=1 // pred_check_branch
      %4082 = sbr.rel (%p4080) target = $region33
    $region32: #{pointer_net_forward.2} parent=1 // pred_region
      %4083 = vst [vmem:[%s6] sm:$0xff] %v4076
      %4084 = vst [vmem:[%s7] sm:$0xff] %v4077
    $region33: #{pointer_net_forward.2} parent=1 // pred_fallthru
      _
    // Predicated region
    $region34: #{pointer_net_forward.2} parent=1 // pred_check
      _
    $region35: #{pointer_net_forward.2} parent=1 // pred_check_branch
      %4086 = sbr.rel (0) target = $region37
    $region36: #{pointer_net_forward.2} parent=1 // pred_region
      _
    $region37: #{pointer_net_forward.2} parent=1 // pred_fallthru
      _
    // Predicated region
    $region38: #{pointer_net_forward.2} parent=1 // pred_check
      _
    $region39: #{pointer_net_forward.2} parent=1 // pred_check_branch
      %4088 = sbr.rel (0) target = $region41
    $region40: #{pointer_net_forward.2} parent=1 // pred_region
      _
    $region41: #{pointer_net_forward.2} parent=1 // pred_fallthru
      _
    // Predicated region
    $region42: #{pointer_net_forward.2} parent=1 // pred_check
      _
    $region43: #{pointer_net_forward.2} parent=1 // pred_check_branch
      %4090 = sbr.rel (0) target = $region45
    $region44: #{pointer_net_forward.2} parent=1 // pred_region
      _
    $region45: #{pointer_net_forward.2} parent=1 // pred_fallthru
      _
    // Predicated region
    $region46: #{pointer_net_forward.2} parent=1 // pred_check
      _
    $region47: #{pointer_net_forward.2} parent=1 // pred_check_branch
      %4092 = sbr.rel (0) target = $region49
    $region48: #{pointer_net_forward.2} parent=1 // pred_region
      _
    $region49: #{pointer_net_forward.2} parent=1 // pred_fallthru
      _
    // Predicated region
    $region50: #{pointer_net_forward.2} parent=1 // pred_check
      _
    $region51: #{pointer_net_forward.2} parent=1 // pred_check_branch
      %4094 = sbr.rel (0) target = $region53
    $region52: #{pointer_net_forward.2} parent=1 // pred_region
      _
    $region53: #{pointer_net_forward.2} parent=1 // pred_fallthru
      _
    // Predicated region
    $region54: #{pointer_net_forward.2} parent=1 // pred_check
      _
    $region55: #{pointer_net_forward.2} parent=1 // pred_check_branch
      %4096 = sbr.rel (0) target = $region57
    $region56: #{pointer_net_forward.2} parent=1 // pred_region
      _
    $region57: #{pointer_net_forward.2} parent=1 // pred_fallthru
      _
    %4097 = vsyncpa [#allocation6], 1

</llo_original>
